<compile_context>
chip_gen: v7x
topology: tpu7x:2x2x1
jax: 0.10.0
libtpu: 0.0.40
codegen_flags: <defaults>
</compile_context>

<pallas_src>
import math

import numpy as np
import jax
import jax.numpy as jnp
from jax import lax
from jax.experimental import pallas as pl
from jax.experimental.pallas import tpu as pltpu

EPS = 1e-5
INV_SQRT2 = 1.0 / math.sqrt(2.0)


# ---------------------------------------------------------------------------
# Trace-time constant construction (host / numpy — runs ONCE at init)
# ---------------------------------------------------------------------------
def _out_hw(hw):
    # Conv2d(kernel=3, stride=2, padding=1) output spatial size.
    return ((hw[0] - 1) // 2 + 1, (hw[1] - 1) // 2 + 1)


def _make_select_matrices(n, h, w):
    """0/1 gather operators for a 3x3 / stride-2 / pad-1 conv.

    S[t] has shape (n*ho*wo, n*h*w) with S[t][m, j] = 1 iff flattened input pixel j
    is the (dy, dx) tap (t = dy*3 + dx) of flattened output pixel m.  Out-of-bounds
    taps are all-zero rows, reproducing zero padding exactly.
    """
    ho, wo = _out_hw((h, w))
    s = np.zeros((9, n * ho * wo, n * h * w), np.float32)
    for nn in range(n):
        for oy in range(ho):
            for ox in range(wo):
                m = (nn * ho + oy) * wo + ox
                for dy in range(3):
                    for dx in range(3):
                        iy, ix = 2 * oy - 1 + dy, 2 * ox - 1 + dx
                        if 0 <= iy < h and 0 <= ix < w:
                            s[dy * 3 + dx, m, (nn * h + iy) * w + ix] = 1.0
    return s


def _conv_w9_np(w_oihw):
    """(Cout, Cin, 3, 3) -> (9, Cin, Cout); tap-major (t = dy*3 + dx)."""
    w = np.asarray(w_oihw, np.float32)
    return np.transpose(w, (2, 3, 1, 0)).reshape(9, w.shape[1], w.shape[0])


def _fullblock(shape):
    nd = len(shape)
    return pl.BlockSpec(shape, lambda i, _n=nd: (0,) * _n)


# ---------------------------------------------------------------------------
# Per-call input fusion (tiny): im2col of the raw input for stage 1 only.
# ---------------------------------------------------------------------------
def _im2col_3x3_s2_p1(x_nhwc):
    """(N, H, W, C) -> (N*Ho*Wo, 9*C); patch-column order (dy, dx, cin)."""
    n, h, w, c = x_nhwc.shape
    ho, wo = _out_hw((h, w))
    xp = jnp.pad(x_nhwc, ((0, 0), (1, 1), (1, 1), (0, 0)))
    cols = []
    for dy in range(3):
        for dx in range(3):
            cols.append(xp[:, dy:dy + 2 * ho:2, dx:dx + 2 * wo:2, :])
    return jnp.concatenate(cols, axis=-1).reshape(n * ho * wo, 9 * c)


# ---------------------------------------------------------------------------
# Builder: packs all constants ONCE and returns a jit-able forward(x) function.
# ---------------------------------------------------------------------------
def make_encoder_forward(params, *, batch, height, width):
    n = batch
    hw1 = _out_hw((height, width))   # after downscale
    hw2 = _out_hw(hw1)               # after top_layer
    hw3 = _out_hw(hw2)               # after middle_layer
    hw4 = _out_hw(hw3)               # after bottom_layer

    rows1 = n * hw1[0] * hw1[1]
    rows2 = n * hw2[0] * hw2[1]
    rows3 = n * hw3[0] * hw3[1]
    rows4 = n * hw4[0] * hw4[1]

    C0, C1, C2, C3, C4 = 3, 32, 64, 128, 256     # module channel sizes
    P, P4 = 128, 256                             # per-stage lane-padded widths
    K1P = 32                                     # stage-1 im2col K (27) padded

    top_d = params["w_rtop"].shape[0]
    mid_d = params["w_rmid"].shape[0]
    bot_d = params["w_rbot"].shape[0]
    assert max(top_d, mid_d, bot_d) <= P

    # ---- constant operand packing (hoisted; runs once) ----------------------
    W2 = _conv_w9_np(params["w_top"])    # (9, 32, 64)
    W3 = _conv_w9_np(params["w_mid"])    # (9, 64, 128)
    W4 = _conv_w9_np(params["w_bot"])    # (9, 128, 256)

    wbig_w = 9 * P4 + P                  # 2432
    w_big = np.zeros((3 * P, wbig_w), np.float32)
    for t in range(9):
        w_big[0:C1, t * P:t * P + C2] = W2[t]                       # stage-2 taps
        w_big[P:P + C2, t * P:t * P + C3] = W3[t]                   # stage-3 taps
        w_big[2 * P:2 * P + C3, t * P4:t * P4 + C4] = W4[t]         # stage-4 taps
    # refilters fused into the following stage's weight matmul (extra lane cols):
    wrt = np.asarray(params["w_rtop"], np.float32).reshape(top_d, C2).T   # (64, top_d)
    wrm = np.asarray(params["w_rmid"], np.float32).reshape(mid_d, C3).T   # (128, mid_d)
    w_big[P:P + C2, 9 * P:9 * P + top_d] = wrt
    w_big[2 * P:2 * P + C3, 9 * P4:9 * P4 + mid_d] = wrm

    w1 = np.transpose(np.asarray(params["w_down"], np.float32),
                      (2, 3, 1, 0)).reshape(9 * C0, C1)                    # (27, 32)
    wrb = np.asarray(params["w_rbot"], np.float32).reshape(bot_d, C4).T    # (256, bot_d)
    w_small = np.zeros((K1P + C4, P), np.float32)                          # (288, 128)
    w_small[0:9 * C0, 0:C1] = w1
    w_small[K1P:K1P + C4, 0:bot_d] = wrb

    prm = np.zeros((16, P4), np.float32)
    def _setrow(i, v):
        v = np.asarray(v, np.float32)
        prm[i, :v.shape[0]] = v
    _setrow(0, params["g_down"]); _setrow(1, params["b_down"])
    _setrow(2, params["g_top"]);  _setrow(3, params["b_top"])
    _setrow(4, params["g_mid"]);  _setrow(5, params["b_mid"])
    _setrow(6, params["g_bot"]);  _setrow(7, params["b_bot"])
    _setrow(8, params["b_rtop"]); _setrow(9, params["b_rmid"]); _setrow(10, params["b_rbot"])

    s2 = _make_select_matrices(n, *hw1)   # (9, rows2, rows1)
    s3 = _make_select_matrices(n, *hw2)   # (9, rows3, rows2)
    s4 = _make_select_matrices(n, *hw3)   # (9, rows4, rows3)

    out_rows = rows2 + rows3 + rows4
    out_rows_pad = ((out_rows + 7) // 8) * 8

    w_big = jnp.asarray(w_big)
    w_small = jnp.asarray(w_small)
    prm_j = jnp.asarray(prm)
    s2 = jnp.asarray(s2)
    s3 = jnp.asarray(s3)
    s4 = jnp.asarray(s4)

    # ---- the single fused kernel (closes over static Python shape ints) -----
    def kernel(p1_ref, wbig_ref, wsml_ref, s2_ref, s3_ref, s4_ref, prm_ref, out_ref):
        def gelu_bn(acc, row):
            # exact GELU (nn.GELU default) + training-mode BatchNorm2d over rows.
            act = 0.5 * acc * (1.0 + lax.erf(acc * INV_SQRT2))
            mean = jnp.mean(act, axis=0, keepdims=True)
            var = jnp.mean(jnp.square(act - mean), axis=0, keepdims=True)
            c = act.shape[1]
            return ((act - mean) * lax.rsqrt(var + EPS)
                    * prm_ref[row:row + 1, 0:c] + prm_ref[row + 1:row + 2, 0:c])

        def conv_taps(x2d, w_cat, s_ref, cp):
            # One wide weight matmul, then 9 select (gather) matmuls on
            # lane-aligned static slices — all on the MXU.
            y = jnp.dot(x2d, w_cat, preferred_element_type=jnp.float32)
            acc = jnp.dot(s_ref[0], y[:, 0:cp], preferred_element_type=jnp.float32)
            for t in range(1, 9):  # statically unrolled
                acc = acc + jnp.dot(s_ref[t], y[:, t * cp:(t + 1) * cp],
                                    preferred_element_type=jnp.float32)
            return acc, y

        out_ref[...] = jnp.zeros((out_rows_pad, P), jnp.float32)

        # Stage 1 (downscale): pre-formed im2col patches -> single matmul.
        a1 = gelu_bn(jnp.dot(p1_ref[...], wsml_ref[0:K1P, :],
                             preferred_element_type=jnp.float32), 0)        # (rows1, 128)

        # Stage 2 (top_layer).
        acc2, _ = conv_taps(a1, wbig_ref[0:P, 0:9 * P], s2_ref, P)
        a2 = gelu_bn(acc2, 2)                                               # (rows2, 128)

        # Stage 3 (middle_layer) — top_refilter fused into its weight matmul.
        acc3, y3 = conv_taps(a2, wbig_ref[P:2 * P, 0:9 * P + P], s3_ref, P)
        a3 = gelu_bn(acc3, 4)                                               # (rows3, 128)
        out_ref[0:rows2, :] = y3[:, 9 * P:9 * P + P] + prm_ref[8:9, 0:P]

        # Stage 4 (bottom_layer) — middle_refilter fused into its weight matmul.
        acc4, y4 = conv_taps(a3, wbig_ref[2 * P:3 * P, 0:9 * P4 + P], s4_ref, P4)
        a4 = gelu_bn(acc4, 6)                                               # (rows4, 256)
        out_ref[rows2:rows2 + rows3, :] = y4[:, 9 * P4:9 * P4 + P] + prm_ref[9:10, 0:P]

        # bottom_refilter (only non-fused 1x1).
        out_ref[rows2 + rows3:rows2 + rows3 + rows4, :] = (
            jnp.dot(a4, wsml_ref[K1P:K1P + C4, :], preferred_element_type=jnp.float32)
            + prm_ref[10:11, 0:P])

    out_shape = jax.ShapeDtypeStruct((out_rows_pad, P), jnp.float32)

    # ---- per-call path: tiny im2col fusion + one pallas_call + output slicing
    def forward(x_nchw):
        x_nhwc = jnp.transpose(x_nchw, (0, 2, 3, 1)).astype(jnp.float32)
        patches = _im2col_3x3_s2_p1(x_nhwc)                        # (rows1, 27)
        patches = jnp.pad(patches, ((0, 0), (0, K1P - 9 * C0)))    # (rows1, 32)

        operands = (patches, w_big, w_small, s2, s3, s4, prm_j)
        out = pl.pallas_call(
            kernel,
            out_shape=out_shape,
            grid=(1,),  # whole model in one grid step; all operands VMEM-resident
            in_specs=[_fullblock(op.shape) for op in operands],
            out_specs=_fullblock((out_rows_pad, P)),
            compiler_params=pltpu.CompilerParams(
                dimension_semantics=("arbitrary",),
                vmem_limit_bytes=32 * 1024 * 1024,  # guardrail; footprint ~10 MiB
            ),
        )(*operands)

        def unpack(r0, rows, cdim, hw):
            y = out[r0:r0 + rows, 0:cdim].reshape(n, hw[0], hw[1], cdim)
            return jnp.transpose(y, (0, 3, 1, 2))  # back to NCHW

        return (unpack(0, rows2, top_d, hw2),
                unpack(rows2, rows3, mid_d, hw3),
                unpack(rows2 + rows3, rows4, bot_d, hw4))

    return forward


# ---------------------------------------------------------------------------
# Parameters (deterministic, synthetic) and pure-XLA reference
# ---------------------------------------------------------------------------
def init_params(key, top_dims, middle_dims, bottom_dims):
    ks = jax.random.split(key, 18)

    def conv_w(k, cout, cin, kh, kw):
        fan_in = cin * kh * kw
        return jax.random.normal(k, (cout, cin, kh, kw), jnp.float32) * math.sqrt(2.0 / fan_in)

    p = {}
    p["w_down"] = conv_w(ks[0], 32, 3, 3, 3)
    p["w_top"] = conv_w(ks[1], 64, 32, 3, 3)
    p["w_mid"] = conv_w(ks[2], 128, 64, 3, 3)
    p["w_bot"] = conv_w(ks[3], 256, 128, 3, 3)
    for name, c, k_g, k_b in (("down", 32, ks[4], ks[5]), ("top", 64, ks[6], ks[7]),
                              ("mid", 128, ks[8], ks[9]), ("bot", 256, ks[10], ks[11])):
        p[f"g_{name}"] = 1.0 + 0.1 * jax.random.normal(k_g, (c,), jnp.float32)
        p[f"b_{name}"] = 0.1 * jax.random.normal(k_b, (c,), jnp.float32)
    p["w_rtop"] = conv_w(ks[12], top_dims, 64, 1, 1)
    p["b_rtop"] = 0.05 * jax.random.normal(ks[13], (top_dims,), jnp.float32)
    p["w_rmid"] = conv_w(ks[14], middle_dims, 128, 1, 1)
    p["b_rmid"] = 0.05 * jax.random.normal(ks[15], (middle_dims,), jnp.float32)
    p["w_rbot"] = conv_w(ks[16], bottom_dims, 256, 1, 1)
    p["b_rbot"] = 0.05 * jax.random.normal(ks[17], (bottom_dims,), jnp.float32)
    return p


def _ref_forward(params, x_nchw):
    """Independent pure-XLA reference (lax.conv) for numerical validation."""
    def block(x, wgt, g, b):
        y = lax.conv_general_dilated(x, wgt, (2, 2), ((1, 1), (1, 1)),
                                     dimension_numbers=("NCHW", "OIHW", "NCHW"))
        y = 0.5 * y * (1.0 + lax.erf(y * INV_SQRT2))
        mean = jnp.mean(y, axis=(0, 2, 3), keepdims=True)
        var = jnp.mean(jnp.square(y - mean), axis=(0, 2, 3), keepdims=True)
        return (y - mean) * lax.rsqrt(var + EPS) * g.reshape(1, -1, 1, 1) + b.reshape(1, -1, 1, 1)

    def refilter(x, wgt, b):
        y = lax.conv_general_dilated(x, wgt, (1, 1), ((0, 0), (0, 0)),
                                     dimension_numbers=("NCHW", "OIHW", "NCHW"))
        return y + b.reshape(1, -1, 1, 1)

    d = block(x_nchw, params["w_down"], params["g_down"], params["b_down"])
    t = block(d, params["w_top"], params["g_top"], params["b_top"])
    m = block(t, params["w_mid"], params["g_mid"], params["b_mid"])
    bt = block(m, params["w_bot"], params["g_bot"], params["b_bot"])
    return (refilter(t, params["w_rtop"], params["b_rtop"]),
            refilter(m, params["w_rmid"], params["b_rmid"]),
            refilter(bt, params["w_rbot"], params["b_rbot"]))


if __name__ == "__main__":
    key = jax.random.PRNGKey(0)
    k_x, k_p = jax.random.split(key)
    top_dims, middle_dims, bottom_dims = 16, 32, 64
    params = init_params(k_p, top_dims, middle_dims, bottom_dims)
    x = jax.random.normal(k_x, (2, 3, 16, 16), jnp.float32)  # NCHW input

    # All constant packing / select-matrix construction happens once here.
    fwd = jax.jit(make_encoder_forward(params, batch=2, height=16, width=16))

    top_out, mid_out, bot_out = fwd(x)
    jax.block_until_ready((top_out, mid_out, bot_out))

    assert top_out.shape == (2, top_dims, 4, 4), top_out.shape
    assert mid_out.shape == (2, middle_dims, 2, 2), mid_out.shape
    assert bot_out.shape == (2, bottom_dims, 1, 1), bot_out.shape

    # Numerical check against an independent pure-XLA reference.  Tolerance
    # tightened vs v2 (all matmuls stay f32); stage-4 BatchNorm over only 2 rows
    # can amplify tiny rounding differences, hence 2e-2 rather than ~1e-4.
    refs = jax.jit(_ref_forward)(params, x)
    for got, want in zip((top_out, mid_out, bot_out), refs):
        err = float(jnp.max(jnp.abs(got - want)))
        assert bool(jnp.allclose(got, want, atol=2e-2, rtol=2e-2)), err

    print("KERNEL_OK")
</pallas_src>

<mosaic_0001>
module attributes {stable_mosaic.version = 11 : i64} {
  func.func @kernel(%arg0: i32, %arg1: memref<128x32xf32, #tpu.memory_space<vmem>>, %arg2: memref<384x2432xf32, #tpu.memory_space<vmem>>, %arg3: memref<288x128xf32, #tpu.memory_space<vmem>>, %arg4: memref<9x32x128xf32, #tpu.memory_space<vmem>>, %arg5: memref<9x8x32xf32, #tpu.memory_space<vmem>>, %arg6: memref<9x2x8xf32, #tpu.memory_space<vmem>>, %arg7: memref<16x256xf32, #tpu.memory_space<vmem>>, %arg8: memref<48x128xf32, #tpu.memory_space<vmem>>) attributes {dimension_semantics = [#tpu.dimension_semantics<arbitrary>], iteration_bounds = array<i64: 1>, scalar_prefetch = 0 : i64, scratch_operands = 0 : i64, tpu.core_type = #tpu.core_type<tc>, window_params = [{pipeline_mode = #tpu.pipeline_mode<synchronous>, transform_indices = @transform_0, window_bounds = array<i64: 128, 32>}, {pipeline_mode = #tpu.pipeline_mode<synchronous>, transform_indices = @transform_1, window_bounds = array<i64: 384, 2432>}, {pipeline_mode = #tpu.pipeline_mode<synchronous>, transform_indices = @transform_2, window_bounds = array<i64: 288, 128>}, {pipeline_mode = #tpu.pipeline_mode<synchronous>, transform_indices = @transform_3, window_bounds = array<i64: 9, 32, 128>}, {pipeline_mode = #tpu.pipeline_mode<synchronous>, transform_indices = @transform_4, window_bounds = array<i64: 9, 8, 32>}, {pipeline_mode = #tpu.pipeline_mode<synchronous>, transform_indices = @transform_5, window_bounds = array<i64: 9, 2, 8>}, {pipeline_mode = #tpu.pipeline_mode<synchronous>, transform_indices = @transform_6, window_bounds = array<i64: 16, 256>}, {pipeline_mode = #tpu.pipeline_mode<synchronous>, transform_indices = @transform_7, window_bounds = array<i64: 48, 128>}]} {
    %cst = arith.constant 0.000000e+00 : f32
    %0 = vector.broadcast %cst : f32 to vector<48x128xf32>
    %c0 = arith.constant 0 : index
    %c0_0 = arith.constant 0 : index
    %1 = vector.load %arg8[%c0, %c0_0] : memref<48x128xf32, #tpu.memory_space<vmem>>, vector<48x128xf32>
    tpu.vector_store %arg8[%c0, %c0_0], %0 {strides = array<i32>} : memref<48x128xf32, #tpu.memory_space<vmem>>, vector<48x128xf32>,
    %c0_1 = arith.constant 0 : index
    %c0_2 = arith.constant 0 : index
    %2 = vector.load %arg1[%c0_1, %c0_2] : memref<128x32xf32, #tpu.memory_space<vmem>>, vector<128x32xf32>
    %c0_3 = arith.constant 0 : index
    %c0_4 = arith.constant 0 : index
    %3 = vector.load %arg3[%c0_3, %c0_4] : memref<288x128xf32, #tpu.memory_space<vmem>>, vector<32x128xf32>
    %cst_5 = arith.constant dense<0.000000e+00> : vector<128x128xf32>
    %4 = tpu.matmul %2, %3, %cst_5 {dimension_numbers = #tpu.dot_dimension_numbers<[1], [0], [0], [1], [0, 0, 1, 1], [], []>} : vector<128x32xf32>, vector<32x128xf32>, vector<128x128xf32> -> vector<128x128xf32>
    %cst_6 = arith.constant 5.000000e-01 : f32
    %5 = vector.broadcast %cst_6 : f32 to vector<128x128xf32>
    %6 = arith.mulf %5, %4 : vector<128x128xf32>
    %cst_7 = arith.constant 0.707106769 : f32
    %7 = vector.broadcast %cst_7 : f32 to vector<128x128xf32>
    %8 = arith.mulf %4, %7 : vector<128x128xf32>
    %9 = math.erf %8 : vector<128x128xf32>
    %cst_8 = arith.constant 1.000000e+00 : f32
    %10 = vector.broadcast %cst_8 : f32 to vector<128x128xf32>
    %11 = arith.addf %10, %9 : vector<128x128xf32>
    %12 = arith.mulf %6, %11 : vector<128x128xf32>
    %cst_9 = arith.constant dense<0.000000e+00> : vector<128xf32>
    %13 = vector.multi_reduction <add>, %12, %cst_9 [0] : vector<128x128xf32> to vector<128xf32>
    %14 = vector.shape_cast %13 : vector<128xf32> to vector<1x128xf32>
    %cst_10 = arith.constant 1.280000e+02 : f32
    %15 = vector.broadcast %cst_10 : f32 to vector<1x128xf32>
    %16 = arith.divf %14, %15 : vector<1x128xf32>
    %17 = vector.broadcast %16 : vector<1x128xf32> to vector<128x128xf32>
    %18 = arith.subf %12, %17 : vector<128x128xf32>
    %19 = arith.mulf %18, %18 : vector<128x128xf32>
    %cst_11 = arith.constant dense<0.000000e+00> : vector<128xf32>
    %20 = vector.multi_reduction <add>, %19, %cst_11 [0] : vector<128x128xf32> to vector<128xf32>
    %21 = vector.shape_cast %20 : vector<128xf32> to vector<1x128xf32>
    %cst_12 = arith.constant 1.280000e+02 : f32
    %22 = vector.broadcast %cst_12 : f32 to vector<1x128xf32>
    %23 = arith.divf %21, %22 : vector<1x128xf32>
    %24 = vector.broadcast %16 : vector<1x128xf32> to vector<128x128xf32>
    %25 = arith.subf %12, %24 : vector<128x128xf32>
    %cst_13 = arith.constant 9.99999974E-6 : f32
    %26 = vector.broadcast %cst_13 : f32 to vector<1x128xf32>
    %27 = arith.addf %23, %26 : vector<1x128xf32>
    %28 = math.rsqrt %27 : vector<1x128xf32>
    %29 = vector.broadcast %28 : vector<1x128xf32> to vector<128x128xf32>
    %30 = arith.mulf %25, %29 : vector<128x128xf32>
    %c0_14 = arith.constant 0 : index
    %c0_15 = arith.constant 0 : index
    %31 = vector.load %arg7[%c0_14, %c0_15] : memref<16x256xf32, #tpu.memory_space<vmem>>, vector<1x128xf32>
    %32 = vector.broadcast %31 : vector<1x128xf32> to vector<128x128xf32>
    %33 = arith.mulf %30, %32 : vector<128x128xf32>
    %c1 = arith.constant 1 : index
    %c0_16 = arith.constant 0 : index
    %34 = vector.load %arg7[%c1, %c0_16] : memref<16x256xf32, #tpu.memory_space<vmem>>, vector<1x128xf32>
    %35 = vector.broadcast %34 : vector<1x128xf32> to vector<128x128xf32>
    %36 = arith.addf %33, %35 : vector<128x128xf32>
    %c0_17 = arith.constant 0 : index
    %c0_18 = arith.constant 0 : index
    %37 = vector.load %arg2[%c0_17, %c0_18] : memref<384x2432xf32, #tpu.memory_space<vmem>>, vector<128x1152xf32>
    %cst_19 = arith.constant dense<0.000000e+00> : vector<128x1152xf32>
    %38 = tpu.matmul %36, %37, %cst_19 {dimension_numbers = #tpu.dot_dimension_numbers<[1], [0], [0], [1], [0, 0, 1, 1], [], []>} : vector<128x128xf32>, vector<128x1152xf32>, vector<128x1152xf32> -> vector<128x1152xf32>
    %c0_20 = arith.constant 0 : index
    %c0_21 = arith.constant 0 : index
    %c0_22 = arith.constant 0 : index
    %39 = vector.load %arg4[%c0_20, %c0_21, %c0_22] : memref<9x32x128xf32, #tpu.memory_space<vmem>>, vector<1x32x128xf32>
    %40 = vector.shape_cast %39 : vector<1x32x128xf32> to vector<32x128xf32>
    %41 = vector.extract_strided_slice %38 {offsets = [0, 0], sizes = [128, 128], strides = [1, 1]} : vector<128x1152xf32> to vector<128x128xf32>
    %cst_23 = arith.constant dense<0.000000e+00> : vector<32x128xf32>
    %42 = tpu.matmul %40, %41, %cst_23 {dimension_numbers = #tpu.dot_dimension_numbers<[1], [0], [0], [1], [0, 0, 1, 1], [], []>} : vector<32x128xf32>, vector<128x128xf32>, vector<32x128xf32> -> vector<32x128xf32>
    %c1_24 = arith.constant 1 : index
    %c0_25 = arith.constant 0 : index
    %c0_26 = arith.constant 0 : index
    %43 = vector.load %arg4[%c1_24, %c0_25, %c0_26] : memref<9x32x128xf32, #tpu.memory_space<vmem>>, vector<1x32x128xf32>
    %44 = vector.shape_cast %43 : vector<1x32x128xf32> to vector<32x128xf32>
    %45 = vector.extract_strided_slice %38 {offsets = [0, 128], sizes = [128, 128], strides = [1, 1]} : vector<128x1152xf32> to vector<128x128xf32>
    %cst_27 = arith.constant dense<0.000000e+00> : vector<32x128xf32>
    %46 = tpu.matmul %44, %45, %cst_27 {dimension_numbers = #tpu.dot_dimension_numbers<[1], [0], [0], [1], [0, 0, 1, 1], [], []>} : vector<32x128xf32>, vector<128x128xf32>, vector<32x128xf32> -> vector<32x128xf32>
    %47 = arith.addf %42, %46 : vector<32x128xf32>
    %c2 = arith.constant 2 : index
    %c0_28 = arith.constant 0 : index
    %c0_29 = arith.constant 0 : index
    %48 = vector.load %arg4[%c2, %c0_28, %c0_29] : memref<9x32x128xf32, #tpu.memory_space<vmem>>, vector<1x32x128xf32>
    %49 = vector.shape_cast %48 : vector<1x32x128xf32> to vector<32x128xf32>
    %50 = vector.extract_strided_slice %38 {offsets = [0, 256], sizes = [128, 128], strides = [1, 1]} : vector<128x1152xf32> to vector<128x128xf32>
    %cst_30 = arith.constant dense<0.000000e+00> : vector<32x128xf32>
    %51 = tpu.matmul %49, %50, %cst_30 {dimension_numbers = #tpu.dot_dimension_numbers<[1], [0], [0], [1], [0, 0, 1, 1], [], []>} : vector<32x128xf32>, vector<128x128xf32>, vector<32x128xf32> -> vector<32x128xf32>
    %52 = arith.addf %47, %51 : vector<32x128xf32>
    %c3 = arith.constant 3 : index
    %c0_31 = arith.constant 0 : index
    %c0_32 = arith.constant 0 : index
    %53 = vector.load %arg4[%c3, %c0_31, %c0_32] : memref<9x32x128xf32, #tpu.memory_space<vmem>>, vector<1x32x128xf32>
    %54 = vector.shape_cast %53 : vector<1x32x128xf32> to vector<32x128xf32>
    %55 = vector.extract_strided_slice %38 {offsets = [0, 384], sizes = [128, 128], strides = [1, 1]} : vector<128x1152xf32> to vector<128x128xf32>
    %cst_33 = arith.constant dense<0.000000e+00> : vector<32x128xf32>
    %56 = tpu.matmul %54, %55, %cst_33 {dimension_numbers = #tpu.dot_dimension_numbers<[1], [0], [0], [1], [0, 0, 1, 1], [], []>} : vector<32x128xf32>, vector<128x128xf32>, vector<32x128xf32> -> vector<32x128xf32>
    %57 = arith.addf %52, %56 : vector<32x128xf32>
    %c4 = arith.constant 4 : index
    %c0_34 = arith.constant 0 : index
    %c0_35 = arith.constant 0 : index
    %58 = vector.load %arg4[%c4, %c0_34, %c0_35] : memref<9x32x128xf32, #tpu.memory_space<vmem>>, vector<1x32x128xf32>
    %59 = vector.shape_cast %58 : vector<1x32x128xf32> to vector<32x128xf32>
    %60 = vector.extract_strided_slice %38 {offsets = [0, 512], sizes = [128, 128], strides = [1, 1]} : vector<128x1152xf32> to vector<128x128xf32>
    %cst_36 = arith.constant dense<0.000000e+00> : vector<32x128xf32>
    %61 = tpu.matmul %59, %60, %cst_36 {dimension_numbers = #tpu.dot_dimension_numbers<[1], [0], [0], [1], [0, 0, 1, 1], [], []>} : vector<32x128xf32>, vector<128x128xf32>, vector<32x128xf32> -> vector<32x128xf32>
    %62 = arith.addf %57, %61 : vector<32x128xf32>
    %c5 = arith.constant 5 : index
    %c0_37 = arith.constant 0 : index
    %c0_38 = arith.constant 0 : index
    %63 = vector.load %arg4[%c5, %c0_37, %c0_38] : memref<9x32x128xf32, #tpu.memory_space<vmem>>, vector<1x32x128xf32>
    %64 = vector.shape_cast %63 : vector<1x32x128xf32> to vector<32x128xf32>
    %65 = vector.extract_strided_slice %38 {offsets = [0, 640], sizes = [128, 128], strides = [1, 1]} : vector<128x1152xf32> to vector<128x128xf32>
    %cst_39 = arith.constant dense<0.000000e+00> : vector<32x128xf32>
    %66 = tpu.matmul %64, %65, %cst_39 {dimension_numbers = #tpu.dot_dimension_numbers<[1], [0], [0], [1], [0, 0, 1, 1], [], []>} : vector<32x128xf32>, vector<128x128xf32>, vector<32x128xf32> -> vector<32x128xf32>
    %67 = arith.addf %62, %66 : vector<32x128xf32>
    %c6 = arith.constant 6 : index
    %c0_40 = arith.constant 0 : index
    %c0_41 = arith.constant 0 : index
    %68 = vector.load %arg4[%c6, %c0_40, %c0_41] : memref<9x32x128xf32, #tpu.memory_space<vmem>>, vector<1x32x128xf32>
    %69 = vector.shape_cast %68 : vector<1x32x128xf32> to vector<32x128xf32>
    %70 = vector.extract_strided_slice %38 {offsets = [0, 768], sizes = [128, 128], strides = [1, 1]} : vector<128x1152xf32> to vector<128x128xf32>
    %cst_42 = arith.constant dense<0.000000e+00> : vector<32x128xf32>
    %71 = tpu.matmul %69, %70, %cst_42 {dimension_numbers = #tpu.dot_dimension_numbers<[1], [0], [0], [1], [0, 0, 1, 1], [], []>} : vector<32x128xf32>, vector<128x128xf32>, vector<32x128xf32> -> vector<32x128xf32>
    %72 = arith.addf %67, %71 : vector<32x128xf32>
    %c7 = arith.constant 7 : index
    %c0_43 = arith.constant 0 : index
    %c0_44 = arith.constant 0 : index
    %73 = vector.load %arg4[%c7, %c0_43, %c0_44] : memref<9x32x128xf32, #tpu.memory_space<vmem>>, vector<1x32x128xf32>
    %74 = vector.shape_cast %73 : vector<1x32x128xf32> to vector<32x128xf32>
    %75 = vector.extract_strided_slice %38 {offsets = [0, 896], sizes = [128, 128], strides = [1, 1]} : vector<128x1152xf32> to vector<128x128xf32>
    %cst_45 = arith.constant dense<0.000000e+00> : vector<32x128xf32>
    %76 = tpu.matmul %74, %75, %cst_45 {dimension_numbers = #tpu.dot_dimension_numbers<[1], [0], [0], [1], [0, 0, 1, 1], [], []>} : vector<32x128xf32>, vector<128x128xf32>, vector<32x128xf32> -> vector<32x128xf32>
    %77 = arith.addf %72, %76 : vector<32x128xf32>
    %c8 = arith.constant 8 : index
    %c0_46 = arith.constant 0 : index
    %c0_47 = arith.constant 0 : index
    %78 = vector.load %arg4[%c8, %c0_46, %c0_47] : memref<9x32x128xf32, #tpu.memory_space<vmem>>, vector<1x32x128xf32>
    %79 = vector.shape_cast %78 : vector<1x32x128xf32> to vector<32x128xf32>
    %80 = vector.extract_strided_slice %38 {offsets = [0, 1024], sizes = [128, 128], strides = [1, 1]} : vector<128x1152xf32> to vector<128x128xf32>
    %cst_48 = arith.constant dense<0.000000e+00> : vector<32x128xf32>
    %81 = tpu.matmul %79, %80, %cst_48 {dimension_numbers = #tpu.dot_dimension_numbers<[1], [0], [0], [1], [0, 0, 1, 1], [], []>} : vector<32x128xf32>, vector<128x128xf32>, vector<32x128xf32> -> vector<32x128xf32>
    %82 = arith.addf %77, %81 : vector<32x128xf32>
    %cst_49 = arith.constant 5.000000e-01 : f32
    %83 = vector.broadcast %cst_49 : f32 to vector<32x128xf32>
    %84 = arith.mulf %83, %82 : vector<32x128xf32>
    %cst_50 = arith.constant 0.707106769 : f32
    %85 = vector.broadcast %cst_50 : f32 to vector<32x128xf32>
    %86 = arith.mulf %82, %85 : vector<32x128xf32>
    %87 = math.erf %86 : vector<32x128xf32>
    %cst_51 = arith.constant 1.000000e+00 : f32
    %88 = vector.broadcast %cst_51 : f32 to vector<32x128xf32>
    %89 = arith.addf %88, %87 : vector<32x128xf32>
    %90 = arith.mulf %84, %89 : vector<32x128xf32>
    %cst_52 = arith.constant dense<0.000000e+00> : vector<128xf32>
    %91 = vector.multi_reduction <add>, %90, %cst_52 [0] : vector<32x128xf32> to vector<128xf32>
    %92 = vector.shape_cast %91 : vector<128xf32> to vector<1x128xf32>
    %cst_53 = arith.constant 3.200000e+01 : f32
    %93 = vector.broadcast %cst_53 : f32 to vector<1x128xf32>
    %94 = arith.divf %92, %93 : vector<1x128xf32>
    %95 = vector.broadcast %94 : vector<1x128xf32> to vector<32x128xf32>
    %96 = arith.subf %90, %95 : vector<32x128xf32>
    %97 = arith.mulf %96, %96 : vector<32x128xf32>
    %cst_54 = arith.constant dense<0.000000e+00> : vector<128xf32>
    %98 = vector.multi_reduction <add>, %97, %cst_54 [0] : vector<32x128xf32> to vector<128xf32>
    %99 = vector.shape_cast %98 : vector<128xf32> to vector<1x128xf32>
    %cst_55 = arith.constant 3.200000e+01 : f32
    %100 = vector.broadcast %cst_55 : f32 to vector<1x128xf32>
    %101 = arith.divf %99, %100 : vector<1x128xf32>
    %102 = vector.broadcast %94 : vector<1x128xf32> to vector<32x128xf32>
    %103 = arith.subf %90, %102 : vector<32x128xf32>
    %cst_56 = arith.constant 9.99999974E-6 : f32
    %104 = vector.broadcast %cst_56 : f32 to vector<1x128xf32>
    %105 = arith.addf %101, %104 : vector<1x128xf32>
    %106 = math.rsqrt %105 : vector<1x128xf32>
    %107 = vector.broadcast %106 : vector<1x128xf32> to vector<32x128xf32>
    %108 = arith.mulf %103, %107 : vector<32x128xf32>
    %c2_57 = arith.constant 2 : index
    %c0_58 = arith.constant 0 : index
    %109 = vector.load %arg7[%c2_57, %c0_58] : memref<16x256xf32, #tpu.memory_space<vmem>>, vector<1x128xf32>
    %110 = vector.broadcast %109 : vector<1x128xf32> to vector<32x128xf32>
    %111 = arith.mulf %108, %110 : vector<32x128xf32>
    %c3_59 = arith.constant 3 : index
    %c0_60 = arith.constant 0 : index
    %112 = vector.load %arg7[%c3_59, %c0_60] : memref<16x256xf32, #tpu.memory_space<vmem>>, vector<1x128xf32>
    %113 = vector.broadcast %112 : vector<1x128xf32> to vector<32x128xf32>
    %114 = arith.addf %111, %113 : vector<32x128xf32>
    %c128 = arith.constant 128 : index
    %c0_61 = arith.constant 0 : index
    %115 = vector.load %arg2[%c128, %c0_61] : memref<384x2432xf32, #tpu.memory_space<vmem>>, vector<128x1280xf32>
    %cst_62 = arith.constant dense<0.000000e+00> : vector<32x1280xf32>
    %116 = tpu.matmul %114, %115, %cst_62 {dimension_numbers = #tpu.dot_dimension_numbers<[1], [0], [0], [1], [0, 0, 1, 1], [], []>} : vector<32x128xf32>, vector<128x1280xf32>, vector<32x1280xf32> -> vector<32x1280xf32>
    %c0_63 = arith.constant 0 : index
    %c0_64 = arith.constant 0 : index
    %c0_65 = arith.constant 0 : index
    %117 = vector.load %arg5[%c0_63, %c0_64, %c0_65] : memref<9x8x32xf32, #tpu.memory_space<vmem>>, vector<1x8x32xf32>
    %118 = vector.shape_cast %117 : vector<1x8x32xf32> to vector<8x32xf32>
    %119 = vector.extract_strided_slice %116 {offsets = [0, 0], sizes = [32, 128], strides = [1, 1]} : vector<32x1280xf32> to vector<32x128xf32>
    %cst_66 = arith.constant dense<0.000000e+00> : vector<8x128xf32>
    %120 = tpu.matmul %118, %119, %cst_66 {dimension_numbers = #tpu.dot_dimension_numbers<[1], [0], [0], [1], [0, 0, 1, 1], [], []>} : vector<8x32xf32>, vector<32x128xf32>, vector<8x128xf32> -> vector<8x128xf32>
    %c1_67 = arith.constant 1 : index
    %c0_68 = arith.constant 0 : index
    %c0_69 = arith.constant 0 : index
    %121 = vector.load %arg5[%c1_67, %c0_68, %c0_69] : memref<9x8x32xf32, #tpu.memory_space<vmem>>, vector<1x8x32xf32>
    %122 = vector.shape_cast %121 : vector<1x8x32xf32> to vector<8x32xf32>
    %123 = vector.extract_strided_slice %116 {offsets = [0, 128], sizes = [32, 128], strides = [1, 1]} : vector<32x1280xf32> to vector<32x128xf32>
    %cst_70 = arith.constant dense<0.000000e+00> : vector<8x128xf32>
    %124 = tpu.matmul %122, %123, %cst_70 {dimension_numbers = #tpu.dot_dimension_numbers<[1], [0], [0], [1], [0, 0, 1, 1], [], []>} : vector<8x32xf32>, vector<32x128xf32>, vector<8x128xf32> -> vector<8x128xf32>
    %125 = arith.addf %120, %124 : vector<8x128xf32>
    %c2_71 = arith.constant 2 : index
    %c0_72 = arith.constant 0 : index
    %c0_73 = arith.constant 0 : index
    %126 = vector.load %arg5[%c2_71, %c0_72, %c0_73] : memref<9x8x32xf32, #tpu.memory_space<vmem>>, vector<1x8x32xf32>
    %127 = vector.shape_cast %126 : vector<1x8x32xf32> to vector<8x32xf32>
    %128 = vector.extract_strided_slice %116 {offsets = [0, 256], sizes = [32, 128], strides = [1, 1]} : vector<32x1280xf32> to vector<32x128xf32>
    %cst_74 = arith.constant dense<0.000000e+00> : vector<8x128xf32>
    %129 = tpu.matmul %127, %128, %cst_74 {dimension_numbers = #tpu.dot_dimension_numbers<[1], [0], [0], [1], [0, 0, 1, 1], [], []>} : vector<8x32xf32>, vector<32x128xf32>, vector<8x128xf32> -> vector<8x128xf32>
    %130 = arith.addf %125, %129 : vector<8x128xf32>
    %c3_75 = arith.constant 3 : index
    %c0_76 = arith.constant 0 : index
    %c0_77 = arith.constant 0 : index
    %131 = vector.load %arg5[%c3_75, %c0_76, %c0_77] : memref<9x8x32xf32, #tpu.memory_space<vmem>>, vector<1x8x32xf32>
    %132 = vector.shape_cast %131 : vector<1x8x32xf32> to vector<8x32xf32>
    %133 = vector.extract_strided_slice %116 {offsets = [0, 384], sizes = [32, 128], strides = [1, 1]} : vector<32x1280xf32> to vector<32x128xf32>
    %cst_78 = arith.constant dense<0.000000e+00> : vector<8x128xf32>
    %134 = tpu.matmul %132, %133, %cst_78 {dimension_numbers = #tpu.dot_dimension_numbers<[1], [0], [0], [1], [0, 0, 1, 1], [], []>} : vector<8x32xf32>, vector<32x128xf32>, vector<8x128xf32> -> vector<8x128xf32>
    %135 = arith.addf %130, %134 : vector<8x128xf32>
    %c4_79 = arith.constant 4 : index
    %c0_80 = arith.constant 0 : index
    %c0_81 = arith.constant 0 : index
    %136 = vector.load %arg5[%c4_79, %c0_80, %c0_81] : memref<9x8x32xf32, #tpu.memory_space<vmem>>, vector<1x8x32xf32>
    %137 = vector.shape_cast %136 : vector<1x8x32xf32> to vector<8x32xf32>
    %138 = vector.extract_strided_slice %116 {offsets = [0, 512], sizes = [32, 128], strides = [1, 1]} : vector<32x1280xf32> to vector<32x128xf32>
    %cst_82 = arith.constant dense<0.000000e+00> : vector<8x128xf32>
    %139 = tpu.matmul %137, %138, %cst_82 {dimension_numbers = #tpu.dot_dimension_numbers<[1], [0], [0], [1], [0, 0, 1, 1], [], []>} : vector<8x32xf32>, vector<32x128xf32>, vector<8x128xf32> -> vector<8x128xf32>
    %140 = arith.addf %135, %139 : vector<8x128xf32>
    %c5_83 = arith.constant 5 : index
    %c0_84 = arith.constant 0 : index
    %c0_85 = arith.constant 0 : index
    %141 = vector.load %arg5[%c5_83, %c0_84, %c0_85] : memref<9x8x32xf32, #tpu.memory_space<vmem>>, vector<1x8x32xf32>
    %142 = vector.shape_cast %141 : vector<1x8x32xf32> to vector<8x32xf32>
    %143 = vector.extract_strided_slice %116 {offsets = [0, 640], sizes = [32, 128], strides = [1, 1]} : vector<32x1280xf32> to vector<32x128xf32>
    %cst_86 = arith.constant dense<0.000000e+00> : vector<8x128xf32>
    %144 = tpu.matmul %142, %143, %cst_86 {dimension_numbers = #tpu.dot_dimension_numbers<[1], [0], [0], [1], [0, 0, 1, 1], [], []>} : vector<8x32xf32>, vector<32x128xf32>, vector<8x128xf32> -> vector<8x128xf32>
    %145 = arith.addf %140, %144 : vector<8x128xf32>
    %c6_87 = arith.constant 6 : index
    %c0_88 = arith.constant 0 : index
    %c0_89 = arith.constant 0 : index
    %146 = vector.load %arg5[%c6_87, %c0_88, %c0_89] : memref<9x8x32xf32, #tpu.memory_space<vmem>>, vector<1x8x32xf32>
    %147 = vector.shape_cast %146 : vector<1x8x32xf32> to vector<8x32xf32>
    %148 = vector.extract_strided_slice %116 {offsets = [0, 768], sizes = [32, 128], strides = [1, 1]} : vector<32x1280xf32> to vector<32x128xf32>
    %cst_90 = arith.constant dense<0.000000e+00> : vector<8x128xf32>
    %149 = tpu.matmul %147, %148, %cst_90 {dimension_numbers = #tpu.dot_dimension_numbers<[1], [0], [0], [1], [0, 0, 1, 1], [], []>} : vector<8x32xf32>, vector<32x128xf32>, vector<8x128xf32> -> vector<8x128xf32>
    %150 = arith.addf %145, %149 : vector<8x128xf32>
    %c7_91 = arith.constant 7 : index
    %c0_92 = arith.constant 0 : index
    %c0_93 = arith.constant 0 : index
    %151 = vector.load %arg5[%c7_91, %c0_92, %c0_93] : memref<9x8x32xf32, #tpu.memory_space<vmem>>, vector<1x8x32xf32>
    %152 = vector.shape_cast %151 : vector<1x8x32xf32> to vector<8x32xf32>
    %153 = vector.extract_strided_slice %116 {offsets = [0, 896], sizes = [32, 128], strides = [1, 1]} : vector<32x1280xf32> to vector<32x128xf32>
    %cst_94 = arith.constant dense<0.000000e+00> : vector<8x128xf32>
    %154 = tpu.matmul %152, %153, %cst_94 {dimension_numbers = #tpu.dot_dimension_numbers<[1], [0], [0], [1], [0, 0, 1, 1], [], []>} : vector<8x32xf32>, vector<32x128xf32>, vector<8x128xf32> -> vector<8x128xf32>
    %155 = arith.addf %150, %154 : vector<8x128xf32>
    %c8_95 = arith.constant 8 : index
    %c0_96 = arith.constant 0 : index
    %c0_97 = arith.constant 0 : index
    %156 = vector.load %arg5[%c8_95, %c0_96, %c0_97] : memref<9x8x32xf32, #tpu.memory_space<vmem>>, vector<1x8x32xf32>
    %157 = vector.shape_cast %156 : vector<1x8x32xf32> to vector<8x32xf32>
    %158 = vector.extract_strided_slice %116 {offsets = [0, 1024], sizes = [32, 128], strides = [1, 1]} : vector<32x1280xf32> to vector<32x128xf32>
    %cst_98 = arith.constant dense<0.000000e+00> : vector<8x128xf32>
    %159 = tpu.matmul %157, %158, %cst_98 {dimension_numbers = #tpu.dot_dimension_numbers<[1], [0], [0], [1], [0, 0, 1, 1], [], []>} : vector<8x32xf32>, vector<32x128xf32>, vector<8x128xf32> -> vector<8x128xf32>
    %160 = arith.addf %155, %159 : vector<8x128xf32>
    %cst_99 = arith.constant 5.000000e-01 : f32
    %161 = vector.broadcast %cst_99 : f32 to vector<8x128xf32>
    %162 = arith.mulf %161, %160 : vector<8x128xf32>
    %cst_100 = arith.constant 0.707106769 : f32
    %163 = vector.broadcast %cst_100 : f32 to vector<8x128xf32>
    %164 = arith.mulf %160, %163 : vector<8x128xf32>
    %165 = math.erf %164 : vector<8x128xf32>
    %cst_101 = arith.constant 1.000000e+00 : f32
    %166 = vector.broadcast %cst_101 : f32 to vector<8x128xf32>
    %167 = arith.addf %166, %165 : vector<8x128xf32>
    %168 = arith.mulf %162, %167 : vector<8x128xf32>
    %cst_102 = arith.constant dense<0.000000e+00> : vector<128xf32>
    %169 = vector.multi_reduction <add>, %168, %cst_102 [0] : vector<8x128xf32> to vector<128xf32>
    %170 = vector.shape_cast %169 : vector<128xf32> to vector<1x128xf32>
    %cst_103 = arith.constant 8.000000e+00 : f32
    %171 = vector.broadcast %cst_103 : f32 to vector<1x128xf32>
    %172 = arith.divf %170, %171 : vector<1x128xf32>
    %173 = vector.broadcast %172 : vector<1x128xf32> to vector<8x128xf32>
    %174 = arith.subf %168, %173 : vector<8x128xf32>
    %175 = arith.mulf %174, %174 : vector<8x128xf32>
    %cst_104 = arith.constant dense<0.000000e+00> : vector<128xf32>
    %176 = vector.multi_reduction <add>, %175, %cst_104 [0] : vector<8x128xf32> to vector<128xf32>
    %177 = vector.shape_cast %176 : vector<128xf32> to vector<1x128xf32>
    %cst_105 = arith.constant 8.000000e+00 : f32
    %178 = vector.broadcast %cst_105 : f32 to vector<1x128xf32>
    %179 = arith.divf %177, %178 : vector<1x128xf32>
    %180 = vector.broadcast %172 : vector<1x128xf32> to vector<8x128xf32>
    %181 = arith.subf %168, %180 : vector<8x128xf32>
    %cst_106 = arith.constant 9.99999974E-6 : f32
    %182 = vector.broadcast %cst_106 : f32 to vector<1x128xf32>
    %183 = arith.addf %179, %182 : vector<1x128xf32>
    %184 = math.rsqrt %183 : vector<1x128xf32>
    %185 = vector.broadcast %184 : vector<1x128xf32> to vector<8x128xf32>
    %186 = arith.mulf %181, %185 : vector<8x128xf32>
    %c4_107 = arith.constant 4 : index
    %c0_108 = arith.constant 0 : index
    %187 = vector.load %arg7[%c4_107, %c0_108] : memref<16x256xf32, #tpu.memory_space<vmem>>, vector<1x128xf32>
    %188 = vector.broadcast %187 : vector<1x128xf32> to vector<8x128xf32>
    %189 = arith.mulf %186, %188 : vector<8x128xf32>
    %c5_109 = arith.constant 5 : index
    %c0_110 = arith.constant 0 : index
    %190 = vector.load %arg7[%c5_109, %c0_110] : memref<16x256xf32, #tpu.memory_space<vmem>>, vector<1x128xf32>
    %191 = vector.broadcast %190 : vector<1x128xf32> to vector<8x128xf32>
    %192 = arith.addf %189, %191 : vector<8x128xf32>
    %193 = vector.extract_strided_slice %116 {offsets = [0, 1152], sizes = [32, 128], strides = [1, 1]} : vector<32x1280xf32> to vector<32x128xf32>
    %c8_111 = arith.constant 8 : index
    %c0_112 = arith.constant 0 : index
    %194 = vector.load %arg7[%c8_111, %c0_112] : memref<16x256xf32, #tpu.memory_space<vmem>>, vector<1x128xf32>
    %195 = vector.broadcast %194 : vector<1x128xf32> to vector<32x128xf32>
    %196 = arith.addf %193, %195 : vector<32x128xf32>
    %c0_113 = arith.constant 0 : index
    %c0_114 = arith.constant 0 : index
    %197 = vector.load %arg8[%c0_113, %c0_114] : memref<48x128xf32, #tpu.memory_space<vmem>>, vector<32x128xf32>
    tpu.vector_store %arg8[%c0_113, %c0_114], %196 {strides = array<i32>} : memref<48x128xf32, #tpu.memory_space<vmem>>, vector<32x128xf32>,
    %c256 = arith.constant 256 : index
    %c0_115 = arith.constant 0 : index
    %198 = vector.load %arg2[%c256, %c0_115] : memref<384x2432xf32, #tpu.memory_space<vmem>>, vector<128x2432xf32>
    %cst_116 = arith.constant dense<0.000000e+00> : vector<8x2432xf32>
    %199 = tpu.matmul %192, %198, %cst_116 {dimension_numbers = #tpu.dot_dimension_numbers<[1], [0], [0], [1], [0, 0, 1, 1], [], []>} : vector<8x128xf32>, vector<128x2432xf32>, vector<8x2432xf32> -> vector<8x2432xf32>
    %c0_117 = arith.constant 0 : index
    %c0_118 = arith.constant 0 : index
    %c0_119 = arith.constant 0 : index
    %200 = vector.load %arg6[%c0_117, %c0_118, %c0_119] : memref<9x2x8xf32, #tpu.memory_space<vmem>>, vector<1x2x8xf32>
    %201 = vector.shape_cast %200 : vector<1x2x8xf32> to vector<2x8xf32>
    %202 = vector.extract_strided_slice %199 {offsets = [0, 0], sizes = [8, 256], strides = [1, 1]} : vector<8x2432xf32> to vector<8x256xf32>
    %cst_120 = arith.constant dense<0.000000e+00> : vector<2x256xf32>
    %203 = tpu.matmul %201, %202, %cst_120 {dimension_numbers = #tpu.dot_dimension_numbers<[1], [0], [0], [1], [0, 0, 1, 1], [], []>} : vector<2x8xf32>, vector<8x256xf32>, vector<2x256xf32> -> vector<2x256xf32>
    %c1_121 = arith.constant 1 : index
    %c0_122 = arith.constant 0 : index
    %c0_123 = arith.constant 0 : index
    %204 = vector.load %arg6[%c1_121, %c0_122, %c0_123] : memref<9x2x8xf32, #tpu.memory_space<vmem>>, vector<1x2x8xf32>
    %205 = vector.shape_cast %204 : vector<1x2x8xf32> to vector<2x8xf32>
    %206 = vector.extract_strided_slice %199 {offsets = [0, 256], sizes = [8, 256], strides = [1, 1]} : vector<8x2432xf32> to vector<8x256xf32>
    %cst_124 = arith.constant dense<0.000000e+00> : vector<2x256xf32>
    %207 = tpu.matmul %205, %206, %cst_124 {dimension_numbers = #tpu.dot_dimension_numbers<[1], [0], [0], [1], [0, 0, 1, 1], [], []>} : vector<2x8xf32>, vector<8x256xf32>, vector<2x256xf32> -> vector<2x256xf32>
    %208 = arith.addf %203, %207 : vector<2x256xf32>
    %c2_125 = arith.constant 2 : index
    %c0_126 = arith.constant 0 : index
    %c0_127 = arith.constant 0 : index
    %209 = vector.load %arg6[%c2_125, %c0_126, %c0_127] : memref<9x2x8xf32, #tpu.memory_space<vmem>>, vector<1x2x8xf32>
    %210 = vector.shape_cast %209 : vector<1x2x8xf32> to vector<2x8xf32>
    %211 = vector.extract_strided_slice %199 {offsets = [0, 512], sizes = [8, 256], strides = [1, 1]} : vector<8x2432xf32> to vector<8x256xf32>
    %cst_128 = arith.constant dense<0.000000e+00> : vector<2x256xf32>
    %212 = tpu.matmul %210, %211, %cst_128 {dimension_numbers = #tpu.dot_dimension_numbers<[1], [0], [0], [1], [0, 0, 1, 1], [], []>} : vector<2x8xf32>, vector<8x256xf32>, vector<2x256xf32> -> vector<2x256xf32>
    %213 = arith.addf %208, %212 : vector<2x256xf32>
    %c3_129 = arith.constant 3 : index
    %c0_130 = arith.constant 0 : index
    %c0_131 = arith.constant 0 : index
    %214 = vector.load %arg6[%c3_129, %c0_130, %c0_131] : memref<9x2x8xf32, #tpu.memory_space<vmem>>, vector<1x2x8xf32>
    %215 = vector.shape_cast %214 : vector<1x2x8xf32> to vector<2x8xf32>
    %216 = vector.extract_strided_slice %199 {offsets = [0, 768], sizes = [8, 256], strides = [1, 1]} : vector<8x2432xf32> to vector<8x256xf32>
    %cst_132 = arith.constant dense<0.000000e+00> : vector<2x256xf32>
    %217 = tpu.matmul %215, %216, %cst_132 {dimension_numbers = #tpu.dot_dimension_numbers<[1], [0], [0], [1], [0, 0, 1, 1], [], []>} : vector<2x8xf32>, vector<8x256xf32>, vector<2x256xf32> -> vector<2x256xf32>
    %218 = arith.addf %213, %217 : vector<2x256xf32>
    %c4_133 = arith.constant 4 : index
    %c0_134 = arith.constant 0 : index
    %c0_135 = arith.constant 0 : index
    %219 = vector.load %arg6[%c4_133, %c0_134, %c0_135] : memref<9x2x8xf32, #tpu.memory_space<vmem>>, vector<1x2x8xf32>
    %220 = vector.shape_cast %219 : vector<1x2x8xf32> to vector<2x8xf32>
    %221 = vector.extract_strided_slice %199 {offsets = [0, 1024], sizes = [8, 256], strides = [1, 1]} : vector<8x2432xf32> to vector<8x256xf32>
    %cst_136 = arith.constant dense<0.000000e+00> : vector<2x256xf32>
    %222 = tpu.matmul %220, %221, %cst_136 {dimension_numbers = #tpu.dot_dimension_numbers<[1], [0], [0], [1], [0, 0, 1, 1], [], []>} : vector<2x8xf32>, vector<8x256xf32>, vector<2x256xf32> -> vector<2x256xf32>
    %223 = arith.addf %218, %222 : vector<2x256xf32>
    %c5_137 = arith.constant 5 : index
    %c0_138 = arith.constant 0 : index
    %c0_139 = arith.constant 0 : index
    %224 = vector.load %arg6[%c5_137, %c0_138, %c0_139] : memref<9x2x8xf32, #tpu.memory_space<vmem>>, vector<1x2x8xf32>
    %225 = vector.shape_cast %224 : vector<1x2x8xf32> to vector<2x8xf32>
    %226 = vector.extract_strided_slice %199 {offsets = [0, 1280], sizes = [8, 256], strides = [1, 1]} : vector<8x2432xf32> to vector<8x256xf32>
    %cst_140 = arith.constant dense<0.000000e+00> : vector<2x256xf32>
    %227 = tpu.matmul %225, %226, %cst_140 {dimension_numbers = #tpu.dot_dimension_numbers<[1], [0], [0], [1], [0, 0, 1, 1], [], []>} : vector<2x8xf32>, vector<8x256xf32>, vector<2x256xf32> -> vector<2x256xf32>
    %228 = arith.addf %223, %227 : vector<2x256xf32>
    %c6_141 = arith.constant 6 : index
    %c0_142 = arith.constant 0 : index
    %c0_143 = arith.constant 0 : index
    %229 = vector.load %arg6[%c6_141, %c0_142, %c0_143] : memref<9x2x8xf32, #tpu.memory_space<vmem>>, vector<1x2x8xf32>
    %230 = vector.shape_cast %229 : vector<1x2x8xf32> to vector<2x8xf32>
    %231 = vector.extract_strided_slice %199 {offsets = [0, 1536], sizes = [8, 256], strides = [1, 1]} : vector<8x2432xf32> to vector<8x256xf32>
    %cst_144 = arith.constant dense<0.000000e+00> : vector<2x256xf32>
    %232 = tpu.matmul %230, %231, %cst_144 {dimension_numbers = #tpu.dot_dimension_numbers<[1], [0], [0], [1], [0, 0, 1, 1], [], []>} : vector<2x8xf32>, vector<8x256xf32>, vector<2x256xf32> -> vector<2x256xf32>
    %233 = arith.addf %228, %232 : vector<2x256xf32>
    %c7_145 = arith.constant 7 : index
    %c0_146 = arith.constant 0 : index
    %c0_147 = arith.constant 0 : index
    %234 = vector.load %arg6[%c7_145, %c0_146, %c0_147] : memref<9x2x8xf32, #tpu.memory_space<vmem>>, vector<1x2x8xf32>
    %235 = vector.shape_cast %234 : vector<1x2x8xf32> to vector<2x8xf32>
    %236 = vector.extract_strided_slice %199 {offsets = [0, 1792], sizes = [8, 256], strides = [1, 1]} : vector<8x2432xf32> to vector<8x256xf32>
    %cst_148 = arith.constant dense<0.000000e+00> : vector<2x256xf32>
    %237 = tpu.matmul %235, %236, %cst_148 {dimension_numbers = #tpu.dot_dimension_numbers<[1], [0], [0], [1], [0, 0, 1, 1], [], []>} : vector<2x8xf32>, vector<8x256xf32>, vector<2x256xf32> -> vector<2x256xf32>
    %238 = arith.addf %233, %237 : vector<2x256xf32>
    %c8_149 = arith.constant 8 : index
    %c0_150 = arith.constant 0 : index
    %c0_151 = arith.constant 0 : index
    %239 = vector.load %arg6[%c8_149, %c0_150, %c0_151] : memref<9x2x8xf32, #tpu.memory_space<vmem>>, vector<1x2x8xf32>
    %240 = vector.shape_cast %239 : vector<1x2x8xf32> to vector<2x8xf32>
    %241 = vector.extract_strided_slice %199 {offsets = [0, 2048], sizes = [8, 256], strides = [1, 1]} : vector<8x2432xf32> to vector<8x256xf32>
    %cst_152 = arith.constant dense<0.000000e+00> : vector<2x256xf32>
    %242 = tpu.matmul %240, %241, %cst_152 {dimension_numbers = #tpu.dot_dimension_numbers<[1], [0], [0], [1], [0, 0, 1, 1], [], []>} : vector<2x8xf32>, vector<8x256xf32>, vector<2x256xf32> -> vector<2x256xf32>
    %243 = arith.addf %238, %242 : vector<2x256xf32>
    %cst_153 = arith.constant 5.000000e-01 : f32
    %244 = vector.broadcast %cst_153 : f32 to vector<2x256xf32>
    %245 = arith.mulf %244, %243 : vector<2x256xf32>
    %cst_154 = arith.constant 0.707106769 : f32
    %246 = vector.broadcast %cst_154 : f32 to vector<2x256xf32>
    %247 = arith.mulf %243, %246 : vector<2x256xf32>
    %248 = math.erf %247 : vector<2x256xf32>
    %cst_155 = arith.constant 1.000000e+00 : f32
    %249 = vector.broadcast %cst_155 : f32 to vector<2x256xf32>
    %250 = arith.addf %249, %248 : vector<2x256xf32>
    %251 = arith.mulf %245, %250 : vector<2x256xf32>
    %cst_156 = arith.constant dense<0.000000e+00> : vector<256xf32>
    %252 = vector.multi_reduction <add>, %251, %cst_156 [0] : vector<2x256xf32> to vector<256xf32>
    %253 = vector.shape_cast %252 : vector<256xf32> to vector<1x256xf32>
    %cst_157 = arith.constant 2.000000e+00 : f32
    %254 = vector.broadcast %cst_157 : f32 to vector<1x256xf32>
    %255 = arith.divf %253, %254 : vector<1x256xf32>
    %256 = vector.broadcast %255 : vector<1x256xf32> to vector<2x256xf32>
    %257 = arith.subf %251, %256 : vector<2x256xf32>
    %258 = arith.mulf %257, %257 : vector<2x256xf32>
    %cst_158 = arith.constant dense<0.000000e+00> : vector<256xf32>
    %259 = vector.multi_reduction <add>, %258, %cst_158 [0] : vector<2x256xf32> to vector<256xf32>
    %260 = vector.shape_cast %259 : vector<256xf32> to vector<1x256xf32>
    %cst_159 = arith.constant 2.000000e+00 : f32
    %261 = vector.broadcast %cst_159 : f32 to vector<1x256xf32>
    %262 = arith.divf %260, %261 : vector<1x256xf32>
    %263 = vector.broadcast %255 : vector<1x256xf32> to vector<2x256xf32>
    %264 = arith.subf %251, %263 : vector<2x256xf32>
    %cst_160 = arith.constant 9.99999974E-6 : f32
    %265 = vector.broadcast %cst_160 : f32 to vector<1x256xf32>
    %266 = arith.addf %262, %265 : vector<1x256xf32>
    %267 = math.rsqrt %266 : vector<1x256xf32>
    %268 = vector.broadcast %267 : vector<1x256xf32> to vector<2x256xf32>
    %269 = arith.mulf %264, %268 : vector<2x256xf32>
    %c6_161 = arith.constant 6 : index
    %c0_162 = arith.constant 0 : index
    %270 = vector.load %arg7[%c6_161, %c0_162] : memref<16x256xf32, #tpu.memory_space<vmem>>, vector<1x256xf32>
    %271 = vector.broadcast %270 : vector<1x256xf32> to vector<2x256xf32>
    %272 = arith.mulf %269, %271 : vector<2x256xf32>
    %c7_163 = arith.constant 7 : index
    %c0_164 = arith.constant 0 : index
    %273 = vector.load %arg7[%c7_163, %c0_164] : memref<16x256xf32, #tpu.memory_space<vmem>>, vector<1x256xf32>
    %274 = vector.broadcast %273 : vector<1x256xf32> to vector<2x256xf32>
    %275 = arith.addf %272, %274 : vector<2x256xf32>
    %276 = vector.extract_strided_slice %199 {offsets = [0, 2304], sizes = [8, 128], strides = [1, 1]} : vector<8x2432xf32> to vector<8x128xf32>
    %c9 = arith.constant 9 : index
    %c0_165 = arith.constant 0 : index
    %277 = vector.load %arg7[%c9, %c0_165] : memref<16x256xf32, #tpu.memory_space<vmem>>, vector<1x128xf32>
    %278 = vector.broadcast %277 : vector<1x128xf32> to vector<8x128xf32>
    %279 = arith.addf %276, %278 : vector<8x128xf32>
    %c32 = arith.constant 32 : index
    %c0_166 = arith.constant 0 : index
    %280 = vector.load %arg8[%c32, %c0_166] : memref<48x128xf32, #tpu.memory_space<vmem>>, vector<8x128xf32>
    tpu.vector_store %arg8[%c32, %c0_166], %279 {strides = array<i32>} : memref<48x128xf32, #tpu.memory_space<vmem>>, vector<8x128xf32>,
    %c32_167 = arith.constant 32 : index
    %c0_168 = arith.constant 0 : index
    %281 = vector.load %arg3[%c32_167, %c0_168] : memref<288x128xf32, #tpu.memory_space<vmem>>, vector<256x128xf32>
    %cst_169 = arith.constant dense<0.000000e+00> : vector<2x128xf32>
    %282 = tpu.matmul %275, %281, %cst_169 {dimension_numbers = #tpu.dot_dimension_numbers<[1], [0], [0], [1], [0, 0, 1, 1], [], []>} : vector<2x256xf32>, vector<256x128xf32>, vector<2x128xf32> -> vector<2x128xf32>
    %c10 = arith.constant 10 : index
    %c0_170 = arith.constant 0 : index
    %283 = vector.load %arg7[%c10, %c0_170] : memref<16x256xf32, #tpu.memory_space<vmem>>, vector<1x128xf32>
    %284 = vector.broadcast %283 : vector<1x128xf32> to vector<2x128xf32>
    %285 = arith.addf %282, %284 : vector<2x128xf32>
    %c40 = arith.constant 40 : index
    %c0_171 = arith.constant 0 : index
    %286 = vector.load %arg8[%c40, %c0_171] : memref<48x128xf32, #tpu.memory_space<vmem>>, vector<2x128xf32>
    tpu.vector_store %arg8[%c40, %c0_171], %285 {strides = array<i32>} : memref<48x128xf32, #tpu.memory_space<vmem>>, vector<2x128xf32>,
    return
  }
  func.func @transform_0(%arg0: i32) -> (i32, i32) {
    %c0_i32 = arith.constant 0 : i32
    %c0_i32_0 = arith.constant 0 : i32
    %c0_i32_1 = arith.constant 0 : i32
    return %c0_i32, %c0_i32_0 : i32, i32
  }
  func.func @transform_1(%arg0: i32) -> (i32, i32) {
    %c0_i32 = arith.constant 0 : i32
    %c0_i32_0 = arith.constant 0 : i32
    %c0_i32_1 = arith.constant 0 : i32
    return %c0_i32, %c0_i32_0 : i32, i32
  }
  func.func @transform_2(%arg0: i32) -> (i32, i32) {
    %c0_i32 = arith.constant 0 : i32
    %c0_i32_0 = arith.constant 0 : i32
    %c0_i32_1 = arith.constant 0 : i32
    return %c0_i32, %c0_i32_0 : i32, i32
  }
  func.func @transform_3(%arg0: i32) -> (i32, i32, i32) {
    %c0_i32 = arith.constant 0 : i32
    %c0_i32_0 = arith.constant 0 : i32
    %c0_i32_1 = arith.constant 0 : i32
    %c0_i32_2 = arith.constant 0 : i32
    return %c0_i32, %c0_i32_0, %c0_i32_1 : i32, i32, i32
  }
  func.func @transform_4(%arg0: i32) -> (i32, i32, i32) {
    %c0_i32 = arith.constant 0 : i32
    %c0_i32_0 = arith.constant 0 : i32
    %c0_i32_1 = arith.constant 0 : i32
    %c0_i32_2 = arith.constant 0 : i32
    return %c0_i32, %c0_i32_0, %c0_i32_1 : i32, i32, i32
  }
  func.func @transform_5(%arg0: i32) -> (i32, i32, i32) {
    %c0_i32 = arith.constant 0 : i32
    %c0_i32_0 = arith.constant 0 : i32
    %c0_i32_1 = arith.constant 0 : i32
    %c0_i32_2 = arith.constant 0 : i32
    return %c0_i32, %c0_i32_0, %c0_i32_1 : i32, i32, i32
  }
  func.func @transform_6(%arg0: i32) -> (i32, i32) {
    %c0_i32 = arith.constant 0 : i32
    %c0_i32_0 = arith.constant 0 : i32
    %c0_i32_1 = arith.constant 0 : i32
    return %c0_i32, %c0_i32_0 : i32, i32
  }
  func.func @transform_7(%arg0: i32) -> (i32, i32) {
    %c0_i32 = arith.constant 0 : i32
    %c0_i32_0 = arith.constant 0 : i32
    %c0_i32_1 = arith.constant 0 : i32
    return %c0_i32, %c0_i32_0 : i32, i32
  }
}

</mosaic_0001>

<llo_original>
// kernel: forward.1
$region0: #{forward.1}
  #allocation0 [shape = 'u32[]', space=smem, size = 0x4, offset = 0x4, fixed_abs, tag = 'smem constant byte address 0x4 - core index']
  #allocation1 [shape = 'u32[144,128]{1,0:T(1,128)}', space=vmem, size = 0x12000, scoped, tag = 'internal scratch']
  %s0 = inlined_call_operand.vmem [shape: f32[128,32], index: 0, kind: input, shape index: {}]
  %s1 = inlined_call_operand.hbm [shape: f32[384,2432], index: 1, kind: input, shape index: {}]
  %s2 = inlined_call_operand.hbm [shape: f32[288,128], index: 2, kind: input, shape index: {}]
  %s3 = inlined_call_operand.hbm [shape: f32[9,32,128], index: 3, kind: input, shape index: {}]
  %s4 = inlined_call_operand.hbm [shape: f32[9,8,32], index: 4, kind: input, shape index: {}]
  %s5 = inlined_call_operand.hbm [shape: f32[9,2,8], index: 5, kind: input, shape index: {}]
  %s6 = inlined_call_operand.hbm [shape: f32[16,256], index: 6, kind: input, shape index: {}]
  %s7 = inlined_call_operand.vmem [shape: f32[48,128], index: 7, kind: output, shape index: {}]
  %s8 = sld [smem:[#allocation0]]
  $region62: #{forward.1} parent=0
    _
  %s10 = ssub.s32 1, %s8
  %s11 = scalar_select 0, %s10, %s8
  $region1: #{forward.1} parent=0
    #allocation2 [shape = 'u8[3735552]{0}', space=vmem, size = 0x390000, scoped, tag = 'input window, operand 1, single buffered']
    #allocation3 [shape = 's32[1]{0}', space=sflag, size = 0x4, scoped, tag = 'scoped memory for forward.1']
    #allocation4 [shape = 'u8[147456]{0}', space=vmem, size = 0x24000, scoped, tag = 'input window, operand 2, single buffered']
    #allocation5 [shape = 's32[1]{0}', space=sflag, size = 0x4, scoped, tag = 'scoped memory for forward.1']
    #allocation6 [shape = 'u8[147456]{0}', space=vmem, size = 0x24000, scoped, tag = 'input window, operand 3, single buffered']
    #allocation7 [shape = 'u8[36864]{0}', space=vmem, size = 0x9000, scoped, tag = 'input window, operand 4, single buffered']
    #allocation8 [shape = 's32[1]{0}', space=sflag, size = 0x4, scoped, tag = 'scoped memory for forward.1']
    #allocation9 [shape = 'u8[9216]{0}', space=vmem, size = 0x2400, scoped, tag = 'input window, operand 5, single buffered']
    #allocation10 [shape = 'u8[16384]{0}', space=vmem, size = 0x4000, scoped, tag = 'input window, operand 6, single buffered']
    #allocation11 [shape = 's32[1]{0}', space=sflag, size = 0x4, scoped, tag = 'scoped memory for forward.1']
    %12 = vsyncpa [#allocation3], 0
    %13 = vsyncpa [#allocation5], 0
    %14 = vsyncpa [#allocation8], 0
    %15 = vsyncpa [#allocation11], 0
    // Predicated region
    $region2: #{forward.1} parent=1 // pred_check
      _
    $region3: #{forward.1} parent=1 // pred_check_branch
      %17 = sbr.rel (0) target = $region5
    $region4: #{forward.1} parent=1 // pred_region
      _
    $region5: #{forward.1} parent=1 // pred_fallthru
      _
    // Predicated region
    $region6: #{forward.1} parent=1 // pred_check
      _
    $region7: #{forward.1} parent=1 // pred_check_branch
      %19 = sbr.rel (0) target = $region9
    $region8: #{forward.1} parent=1 // pred_region
      %s21 = ssub.s32 116736, 116736
      %22 = vsyncadd [#allocation3], %s21
      %s23 = sshll.u32 [#allocation2], 4
      %s24 = int_to_ptr.vmem [resolvable:$true] %s23
      %29 = dma.hbm_to_vmem [thread:$0]  %s1, 116736, %s24, [#allocation3], 2432, 2432, 152
    $region9: #{forward.1} parent=1 // pred_fallthru
      _
    // Predicated region
    $region10: #{forward.1} parent=1 // pred_check
      _
    $region11: #{forward.1} parent=1 // pred_check_branch
      %31 = sbr.rel (0) target = $region13
    $region12: #{forward.1} parent=1 // pred_region
      %s33 = ssub.s32 4608, 4608
      %34 = vsyncadd [#allocation5], %s33
      %s35 = sshll.u32 [#allocation4], 4
      %s36 = int_to_ptr.vmem [resolvable:$true] %s35
      %41 = dma.hbm_to_vmem [thread:$0]  %s2, 4608, %s36, [#allocation5], 128, 128, 8
    $region13: #{forward.1} parent=1 // pred_fallthru
      _
    // Predicated region
    $region14: #{forward.1} parent=1 // pred_check
      _
    $region15: #{forward.1} parent=1 // pred_check_branch
      %43 = sbr.rel (0) target = $region17
    $region16: #{forward.1} parent=1 // pred_region
      %s45 = ssub.s32 4608, 4608
      %46 = vsyncadd [#allocation5], %s45
      %s47 = sshll.u32 [#allocation6], 4
      %s48 = int_to_ptr.vmem [resolvable:$true] %s47
      %53 = dma.hbm_to_vmem [thread:$0]  %s3, 4608, %s48, [#allocation5], 128, 128, 8
    $region17: #{forward.1} parent=1 // pred_fallthru
      _
    // Predicated region
    $region18: #{forward.1} parent=1 // pred_check
      _
    $region19: #{forward.1} parent=1 // pred_check_branch
      %55 = sbr.rel (0) target = $region21
    $region20: #{forward.1} parent=1 // pred_region
      %s57 = ssub.s32 1152, 1152
      %58 = vsyncadd [#allocation8], %s57
      %s59 = sshll.u32 [#allocation7], 4
      %s60 = int_to_ptr.vmem [resolvable:$true] %s59
      %65 = dma.hbm_to_vmem [thread:$0]  %s4, 1152, %s60, [#allocation8], 128, 128, 8
    $region21: #{forward.1} parent=1 // pred_fallthru
      _
    // Predicated region
    $region22: #{forward.1} parent=1 // pred_check
      _
    $region23: #{forward.1} parent=1 // pred_check_branch
      %67 = sbr.rel (0) target = $region25
    $region24: #{forward.1} parent=1 // pred_region
      %s69 = ssub.s32 288, 288
      %70 = vsyncadd [#allocation8], %s69
      %s71 = sshll.u32 [#allocation9], 4
      %s72 = int_to_ptr.vmem [resolvable:$true] %s71
      %77 = dma.hbm_to_vmem [thread:$0]  %s5, 288, %s72, [#allocation8], 32, 32, 2
    $region25: #{forward.1} parent=1 // pred_fallthru
      _
    // Predicated region
    $region26: #{forward.1} parent=1 // pred_check
      _
    $region27: #{forward.1} parent=1 // pred_check_branch
      %79 = sbr.rel (0) target = $region29
    $region28: #{forward.1} parent=1 // pred_region
      %s81 = ssub.s32 512, 512
      %82 = vsyncadd [#allocation11], %s81
      %s83 = sshll.u32 [#allocation10], 4
      %s84 = int_to_ptr.vmem [resolvable:$true] %s83
      %89 = dma.hbm_to_vmem [thread:$0]  %s6, 512, %s84, [#allocation11], 256, 256, 16
    $region29: #{forward.1} parent=1 // pred_fallthru
      _
    // Predicated region
    $region30: #{forward.1} parent=1 // pred_check
      _
    $region31: #{forward.1} parent=1 // pred_check_branch
      %91 = sbr.rel (0) target = $region33
    $region32: #{forward.1} parent=1 // pred_region
      %92 = dma.done [#allocation3], 116736
    $region33: #{forward.1} parent=1 // pred_fallthru
      _
    // Predicated region
    $region34: #{forward.1} parent=1 // pred_check
      _
    $region35: #{forward.1} parent=1 // pred_check_branch
      %94 = sbr.rel (0) target = $region37
    $region36: #{forward.1} parent=1 // pred_region
      %95 = dma.done [#allocation5], 4608
    $region37: #{forward.1} parent=1 // pred_fallthru
      _
    // Predicated region
    $region38: #{forward.1} parent=1 // pred_check
      _
    $region39: #{forward.1} parent=1 // pred_check_branch
      %97 = sbr.rel (0) target = $region41
    $region40: #{forward.1} parent=1 // pred_region
      %98 = dma.done [#allocation5], 4608
    $region41: #{forward.1} parent=1 // pred_fallthru
      _
    // Predicated region
    $region42: #{forward.1} parent=1 // pred_check
      _
    $region43: #{forward.1} parent=1 // pred_check_branch
      %100 = sbr.rel (0) target = $region45
    $region44: #{forward.1} parent=1 // pred_region
      %101 = dma.done [#allocation8], 1152
    $region45: #{forward.1} parent=1 // pred_fallthru
      _
    // Predicated region
    $region46: #{forward.1} parent=1 // pred_check
      _
    $region47: #{forward.1} parent=1 // pred_check_branch
      %103 = sbr.rel (0) target = $region49
    $region48: #{forward.1} parent=1 // pred_region
      %104 = dma.done [#allocation8], 288
    $region49: #{forward.1} parent=1 // pred_fallthru
      _
    // Predicated region
    $region50: #{forward.1} parent=1 // pred_check
      _
    $region51: #{forward.1} parent=1 // pred_check_branch
      %106 = sbr.rel (0) target = $region53
    $region52: #{forward.1} parent=1 // pred_region
      %107 = dma.done [#allocation11], 512
    $region53: #{forward.1} parent=1 // pred_fallthru
      _
    %108 = vst [vmem:[%s7] sm:$0xff] 0.0
    %109 = vst [vmem:[%s7 + $0x8] sm:$0xff] 0.0
    %110 = vst [vmem:[%s7 + $0x10] sm:$0xff] 0.0
    %111 = vst [vmem:[%s7 + $0x18] sm:$0xff] 0.0
    %112 = vst [vmem:[%s7 + $0x20] sm:$0xff] 0.0
    %113 = vst [vmem:[%s7 + $0x28] sm:$0xff] 0.0
    %v114 = vld [vmem:[%s0] sm:$0xff]
    %v115 = vld [vmem:[%s0 + $0x8] sm:$0xff]
    %v116 = vld [vmem:[%s0 + $0x10] sm:$0xff]
    %v117 = vld [vmem:[%s0 + $0x18] sm:$0xff]
    %v118 = vld [vmem:[%s0 + $0x20] sm:$0xff]
    %v119 = vld [vmem:[%s0 + $0x28] sm:$0xff]
    %v120 = vld [vmem:[%s0 + $0x30] sm:$0xff]
    %v121 = vld [vmem:[%s0 + $0x38] sm:$0xff]
    %v122 = vld [vmem:[%s0 + $0x40] sm:$0xff]
    %v123 = vld [vmem:[%s0 + $0x48] sm:$0xff]
    %v124 = vld [vmem:[%s0 + $0x50] sm:$0xff]
    %v125 = vld [vmem:[%s0 + $0x58] sm:$0xff]
    %v126 = vld [vmem:[%s0 + $0x60] sm:$0xff]
    %v127 = vld [vmem:[%s0 + $0x68] sm:$0xff]
    %v128 = vld [vmem:[%s0 + $0x70] sm:$0xff]
    %v129 = vld [vmem:[%s0 + $0x78] sm:$0xff]
    %v130 = vld [vmem:[#allocation4] sm:$0xff]
    %v131 = vld [vmem:[#allocation4 + $0x8] sm:$0xff]
    %v132 = vld [vmem:[#allocation4 + $0x10] sm:$0xff]
    %v133 = vld [vmem:[#allocation4 + $0x18] sm:$0xff]
    %vm134 = vcmask 261120
    %v136 = vsel %vm134, %v114, 0
    %v139 = vsel %vm134, %v115, 0
    %v142 = vsel %vm134, %v116, 0
    %v145 = vsel %vm134, %v117, 0
    %v148 = vsel %vm134, %v118, 0
    %v151 = vsel %vm134, %v119, 0
    %v154 = vsel %vm134, %v120, 0
    %v157 = vsel %vm134, %v121, 0
    %v160 = vsel %vm134, %v122, 0
    %v163 = vsel %vm134, %v123, 0
    %v166 = vsel %vm134, %v124, 0
    %v169 = vsel %vm134, %v125, 0
    %v172 = vsel %vm134, %v126, 0
    %v175 = vsel %vm134, %v127, 0
    %v178 = vsel %vm134, %v128, 0
    %v181 = vsel %vm134, %v129, 0
    %183 = vmatprep.subr.mxu0 0.0
    %184 = vmatpush1.msra.mxu0 %v130
    %185 = vmatprep.subr.mxu0 0.0
    %186 = vmatpush1.msra.mxu0 %v131
    %187 = vmatprep.subr.mxu0 0.0
    %188 = vmatpush1.msra.mxu0 %v132
    %189 = vmatprep.subr.mxu0 0.0
    %190 = vmatpush1.msra.mxu0 %v133
    %191 = vmatprep.subr.mxu0 0.0
    %192 = vmatpush1.msra.mxu0 0.0
    %193 = vmatprep.subr.mxu0 0.0
    %194 = vmatpush1.msra.mxu0 0.0
    %195 = vmatprep.subr.mxu0 0.0
    %196 = vmatpush1.msra.mxu0 0.0
    %197 = vmatprep.subr.mxu0 0.0
    %198 = vmatpush1.msra.mxu0 0.0
    %199 = vmatprep.subr.mxu0 0.0
    %200 = vmatpush1.msra.mxu0 0.0
    %201 = vmatprep.subr.mxu0 0.0
    %202 = vmatpush1.msra.mxu0 0.0
    %203 = vmatprep.subr.mxu0 0.0
    %204 = vmatpush1.msra.mxu0 0.0
    %205 = vmatprep.subr.mxu0 0.0
    %206 = vmatpush1.msra.mxu0 0.0
    %207 = vmatprep.subr.mxu0 0.0
    %208 = vmatpush1.msra.mxu0 0.0
    %209 = vmatprep.subr.mxu0 0.0
    %210 = vmatpush1.msra.mxu0 0.0
    %211 = vmatprep.subr.mxu0 0.0
    %212 = vmatpush1.msra.mxu0 0.0
    %213 = vmatprep.subr.mxu0 0.0
    %214 = vmatpush1.msra.mxu0 0.0
    %215 = vmatprep.subr.mxu0 0.0
    %216 = vmatpush1.msra.mxu0 0.0
    %217 = vmatprep.subr.mxu0 0.0
    %218 = vmatpush1.msra.mxu0 0.0
    %219 = vmatprep.subr.mxu0 0.0
    %220 = vmatpush1.msra.mxu0 0.0
    %221 = vmatprep.subr.mxu0 0.0
    %222 = vmatpush1.msra.mxu0 0.0
    %223 = vmatprep.subr.mxu0 0.0
    %224 = vmatpush1.msra.mxu0 0.0
    %225 = vmatprep.subr.mxu0 0.0
    %226 = vmatpush1.msra.mxu0 0.0
    %227 = vmatprep.subr.mxu0 0.0
    %228 = vmatpush1.msra.mxu0 0.0
    %229 = vmatprep.subr.mxu0 0.0
    %230 = vmatpush1.msra.mxu0 0.0
    %231 = vmatprep.subr.mxu0 0.0
    %232 = vmatpush1.msra.mxu0 0.0
    %233 = vmatprep.subr.mxu0 0.0
    %234 = vmatpush1.msra.mxu0 0.0
    %235 = vmatprep.subr.mxu0 0.0
    %236 = vmatpush1.msra.mxu0 0.0
    %237 = vmatprep.subr.mxu0 0.0
    %238 = vmatpush1.msra.mxu0 0.0
    %239 = vmatprep.subr.mxu0 0.0
    %240 = vmatpush1.msra.mxu0 0.0
    %241 = vmatprep.subr.mxu0 0.0
    %242 = vmatpush1.msra.mxu0 0.0
    %243 = vmatprep.subr.mxu0 0.0
    %244 = vmatpush1.msra.mxu0 0.0
    %245 = vmatprep.subr.mxu0 0.0
    %246 = vmatpush1.msra.mxu0 0.0
    %247 = vmatprep.mubr.f32.mxu0 0.0
    %248 = vmatmul.mubr.f32.gmra.mrb[0].mxu0 %v136
    %v249 = vpop.f32.mrb[0].mxu0
    %v250 = vadd.f32 0.0, %v249
    %v251 = vpop.f32.mrb[0].mxu0
    %252 = vmatprep.mubr.f32.mxu0 0.0
    %253 = vmatmul.mubr.f32.gmra.mrb[0].mxu0 %v139
    %v254 = vpop.f32.mrb[0].mxu0
    %v255 = vadd.f32 0.0, %v254
    %v256 = vpop.f32.mrb[0].mxu0
    %257 = vmatprep.mubr.f32.mxu0 0.0
    %258 = vmatmul.mubr.f32.gmra.mrb[0].mxu0 %v142
    %v259 = vpop.f32.mrb[0].mxu0
    %v260 = vadd.f32 0.0, %v259
    %v261 = vpop.f32.mrb[0].mxu0
    %262 = vmatprep.mubr.f32.mxu0 0.0
    %263 = vmatmul.mubr.f32.gmra.mrb[0].mxu0 %v145
    %v264 = vpop.f32.mrb[0].mxu0
    %v265 = vadd.f32 0.0, %v264
    %v266 = vpop.f32.mrb[0].mxu0
    %267 = vmatprep.mubr.f32.mxu0 0.0
    %268 = vmatmul.mubr.f32.gmra.mrb[0].mxu0 %v148
    %v269 = vpop.f32.mrb[0].mxu0
    %v270 = vadd.f32 0.0, %v269
    %v271 = vpop.f32.mrb[0].mxu0
    %272 = vmatprep.mubr.f32.mxu0 0.0
    %273 = vmatmul.mubr.f32.gmra.mrb[0].mxu0 %v151
    %v274 = vpop.f32.mrb[0].mxu0
    %v275 = vadd.f32 0.0, %v274
    %v276 = vpop.f32.mrb[0].mxu0
    %277 = vmatprep.mubr.f32.mxu0 0.0
    %278 = vmatmul.mubr.f32.gmra.mrb[0].mxu0 %v154
    %v279 = vpop.f32.mrb[0].mxu0
    %v280 = vadd.f32 0.0, %v279
    %v281 = vpop.f32.mrb[0].mxu0
    %282 = vmatprep.mubr.f32.mxu0 0.0
    %283 = vmatmul.mubr.f32.gmra.mrb[0].mxu0 %v157
    %v284 = vpop.f32.mrb[0].mxu0
    %v285 = vadd.f32 0.0, %v284
    %v286 = vpop.f32.mrb[0].mxu0
    %287 = vmatprep.mubr.f32.mxu0 0.0
    %288 = vmatmul.mubr.f32.gmra.mrb[0].mxu0 %v160
    %v289 = vpop.f32.mrb[0].mxu0
    %v290 = vadd.f32 0.0, %v289
    %v291 = vpop.f32.mrb[0].mxu0
    %292 = vmatprep.mubr.f32.mxu0 0.0
    %293 = vmatmul.mubr.f32.gmra.mrb[0].mxu0 %v163
    %v294 = vpop.f32.mrb[0].mxu0
    %v295 = vadd.f32 0.0, %v294
    %v296 = vpop.f32.mrb[0].mxu0
    %297 = vmatprep.mubr.f32.mxu0 0.0
    %298 = vmatmul.mubr.f32.gmra.mrb[0].mxu0 %v166
    %v299 = vpop.f32.mrb[0].mxu0
    %v300 = vadd.f32 0.0, %v299
    %v301 = vpop.f32.mrb[0].mxu0
    %302 = vmatprep.mubr.f32.mxu0 0.0
    %303 = vmatmul.mubr.f32.gmra.mrb[0].mxu0 %v169
    %v304 = vpop.f32.mrb[0].mxu0
    %v305 = vadd.f32 0.0, %v304
    %v306 = vpop.f32.mrb[0].mxu0
    %307 = vmatprep.mubr.f32.mxu0 0.0
    %308 = vmatmul.mubr.f32.gmra.mrb[0].mxu0 %v172
    %v309 = vpop.f32.mrb[0].mxu0
    %v310 = vadd.f32 0.0, %v309
    %v311 = vpop.f32.mrb[0].mxu0
    %312 = vmatprep.mubr.f32.mxu0 0.0
    %313 = vmatmul.mubr.f32.gmra.mrb[0].mxu0 %v175
    %v314 = vpop.f32.mrb[0].mxu0
    %v315 = vadd.f32 0.0, %v314
    %v316 = vpop.f32.mrb[0].mxu0
    %317 = vmatprep.mubr.f32.mxu0 0.0
    %318 = vmatmul.mubr.f32.gmra.mrb[0].mxu0 %v178
    %v319 = vpop.f32.mrb[0].mxu0
    %v320 = vadd.f32 0.0, %v319
    %v321 = vpop.f32.mrb[0].mxu0
    %322 = vmatprep.mubr.f32.mxu0 0.0
    %323 = vmatmul.mubr.f32.gmra.mrb[0].mxu0 %v181
    %v324 = vpop.f32.mrb[0].mxu0
    %v325 = vadd.f32 0.0, %v324
    %v326 = vpop.f32.mrb[0].mxu0
    %327 = vdwg.mxu0
    %v328 = vmul.f32 %v250, 0.5
    %v329 = vmul.f32 %v255, 0.5
    %v330 = vmul.f32 %v260, 0.5
    %v331 = vmul.f32 %v265, 0.5
    %v332 = vmul.f32 %v270, 0.5
    %v333 = vmul.f32 %v275, 0.5
    %v334 = vmul.f32 %v280, 0.5
    %v335 = vmul.f32 %v285, 0.5
    %v336 = vmul.f32 %v290, 0.5
    %v337 = vmul.f32 %v295, 0.5
    %v338 = vmul.f32 %v300, 0.5
    %v339 = vmul.f32 %v305, 0.5
    %v340 = vmul.f32 %v310, 0.5
    %v341 = vmul.f32 %v315, 0.5
    %v342 = vmul.f32 %v320, 0.5
    %v343 = vmul.f32 %v325, 0.5
    %v344 = vmul.f32 %v250, 0.70710677
    %v345 = vmul.f32 %v255, 0.70710677
    %v346 = vmul.f32 %v260, 0.70710677
    %v347 = vmul.f32 %v265, 0.70710677
    %v348 = vmul.f32 %v270, 0.70710677
    %v349 = vmul.f32 %v275, 0.70710677
    %v350 = vmul.f32 %v280, 0.70710677
    %v351 = vmul.f32 %v285, 0.70710677
    %v352 = vmul.f32 %v290, 0.70710677
    %v353 = vmul.f32 %v295, 0.70710677
    %v354 = vmul.f32 %v300, 0.70710677
    %v355 = vmul.f32 %v305, 0.70710677
    %v356 = vmul.f32 %v310, 0.70710677
    %v357 = vmul.f32 %v315, 0.70710677
    %v358 = vmul.f32 %v320, 0.70710677
    %v359 = vmul.f32 %v325, 0.70710677
    %v360 = verf.f32.pop %v344
    %v361 = verf.f32.pop %v345
    %v362 = verf.f32.pop %v346
    %v363 = verf.f32.pop %v347
    %v364 = verf.f32.pop %v348
    %v365 = verf.f32.pop %v349
    %v366 = verf.f32.pop %v350
    %v367 = verf.f32.pop %v351
    %v368 = verf.f32.pop %v352
    %v369 = verf.f32.pop %v353
    %v370 = verf.f32.pop %v354
    %v371 = verf.f32.pop %v355
    %v372 = verf.f32.pop %v356
    %v373 = verf.f32.pop %v357
    %v374 = verf.f32.pop %v358
    %v375 = verf.f32.pop %v359
    %v376 = vadd.f32 %v360, 1.0
    %v377 = vadd.f32 %v361, 1.0
    %v378 = vadd.f32 %v362, 1.0
    %v379 = vadd.f32 %v363, 1.0
    %v380 = vadd.f32 %v364, 1.0
    %v381 = vadd.f32 %v365, 1.0
    %v382 = vadd.f32 %v366, 1.0
    %v383 = vadd.f32 %v367, 1.0
    %v384 = vadd.f32 %v368, 1.0
    %v385 = vadd.f32 %v369, 1.0
    %v386 = vadd.f32 %v370, 1.0
    %v387 = vadd.f32 %v371, 1.0
    %v388 = vadd.f32 %v372, 1.0
    %v389 = vadd.f32 %v373, 1.0
    %v390 = vadd.f32 %v374, 1.0
    %v391 = vadd.f32 %v375, 1.0
    %v392 = vmul.f32 %v328, %v376
    %v393 = vmul.f32 %v329, %v377
    %v394 = vmul.f32 %v330, %v378
    %v395 = vmul.f32 %v331, %v379
    %v396 = vmul.f32 %v332, %v380
    %v397 = vmul.f32 %v333, %v381
    %v398 = vmul.f32 %v334, %v382
    %v399 = vmul.f32 %v335, %v383
    %v400 = vmul.f32 %v336, %v384
    %v401 = vmul.f32 %v337, %v385
    %v402 = vmul.f32 %v338, %v386
    %v403 = vmul.f32 %v339, %v387
    %v404 = vmul.f32 %v340, %v388
    %v405 = vmul.f32 %v341, %v389
    %v406 = vmul.f32 %v342, %v390
    %v407 = vmul.f32 %v343, %v391
    %v408 = vadd.f32 %v392, %v393
    %v409 = vadd.f32 %v408, %v394
    %v410 = vadd.f32 %v409, %v395
    %v411 = vadd.f32 %v410, %v396
    %v412 = vadd.f32 %v411, %v397
    %v413 = vadd.f32 %v412, %v398
    %v414 = vadd.f32 %v413, %v399
    %v415 = vadd.f32 %v414, %v400
    %v416 = vadd.f32 %v415, %v401
    %v417 = vadd.f32 %v416, %v402
    %v418 = vadd.f32 %v417, %v403
    %v419 = vadd.f32 %v418, %v404
    %v420 = vadd.f32 %v419, %v405
    %v421 = vadd.f32 %v420, %v406
    %v422 = vadd.f32 %v421, %v407
    %v423 = vrot.slane %v422, 4
    %v424 = vadd.f32 %v422, %v423
    %v425 = vrot.slane %v424, 2
    %v426 = vadd.f32 %v424, %v425
    %v427 = vrot.slane %v426, 1
    %v428 = vadd.f32 %v426, %v427
    %v429 = vrcp.pop 128.0
    %v430 = vmul.f32 %v428, %v429
    %v431 = vsub.f32 %v392, %v430
    %v432 = vsub.f32 %v393, %v430
    %v433 = vsub.f32 %v394, %v430
    %v434 = vsub.f32 %v395, %v430
    %v435 = vsub.f32 %v396, %v430
    %v436 = vsub.f32 %v397, %v430
    %v437 = vsub.f32 %v398, %v430
    %v438 = vsub.f32 %v399, %v430
    %v439 = vsub.f32 %v400, %v430
    %v440 = vsub.f32 %v401, %v430
    %v441 = vsub.f32 %v402, %v430
    %v442 = vsub.f32 %v403, %v430
    %v443 = vsub.f32 %v404, %v430
    %v444 = vsub.f32 %v405, %v430
    %v445 = vsub.f32 %v406, %v430
    %v446 = vsub.f32 %v407, %v430
    %v447 = vmul.f32 %v431, %v431
    %v448 = vmul.f32 %v432, %v432
    %v449 = vmul.f32 %v433, %v433
    %v450 = vmul.f32 %v434, %v434
    %v451 = vmul.f32 %v435, %v435
    %v452 = vmul.f32 %v436, %v436
    %v453 = vmul.f32 %v437, %v437
    %v454 = vmul.f32 %v438, %v438
    %v455 = vmul.f32 %v439, %v439
    %v456 = vmul.f32 %v440, %v440
    %v457 = vmul.f32 %v441, %v441
    %v458 = vmul.f32 %v442, %v442
    %v459 = vmul.f32 %v443, %v443
    %v460 = vmul.f32 %v444, %v444
    %v461 = vmul.f32 %v445, %v445
    %v462 = vmul.f32 %v446, %v446
    %v463 = vadd.f32 %v447, %v448
    %v464 = vadd.f32 %v463, %v449
    %v465 = vadd.f32 %v464, %v450
    %v466 = vadd.f32 %v465, %v451
    %v467 = vadd.f32 %v466, %v452
    %v468 = vadd.f32 %v467, %v453
    %v469 = vadd.f32 %v468, %v454
    %v470 = vadd.f32 %v469, %v455
    %v471 = vadd.f32 %v470, %v456
    %v472 = vadd.f32 %v471, %v457
    %v473 = vadd.f32 %v472, %v458
    %v474 = vadd.f32 %v473, %v459
    %v475 = vadd.f32 %v474, %v460
    %v476 = vadd.f32 %v475, %v461
    %v477 = vadd.f32 %v476, %v462
    %v478 = vrot.slane %v477, 4
    %v479 = vadd.f32 %v477, %v478
    %v480 = vrot.slane %v479, 2
    %v481 = vadd.f32 %v479, %v480
    %v482 = vrot.slane %v481, 1
    %v483 = vadd.f32 %v481, %v482
    %v484 = vmul.f32 %v483, %v429
    %v485 = vadd.f32 %v484, 1e-05
    %v486 = vrsqrt.pop %v485
    %v487 = vmul.f32 %v431, %v486
    %v488 = vmul.f32 %v432, %v486
    %v489 = vmul.f32 %v433, %v486
    %v490 = vmul.f32 %v434, %v486
    %v491 = vmul.f32 %v435, %v486
    %v492 = vmul.f32 %v436, %v486
    %v493 = vmul.f32 %v437, %v486
    %v494 = vmul.f32 %v438, %v486
    %v495 = vmul.f32 %v439, %v486
    %v496 = vmul.f32 %v440, %v486
    %v497 = vmul.f32 %v441, %v486
    %v498 = vmul.f32 %v442, %v486
    %v499 = vmul.f32 %v443, %v486
    %v500 = vmul.f32 %v444, %v486
    %v501 = vmul.f32 %v445, %v486
    %v502 = vmul.f32 %v446, %v486
    %v503 = vld [vmem:[#allocation10] ss:$0 sm:$0xff]
    %v504 = vmul.f32 %v487, %v503
    %v505 = vmul.f32 %v488, %v503
    %v506 = vmul.f32 %v489, %v503
    %v507 = vmul.f32 %v490, %v503
    %v508 = vmul.f32 %v491, %v503
    %v509 = vmul.f32 %v492, %v503
    %v510 = vmul.f32 %v493, %v503
    %v511 = vmul.f32 %v494, %v503
    %v512 = vmul.f32 %v495, %v503
    %v513 = vmul.f32 %v496, %v503
    %v514 = vmul.f32 %v497, %v503
    %v515 = vmul.f32 %v498, %v503
    %v516 = vmul.f32 %v499, %v503
    %v517 = vmul.f32 %v500, %v503
    %v518 = vmul.f32 %v501, %v503
    %v519 = vmul.f32 %v502, %v503
    %v520 = vld [vmem:[#allocation10 + $0x1] ss:$0 sm:$0xff]
    %v521 = vadd.f32 %v504, %v520
    %v522 = vadd.f32 %v505, %v520
    %v523 = vadd.f32 %v506, %v520
    %v524 = vadd.f32 %v507, %v520
    %v525 = vadd.f32 %v508, %v520
    %v526 = vadd.f32 %v509, %v520
    %v527 = vadd.f32 %v510, %v520
    %v528 = vadd.f32 %v511, %v520
    %v529 = vadd.f32 %v512, %v520
    %v530 = vadd.f32 %v513, %v520
    %v531 = vadd.f32 %v514, %v520
    %v532 = vadd.f32 %v515, %v520
    %v533 = vadd.f32 %v516, %v520
    %v534 = vadd.f32 %v517, %v520
    %v535 = vadd.f32 %v518, %v520
    %v536 = vadd.f32 %v519, %v520
    %v537 = vld [vmem:[#allocation2] sm:$0xff]
    %v538 = vld [vmem:[#allocation2 + $0x8] sm:$0xff]
    %v539 = vld [vmem:[#allocation2 + $0x10] sm:$0xff]
    %v540 = vld [vmem:[#allocation2 + $0x18] sm:$0xff]
    %v541 = vld [vmem:[#allocation2 + $0x20] sm:$0xff]
    %v542 = vld [vmem:[#allocation2 + $0x28] sm:$0xff]
    %v543 = vld [vmem:[#allocation2 + $0x30] sm:$0xff]
    %v544 = vld [vmem:[#allocation2 + $0x38] sm:$0xff]
    %v545 = vld [vmem:[#allocation2 + $0x40] sm:$0xff]
    %v546 = vld [vmem:[#allocation2 + $0x98] sm:$0xff]
    %v547 = vld [vmem:[#allocation2 + $0xa0] sm:$0xff]
    %v548 = vld [vmem:[#allocation2 + $0xa8] sm:$0xff]
    %v549 = vld [vmem:[#allocation2 + $0xb0] sm:$0xff]
    %v550 = vld [vmem:[#allocation2 + $0xb8] sm:$0xff]
    %v551 = vld [vmem:[#allocation2 + $0xc0] sm:$0xff]
    %v552 = vld [vmem:[#allocation2 + $0xc8] sm:$0xff]
    %v553 = vld [vmem:[#allocation2 + $0xd0] sm:$0xff]
    %v554 = vld [vmem:[#allocation2 + $0xd8] sm:$0xff]
    %v555 = vld [vmem:[#allocation2 + $0x130] sm:$0xff]
    %v556 = vld [vmem:[#allocation2 + $0x138] sm:$0xff]
    %v557 = vld [vmem:[#allocation2 + $0x140] sm:$0xff]
    %v558 = vld [vmem:[#allocation2 + $0x148] sm:$0xff]
    %v559 = vld [vmem:[#allocation2 + $0x150] sm:$0xff]
    %v560 = vld [vmem:[#allocation2 + $0x158] sm:$0xff]
    %v561 = vld [vmem:[#allocation2 + $0x160] sm:$0xff]
    %v562 = vld [vmem:[#allocation2 + $0x168] sm:$0xff]
    %v563 = vld [vmem:[#allocation2 + $0x170] sm:$0xff]
    %v564 = vld [vmem:[#allocation2 + $0x1c8] sm:$0xff]
    %v565 = vld [vmem:[#allocation2 + $0x1d0] sm:$0xff]
    %v566 = vld [vmem:[#allocation2 + $0x1d8] sm:$0xff]
    %v567 = vld [vmem:[#allocation2 + $0x1e0] sm:$0xff]
    %v568 = vld [vmem:[#allocation2 + $0x1e8] sm:$0xff]
    %v569 = vld [vmem:[#allocation2 + $0x1f0] sm:$0xff]
    %v570 = vld [vmem:[#allocation2 + $0x1f8] sm:$0xff]
    %v571 = vld [vmem:[#allocation2 + $0x200] sm:$0xff]
    %v572 = vld [vmem:[#allocation2 + $0x208] sm:$0xff]
    %v573 = vld [vmem:[#allocation2 + $0x260] sm:$0xff]
    %v574 = vld [vmem:[#allocation2 + $0x268] sm:$0xff]
    %v575 = vld [vmem:[#allocation2 + $0x270] sm:$0xff]
    %v576 = vld [vmem:[#allocation2 + $0x278] sm:$0xff]
    %v577 = vld [vmem:[#allocation2 + $0x280] sm:$0xff]
    %v578 = vld [vmem:[#allocation2 + $0x288] sm:$0xff]
    %v579 = vld [vmem:[#allocation2 + $0x290] sm:$0xff]
    %v580 = vld [vmem:[#allocation2 + $0x298] sm:$0xff]
    %v581 = vld [vmem:[#allocation2 + $0x2a0] sm:$0xff]
    %v582 = vld [vmem:[#allocation2 + $0x2f8] sm:$0xff]
    %v583 = vld [vmem:[#allocation2 + $0x300] sm:$0xff]
    %v584 = vld [vmem:[#allocation2 + $0x308] sm:$0xff]
    %v585 = vld [vmem:[#allocation2 + $0x310] sm:$0xff]
    %v586 = vld [vmem:[#allocation2 + $0x318] sm:$0xff]
    %v587 = vld [vmem:[#allocation2 + $0x320] sm:$0xff]
    %v588 = vld [vmem:[#allocation2 + $0x328] sm:$0xff]
    %v589 = vld [vmem:[#allocation2 + $0x330] sm:$0xff]
    %v590 = vld [vmem:[#allocation2 + $0x338] sm:$0xff]
    %v591 = vld [vmem:[#allocation2 + $0x390] sm:$0xff]
    %v592 = vld [vmem:[#allocation2 + $0x398] sm:$0xff]
    %v593 = vld [vmem:[#allocation2 + $0x3a0] sm:$0xff]
    %v594 = vld [vmem:[#allocation2 + $0x3a8] sm:$0xff]
    %v595 = vld [vmem:[#allocation2 + $0x3b0] sm:$0xff]
    %v596 = vld [vmem:[#allocation2 + $0x3b8] sm:$0xff]
    %v597 = vld [vmem:[#allocation2 + $0x3c0] sm:$0xff]
    %v598 = vld [vmem:[#allocation2 + $0x3c8] sm:$0xff]
    %v599 = vld [vmem:[#allocation2 + $0x3d0] sm:$0xff]
    %v600 = vld [vmem:[#allocation2 + $0x428] sm:$0xff]
    %v601 = vld [vmem:[#allocation2 + $0x430] sm:$0xff]
    %v602 = vld [vmem:[#allocation2 + $0x438] sm:$0xff]
    %v603 = vld [vmem:[#allocation2 + $0x440] sm:$0xff]
    %v604 = vld [vmem:[#allocation2 + $0x448] sm:$0xff]
    %v605 = vld [vmem:[#allocation2 + $0x450] sm:$0xff]
    %v606 = vld [vmem:[#allocation2 + $0x458] sm:$0xff]
    %v607 = vld [vmem:[#allocation2 + $0x460] sm:$0xff]
    %v608 = vld [vmem:[#allocation2 + $0x468] sm:$0xff]
    %v609 = vld [vmem:[#allocation2 + $0x4c0] sm:$0xff]
    %v610 = vld [vmem:[#allocation2 + $0x4c8] sm:$0xff]
    %v611 = vld [vmem:[#allocation2 + $0x4d0] sm:$0xff]
    %v612 = vld [vmem:[#allocation2 + $0x4d8] sm:$0xff]
    %v613 = vld [vmem:[#allocation2 + $0x4e0] sm:$0xff]
    %v614 = vld [vmem:[#allocation2 + $0x4e8] sm:$0xff]
    %v615 = vld [vmem:[#allocation2 + $0x4f0] sm:$0xff]
    %v616 = vld [vmem:[#allocation2 + $0x4f8] sm:$0xff]
    %v617 = vld [vmem:[#allocation2 + $0x500] sm:$0xff]
    %v618 = vld [vmem:[#allocation2 + $0x558] sm:$0xff]
    %v619 = vld [vmem:[#allocation2 + $0x560] sm:$0xff]
    %v620 = vld [vmem:[#allocation2 + $0x568] sm:$0xff]
    %v621 = vld [vmem:[#allocation2 + $0x570] sm:$0xff]
    %v622 = vld [vmem:[#allocation2 + $0x578] sm:$0xff]
    %v623 = vld [vmem:[#allocation2 + $0x580] sm:$0xff]
    %v624 = vld [vmem:[#allocation2 + $0x588] sm:$0xff]
    %v625 = vld [vmem:[#allocation2 + $0x590] sm:$0xff]
    %v626 = vld [vmem:[#allocation2 + $0x598] sm:$0xff]
    %v627 = vld [vmem:[#allocation2 + $0x5f0] sm:$0xff]
    %v628 = vld [vmem:[#allocation2 + $0x5f8] sm:$0xff]
    %v629 = vld [vmem:[#allocation2 + $0x600] sm:$0xff]
    %v630 = vld [vmem:[#allocation2 + $0x608] sm:$0xff]
    %v631 = vld [vmem:[#allocation2 + $0x610] sm:$0xff]
    %v632 = vld [vmem:[#allocation2 + $0x618] sm:$0xff]
    %v633 = vld [vmem:[#allocation2 + $0x620] sm:$0xff]
    %v634 = vld [vmem:[#allocation2 + $0x628] sm:$0xff]
    %v635 = vld [vmem:[#allocation2 + $0x630] sm:$0xff]
    %v636 = vld [vmem:[#allocation2 + $0x688] sm:$0xff]
    %v637 = vld [vmem:[#allocation2 + $0x690] sm:$0xff]
    %v638 = vld [vmem:[#allocation2 + $0x698] sm:$0xff]
    %v639 = vld [vmem:[#allocation2 + $0x6a0] sm:$0xff]
    %v640 = vld [vmem:[#allocation2 + $0x6a8] sm:$0xff]
    %v641 = vld [vmem:[#allocation2 + $0x6b0] sm:$0xff]
    %v642 = vld [vmem:[#allocation2 + $0x6b8] sm:$0xff]
    %v643 = vld [vmem:[#allocation2 + $0x6c0] sm:$0xff]
    %v644 = vld [vmem:[#allocation2 + $0x6c8] sm:$0xff]
    %v645 = vld [vmem:[#allocation2 + $0x720] sm:$0xff]
    %v646 = vld [vmem:[#allocation2 + $0x728] sm:$0xff]
    %v647 = vld [vmem:[#allocation2 + $0x730] sm:$0xff]
    %v648 = vld [vmem:[#allocation2 + $0x738] sm:$0xff]
    %v649 = vld [vmem:[#allocation2 + $0x740] sm:$0xff]
    %v650 = vld [vmem:[#allocation2 + $0x748] sm:$0xff]
    %v651 = vld [vmem:[#allocation2 + $0x750] sm:$0xff]
    %v652 = vld [vmem:[#allocation2 + $0x758] sm:$0xff]
    %v653 = vld [vmem:[#allocation2 + $0x760] sm:$0xff]
    %v654 = vld [vmem:[#allocation2 + $0x7b8] sm:$0xff]
    %v655 = vld [vmem:[#allocation2 + $0x7c0] sm:$0xff]
    %v656 = vld [vmem:[#allocation2 + $0x7c8] sm:$0xff]
    %v657 = vld [vmem:[#allocation2 + $0x7d0] sm:$0xff]
    %v658 = vld [vmem:[#allocation2 + $0x7d8] sm:$0xff]
    %v659 = vld [vmem:[#allocation2 + $0x7e0] sm:$0xff]
    %v660 = vld [vmem:[#allocation2 + $0x7e8] sm:$0xff]
    %v661 = vld [vmem:[#allocation2 + $0x7f0] sm:$0xff]
    %v662 = vld [vmem:[#allocation2 + $0x7f8] sm:$0xff]
    %v663 = vld [vmem:[#allocation2 + $0x850] sm:$0xff]
    %v664 = vld [vmem:[#allocation2 + $0x858] sm:$0xff]
    %v665 = vld [vmem:[#allocation2 + $0x860] sm:$0xff]
    %v666 = vld [vmem:[#allocation2 + $0x868] sm:$0xff]
    %v667 = vld [vmem:[#allocation2 + $0x870] sm:$0xff]
    %v668 = vld [vmem:[#allocation2 + $0x878] sm:$0xff]
    %v669 = vld [vmem:[#allocation2 + $0x880] sm:$0xff]
    %v670 = vld [vmem:[#allocation2 + $0x888] sm:$0xff]
    %v671 = vld [vmem:[#allocation2 + $0x890] sm:$0xff]
    %v672 = vld [vmem:[#allocation2 + $0x8e8] sm:$0xff]
    %v673 = vld [vmem:[#allocation2 + $0x8f0] sm:$0xff]
    %v674 = vld [vmem:[#allocation2 + $0x8f8] sm:$0xff]
    %v675 = vld [vmem:[#allocation2 + $0x900] sm:$0xff]
    %v676 = vld [vmem:[#allocation2 + $0x908] sm:$0xff]
    %v677 = vld [vmem:[#allocation2 + $0x910] sm:$0xff]
    %v678 = vld [vmem:[#allocation2 + $0x918] sm:$0xff]
    %v679 = vld [vmem:[#allocation2 + $0x920] sm:$0xff]
    %v680 = vld [vmem:[#allocation2 + $0x928] sm:$0xff]
    %681 = vmatprep.subr.mxu0 %v538
    %682 = vmatpush1.msra.mxu0 %v537
    %683 = vmatprep.subr.mxu0 %v547
    %684 = vmatpush1.msra.mxu0 %v546
    %685 = vmatprep.subr.mxu0 %v556
    %686 = vmatpush1.msra.mxu0 %v555
    %687 = vmatprep.subr.mxu0 %v565
    %688 = vmatpush1.msra.mxu0 %v564
    %689 = vmatprep.subr.mxu0 %v574
    %690 = vmatpush1.msra.mxu0 %v573
    %691 = vmatprep.subr.mxu0 %v583
    %692 = vmatpush1.msra.mxu0 %v582
    %693 = vmatprep.subr.mxu0 %v592
    %694 = vmatpush1.msra.mxu0 %v591
    %695 = vmatprep.subr.mxu0 %v601
    %696 = vmatpush1.msra.mxu0 %v600
    %697 = vmatprep.subr.mxu0 %v610
    %698 = vmatpush1.msra.mxu0 %v609
    %699 = vmatprep.subr.mxu0 %v619
    %700 = vmatpush1.msra.mxu0 %v618
    %701 = vmatprep.subr.mxu0 %v628
    %702 = vmatpush1.msra.mxu0 %v627
    %703 = vmatprep.subr.mxu0 %v637
    %704 = vmatpush1.msra.mxu0 %v636
    %705 = vmatprep.subr.mxu0 %v646
    %706 = vmatpush1.msra.mxu0 %v645
    %707 = vmatprep.subr.mxu0 %v655
    %708 = vmatpush1.msra.mxu0 %v654
    %709 = vmatprep.subr.mxu0 %v664
    %710 = vmatpush1.msra.mxu0 %v663
    %711 = vmatprep.subr.mxu0 %v673
    %712 = vmatpush1.msra.mxu0 %v672
    %713 = vmatprep.subr.mxu0 0.0
    %714 = vmatpush1.msra.mxu0 0.0
    %715 = vmatprep.subr.mxu0 0.0
    %716 = vmatpush1.msra.mxu0 0.0
    %717 = vmatprep.subr.mxu0 0.0
    %718 = vmatpush1.msra.mxu0 0.0
    %719 = vmatprep.subr.mxu0 0.0
    %720 = vmatpush1.msra.mxu0 0.0
    %721 = vmatprep.subr.mxu0 0.0
    %722 = vmatpush1.msra.mxu0 0.0
    %723 = vmatprep.subr.mxu0 0.0
    %724 = vmatpush1.msra.mxu0 0.0
    %725 = vmatprep.subr.mxu0 0.0
    %726 = vmatpush1.msra.mxu0 0.0
    %727 = vmatprep.subr.mxu0 0.0
    %728 = vmatpush1.msra.mxu0 0.0
    %729 = vmatprep.subr.mxu0 0.0
    %730 = vmatpush1.msra.mxu0 0.0
    %731 = vmatprep.subr.mxu0 0.0
    %732 = vmatpush1.msra.mxu0 0.0
    %733 = vmatprep.subr.mxu0 0.0
    %734 = vmatpush1.msra.mxu0 0.0
    %735 = vmatprep.subr.mxu0 0.0
    %736 = vmatpush1.msra.mxu0 0.0
    %737 = vmatprep.subr.mxu0 0.0
    %738 = vmatpush1.msra.mxu0 0.0
    %739 = vmatprep.subr.mxu0 0.0
    %740 = vmatpush1.msra.mxu0 0.0
    %741 = vmatprep.subr.mxu0 0.0
    %742 = vmatpush1.msra.mxu0 0.0
    %743 = vmatprep.subr.mxu0 0.0
    %744 = vmatpush1.msra.mxu0 0.0
    %745 = vmatprep.mubr.f32.mxu0 0.0
    %746 = vmatmul.mubr.f32.gmra.mrb[0].mxu0 %v521
    %v747 = vpop.f32.mrb[0].mxu0
    %v748 = vadd.f32 0.0, %v747
    %v749 = vpop.f32.mrb[0].mxu0
    %v750 = vadd.f32 0.0, %v749
    %751 = vmatprep.mubr.f32.mxu0 0.0
    %752 = vmatmul.mubr.f32.gmra.mrb[0].mxu0 %v522
    %v753 = vpop.f32.mrb[0].mxu0
    %v754 = vadd.f32 0.0, %v753
    %v755 = vpop.f32.mrb[0].mxu0
    %v756 = vadd.f32 0.0, %v755
    %757 = vmatprep.mubr.f32.mxu0 0.0
    %758 = vmatmul.mubr.f32.gmra.mrb[0].mxu0 %v523
    %v759 = vpop.f32.mrb[0].mxu0
    %v760 = vadd.f32 0.0, %v759
    %v761 = vpop.f32.mrb[0].mxu0
    %v762 = vadd.f32 0.0, %v761
    %763 = vmatprep.mubr.f32.mxu0 0.0
    %764 = vmatmul.mubr.f32.gmra.mrb[0].mxu0 %v524
    %v765 = vpop.f32.mrb[0].mxu0
    %v766 = vadd.f32 0.0, %v765
    %v767 = vpop.f32.mrb[0].mxu0
    %v768 = vadd.f32 0.0, %v767
    %769 = vmatprep.mubr.f32.mxu0 0.0
    %770 = vmatmul.mubr.f32.gmra.mrb[0].mxu0 %v525
    %v771 = vpop.f32.mrb[0].mxu0
    %v772 = vadd.f32 0.0, %v771
    %v773 = vpop.f32.mrb[0].mxu0
    %v774 = vadd.f32 0.0, %v773
    %775 = vmatprep.mubr.f32.mxu0 0.0
    %776 = vmatmul.mubr.f32.gmra.mrb[0].mxu0 %v526
    %v777 = vpop.f32.mrb[0].mxu0
    %v778 = vadd.f32 0.0, %v777
    %v779 = vpop.f32.mrb[0].mxu0
    %v780 = vadd.f32 0.0, %v779
    %781 = vmatprep.mubr.f32.mxu0 0.0
    %782 = vmatmul.mubr.f32.gmra.mrb[0].mxu0 %v527
    %v783 = vpop.f32.mrb[0].mxu0
    %v784 = vadd.f32 0.0, %v783
    %v785 = vpop.f32.mrb[0].mxu0
    %v786 = vadd.f32 0.0, %v785
    %787 = vmatprep.mubr.f32.mxu0 0.0
    %788 = vmatmul.mubr.f32.gmra.mrb[0].mxu0 %v528
    %v789 = vpop.f32.mrb[0].mxu0
    %v790 = vadd.f32 0.0, %v789
    %v791 = vpop.f32.mrb[0].mxu0
    %v792 = vadd.f32 0.0, %v791
    %793 = vmatprep.mubr.f32.mxu0 0.0
    %794 = vmatmul.mubr.f32.gmra.mrb[0].mxu0 %v529
    %v795 = vpop.f32.mrb[0].mxu0
    %v796 = vadd.f32 0.0, %v795
    %v797 = vpop.f32.mrb[0].mxu0
    %v798 = vadd.f32 0.0, %v797
    %799 = vmatprep.mubr.f32.mxu0 0.0
    %800 = vmatmul.mubr.f32.gmra.mrb[0].mxu0 %v530
    %v801 = vpop.f32.mrb[0].mxu0
    %v802 = vadd.f32 0.0, %v801
    %v803 = vpop.f32.mrb[0].mxu0
    %v804 = vadd.f32 0.0, %v803
    %805 = vmatprep.mubr.f32.mxu0 0.0
    %806 = vmatmul.mubr.f32.gmra.mrb[0].mxu0 %v531
    %v807 = vpop.f32.mrb[0].mxu0
    %v808 = vadd.f32 0.0, %v807
    %v809 = vpop.f32.mrb[0].mxu0
    %v810 = vadd.f32 0.0, %v809
    %811 = vmatprep.mubr.f32.mxu0 0.0
    %812 = vmatmul.mubr.f32.gmra.mrb[0].mxu0 %v532
    %v813 = vpop.f32.mrb[0].mxu0
    %v814 = vadd.f32 0.0, %v813
    %v815 = vpop.f32.mrb[0].mxu0
    %v816 = vadd.f32 0.0, %v815
    %817 = vmatprep.mubr.f32.mxu0 0.0
    %818 = vmatmul.mubr.f32.gmra.mrb[0].mxu0 %v533
    %v819 = vpop.f32.mrb[0].mxu0
    %v820 = vadd.f32 0.0, %v819
    %v821 = vpop.f32.mrb[0].mxu0
    %v822 = vadd.f32 0.0, %v821
    %823 = vmatprep.mubr.f32.mxu0 0.0
    %824 = vmatmul.mubr.f32.gmra.mrb[0].mxu0 %v534
    %v825 = vpop.f32.mrb[0].mxu0
    %v826 = vadd.f32 0.0, %v825
    %v827 = vpop.f32.mrb[0].mxu0
    %v828 = vadd.f32 0.0, %v827
    %829 = vmatprep.mubr.f32.mxu0 0.0
    %830 = vmatmul.mubr.f32.gmra.mrb[0].mxu0 %v535
    %v831 = vpop.f32.mrb[0].mxu0
    %v832 = vadd.f32 0.0, %v831
    %v833 = vpop.f32.mrb[0].mxu0
    %v834 = vadd.f32 0.0, %v833
    %835 = vmatprep.mubr.f32.mxu0 0.0
    %836 = vmatmul.mubr.f32.gmra.mrb[0].mxu0 %v536
    %v837 = vpop.f32.mrb[0].mxu0
    %v838 = vadd.f32 0.0, %v837
    %v839 = vpop.f32.mrb[0].mxu0
    %v840 = vadd.f32 0.0, %v839
    %841 = vdwg.mxu0
    %842 = vmatprep.subr.mxu0 %v540
    %843 = vmatpush1.msra.mxu0 %v539
    %844 = vmatprep.subr.mxu0 %v549
    %845 = vmatpush1.msra.mxu0 %v548
    %846 = vmatprep.subr.mxu0 %v558
    %847 = vmatpush1.msra.mxu0 %v557
    %848 = vmatprep.subr.mxu0 %v567
    %849 = vmatpush1.msra.mxu0 %v566
    %850 = vmatprep.subr.mxu0 %v576
    %851 = vmatpush1.msra.mxu0 %v575
    %852 = vmatprep.subr.mxu0 %v585
    %853 = vmatpush1.msra.mxu0 %v584
    %854 = vmatprep.subr.mxu0 %v594
    %855 = vmatpush1.msra.mxu0 %v593
    %856 = vmatprep.subr.mxu0 %v603
    %857 = vmatpush1.msra.mxu0 %v602
    %858 = vmatprep.subr.mxu0 %v612
    %859 = vmatpush1.msra.mxu0 %v611
    %860 = vmatprep.subr.mxu0 %v621
    %861 = vmatpush1.msra.mxu0 %v620
    %862 = vmatprep.subr.mxu0 %v630
    %863 = vmatpush1.msra.mxu0 %v629
    %864 = vmatprep.subr.mxu0 %v639
    %865 = vmatpush1.msra.mxu0 %v638
    %866 = vmatprep.subr.mxu0 %v648
    %867 = vmatpush1.msra.mxu0 %v647
    %868 = vmatprep.subr.mxu0 %v657
    %869 = vmatpush1.msra.mxu0 %v656
    %870 = vmatprep.subr.mxu0 %v666
    %871 = vmatpush1.msra.mxu0 %v665
    %872 = vmatprep.subr.mxu0 %v675
    %873 = vmatpush1.msra.mxu0 %v674
    %874 = vmatprep.subr.mxu0 0.0
    %875 = vmatpush1.msra.mxu0 0.0
    %876 = vmatprep.subr.mxu0 0.0
    %877 = vmatpush1.msra.mxu0 0.0
    %878 = vmatprep.subr.mxu0 0.0
    %879 = vmatpush1.msra.mxu0 0.0
    %880 = vmatprep.subr.mxu0 0.0
    %881 = vmatpush1.msra.mxu0 0.0
    %882 = vmatprep.subr.mxu0 0.0
    %883 = vmatpush1.msra.mxu0 0.0
    %884 = vmatprep.subr.mxu0 0.0
    %885 = vmatpush1.msra.mxu0 0.0
    %886 = vmatprep.subr.mxu0 0.0
    %887 = vmatpush1.msra.mxu0 0.0
    %888 = vmatprep.subr.mxu0 0.0
    %889 = vmatpush1.msra.mxu0 0.0
    %890 = vmatprep.subr.mxu0 0.0
    %891 = vmatpush1.msra.mxu0 0.0
    %892 = vmatprep.subr.mxu0 0.0
    %893 = vmatpush1.msra.mxu0 0.0
    %894 = vmatprep.subr.mxu0 0.0
    %895 = vmatpush1.msra.mxu0 0.0
    %896 = vmatprep.subr.mxu0 0.0
    %897 = vmatpush1.msra.mxu0 0.0
    %898 = vmatprep.subr.mxu0 0.0
    %899 = vmatpush1.msra.mxu0 0.0
    %900 = vmatprep.subr.mxu0 0.0
    %901 = vmatpush1.msra.mxu0 0.0
    %902 = vmatprep.subr.mxu0 0.0
    %903 = vmatpush1.msra.mxu0 0.0
    %904 = vmatprep.subr.mxu0 0.0
    %905 = vmatpush1.msra.mxu0 0.0
    %906 = vmatprep.mubr.f32.mxu0 0.0
    %907 = vmatmul.mubr.f32.gmra.mrb[0].mxu0 %v521
    %v908 = vpop.f32.mrb[0].mxu0
    %v909 = vadd.f32 0.0, %v908
    %v910 = vpop.f32.mrb[0].mxu0
    %v911 = vadd.f32 0.0, %v910
    %912 = vmatprep.mubr.f32.mxu0 0.0
    %913 = vmatmul.mubr.f32.gmra.mrb[0].mxu0 %v522
    %v914 = vpop.f32.mrb[0].mxu0
    %v915 = vadd.f32 0.0, %v914
    %v916 = vpop.f32.mrb[0].mxu0
    %v917 = vadd.f32 0.0, %v916
    %918 = vmatprep.mubr.f32.mxu0 0.0
    %919 = vmatmul.mubr.f32.gmra.mrb[0].mxu0 %v523
    %v920 = vpop.f32.mrb[0].mxu0
    %v921 = vadd.f32 0.0, %v920
    %v922 = vpop.f32.mrb[0].mxu0
    %v923 = vadd.f32 0.0, %v922
    %924 = vmatprep.mubr.f32.mxu0 0.0
    %925 = vmatmul.mubr.f32.gmra.mrb[0].mxu0 %v524
    %v926 = vpop.f32.mrb[0].mxu0
    %v927 = vadd.f32 0.0, %v926
    %v928 = vpop.f32.mrb[0].mxu0
    %v929 = vadd.f32 0.0, %v928
    %930 = vmatprep.mubr.f32.mxu0 0.0
    %931 = vmatmul.mubr.f32.gmra.mrb[0].mxu0 %v525
    %v932 = vpop.f32.mrb[0].mxu0
    %v933 = vadd.f32 0.0, %v932
    %v934 = vpop.f32.mrb[0].mxu0
    %v935 = vadd.f32 0.0, %v934
    %936 = vmatprep.mubr.f32.mxu0 0.0
    %937 = vmatmul.mubr.f32.gmra.mrb[0].mxu0 %v526
    %v938 = vpop.f32.mrb[0].mxu0
    %v939 = vadd.f32 0.0, %v938
    %v940 = vpop.f32.mrb[0].mxu0
    %v941 = vadd.f32 0.0, %v940
    %942 = vmatprep.mubr.f32.mxu0 0.0
    %943 = vmatmul.mubr.f32.gmra.mrb[0].mxu0 %v527
    %v944 = vpop.f32.mrb[0].mxu0
    %v945 = vadd.f32 0.0, %v944
    %v946 = vpop.f32.mrb[0].mxu0
    %v947 = vadd.f32 0.0, %v946
    %948 = vmatprep.mubr.f32.mxu0 0.0
    %949 = vmatmul.mubr.f32.gmra.mrb[0].mxu0 %v528
    %v950 = vpop.f32.mrb[0].mxu0
    %v951 = vadd.f32 0.0, %v950
    %v952 = vpop.f32.mrb[0].mxu0
    %v953 = vadd.f32 0.0, %v952
    %954 = vmatprep.mubr.f32.mxu0 0.0
    %955 = vmatmul.mubr.f32.gmra.mrb[0].mxu0 %v529
    %v956 = vpop.f32.mrb[0].mxu0
    %v957 = vadd.f32 0.0, %v956
    %v958 = vpop.f32.mrb[0].mxu0
    %v959 = vadd.f32 0.0, %v958
    %960 = vmatprep.mubr.f32.mxu0 0.0
    %961 = vmatmul.mubr.f32.gmra.mrb[0].mxu0 %v530
    %v962 = vpop.f32.mrb[0].mxu0
    %v963 = vadd.f32 0.0, %v962
    %v964 = vpop.f32.mrb[0].mxu0
    %v965 = vadd.f32 0.0, %v964
    %966 = vmatprep.mubr.f32.mxu0 0.0
    %967 = vmatmul.mubr.f32.gmra.mrb[0].mxu0 %v531
    %v968 = vpop.f32.mrb[0].mxu0
    %v969 = vadd.f32 0.0, %v968
    %v970 = vpop.f32.mrb[0].mxu0
    %v971 = vadd.f32 0.0, %v970
    %972 = vmatprep.mubr.f32.mxu0 0.0
    %973 = vmatmul.mubr.f32.gmra.mrb[0].mxu0 %v532
    %v974 = vpop.f32.mrb[0].mxu0
    %v975 = vadd.f32 0.0, %v974
    %v976 = vpop.f32.mrb[0].mxu0
    %v977 = vadd.f32 0.0, %v976
    %978 = vmatprep.mubr.f32.mxu0 0.0
    %979 = vmatmul.mubr.f32.gmra.mrb[0].mxu0 %v533
    %v980 = vpop.f32.mrb[0].mxu0
    %v981 = vadd.f32 0.0, %v980
    %v982 = vpop.f32.mrb[0].mxu0
    %v983 = vadd.f32 0.0, %v982
    %984 = vmatprep.mubr.f32.mxu0 0.0
    %985 = vmatmul.mubr.f32.gmra.mrb[0].mxu0 %v534
    %v986 = vpop.f32.mrb[0].mxu0
    %v987 = vadd.f32 0.0, %v986
    %v988 = vpop.f32.mrb[0].mxu0
    %v989 = vadd.f32 0.0, %v988
    %990 = vmatprep.mubr.f32.mxu0 0.0
    %991 = vmatmul.mubr.f32.gmra.mrb[0].mxu0 %v535
    %v992 = vpop.f32.mrb[0].mxu0
    %v993 = vadd.f32 0.0, %v992
    %v994 = vpop.f32.mrb[0].mxu0
    %v995 = vadd.f32 0.0, %v994
    %996 = vmatprep.mubr.f32.mxu0 0.0
    %997 = vmatmul.mubr.f32.gmra.mrb[0].mxu0 %v536
    %v998 = vpop.f32.mrb[0].mxu0
    %v999 = vadd.f32 0.0, %v998
    %v1000 = vpop.f32.mrb[0].mxu0
    %v1001 = vadd.f32 0.0, %v1000
    %1002 = vdwg.mxu0
    %1003 = vmatprep.subr.mxu0 %v542
    %1004 = vmatpush1.msra.mxu0 %v541
    %1005 = vmatprep.subr.mxu0 %v551
    %1006 = vmatpush1.msra.mxu0 %v550
    %1007 = vmatprep.subr.mxu0 %v560
    %1008 = vmatpush1.msra.mxu0 %v559
    %1009 = vmatprep.subr.mxu0 %v569
    %1010 = vmatpush1.msra.mxu0 %v568
    %1011 = vmatprep.subr.mxu0 %v578
    %1012 = vmatpush1.msra.mxu0 %v577
    %1013 = vmatprep.subr.mxu0 %v587
    %1014 = vmatpush1.msra.mxu0 %v586
    %1015 = vmatprep.subr.mxu0 %v596
    %1016 = vmatpush1.msra.mxu0 %v595
    %1017 = vmatprep.subr.mxu0 %v605
    %1018 = vmatpush1.msra.mxu0 %v604
    %1019 = vmatprep.subr.mxu0 %v614
    %1020 = vmatpush1.msra.mxu0 %v613
    %1021 = vmatprep.subr.mxu0 %v623
    %1022 = vmatpush1.msra.mxu0 %v622
    %1023 = vmatprep.subr.mxu0 %v632
    %1024 = vmatpush1.msra.mxu0 %v631
    %1025 = vmatprep.subr.mxu0 %v641
    %1026 = vmatpush1.msra.mxu0 %v640
    %1027 = vmatprep.subr.mxu0 %v650
    %1028 = vmatpush1.msra.mxu0 %v649
    %1029 = vmatprep.subr.mxu0 %v659
    %1030 = vmatpush1.msra.mxu0 %v658
    %1031 = vmatprep.subr.mxu0 %v668
    %1032 = vmatpush1.msra.mxu0 %v667
    %1033 = vmatprep.subr.mxu0 %v677
    %1034 = vmatpush1.msra.mxu0 %v676
    %1035 = vmatprep.subr.mxu0 0.0
    %1036 = vmatpush1.msra.mxu0 0.0
    %1037 = vmatprep.subr.mxu0 0.0
    %1038 = vmatpush1.msra.mxu0 0.0
    %1039 = vmatprep.subr.mxu0 0.0
    %1040 = vmatpush1.msra.mxu0 0.0
    %1041 = vmatprep.subr.mxu0 0.0
    %1042 = vmatpush1.msra.mxu0 0.0
    %1043 = vmatprep.subr.mxu0 0.0
    %1044 = vmatpush1.msra.mxu0 0.0
    %1045 = vmatprep.subr.mxu0 0.0
    %1046 = vmatpush1.msra.mxu0 0.0
    %1047 = vmatprep.subr.mxu0 0.0
    %1048 = vmatpush1.msra.mxu0 0.0
    %1049 = vmatprep.subr.mxu0 0.0
    %1050 = vmatpush1.msra.mxu0 0.0
    %1051 = vmatprep.subr.mxu0 0.0
    %1052 = vmatpush1.msra.mxu0 0.0
    %1053 = vmatprep.subr.mxu0 0.0
    %1054 = vmatpush1.msra.mxu0 0.0
    %1055 = vmatprep.subr.mxu0 0.0
    %1056 = vmatpush1.msra.mxu0 0.0
    %1057 = vmatprep.subr.mxu0 0.0
    %1058 = vmatpush1.msra.mxu0 0.0
    %1059 = vmatprep.subr.mxu0 0.0
    %1060 = vmatpush1.msra.mxu0 0.0
    %1061 = vmatprep.subr.mxu0 0.0
    %1062 = vmatpush1.msra.mxu0 0.0
    %1063 = vmatprep.subr.mxu0 0.0
    %1064 = vmatpush1.msra.mxu0 0.0
    %1065 = vmatprep.subr.mxu0 0.0
    %1066 = vmatpush1.msra.mxu0 0.0
    %1067 = vmatprep.mubr.f32.mxu0 0.0
    %1068 = vmatmul.mubr.f32.gmra.mrb[0].mxu0 %v521
    %v1069 = vpop.f32.mrb[0].mxu0
    %v1070 = vadd.f32 0.0, %v1069
    %v1071 = vpop.f32.mrb[0].mxu0
    %v1072 = vadd.f32 0.0, %v1071
    %1073 = vmatprep.mubr.f32.mxu0 0.0
    %1074 = vmatmul.mubr.f32.gmra.mrb[0].mxu0 %v522
    %v1075 = vpop.f32.mrb[0].mxu0
    %v1076 = vadd.f32 0.0, %v1075
    %v1077 = vpop.f32.mrb[0].mxu0
    %v1078 = vadd.f32 0.0, %v1077
    %1079 = vmatprep.mubr.f32.mxu0 0.0
    %1080 = vmatmul.mubr.f32.gmra.mrb[0].mxu0 %v523
    %v1081 = vpop.f32.mrb[0].mxu0
    %v1082 = vadd.f32 0.0, %v1081
    %v1083 = vpop.f32.mrb[0].mxu0
    %v1084 = vadd.f32 0.0, %v1083
    %1085 = vmatprep.mubr.f32.mxu0 0.0
    %1086 = vmatmul.mubr.f32.gmra.mrb[0].mxu0 %v524
    %v1087 = vpop.f32.mrb[0].mxu0
    %v1088 = vadd.f32 0.0, %v1087
    %v1089 = vpop.f32.mrb[0].mxu0
    %v1090 = vadd.f32 0.0, %v1089
    %1091 = vmatprep.mubr.f32.mxu0 0.0
    %1092 = vmatmul.mubr.f32.gmra.mrb[0].mxu0 %v525
    %v1093 = vpop.f32.mrb[0].mxu0
    %v1094 = vadd.f32 0.0, %v1093
    %v1095 = vpop.f32.mrb[0].mxu0
    %v1096 = vadd.f32 0.0, %v1095
    %1097 = vmatprep.mubr.f32.mxu0 0.0
    %1098 = vmatmul.mubr.f32.gmra.mrb[0].mxu0 %v526
    %v1099 = vpop.f32.mrb[0].mxu0
    %v1100 = vadd.f32 0.0, %v1099
    %v1101 = vpop.f32.mrb[0].mxu0
    %v1102 = vadd.f32 0.0, %v1101
    %1103 = vmatprep.mubr.f32.mxu0 0.0
    %1104 = vmatmul.mubr.f32.gmra.mrb[0].mxu0 %v527
    %v1105 = vpop.f32.mrb[0].mxu0
    %v1106 = vadd.f32 0.0, %v1105
    %v1107 = vpop.f32.mrb[0].mxu0
    %v1108 = vadd.f32 0.0, %v1107
    %1109 = vmatprep.mubr.f32.mxu0 0.0
    %1110 = vmatmul.mubr.f32.gmra.mrb[0].mxu0 %v528
    %v1111 = vpop.f32.mrb[0].mxu0
    %v1112 = vadd.f32 0.0, %v1111
    %v1113 = vpop.f32.mrb[0].mxu0
    %v1114 = vadd.f32 0.0, %v1113
    %1115 = vmatprep.mubr.f32.mxu0 0.0
    %1116 = vmatmul.mubr.f32.gmra.mrb[0].mxu0 %v529
    %v1117 = vpop.f32.mrb[0].mxu0
    %v1118 = vadd.f32 0.0, %v1117
    %v1119 = vpop.f32.mrb[0].mxu0
    %v1120 = vadd.f32 0.0, %v1119
    %1121 = vmatprep.mubr.f32.mxu0 0.0
    %1122 = vmatmul.mubr.f32.gmra.mrb[0].mxu0 %v530
    %v1123 = vpop.f32.mrb[0].mxu0
    %v1124 = vadd.f32 0.0, %v1123
    %v1125 = vpop.f32.mrb[0].mxu0
    %v1126 = vadd.f32 0.0, %v1125
    %1127 = vmatprep.mubr.f32.mxu0 0.0
    %1128 = vmatmul.mubr.f32.gmra.mrb[0].mxu0 %v531
    %v1129 = vpop.f32.mrb[0].mxu0
    %v1130 = vadd.f32 0.0, %v1129
    %v1131 = vpop.f32.mrb[0].mxu0
    %v1132 = vadd.f32 0.0, %v1131
    %1133 = vmatprep.mubr.f32.mxu0 0.0
    %1134 = vmatmul.mubr.f32.gmra.mrb[0].mxu0 %v532
    %v1135 = vpop.f32.mrb[0].mxu0
    %v1136 = vadd.f32 0.0, %v1135
    %v1137 = vpop.f32.mrb[0].mxu0
    %v1138 = vadd.f32 0.0, %v1137
    %1139 = vmatprep.mubr.f32.mxu0 0.0
    %1140 = vmatmul.mubr.f32.gmra.mrb[0].mxu0 %v533
    %v1141 = vpop.f32.mrb[0].mxu0
    %v1142 = vadd.f32 0.0, %v1141
    %v1143 = vpop.f32.mrb[0].mxu0
    %v1144 = vadd.f32 0.0, %v1143
    %1145 = vmatprep.mubr.f32.mxu0 0.0
    %1146 = vmatmul.mubr.f32.gmra.mrb[0].mxu0 %v534
    %v1147 = vpop.f32.mrb[0].mxu0
    %v1148 = vadd.f32 0.0, %v1147
    %v1149 = vpop.f32.mrb[0].mxu0
    %v1150 = vadd.f32 0.0, %v1149
    %1151 = vmatprep.mubr.f32.mxu0 0.0
    %1152 = vmatmul.mubr.f32.gmra.mrb[0].mxu0 %v535
    %v1153 = vpop.f32.mrb[0].mxu0
    %v1154 = vadd.f32 0.0, %v1153
    %v1155 = vpop.f32.mrb[0].mxu0
    %v1156 = vadd.f32 0.0, %v1155
    %1157 = vmatprep.mubr.f32.mxu0 0.0
    %1158 = vmatmul.mubr.f32.gmra.mrb[0].mxu0 %v536
    %v1159 = vpop.f32.mrb[0].mxu0
    %v1160 = vadd.f32 0.0, %v1159
    %v1161 = vpop.f32.mrb[0].mxu0
    %v1162 = vadd.f32 0.0, %v1161
    %1163 = vdwg.mxu0
    %1164 = vmatprep.subr.mxu0 %v544
    %1165 = vmatpush1.msra.mxu0 %v543
    %1166 = vmatprep.subr.mxu0 %v553
    %1167 = vmatpush1.msra.mxu0 %v552
    %1168 = vmatprep.subr.mxu0 %v562
    %1169 = vmatpush1.msra.mxu0 %v561
    %1170 = vmatprep.subr.mxu0 %v571
    %1171 = vmatpush1.msra.mxu0 %v570
    %1172 = vmatprep.subr.mxu0 %v580
    %1173 = vmatpush1.msra.mxu0 %v579
    %1174 = vmatprep.subr.mxu0 %v589
    %1175 = vmatpush1.msra.mxu0 %v588
    %1176 = vmatprep.subr.mxu0 %v598
    %1177 = vmatpush1.msra.mxu0 %v597
    %1178 = vmatprep.subr.mxu0 %v607
    %1179 = vmatpush1.msra.mxu0 %v606
    %1180 = vmatprep.subr.mxu0 %v616
    %1181 = vmatpush1.msra.mxu0 %v615
    %1182 = vmatprep.subr.mxu0 %v625
    %1183 = vmatpush1.msra.mxu0 %v624
    %1184 = vmatprep.subr.mxu0 %v634
    %1185 = vmatpush1.msra.mxu0 %v633
    %1186 = vmatprep.subr.mxu0 %v643
    %1187 = vmatpush1.msra.mxu0 %v642
    %1188 = vmatprep.subr.mxu0 %v652
    %1189 = vmatpush1.msra.mxu0 %v651
    %1190 = vmatprep.subr.mxu0 %v661
    %1191 = vmatpush1.msra.mxu0 %v660
    %1192 = vmatprep.subr.mxu0 %v670
    %1193 = vmatpush1.msra.mxu0 %v669
    %1194 = vmatprep.subr.mxu0 %v679
    %1195 = vmatpush1.msra.mxu0 %v678
    %1196 = vmatprep.subr.mxu0 0.0
    %1197 = vmatpush1.msra.mxu0 0.0
    %1198 = vmatprep.subr.mxu0 0.0
    %1199 = vmatpush1.msra.mxu0 0.0
    %1200 = vmatprep.subr.mxu0 0.0
    %1201 = vmatpush1.msra.mxu0 0.0
    %1202 = vmatprep.subr.mxu0 0.0
    %1203 = vmatpush1.msra.mxu0 0.0
    %1204 = vmatprep.subr.mxu0 0.0
    %1205 = vmatpush1.msra.mxu0 0.0
    %1206 = vmatprep.subr.mxu0 0.0
    %1207 = vmatpush1.msra.mxu0 0.0
    %1208 = vmatprep.subr.mxu0 0.0
    %1209 = vmatpush1.msra.mxu0 0.0
    %1210 = vmatprep.subr.mxu0 0.0
    %1211 = vmatpush1.msra.mxu0 0.0
    %1212 = vmatprep.subr.mxu0 0.0
    %1213 = vmatpush1.msra.mxu0 0.0
    %1214 = vmatprep.subr.mxu0 0.0
    %1215 = vmatpush1.msra.mxu0 0.0
    %1216 = vmatprep.subr.mxu0 0.0
    %1217 = vmatpush1.msra.mxu0 0.0
    %1218 = vmatprep.subr.mxu0 0.0
    %1219 = vmatpush1.msra.mxu0 0.0
    %1220 = vmatprep.subr.mxu0 0.0
    %1221 = vmatpush1.msra.mxu0 0.0
    %1222 = vmatprep.subr.mxu0 0.0
    %1223 = vmatpush1.msra.mxu0 0.0
    %1224 = vmatprep.subr.mxu0 0.0
    %1225 = vmatpush1.msra.mxu0 0.0
    %1226 = vmatprep.subr.mxu0 0.0
    %1227 = vmatpush1.msra.mxu0 0.0
    %1228 = vmatprep.mubr.f32.mxu0 0.0
    %1229 = vmatmul.mubr.f32.gmra.mrb[0].mxu0 %v521
    %v1230 = vpop.f32.mrb[0].mxu0
    %v1231 = vadd.f32 0.0, %v1230
    %v1232 = vpop.f32.mrb[0].mxu0
    %v1233 = vadd.f32 0.0, %v1232
    %1234 = vmatprep.mubr.f32.mxu0 0.0
    %1235 = vmatmul.mubr.f32.gmra.mrb[0].mxu0 %v522
    %v1236 = vpop.f32.mrb[0].mxu0
    %v1237 = vadd.f32 0.0, %v1236
    %v1238 = vpop.f32.mrb[0].mxu0
    %v1239 = vadd.f32 0.0, %v1238
    %1240 = vmatprep.mubr.f32.mxu0 0.0
    %1241 = vmatmul.mubr.f32.gmra.mrb[0].mxu0 %v523
    %v1242 = vpop.f32.mrb[0].mxu0
    %v1243 = vadd.f32 0.0, %v1242
    %v1244 = vpop.f32.mrb[0].mxu0
    %v1245 = vadd.f32 0.0, %v1244
    %1246 = vmatprep.mubr.f32.mxu0 0.0
    %1247 = vmatmul.mubr.f32.gmra.mrb[0].mxu0 %v524
    %v1248 = vpop.f32.mrb[0].mxu0
    %v1249 = vadd.f32 0.0, %v1248
    %v1250 = vpop.f32.mrb[0].mxu0
    %v1251 = vadd.f32 0.0, %v1250
    %1252 = vmatprep.mubr.f32.mxu0 0.0
    %1253 = vmatmul.mubr.f32.gmra.mrb[0].mxu0 %v525
    %v1254 = vpop.f32.mrb[0].mxu0
    %v1255 = vadd.f32 0.0, %v1254
    %v1256 = vpop.f32.mrb[0].mxu0
    %v1257 = vadd.f32 0.0, %v1256
    %1258 = vmatprep.mubr.f32.mxu0 0.0
    %1259 = vmatmul.mubr.f32.gmra.mrb[0].mxu0 %v526
    %v1260 = vpop.f32.mrb[0].mxu0
    %v1261 = vadd.f32 0.0, %v1260
    %v1262 = vpop.f32.mrb[0].mxu0
    %v1263 = vadd.f32 0.0, %v1262
    %1264 = vmatprep.mubr.f32.mxu0 0.0
    %1265 = vmatmul.mubr.f32.gmra.mrb[0].mxu0 %v527
    %v1266 = vpop.f32.mrb[0].mxu0
    %v1267 = vadd.f32 0.0, %v1266
    %v1268 = vpop.f32.mrb[0].mxu0
    %v1269 = vadd.f32 0.0, %v1268
    %1270 = vmatprep.mubr.f32.mxu0 0.0
    %1271 = vmatmul.mubr.f32.gmra.mrb[0].mxu0 %v528
    %v1272 = vpop.f32.mrb[0].mxu0
    %v1273 = vadd.f32 0.0, %v1272
    %v1274 = vpop.f32.mrb[0].mxu0
    %v1275 = vadd.f32 0.0, %v1274
    %1276 = vmatprep.mubr.f32.mxu0 0.0
    %1277 = vmatmul.mubr.f32.gmra.mrb[0].mxu0 %v529
    %v1278 = vpop.f32.mrb[0].mxu0
    %v1279 = vadd.f32 0.0, %v1278
    %v1280 = vpop.f32.mrb[0].mxu0
    %v1281 = vadd.f32 0.0, %v1280
    %1282 = vmatprep.mubr.f32.mxu0 0.0
    %1283 = vmatmul.mubr.f32.gmra.mrb[0].mxu0 %v530
    %v1284 = vpop.f32.mrb[0].mxu0
    %v1285 = vadd.f32 0.0, %v1284
    %v1286 = vpop.f32.mrb[0].mxu0
    %v1287 = vadd.f32 0.0, %v1286
    %1288 = vmatprep.mubr.f32.mxu0 0.0
    %1289 = vmatmul.mubr.f32.gmra.mrb[0].mxu0 %v531
    %v1290 = vpop.f32.mrb[0].mxu0
    %v1291 = vadd.f32 0.0, %v1290
    %v1292 = vpop.f32.mrb[0].mxu0
    %v1293 = vadd.f32 0.0, %v1292
    %1294 = vmatprep.mubr.f32.mxu0 0.0
    %1295 = vmatmul.mubr.f32.gmra.mrb[0].mxu0 %v532
    %v1296 = vpop.f32.mrb[0].mxu0
    %v1297 = vadd.f32 0.0, %v1296
    %v1298 = vpop.f32.mrb[0].mxu0
    %v1299 = vadd.f32 0.0, %v1298
    %1300 = vmatprep.mubr.f32.mxu0 0.0
    %1301 = vmatmul.mubr.f32.gmra.mrb[0].mxu0 %v533
    %v1302 = vpop.f32.mrb[0].mxu0
    %v1303 = vadd.f32 0.0, %v1302
    %v1304 = vpop.f32.mrb[0].mxu0
    %v1305 = vadd.f32 0.0, %v1304
    %1306 = vmatprep.mubr.f32.mxu0 0.0
    %1307 = vmatmul.mubr.f32.gmra.mrb[0].mxu0 %v534
    %v1308 = vpop.f32.mrb[0].mxu0
    %v1309 = vadd.f32 0.0, %v1308
    %v1310 = vpop.f32.mrb[0].mxu0
    %v1311 = vadd.f32 0.0, %v1310
    %1312 = vmatprep.mubr.f32.mxu0 0.0
    %1313 = vmatmul.mubr.f32.gmra.mrb[0].mxu0 %v535
    %v1314 = vpop.f32.mrb[0].mxu0
    %v1315 = vadd.f32 0.0, %v1314
    %v1316 = vpop.f32.mrb[0].mxu0
    %v1317 = vadd.f32 0.0, %v1316
    %1318 = vmatprep.mubr.f32.mxu0 0.0
    %1319 = vmatmul.mubr.f32.gmra.mrb[0].mxu0 %v536
    %v1320 = vpop.f32.mrb[0].mxu0
    %v1321 = vadd.f32 0.0, %v1320
    %v1322 = vpop.f32.mrb[0].mxu0
    %v1323 = vadd.f32 0.0, %v1322
    %1324 = vdwg.mxu0
    %1325 = vmatprep.subr.mxu0 0.0
    %1326 = vmatpush1.msra.mxu0 %v545
    %1327 = vmatprep.subr.mxu0 0.0
    %1328 = vmatpush1.msra.mxu0 %v554
    %1329 = vmatprep.subr.mxu0 0.0
    %1330 = vmatpush1.msra.mxu0 %v563
    %1331 = vmatprep.subr.mxu0 0.0
    %1332 = vmatpush1.msra.mxu0 %v572
    %1333 = vmatprep.subr.mxu0 0.0
    %1334 = vmatpush1.msra.mxu0 %v581
    %1335 = vmatprep.subr.mxu0 0.0
    %1336 = vmatpush1.msra.mxu0 %v590
    %1337 = vmatprep.subr.mxu0 0.0
    %1338 = vmatpush1.msra.mxu0 %v599
    %1339 = vmatprep.subr.mxu0 0.0
    %1340 = vmatpush1.msra.mxu0 %v608
    %1341 = vmatprep.subr.mxu0 0.0
    %1342 = vmatpush1.msra.mxu0 %v617
    %1343 = vmatprep.subr.mxu0 0.0
    %1344 = vmatpush1.msra.mxu0 %v626
    %1345 = vmatprep.subr.mxu0 0.0
    %1346 = vmatpush1.msra.mxu0 %v635
    %1347 = vmatprep.subr.mxu0 0.0
    %1348 = vmatpush1.msra.mxu0 %v644
    %1349 = vmatprep.subr.mxu0 0.0
    %1350 = vmatpush1.msra.mxu0 %v653
    %1351 = vmatprep.subr.mxu0 0.0
    %1352 = vmatpush1.msra.mxu0 %v662
    %1353 = vmatprep.subr.mxu0 0.0
    %1354 = vmatpush1.msra.mxu0 %v671
    %1355 = vmatprep.subr.mxu0 0.0
    %1356 = vmatpush1.msra.mxu0 %v680
    %1357 = vmatprep.subr.mxu0 0.0
    %1358 = vmatpush1.msra.mxu0 0.0
    %1359 = vmatprep.subr.mxu0 0.0
    %1360 = vmatpush1.msra.mxu0 0.0
    %1361 = vmatprep.subr.mxu0 0.0
    %1362 = vmatpush1.msra.mxu0 0.0
    %1363 = vmatprep.subr.mxu0 0.0
    %1364 = vmatpush1.msra.mxu0 0.0
    %1365 = vmatprep.subr.mxu0 0.0
    %1366 = vmatpush1.msra.mxu0 0.0
    %1367 = vmatprep.subr.mxu0 0.0
    %1368 = vmatpush1.msra.mxu0 0.0
    %1369 = vmatprep.subr.mxu0 0.0
    %1370 = vmatpush1.msra.mxu0 0.0
    %1371 = vmatprep.subr.mxu0 0.0
    %1372 = vmatpush1.msra.mxu0 0.0
    %1373 = vmatprep.subr.mxu0 0.0
    %1374 = vmatpush1.msra.mxu0 0.0
    %1375 = vmatprep.subr.mxu0 0.0
    %1376 = vmatpush1.msra.mxu0 0.0
    %1377 = vmatprep.subr.mxu0 0.0
    %1378 = vmatpush1.msra.mxu0 0.0
    %1379 = vmatprep.subr.mxu0 0.0
    %1380 = vmatpush1.msra.mxu0 0.0
    %1381 = vmatprep.subr.mxu0 0.0
    %1382 = vmatpush1.msra.mxu0 0.0
    %1383 = vmatprep.subr.mxu0 0.0
    %1384 = vmatpush1.msra.mxu0 0.0
    %1385 = vmatprep.subr.mxu0 0.0
    %1386 = vmatpush1.msra.mxu0 0.0
    %1387 = vmatprep.subr.mxu0 0.0
    %1388 = vmatpush1.msra.mxu0 0.0
    %1389 = vmatprep.mubr.f32.mxu0 0.0
    %1390 = vmatmul.mubr.f32.gmra.mrb[0].mxu0 %v521
    %v1391 = vpop.f32.mrb[0].mxu0
    %v1392 = vadd.f32 0.0, %v1391
    %v1393 = vpop.f32.mrb[0].mxu0
    %1394 = vmatprep.mubr.f32.mxu0 0.0
    %1395 = vmatmul.mubr.f32.gmra.mrb[0].mxu0 %v522
    %v1396 = vpop.f32.mrb[0].mxu0
    %v1397 = vadd.f32 0.0, %v1396
    %v1398 = vpop.f32.mrb[0].mxu0
    %1399 = vmatprep.mubr.f32.mxu0 0.0
    %1400 = vmatmul.mubr.f32.gmra.mrb[0].mxu0 %v523
    %v1401 = vpop.f32.mrb[0].mxu0
    %v1402 = vadd.f32 0.0, %v1401
    %v1403 = vpop.f32.mrb[0].mxu0
    %1404 = vmatprep.mubr.f32.mxu0 0.0
    %1405 = vmatmul.mubr.f32.gmra.mrb[0].mxu0 %v524
    %v1406 = vpop.f32.mrb[0].mxu0
    %v1407 = vadd.f32 0.0, %v1406
    %v1408 = vpop.f32.mrb[0].mxu0
    %1409 = vmatprep.mubr.f32.mxu0 0.0
    %1410 = vmatmul.mubr.f32.gmra.mrb[0].mxu0 %v525
    %v1411 = vpop.f32.mrb[0].mxu0
    %v1412 = vadd.f32 0.0, %v1411
    %v1413 = vpop.f32.mrb[0].mxu0
    %1414 = vmatprep.mubr.f32.mxu0 0.0
    %1415 = vmatmul.mubr.f32.gmra.mrb[0].mxu0 %v526
    %v1416 = vpop.f32.mrb[0].mxu0
    %v1417 = vadd.f32 0.0, %v1416
    %v1418 = vpop.f32.mrb[0].mxu0
    %1419 = vmatprep.mubr.f32.mxu0 0.0
    %1420 = vmatmul.mubr.f32.gmra.mrb[0].mxu0 %v527
    %v1421 = vpop.f32.mrb[0].mxu0
    %v1422 = vadd.f32 0.0, %v1421
    %v1423 = vpop.f32.mrb[0].mxu0
    %1424 = vmatprep.mubr.f32.mxu0 0.0
    %1425 = vmatmul.mubr.f32.gmra.mrb[0].mxu0 %v528
    %v1426 = vpop.f32.mrb[0].mxu0
    %v1427 = vadd.f32 0.0, %v1426
    %v1428 = vpop.f32.mrb[0].mxu0
    %1429 = vmatprep.mubr.f32.mxu0 0.0
    %1430 = vmatmul.mubr.f32.gmra.mrb[0].mxu0 %v529
    %v1431 = vpop.f32.mrb[0].mxu0
    %v1432 = vadd.f32 0.0, %v1431
    %v1433 = vpop.f32.mrb[0].mxu0
    %1434 = vmatprep.mubr.f32.mxu0 0.0
    %1435 = vmatmul.mubr.f32.gmra.mrb[0].mxu0 %v530
    %v1436 = vpop.f32.mrb[0].mxu0
    %v1437 = vadd.f32 0.0, %v1436
    %v1438 = vpop.f32.mrb[0].mxu0
    %1439 = vmatprep.mubr.f32.mxu0 0.0
    %1440 = vmatmul.mubr.f32.gmra.mrb[0].mxu0 %v531
    %v1441 = vpop.f32.mrb[0].mxu0
    %v1442 = vadd.f32 0.0, %v1441
    %v1443 = vpop.f32.mrb[0].mxu0
    %1444 = vmatprep.mubr.f32.mxu0 0.0
    %1445 = vmatmul.mubr.f32.gmra.mrb[0].mxu0 %v532
    %v1446 = vpop.f32.mrb[0].mxu0
    %v1447 = vadd.f32 0.0, %v1446
    %v1448 = vpop.f32.mrb[0].mxu0
    %1449 = vmatprep.mubr.f32.mxu0 0.0
    %1450 = vmatmul.mubr.f32.gmra.mrb[0].mxu0 %v533
    %v1451 = vpop.f32.mrb[0].mxu0
    %v1452 = vadd.f32 0.0, %v1451
    %v1453 = vpop.f32.mrb[0].mxu0
    %1454 = vmatprep.mubr.f32.mxu0 0.0
    %1455 = vmatmul.mubr.f32.gmra.mrb[0].mxu0 %v534
    %v1456 = vpop.f32.mrb[0].mxu0
    %v1457 = vadd.f32 0.0, %v1456
    %v1458 = vpop.f32.mrb[0].mxu0
    %1459 = vmatprep.mubr.f32.mxu0 0.0
    %1460 = vmatmul.mubr.f32.gmra.mrb[0].mxu0 %v535
    %v1461 = vpop.f32.mrb[0].mxu0
    %v1462 = vadd.f32 0.0, %v1461
    %v1463 = vpop.f32.mrb[0].mxu0
    %1464 = vmatprep.mubr.f32.mxu0 0.0
    %1465 = vmatmul.mubr.f32.gmra.mrb[0].mxu0 %v536
    %v1466 = vpop.f32.mrb[0].mxu0
    %v1467 = vadd.f32 0.0, %v1466
    %v1468 = vpop.f32.mrb[0].mxu0
    %1469 = vdwg.mxu0
    %v1470 = vld [vmem:[#allocation6] sm:$0xff]
    %v1471 = vld [vmem:[#allocation6 + $0x8] sm:$0xff]
    %v1472 = vld [vmem:[#allocation6 + $0x10] sm:$0xff]
    %v1473 = vld [vmem:[#allocation6 + $0x18] sm:$0xff]
    %s1474 = scalar_lea.vmem [#allocation6], 32
    %v1475 = vld [vmem:[%s1474] sm:$0xff]
    %v1476 = vld [vmem:[%s1474 + $0x8] sm:$0xff]
    %v1477 = vld [vmem:[%s1474 + $0x10] sm:$0xff]
    %v1478 = vld [vmem:[%s1474 + $0x18] sm:$0xff]
    %1479 = vmatprep.subr.mxu0 0.0
    %1480 = vmatpush1.msra.mxu0 %v750
    %1481 = vmatprep.subr.mxu0 0.0
    %1482 = vmatpush1.msra.mxu0 %v756
    %1483 = vmatprep.subr.mxu0 0.0
    %1484 = vmatpush1.msra.mxu0 %v762
    %1485 = vmatprep.subr.mxu0 0.0
    %1486 = vmatpush1.msra.mxu0 %v768
    %1487 = vmatprep.subr.mxu0 0.0
    %1488 = vmatpush1.msra.mxu0 %v774
    %1489 = vmatprep.subr.mxu0 0.0
    %1490 = vmatpush1.msra.mxu0 %v780
    %1491 = vmatprep.subr.mxu0 0.0
    %1492 = vmatpush1.msra.mxu0 %v786
    %1493 = vmatprep.subr.mxu0 0.0
    %1494 = vmatpush1.msra.mxu0 %v792
    %1495 = vmatprep.subr.mxu0 0.0
    %1496 = vmatpush1.msra.mxu0 %v798
    %1497 = vmatprep.subr.mxu0 0.0
    %1498 = vmatpush1.msra.mxu0 %v804
    %1499 = vmatprep.subr.mxu0 0.0
    %1500 = vmatpush1.msra.mxu0 %v810
    %1501 = vmatprep.subr.mxu0 0.0
    %1502 = vmatpush1.msra.mxu0 %v816
    %1503 = vmatprep.subr.mxu0 0.0
    %1504 = vmatpush1.msra.mxu0 %v822
    %1505 = vmatprep.subr.mxu0 0.0
    %1506 = vmatpush1.msra.mxu0 %v828
    %1507 = vmatprep.subr.mxu0 0.0
    %1508 = vmatpush1.msra.mxu0 %v834
    %1509 = vmatprep.subr.mxu0 0.0
    %1510 = vmatpush1.msra.mxu0 %v840
    %1511 = vmatprep.subr.mxu0 0.0
    %1512 = vmatpush1.msra.mxu0 0.0
    %1513 = vmatprep.subr.mxu0 0.0
    %1514 = vmatpush1.msra.mxu0 0.0
    %1515 = vmatprep.subr.mxu0 0.0
    %1516 = vmatpush1.msra.mxu0 0.0
    %1517 = vmatprep.subr.mxu0 0.0
    %1518 = vmatpush1.msra.mxu0 0.0
    %1519 = vmatprep.subr.mxu0 0.0
    %1520 = vmatpush1.msra.mxu0 0.0
    %1521 = vmatprep.subr.mxu0 0.0
    %1522 = vmatpush1.msra.mxu0 0.0
    %1523 = vmatprep.subr.mxu0 0.0
    %1524 = vmatpush1.msra.mxu0 0.0
    %1525 = vmatprep.subr.mxu0 0.0
    %1526 = vmatpush1.msra.mxu0 0.0
    %1527 = vmatprep.subr.mxu0 0.0
    %1528 = vmatpush1.msra.mxu0 0.0
    %1529 = vmatprep.subr.mxu0 0.0
    %1530 = vmatpush1.msra.mxu0 0.0
    %1531 = vmatprep.subr.mxu0 0.0
    %1532 = vmatpush1.msra.mxu0 0.0
    %1533 = vmatprep.subr.mxu0 0.0
    %1534 = vmatpush1.msra.mxu0 0.0
    %1535 = vmatprep.subr.mxu0 0.0
    %1536 = vmatpush1.msra.mxu0 0.0
    %1537 = vmatprep.subr.mxu0 0.0
    %1538 = vmatpush1.msra.mxu0 0.0
    %1539 = vmatprep.subr.mxu0 0.0
    %1540 = vmatpush1.msra.mxu0 0.0
    %1541 = vmatprep.subr.mxu0 0.0
    %1542 = vmatpush1.msra.mxu0 0.0
    %1543 = vmatprep.mubr.f32.mxu0 0.0
    %1544 = vmatmul.mubr.f32.gmra.mrb[0].mxu0 %v1475
    %v1545 = vpop.f32.mrb[0].mxu0
    %v1546 = vadd.f32 0.0, %v1545
    %v1547 = vpop.f32.mrb[0].mxu0
    %1548 = vmatprep.mubr.f32.mxu0 0.0
    %1549 = vmatmul.mubr.f32.gmra.mrb[0].mxu0 %v1476
    %v1550 = vpop.f32.mrb[0].mxu0
    %v1551 = vadd.f32 0.0, %v1550
    %v1552 = vpop.f32.mrb[0].mxu0
    %1553 = vmatprep.mubr.f32.mxu0 0.0
    %1554 = vmatmul.mubr.f32.gmra.mrb[0].mxu0 %v1477
    %v1555 = vpop.f32.mrb[0].mxu0
    %v1556 = vadd.f32 0.0, %v1555
    %v1557 = vpop.f32.mrb[0].mxu0
    %1558 = vmatprep.mubr.f32.mxu0 0.0
    %1559 = vmatmul.mubr.f32.gmra.mrb[0].mxu0 %v1478
    %v1560 = vpop.f32.mrb[0].mxu0
    %v1561 = vadd.f32 0.0, %v1560
    %v1562 = vpop.f32.mrb[0].mxu0
    %1563 = vdwg.mxu0
    %1564 = vmatprep.subr.mxu0 0.0
    %1565 = vmatpush1.msra.mxu0 %v748
    %1566 = vmatprep.subr.mxu0 0.0
    %1567 = vmatpush1.msra.mxu0 %v754
    %1568 = vmatprep.subr.mxu0 0.0
    %1569 = vmatpush1.msra.mxu0 %v760
    %1570 = vmatprep.subr.mxu0 0.0
    %1571 = vmatpush1.msra.mxu0 %v766
    %1572 = vmatprep.subr.mxu0 0.0
    %1573 = vmatpush1.msra.mxu0 %v772
    %1574 = vmatprep.subr.mxu0 0.0
    %1575 = vmatpush1.msra.mxu0 %v778
    %1576 = vmatprep.subr.mxu0 0.0
    %1577 = vmatpush1.msra.mxu0 %v784
    %1578 = vmatprep.subr.mxu0 0.0
    %1579 = vmatpush1.msra.mxu0 %v790
    %1580 = vmatprep.subr.mxu0 0.0
    %1581 = vmatpush1.msra.mxu0 %v796
    %1582 = vmatprep.subr.mxu0 0.0
    %1583 = vmatpush1.msra.mxu0 %v802
    %1584 = vmatprep.subr.mxu0 0.0
    %1585 = vmatpush1.msra.mxu0 %v808
    %1586 = vmatprep.subr.mxu0 0.0
    %1587 = vmatpush1.msra.mxu0 %v814
    %1588 = vmatprep.subr.mxu0 0.0
    %1589 = vmatpush1.msra.mxu0 %v820
    %1590 = vmatprep.subr.mxu0 0.0
    %1591 = vmatpush1.msra.mxu0 %v826
    %1592 = vmatprep.subr.mxu0 0.0
    %1593 = vmatpush1.msra.mxu0 %v832
    %1594 = vmatprep.subr.mxu0 0.0
    %1595 = vmatpush1.msra.mxu0 %v838
    %1596 = vmatprep.subr.mxu0 0.0
    %1597 = vmatpush1.msra.mxu0 0.0
    %1598 = vmatprep.subr.mxu0 0.0
    %1599 = vmatpush1.msra.mxu0 0.0
    %1600 = vmatprep.subr.mxu0 0.0
    %1601 = vmatpush1.msra.mxu0 0.0
    %1602 = vmatprep.subr.mxu0 0.0
    %1603 = vmatpush1.msra.mxu0 0.0
    %1604 = vmatprep.subr.mxu0 0.0
    %1605 = vmatpush1.msra.mxu0 0.0
    %1606 = vmatprep.subr.mxu0 0.0
    %1607 = vmatpush1.msra.mxu0 0.0
    %1608 = vmatprep.subr.mxu0 0.0
    %1609 = vmatpush1.msra.mxu0 0.0
    %1610 = vmatprep.subr.mxu0 0.0
    %1611 = vmatpush1.msra.mxu0 0.0
    %1612 = vmatprep.subr.mxu0 0.0
    %1613 = vmatpush1.msra.mxu0 0.0
    %1614 = vmatprep.subr.mxu0 0.0
    %1615 = vmatpush1.msra.mxu0 0.0
    %1616 = vmatprep.subr.mxu0 0.0
    %1617 = vmatpush1.msra.mxu0 0.0
    %1618 = vmatprep.subr.mxu0 0.0
    %1619 = vmatpush1.msra.mxu0 0.0
    %1620 = vmatprep.subr.mxu0 0.0
    %1621 = vmatpush1.msra.mxu0 0.0
    %1622 = vmatprep.subr.mxu0 0.0
    %1623 = vmatpush1.msra.mxu0 0.0
    %1624 = vmatprep.subr.mxu0 0.0
    %1625 = vmatpush1.msra.mxu0 0.0
    %1626 = vmatprep.subr.mxu0 0.0
    %1627 = vmatpush1.msra.mxu0 0.0
    %1628 = vmatprep.mubr.f32.mxu0 0.0
    %1629 = vmatmul.mubr.f32.gmra.mrb[0].mxu0 %v1470
    %v1630 = vpop.f32.mrb[0].mxu0
    %v1631 = vadd.f32 %v1546, %v1630
    %v1632 = vpop.f32.mrb[0].mxu0
    %1633 = vmatprep.mubr.f32.mxu0 0.0
    %1634 = vmatmul.mubr.f32.gmra.mrb[0].mxu0 %v1471
    %v1635 = vpop.f32.mrb[0].mxu0
    %v1636 = vadd.f32 %v1551, %v1635
    %v1637 = vpop.f32.mrb[0].mxu0
    %1638 = vmatprep.mubr.f32.mxu0 0.0
    %1639 = vmatmul.mubr.f32.gmra.mrb[0].mxu0 %v1472
    %v1640 = vpop.f32.mrb[0].mxu0
    %v1641 = vadd.f32 %v1556, %v1640
    %v1642 = vpop.f32.mrb[0].mxu0
    %1643 = vmatprep.mubr.f32.mxu0 0.0
    %1644 = vmatmul.mubr.f32.gmra.mrb[0].mxu0 %v1473
    %v1645 = vpop.f32.mrb[0].mxu0
    %v1646 = vadd.f32 %v1561, %v1645
    %v1647 = vpop.f32.mrb[0].mxu0
    %1648 = vdwg.mxu0
    %s1649 = scalar_lea.vmem [#allocation6], 64
    %v1650 = vld [vmem:[%s1649] sm:$0xff]
    %v1651 = vld [vmem:[%s1649 + $0x8] sm:$0xff]
    %v1652 = vld [vmem:[%s1649 + $0x10] sm:$0xff]
    %v1653 = vld [vmem:[%s1649 + $0x18] sm:$0xff]
    %1654 = vmatprep.subr.mxu0 0.0
    %1655 = vmatpush1.msra.mxu0 %v909
    %1656 = vmatprep.subr.mxu0 0.0
    %1657 = vmatpush1.msra.mxu0 %v915
    %1658 = vmatprep.subr.mxu0 0.0
    %1659 = vmatpush1.msra.mxu0 %v921
    %1660 = vmatprep.subr.mxu0 0.0
    %1661 = vmatpush1.msra.mxu0 %v927
    %1662 = vmatprep.subr.mxu0 0.0
    %1663 = vmatpush1.msra.mxu0 %v933
    %1664 = vmatprep.subr.mxu0 0.0
    %1665 = vmatpush1.msra.mxu0 %v939
    %1666 = vmatprep.subr.mxu0 0.0
    %1667 = vmatpush1.msra.mxu0 %v945
    %1668 = vmatprep.subr.mxu0 0.0
    %1669 = vmatpush1.msra.mxu0 %v951
    %1670 = vmatprep.subr.mxu0 0.0
    %1671 = vmatpush1.msra.mxu0 %v957
    %1672 = vmatprep.subr.mxu0 0.0
    %1673 = vmatpush1.msra.mxu0 %v963
    %1674 = vmatprep.subr.mxu0 0.0
    %1675 = vmatpush1.msra.mxu0 %v969
    %1676 = vmatprep.subr.mxu0 0.0
    %1677 = vmatpush1.msra.mxu0 %v975
    %1678 = vmatprep.subr.mxu0 0.0
    %1679 = vmatpush1.msra.mxu0 %v981
    %1680 = vmatprep.subr.mxu0 0.0
    %1681 = vmatpush1.msra.mxu0 %v987
    %1682 = vmatprep.subr.mxu0 0.0
    %1683 = vmatpush1.msra.mxu0 %v993
    %1684 = vmatprep.subr.mxu0 0.0
    %1685 = vmatpush1.msra.mxu0 %v999
    %1686 = vmatprep.subr.mxu0 0.0
    %1687 = vmatpush1.msra.mxu0 0.0
    %1688 = vmatprep.subr.mxu0 0.0
    %1689 = vmatpush1.msra.mxu0 0.0
    %1690 = vmatprep.subr.mxu0 0.0
    %1691 = vmatpush1.msra.mxu0 0.0
    %1692 = vmatprep.subr.mxu0 0.0
    %1693 = vmatpush1.msra.mxu0 0.0
    %1694 = vmatprep.subr.mxu0 0.0
    %1695 = vmatpush1.msra.mxu0 0.0
    %1696 = vmatprep.subr.mxu0 0.0
    %1697 = vmatpush1.msra.mxu0 0.0
    %1698 = vmatprep.subr.mxu0 0.0
    %1699 = vmatpush1.msra.mxu0 0.0
    %1700 = vmatprep.subr.mxu0 0.0
    %1701 = vmatpush1.msra.mxu0 0.0
    %1702 = vmatprep.subr.mxu0 0.0
    %1703 = vmatpush1.msra.mxu0 0.0
    %1704 = vmatprep.subr.mxu0 0.0
    %1705 = vmatpush1.msra.mxu0 0.0
    %1706 = vmatprep.subr.mxu0 0.0
    %1707 = vmatpush1.msra.mxu0 0.0
    %1708 = vmatprep.subr.mxu0 0.0
    %1709 = vmatpush1.msra.mxu0 0.0
    %1710 = vmatprep.subr.mxu0 0.0
    %1711 = vmatpush1.msra.mxu0 0.0
    %1712 = vmatprep.subr.mxu0 0.0
    %1713 = vmatpush1.msra.mxu0 0.0
    %1714 = vmatprep.subr.mxu0 0.0
    %1715 = vmatpush1.msra.mxu0 0.0
    %1716 = vmatprep.subr.mxu0 0.0
    %1717 = vmatpush1.msra.mxu0 0.0
    %1718 = vmatprep.mubr.f32.mxu0 0.0
    %1719 = vmatmul.mubr.f32.gmra.mrb[0].mxu0 %v1650
    %v1720 = vpop.f32.mrb[0].mxu0
    %v1721 = vadd.f32 0.0, %v1720
    %v1722 = vpop.f32.mrb[0].mxu0
    %1723 = vmatprep.mubr.f32.mxu0 0.0
    %1724 = vmatmul.mubr.f32.gmra.mrb[0].mxu0 %v1651
    %v1725 = vpop.f32.mrb[0].mxu0
    %v1726 = vadd.f32 0.0, %v1725
    %v1727 = vpop.f32.mrb[0].mxu0
    %1728 = vmatprep.mubr.f32.mxu0 0.0
    %1729 = vmatmul.mubr.f32.gmra.mrb[0].mxu0 %v1652
    %v1730 = vpop.f32.mrb[0].mxu0
    %v1731 = vadd.f32 0.0, %v1730
    %v1732 = vpop.f32.mrb[0].mxu0
    %1733 = vmatprep.mubr.f32.mxu0 0.0
    %1734 = vmatmul.mubr.f32.gmra.mrb[0].mxu0 %v1653
    %v1735 = vpop.f32.mrb[0].mxu0
    %v1736 = vadd.f32 0.0, %v1735
    %v1737 = vpop.f32.mrb[0].mxu0
    %1738 = vdwg.mxu0
    %v1739 = vadd.f32 %v1631, %v1721
    %v1740 = vadd.f32 %v1636, %v1726
    %v1741 = vadd.f32 %v1641, %v1731
    %v1742 = vadd.f32 %v1646, %v1736
    %s1743 = scalar_lea.vmem [#allocation6], 96
    %v1744 = vld [vmem:[%s1743] sm:$0xff]
    %v1745 = vld [vmem:[%s1743 + $0x8] sm:$0xff]
    %v1746 = vld [vmem:[%s1743 + $0x10] sm:$0xff]
    %v1747 = vld [vmem:[%s1743 + $0x18] sm:$0xff]
    %1748 = vmatprep.subr.mxu0 0.0
    %1749 = vmatpush1.msra.mxu0 %v911
    %1750 = vmatprep.subr.mxu0 0.0
    %1751 = vmatpush1.msra.mxu0 %v917
    %1752 = vmatprep.subr.mxu0 0.0
    %1753 = vmatpush1.msra.mxu0 %v923
    %1754 = vmatprep.subr.mxu0 0.0
    %1755 = vmatpush1.msra.mxu0 %v929
    %1756 = vmatprep.subr.mxu0 0.0
    %1757 = vmatpush1.msra.mxu0 %v935
    %1758 = vmatprep.subr.mxu0 0.0
    %1759 = vmatpush1.msra.mxu0 %v941
    %1760 = vmatprep.subr.mxu0 0.0
    %1761 = vmatpush1.msra.mxu0 %v947
    %1762 = vmatprep.subr.mxu0 0.0
    %1763 = vmatpush1.msra.mxu0 %v953
    %1764 = vmatprep.subr.mxu0 0.0
    %1765 = vmatpush1.msra.mxu0 %v959
    %1766 = vmatprep.subr.mxu0 0.0
    %1767 = vmatpush1.msra.mxu0 %v965
    %1768 = vmatprep.subr.mxu0 0.0
    %1769 = vmatpush1.msra.mxu0 %v971
    %1770 = vmatprep.subr.mxu0 0.0
    %1771 = vmatpush1.msra.mxu0 %v977
    %1772 = vmatprep.subr.mxu0 0.0
    %1773 = vmatpush1.msra.mxu0 %v983
    %1774 = vmatprep.subr.mxu0 0.0
    %1775 = vmatpush1.msra.mxu0 %v989
    %1776 = vmatprep.subr.mxu0 0.0
    %1777 = vmatpush1.msra.mxu0 %v995
    %1778 = vmatprep.subr.mxu0 0.0
    %1779 = vmatpush1.msra.mxu0 %v1001
    %1780 = vmatprep.subr.mxu0 0.0
    %1781 = vmatpush1.msra.mxu0 0.0
    %1782 = vmatprep.subr.mxu0 0.0
    %1783 = vmatpush1.msra.mxu0 0.0
    %1784 = vmatprep.subr.mxu0 0.0
    %1785 = vmatpush1.msra.mxu0 0.0
    %1786 = vmatprep.subr.mxu0 0.0
    %1787 = vmatpush1.msra.mxu0 0.0
    %1788 = vmatprep.subr.mxu0 0.0
    %1789 = vmatpush1.msra.mxu0 0.0
    %1790 = vmatprep.subr.mxu0 0.0
    %1791 = vmatpush1.msra.mxu0 0.0
    %1792 = vmatprep.subr.mxu0 0.0
    %1793 = vmatpush1.msra.mxu0 0.0
    %1794 = vmatprep.subr.mxu0 0.0
    %1795 = vmatpush1.msra.mxu0 0.0
    %1796 = vmatprep.subr.mxu0 0.0
    %1797 = vmatpush1.msra.mxu0 0.0
    %1798 = vmatprep.subr.mxu0 0.0
    %1799 = vmatpush1.msra.mxu0 0.0
    %1800 = vmatprep.subr.mxu0 0.0
    %1801 = vmatpush1.msra.mxu0 0.0
    %1802 = vmatprep.subr.mxu0 0.0
    %1803 = vmatpush1.msra.mxu0 0.0
    %1804 = vmatprep.subr.mxu0 0.0
    %1805 = vmatpush1.msra.mxu0 0.0
    %1806 = vmatprep.subr.mxu0 0.0
    %1807 = vmatpush1.msra.mxu0 0.0
    %1808 = vmatprep.subr.mxu0 0.0
    %1809 = vmatpush1.msra.mxu0 0.0
    %1810 = vmatprep.subr.mxu0 0.0
    %1811 = vmatpush1.msra.mxu0 0.0
    %1812 = vmatprep.mubr.f32.mxu0 0.0
    %1813 = vmatmul.mubr.f32.gmra.mrb[0].mxu0 %v1744
    %v1814 = vpop.f32.mrb[0].mxu0
    %v1815 = vadd.f32 0.0, %v1814
    %v1816 = vpop.f32.mrb[0].mxu0
    %1817 = vmatprep.mubr.f32.mxu0 0.0
    %1818 = vmatmul.mubr.f32.gmra.mrb[0].mxu0 %v1745
    %v1819 = vpop.f32.mrb[0].mxu0
    %v1820 = vadd.f32 0.0, %v1819
    %v1821 = vpop.f32.mrb[0].mxu0
    %1822 = vmatprep.mubr.f32.mxu0 0.0
    %1823 = vmatmul.mubr.f32.gmra.mrb[0].mxu0 %v1746
    %v1824 = vpop.f32.mrb[0].mxu0
    %v1825 = vadd.f32 0.0, %v1824
    %v1826 = vpop.f32.mrb[0].mxu0
    %1827 = vmatprep.mubr.f32.mxu0 0.0
    %1828 = vmatmul.mubr.f32.gmra.mrb[0].mxu0 %v1747
    %v1829 = vpop.f32.mrb[0].mxu0
    %v1830 = vadd.f32 0.0, %v1829
    %v1831 = vpop.f32.mrb[0].mxu0
    %1832 = vdwg.mxu0
    %v1833 = vadd.f32 %v1739, %v1815
    %v1834 = vadd.f32 %v1740, %v1820
    %v1835 = vadd.f32 %v1741, %v1825
    %v1836 = vadd.f32 %v1742, %v1830
    %s1837 = scalar_lea.vmem [#allocation6], 128
    %v1838 = vld [vmem:[%s1837] sm:$0xff]
    %v1839 = vld [vmem:[%s1837 + $0x8] sm:$0xff]
    %v1840 = vld [vmem:[%s1837 + $0x10] sm:$0xff]
    %v1841 = vld [vmem:[%s1837 + $0x18] sm:$0xff]
    %1842 = vmatprep.subr.mxu0 0.0
    %1843 = vmatpush1.msra.mxu0 %v1070
    %1844 = vmatprep.subr.mxu0 0.0
    %1845 = vmatpush1.msra.mxu0 %v1076
    %1846 = vmatprep.subr.mxu0 0.0
    %1847 = vmatpush1.msra.mxu0 %v1082
    %1848 = vmatprep.subr.mxu0 0.0
    %1849 = vmatpush1.msra.mxu0 %v1088
    %1850 = vmatprep.subr.mxu0 0.0
    %1851 = vmatpush1.msra.mxu0 %v1094
    %1852 = vmatprep.subr.mxu0 0.0
    %1853 = vmatpush1.msra.mxu0 %v1100
    %1854 = vmatprep.subr.mxu0 0.0
    %1855 = vmatpush1.msra.mxu0 %v1106
    %1856 = vmatprep.subr.mxu0 0.0
    %1857 = vmatpush1.msra.mxu0 %v1112
    %1858 = vmatprep.subr.mxu0 0.0
    %1859 = vmatpush1.msra.mxu0 %v1118
    %1860 = vmatprep.subr.mxu0 0.0
    %1861 = vmatpush1.msra.mxu0 %v1124
    %1862 = vmatprep.subr.mxu0 0.0
    %1863 = vmatpush1.msra.mxu0 %v1130
    %1864 = vmatprep.subr.mxu0 0.0
    %1865 = vmatpush1.msra.mxu0 %v1136
    %1866 = vmatprep.subr.mxu0 0.0
    %1867 = vmatpush1.msra.mxu0 %v1142
    %1868 = vmatprep.subr.mxu0 0.0
    %1869 = vmatpush1.msra.mxu0 %v1148
    %1870 = vmatprep.subr.mxu0 0.0
    %1871 = vmatpush1.msra.mxu0 %v1154
    %1872 = vmatprep.subr.mxu0 0.0
    %1873 = vmatpush1.msra.mxu0 %v1160
    %1874 = vmatprep.subr.mxu0 0.0
    %1875 = vmatpush1.msra.mxu0 0.0
    %1876 = vmatprep.subr.mxu0 0.0
    %1877 = vmatpush1.msra.mxu0 0.0
    %1878 = vmatprep.subr.mxu0 0.0
    %1879 = vmatpush1.msra.mxu0 0.0
    %1880 = vmatprep.subr.mxu0 0.0
    %1881 = vmatpush1.msra.mxu0 0.0
    %1882 = vmatprep.subr.mxu0 0.0
    %1883 = vmatpush1.msra.mxu0 0.0
    %1884 = vmatprep.subr.mxu0 0.0
    %1885 = vmatpush1.msra.mxu0 0.0
    %1886 = vmatprep.subr.mxu0 0.0
    %1887 = vmatpush1.msra.mxu0 0.0
    %1888 = vmatprep.subr.mxu0 0.0
    %1889 = vmatpush1.msra.mxu0 0.0
    %1890 = vmatprep.subr.mxu0 0.0
    %1891 = vmatpush1.msra.mxu0 0.0
    %1892 = vmatprep.subr.mxu0 0.0
    %1893 = vmatpush1.msra.mxu0 0.0
    %1894 = vmatprep.subr.mxu0 0.0
    %1895 = vmatpush1.msra.mxu0 0.0
    %1896 = vmatprep.subr.mxu0 0.0
    %1897 = vmatpush1.msra.mxu0 0.0
    %1898 = vmatprep.subr.mxu0 0.0
    %1899 = vmatpush1.msra.mxu0 0.0
    %1900 = vmatprep.subr.mxu0 0.0
    %1901 = vmatpush1.msra.mxu0 0.0
    %1902 = vmatprep.subr.mxu0 0.0
    %1903 = vmatpush1.msra.mxu0 0.0
    %1904 = vmatprep.subr.mxu0 0.0
    %1905 = vmatpush1.msra.mxu0 0.0
    %1906 = vmatprep.mubr.f32.mxu0 0.0
    %1907 = vmatmul.mubr.f32.gmra.mrb[0].mxu0 %v1838
    %v1908 = vpop.f32.mrb[0].mxu0
    %v1909 = vadd.f32 0.0, %v1908
    %v1910 = vpop.f32.mrb[0].mxu0
    %1911 = vmatprep.mubr.f32.mxu0 0.0
    %1912 = vmatmul.mubr.f32.gmra.mrb[0].mxu0 %v1839
    %v1913 = vpop.f32.mrb[0].mxu0
    %v1914 = vadd.f32 0.0, %v1913
    %v1915 = vpop.f32.mrb[0].mxu0
    %1916 = vmatprep.mubr.f32.mxu0 0.0
    %1917 = vmatmul.mubr.f32.gmra.mrb[0].mxu0 %v1840
    %v1918 = vpop.f32.mrb[0].mxu0
    %v1919 = vadd.f32 0.0, %v1918
    %v1920 = vpop.f32.mrb[0].mxu0
    %1921 = vmatprep.mubr.f32.mxu0 0.0
    %1922 = vmatmul.mubr.f32.gmra.mrb[0].mxu0 %v1841
    %v1923 = vpop.f32.mrb[0].mxu0
    %v1924 = vadd.f32 0.0, %v1923
    %v1925 = vpop.f32.mrb[0].mxu0
    %1926 = vdwg.mxu0
    %v1927 = vadd.f32 %v1833, %v1909
    %v1928 = vadd.f32 %v1834, %v1914
    %v1929 = vadd.f32 %v1835, %v1919
    %v1930 = vadd.f32 %v1836, %v1924
    %s1931 = scalar_lea.vmem [#allocation6], 160
    %v1932 = vld [vmem:[%s1931] sm:$0xff]
    %v1933 = vld [vmem:[%s1931 + $0x8] sm:$0xff]
    %v1934 = vld [vmem:[%s1931 + $0x10] sm:$0xff]
    %v1935 = vld [vmem:[%s1931 + $0x18] sm:$0xff]
    %1936 = vmatprep.subr.mxu0 0.0
    %1937 = vmatpush1.msra.mxu0 %v1072
    %1938 = vmatprep.subr.mxu0 0.0
    %1939 = vmatpush1.msra.mxu0 %v1078
    %1940 = vmatprep.subr.mxu0 0.0
    %1941 = vmatpush1.msra.mxu0 %v1084
    %1942 = vmatprep.subr.mxu0 0.0
    %1943 = vmatpush1.msra.mxu0 %v1090
    %1944 = vmatprep.subr.mxu0 0.0
    %1945 = vmatpush1.msra.mxu0 %v1096
    %1946 = vmatprep.subr.mxu0 0.0
    %1947 = vmatpush1.msra.mxu0 %v1102
    %1948 = vmatprep.subr.mxu0 0.0
    %1949 = vmatpush1.msra.mxu0 %v1108
    %1950 = vmatprep.subr.mxu0 0.0
    %1951 = vmatpush1.msra.mxu0 %v1114
    %1952 = vmatprep.subr.mxu0 0.0
    %1953 = vmatpush1.msra.mxu0 %v1120
    %1954 = vmatprep.subr.mxu0 0.0
    %1955 = vmatpush1.msra.mxu0 %v1126
    %1956 = vmatprep.subr.mxu0 0.0
    %1957 = vmatpush1.msra.mxu0 %v1132
    %1958 = vmatprep.subr.mxu0 0.0
    %1959 = vmatpush1.msra.mxu0 %v1138
    %1960 = vmatprep.subr.mxu0 0.0
    %1961 = vmatpush1.msra.mxu0 %v1144
    %1962 = vmatprep.subr.mxu0 0.0
    %1963 = vmatpush1.msra.mxu0 %v1150
    %1964 = vmatprep.subr.mxu0 0.0
    %1965 = vmatpush1.msra.mxu0 %v1156
    %1966 = vmatprep.subr.mxu0 0.0
    %1967 = vmatpush1.msra.mxu0 %v1162
    %1968 = vmatprep.subr.mxu0 0.0
    %1969 = vmatpush1.msra.mxu0 0.0
    %1970 = vmatprep.subr.mxu0 0.0
    %1971 = vmatpush1.msra.mxu0 0.0
    %1972 = vmatprep.subr.mxu0 0.0
    %1973 = vmatpush1.msra.mxu0 0.0
    %1974 = vmatprep.subr.mxu0 0.0
    %1975 = vmatpush1.msra.mxu0 0.0
    %1976 = vmatprep.subr.mxu0 0.0
    %1977 = vmatpush1.msra.mxu0 0.0
    %1978 = vmatprep.subr.mxu0 0.0
    %1979 = vmatpush1.msra.mxu0 0.0
    %1980 = vmatprep.subr.mxu0 0.0
    %1981 = vmatpush1.msra.mxu0 0.0
    %1982 = vmatprep.subr.mxu0 0.0
    %1983 = vmatpush1.msra.mxu0 0.0
    %1984 = vmatprep.subr.mxu0 0.0
    %1985 = vmatpush1.msra.mxu0 0.0
    %1986 = vmatprep.subr.mxu0 0.0
    %1987 = vmatpush1.msra.mxu0 0.0
    %1988 = vmatprep.subr.mxu0 0.0
    %1989 = vmatpush1.msra.mxu0 0.0
    %1990 = vmatprep.subr.mxu0 0.0
    %1991 = vmatpush1.msra.mxu0 0.0
    %1992 = vmatprep.subr.mxu0 0.0
    %1993 = vmatpush1.msra.mxu0 0.0
    %1994 = vmatprep.subr.mxu0 0.0
    %1995 = vmatpush1.msra.mxu0 0.0
    %1996 = vmatprep.subr.mxu0 0.0
    %1997 = vmatpush1.msra.mxu0 0.0
    %1998 = vmatprep.subr.mxu0 0.0
    %1999 = vmatpush1.msra.mxu0 0.0
    %2000 = vmatprep.mubr.f32.mxu0 0.0
    %2001 = vmatmul.mubr.f32.gmra.mrb[0].mxu0 %v1932
    %v2002 = vpop.f32.mrb[0].mxu0
    %v2003 = vadd.f32 0.0, %v2002
    %v2004 = vpop.f32.mrb[0].mxu0
    %2005 = vmatprep.mubr.f32.mxu0 0.0
    %2006 = vmatmul.mubr.f32.gmra.mrb[0].mxu0 %v1933
    %v2007 = vpop.f32.mrb[0].mxu0
    %v2008 = vadd.f32 0.0, %v2007
    %v2009 = vpop.f32.mrb[0].mxu0
    %2010 = vmatprep.mubr.f32.mxu0 0.0
    %2011 = vmatmul.mubr.f32.gmra.mrb[0].mxu0 %v1934
    %v2012 = vpop.f32.mrb[0].mxu0
    %v2013 = vadd.f32 0.0, %v2012
    %v2014 = vpop.f32.mrb[0].mxu0
    %2015 = vmatprep.mubr.f32.mxu0 0.0
    %2016 = vmatmul.mubr.f32.gmra.mrb[0].mxu0 %v1935
    %v2017 = vpop.f32.mrb[0].mxu0
    %v2018 = vadd.f32 0.0, %v2017
    %v2019 = vpop.f32.mrb[0].mxu0
    %2020 = vdwg.mxu0
    %v2021 = vadd.f32 %v1927, %v2003
    %v2022 = vadd.f32 %v1928, %v2008
    %v2023 = vadd.f32 %v1929, %v2013
    %v2024 = vadd.f32 %v1930, %v2018
    %s2025 = scalar_lea.vmem [#allocation6], 192
    %v2026 = vld [vmem:[%s2025] sm:$0xff]
    %v2027 = vld [vmem:[%s2025 + $0x8] sm:$0xff]
    %v2028 = vld [vmem:[%s2025 + $0x10] sm:$0xff]
    %v2029 = vld [vmem:[%s2025 + $0x18] sm:$0xff]
    %2030 = vmatprep.subr.mxu0 0.0
    %2031 = vmatpush1.msra.mxu0 %v1231
    %2032 = vmatprep.subr.mxu0 0.0
    %2033 = vmatpush1.msra.mxu0 %v1237
    %2034 = vmatprep.subr.mxu0 0.0
    %2035 = vmatpush1.msra.mxu0 %v1243
    %2036 = vmatprep.subr.mxu0 0.0
    %2037 = vmatpush1.msra.mxu0 %v1249
    %2038 = vmatprep.subr.mxu0 0.0
    %2039 = vmatpush1.msra.mxu0 %v1255
    %2040 = vmatprep.subr.mxu0 0.0
    %2041 = vmatpush1.msra.mxu0 %v1261
    %2042 = vmatprep.subr.mxu0 0.0
    %2043 = vmatpush1.msra.mxu0 %v1267
    %2044 = vmatprep.subr.mxu0 0.0
    %2045 = vmatpush1.msra.mxu0 %v1273
    %2046 = vmatprep.subr.mxu0 0.0
    %2047 = vmatpush1.msra.mxu0 %v1279
    %2048 = vmatprep.subr.mxu0 0.0
    %2049 = vmatpush1.msra.mxu0 %v1285
    %2050 = vmatprep.subr.mxu0 0.0
    %2051 = vmatpush1.msra.mxu0 %v1291
    %2052 = vmatprep.subr.mxu0 0.0
    %2053 = vmatpush1.msra.mxu0 %v1297
    %2054 = vmatprep.subr.mxu0 0.0
    %2055 = vmatpush1.msra.mxu0 %v1303
    %2056 = vmatprep.subr.mxu0 0.0
    %2057 = vmatpush1.msra.mxu0 %v1309
    %2058 = vmatprep.subr.mxu0 0.0
    %2059 = vmatpush1.msra.mxu0 %v1315
    %2060 = vmatprep.subr.mxu0 0.0
    %2061 = vmatpush1.msra.mxu0 %v1321
    %2062 = vmatprep.subr.mxu0 0.0
    %2063 = vmatpush1.msra.mxu0 0.0
    %2064 = vmatprep.subr.mxu0 0.0
    %2065 = vmatpush1.msra.mxu0 0.0
    %2066 = vmatprep.subr.mxu0 0.0
    %2067 = vmatpush1.msra.mxu0 0.0
    %2068 = vmatprep.subr.mxu0 0.0
    %2069 = vmatpush1.msra.mxu0 0.0
    %2070 = vmatprep.subr.mxu0 0.0
    %2071 = vmatpush1.msra.mxu0 0.0
    %2072 = vmatprep.subr.mxu0 0.0
    %2073 = vmatpush1.msra.mxu0 0.0
    %2074 = vmatprep.subr.mxu0 0.0
    %2075 = vmatpush1.msra.mxu0 0.0
    %2076 = vmatprep.subr.mxu0 0.0
    %2077 = vmatpush1.msra.mxu0 0.0
    %2078 = vmatprep.subr.mxu0 0.0
    %2079 = vmatpush1.msra.mxu0 0.0
    %2080 = vmatprep.subr.mxu0 0.0
    %2081 = vmatpush1.msra.mxu0 0.0
    %2082 = vmatprep.subr.mxu0 0.0
    %2083 = vmatpush1.msra.mxu0 0.0
    %2084 = vmatprep.subr.mxu0 0.0
    %2085 = vmatpush1.msra.mxu0 0.0
    %2086 = vmatprep.subr.mxu0 0.0
    %2087 = vmatpush1.msra.mxu0 0.0
    %2088 = vmatprep.subr.mxu0 0.0
    %2089 = vmatpush1.msra.mxu0 0.0
    %2090 = vmatprep.subr.mxu0 0.0
    %2091 = vmatpush1.msra.mxu0 0.0
    %2092 = vmatprep.subr.mxu0 0.0
    %2093 = vmatpush1.msra.mxu0 0.0
    %2094 = vmatprep.mubr.f32.mxu0 0.0
    %2095 = vmatmul.mubr.f32.gmra.mrb[0].mxu0 %v2026
    %v2096 = vpop.f32.mrb[0].mxu0
    %v2097 = vadd.f32 0.0, %v2096
    %v2098 = vpop.f32.mrb[0].mxu0
    %2099 = vmatprep.mubr.f32.mxu0 0.0
    %2100 = vmatmul.mubr.f32.gmra.mrb[0].mxu0 %v2027
    %v2101 = vpop.f32.mrb[0].mxu0
    %v2102 = vadd.f32 0.0, %v2101
    %v2103 = vpop.f32.mrb[0].mxu0
    %2104 = vmatprep.mubr.f32.mxu0 0.0
    %2105 = vmatmul.mubr.f32.gmra.mrb[0].mxu0 %v2028
    %v2106 = vpop.f32.mrb[0].mxu0
    %v2107 = vadd.f32 0.0, %v2106
    %v2108 = vpop.f32.mrb[0].mxu0
    %2109 = vmatprep.mubr.f32.mxu0 0.0
    %2110 = vmatmul.mubr.f32.gmra.mrb[0].mxu0 %v2029
    %v2111 = vpop.f32.mrb[0].mxu0
    %v2112 = vadd.f32 0.0, %v2111
    %v2113 = vpop.f32.mrb[0].mxu0
    %2114 = vdwg.mxu0
    %v2115 = vadd.f32 %v2021, %v2097
    %v2116 = vadd.f32 %v2022, %v2102
    %v2117 = vadd.f32 %v2023, %v2107
    %v2118 = vadd.f32 %v2024, %v2112
    %s2119 = scalar_lea.vmem [#allocation6], 224
    %v2120 = vld [vmem:[%s2119] sm:$0xff]
    %v2121 = vld [vmem:[%s2119 + $0x8] sm:$0xff]
    %v2122 = vld [vmem:[%s2119 + $0x10] sm:$0xff]
    %v2123 = vld [vmem:[%s2119 + $0x18] sm:$0xff]
    %2124 = vmatprep.subr.mxu0 0.0
    %2125 = vmatpush1.msra.mxu0 %v1233
    %2126 = vmatprep.subr.mxu0 0.0
    %2127 = vmatpush1.msra.mxu0 %v1239
    %2128 = vmatprep.subr.mxu0 0.0
    %2129 = vmatpush1.msra.mxu0 %v1245
    %2130 = vmatprep.subr.mxu0 0.0
    %2131 = vmatpush1.msra.mxu0 %v1251
    %2132 = vmatprep.subr.mxu0 0.0
    %2133 = vmatpush1.msra.mxu0 %v1257
    %2134 = vmatprep.subr.mxu0 0.0
    %2135 = vmatpush1.msra.mxu0 %v1263
    %2136 = vmatprep.subr.mxu0 0.0
    %2137 = vmatpush1.msra.mxu0 %v1269
    %2138 = vmatprep.subr.mxu0 0.0
    %2139 = vmatpush1.msra.mxu0 %v1275
    %2140 = vmatprep.subr.mxu0 0.0
    %2141 = vmatpush1.msra.mxu0 %v1281
    %2142 = vmatprep.subr.mxu0 0.0
    %2143 = vmatpush1.msra.mxu0 %v1287
    %2144 = vmatprep.subr.mxu0 0.0
    %2145 = vmatpush1.msra.mxu0 %v1293
    %2146 = vmatprep.subr.mxu0 0.0
    %2147 = vmatpush1.msra.mxu0 %v1299
    %2148 = vmatprep.subr.mxu0 0.0
    %2149 = vmatpush1.msra.mxu0 %v1305
    %2150 = vmatprep.subr.mxu0 0.0
    %2151 = vmatpush1.msra.mxu0 %v1311
    %2152 = vmatprep.subr.mxu0 0.0
    %2153 = vmatpush1.msra.mxu0 %v1317
    %2154 = vmatprep.subr.mxu0 0.0
    %2155 = vmatpush1.msra.mxu0 %v1323
    %2156 = vmatprep.subr.mxu0 0.0
    %2157 = vmatpush1.msra.mxu0 0.0
    %2158 = vmatprep.subr.mxu0 0.0
    %2159 = vmatpush1.msra.mxu0 0.0
    %2160 = vmatprep.subr.mxu0 0.0
    %2161 = vmatpush1.msra.mxu0 0.0
    %2162 = vmatprep.subr.mxu0 0.0
    %2163 = vmatpush1.msra.mxu0 0.0
    %2164 = vmatprep.subr.mxu0 0.0
    %2165 = vmatpush1.msra.mxu0 0.0
    %2166 = vmatprep.subr.mxu0 0.0
    %2167 = vmatpush1.msra.mxu0 0.0
    %2168 = vmatprep.subr.mxu0 0.0
    %2169 = vmatpush1.msra.mxu0 0.0
    %2170 = vmatprep.subr.mxu0 0.0
    %2171 = vmatpush1.msra.mxu0 0.0
    %2172 = vmatprep.subr.mxu0 0.0
    %2173 = vmatpush1.msra.mxu0 0.0
    %2174 = vmatprep.subr.mxu0 0.0
    %2175 = vmatpush1.msra.mxu0 0.0
    %2176 = vmatprep.subr.mxu0 0.0
    %2177 = vmatpush1.msra.mxu0 0.0
    %2178 = vmatprep.subr.mxu0 0.0
    %2179 = vmatpush1.msra.mxu0 0.0
    %2180 = vmatprep.subr.mxu0 0.0
    %2181 = vmatpush1.msra.mxu0 0.0
    %2182 = vmatprep.subr.mxu0 0.0
    %2183 = vmatpush1.msra.mxu0 0.0
    %2184 = vmatprep.subr.mxu0 0.0
    %2185 = vmatpush1.msra.mxu0 0.0
    %2186 = vmatprep.subr.mxu0 0.0
    %2187 = vmatpush1.msra.mxu0 0.0
    %2188 = vmatprep.mubr.f32.mxu0 0.0
    %2189 = vmatmul.mubr.f32.gmra.mrb[0].mxu0 %v2120
    %v2190 = vpop.f32.mrb[0].mxu0
    %v2191 = vadd.f32 0.0, %v2190
    %v2192 = vpop.f32.mrb[0].mxu0
    %2193 = vmatprep.mubr.f32.mxu0 0.0
    %2194 = vmatmul.mubr.f32.gmra.mrb[0].mxu0 %v2121
    %v2195 = vpop.f32.mrb[0].mxu0
    %v2196 = vadd.f32 0.0, %v2195
    %v2197 = vpop.f32.mrb[0].mxu0
    %2198 = vmatprep.mubr.f32.mxu0 0.0
    %2199 = vmatmul.mubr.f32.gmra.mrb[0].mxu0 %v2122
    %v2200 = vpop.f32.mrb[0].mxu0
    %v2201 = vadd.f32 0.0, %v2200
    %v2202 = vpop.f32.mrb[0].mxu0
    %2203 = vmatprep.mubr.f32.mxu0 0.0
    %2204 = vmatmul.mubr.f32.gmra.mrb[0].mxu0 %v2123
    %v2205 = vpop.f32.mrb[0].mxu0
    %v2206 = vadd.f32 0.0, %v2205
    %v2207 = vpop.f32.mrb[0].mxu0
    %2208 = vdwg.mxu0
    %v2209 = vadd.f32 %v2115, %v2191
    %v2210 = vadd.f32 %v2116, %v2196
    %v2211 = vadd.f32 %v2117, %v2201
    %v2212 = vadd.f32 %v2118, %v2206
    %s2213 = scalar_lea.vmem [#allocation6], 256
    %v2214 = vld [vmem:[%s2213] sm:$0xff]
    %v2215 = vld [vmem:[%s2213 + $0x8] sm:$0xff]
    %v2216 = vld [vmem:[%s2213 + $0x10] sm:$0xff]
    %v2217 = vld [vmem:[%s2213 + $0x18] sm:$0xff]
    %2218 = vmatprep.subr.mxu0 0.0
    %2219 = vmatpush1.msra.mxu0 %v1392
    %2220 = vmatprep.subr.mxu0 0.0
    %2221 = vmatpush1.msra.mxu0 %v1397
    %2222 = vmatprep.subr.mxu0 0.0
    %2223 = vmatpush1.msra.mxu0 %v1402
    %2224 = vmatprep.subr.mxu0 0.0
    %2225 = vmatpush1.msra.mxu0 %v1407
    %2226 = vmatprep.subr.mxu0 0.0
    %2227 = vmatpush1.msra.mxu0 %v1412
    %2228 = vmatprep.subr.mxu0 0.0
    %2229 = vmatpush1.msra.mxu0 %v1417
    %2230 = vmatprep.subr.mxu0 0.0
    %2231 = vmatpush1.msra.mxu0 %v1422
    %2232 = vmatprep.subr.mxu0 0.0
    %2233 = vmatpush1.msra.mxu0 %v1427
    %2234 = vmatprep.subr.mxu0 0.0
    %2235 = vmatpush1.msra.mxu0 %v1432
    %2236 = vmatprep.subr.mxu0 0.0
    %2237 = vmatpush1.msra.mxu0 %v1437
    %2238 = vmatprep.subr.mxu0 0.0
    %2239 = vmatpush1.msra.mxu0 %v1442
    %2240 = vmatprep.subr.mxu0 0.0
    %2241 = vmatpush1.msra.mxu0 %v1447
    %2242 = vmatprep.subr.mxu0 0.0
    %2243 = vmatpush1.msra.mxu0 %v1452
    %2244 = vmatprep.subr.mxu0 0.0
    %2245 = vmatpush1.msra.mxu0 %v1457
    %2246 = vmatprep.subr.mxu0 0.0
    %2247 = vmatpush1.msra.mxu0 %v1462
    %2248 = vmatprep.subr.mxu0 0.0
    %2249 = vmatpush1.msra.mxu0 %v1467
    %2250 = vmatprep.subr.mxu0 0.0
    %2251 = vmatpush1.msra.mxu0 0.0
    %2252 = vmatprep.subr.mxu0 0.0
    %2253 = vmatpush1.msra.mxu0 0.0
    %2254 = vmatprep.subr.mxu0 0.0
    %2255 = vmatpush1.msra.mxu0 0.0
    %2256 = vmatprep.subr.mxu0 0.0
    %2257 = vmatpush1.msra.mxu0 0.0
    %2258 = vmatprep.subr.mxu0 0.0
    %2259 = vmatpush1.msra.mxu0 0.0
    %2260 = vmatprep.subr.mxu0 0.0
    %2261 = vmatpush1.msra.mxu0 0.0
    %2262 = vmatprep.subr.mxu0 0.0
    %2263 = vmatpush1.msra.mxu0 0.0
    %2264 = vmatprep.subr.mxu0 0.0
    %2265 = vmatpush1.msra.mxu0 0.0
    %2266 = vmatprep.subr.mxu0 0.0
    %2267 = vmatpush1.msra.mxu0 0.0
    %2268 = vmatprep.subr.mxu0 0.0
    %2269 = vmatpush1.msra.mxu0 0.0
    %2270 = vmatprep.subr.mxu0 0.0
    %2271 = vmatpush1.msra.mxu0 0.0
    %2272 = vmatprep.subr.mxu0 0.0
    %2273 = vmatpush1.msra.mxu0 0.0
    %2274 = vmatprep.subr.mxu0 0.0
    %2275 = vmatpush1.msra.mxu0 0.0
    %2276 = vmatprep.subr.mxu0 0.0
    %2277 = vmatpush1.msra.mxu0 0.0
    %2278 = vmatprep.subr.mxu0 0.0
    %2279 = vmatpush1.msra.mxu0 0.0
    %2280 = vmatprep.subr.mxu0 0.0
    %2281 = vmatpush1.msra.mxu0 0.0
    %2282 = vmatprep.mubr.f32.mxu0 0.0
    %2283 = vmatmul.mubr.f32.gmra.mrb[0].mxu0 %v2214
    %v2284 = vpop.f32.mrb[0].mxu0
    %v2285 = vadd.f32 0.0, %v2284
    %v2286 = vpop.f32.mrb[0].mxu0
    %2287 = vmatprep.mubr.f32.mxu0 0.0
    %2288 = vmatmul.mubr.f32.gmra.mrb[0].mxu0 %v2215
    %v2289 = vpop.f32.mrb[0].mxu0
    %v2290 = vadd.f32 0.0, %v2289
    %v2291 = vpop.f32.mrb[0].mxu0
    %2292 = vmatprep.mubr.f32.mxu0 0.0
    %2293 = vmatmul.mubr.f32.gmra.mrb[0].mxu0 %v2216
    %v2294 = vpop.f32.mrb[0].mxu0
    %v2295 = vadd.f32 0.0, %v2294
    %v2296 = vpop.f32.mrb[0].mxu0
    %2297 = vmatprep.mubr.f32.mxu0 0.0
    %2298 = vmatmul.mubr.f32.gmra.mrb[0].mxu0 %v2217
    %v2299 = vpop.f32.mrb[0].mxu0
    %v2300 = vadd.f32 0.0, %v2299
    %v2301 = vpop.f32.mrb[0].mxu0
    %2302 = vdwg.mxu0
    %v2303 = vadd.f32 %v2209, %v2285
    %v2304 = vadd.f32 %v2210, %v2290
    %v2305 = vadd.f32 %v2211, %v2295
    %v2306 = vadd.f32 %v2212, %v2300
    %v2307 = vmul.f32 %v2303, 0.5
    %v2308 = vmul.f32 %v2304, 0.5
    %v2309 = vmul.f32 %v2305, 0.5
    %v2310 = vmul.f32 %v2306, 0.5
    %v2311 = vmul.f32 %v2303, 0.70710677
    %v2312 = vmul.f32 %v2304, 0.70710677
    %v2313 = vmul.f32 %v2305, 0.70710677
    %v2314 = vmul.f32 %v2306, 0.70710677
    %v2315 = verf.f32.pop %v2311
    %v2316 = verf.f32.pop %v2312
    %v2317 = verf.f32.pop %v2313
    %v2318 = verf.f32.pop %v2314
    %v2319 = vadd.f32 %v2315, 1.0
    %v2320 = vadd.f32 %v2316, 1.0
    %v2321 = vadd.f32 %v2317, 1.0
    %v2322 = vadd.f32 %v2318, 1.0
    %v2323 = vmul.f32 %v2307, %v2319
    %v2324 = vmul.f32 %v2308, %v2320
    %v2325 = vmul.f32 %v2309, %v2321
    %v2326 = vmul.f32 %v2310, %v2322
    %v2327 = vadd.f32 %v2323, %v2324
    %v2328 = vadd.f32 %v2327, %v2325
    %v2329 = vadd.f32 %v2328, %v2326
    %v2330 = vrot.slane %v2329, 4
    %v2331 = vadd.f32 %v2329, %v2330
    %v2332 = vrot.slane %v2331, 2
    %v2333 = vadd.f32 %v2331, %v2332
    %v2334 = vrot.slane %v2333, 1
    %v2335 = vadd.f32 %v2333, %v2334
    %v2336 = vrcp.pop 32.0
    %v2337 = vmul.f32 %v2335, %v2336
    %v2338 = vsub.f32 %v2323, %v2337
    %v2339 = vsub.f32 %v2324, %v2337
    %v2340 = vsub.f32 %v2325, %v2337
    %v2341 = vsub.f32 %v2326, %v2337
    %v2342 = vmul.f32 %v2338, %v2338
    %v2343 = vmul.f32 %v2339, %v2339
    %v2344 = vmul.f32 %v2340, %v2340
    %v2345 = vmul.f32 %v2341, %v2341
    %v2346 = vadd.f32 %v2342, %v2343
    %v2347 = vadd.f32 %v2346, %v2344
    %v2348 = vadd.f32 %v2347, %v2345
    %v2349 = vrot.slane %v2348, 4
    %v2350 = vadd.f32 %v2348, %v2349
    %v2351 = vrot.slane %v2350, 2
    %v2352 = vadd.f32 %v2350, %v2351
    %v2353 = vrot.slane %v2352, 1
    %v2354 = vadd.f32 %v2352, %v2353
    %v2355 = vmul.f32 %v2354, %v2336
    %v2356 = vadd.f32 %v2355, 1e-05
    %v2357 = vrsqrt.pop %v2356
    %v2358 = vmul.f32 %v2338, %v2357
    %v2359 = vmul.f32 %v2339, %v2357
    %v2360 = vmul.f32 %v2340, %v2357
    %v2361 = vmul.f32 %v2341, %v2357
    %v2362 = vld [vmem:[#allocation10 + $0x2] ss:$0 sm:$0xff]
    %v2363 = vmul.f32 %v2358, %v2362
    %v2364 = vmul.f32 %v2359, %v2362
    %v2365 = vmul.f32 %v2360, %v2362
    %v2366 = vmul.f32 %v2361, %v2362
    %v2367 = vld [vmem:[#allocation10 + $0x3] ss:$0 sm:$0xff]
    %v2368 = vadd.f32 %v2363, %v2367
    %v2369 = vadd.f32 %v2364, %v2367
    %v2370 = vadd.f32 %v2365, %v2367
    %v2371 = vadd.f32 %v2366, %v2367
    %v2372 = vld [vmem:[#allocation2 + $0x980] sm:$0xff]
    %v2373 = vld [vmem:[#allocation2 + $0x988] sm:$0xff]
    %v2374 = vld [vmem:[#allocation2 + $0x990] sm:$0xff]
    %v2375 = vld [vmem:[#allocation2 + $0x998] sm:$0xff]
    %v2376 = vld [vmem:[#allocation2 + $0x9a0] sm:$0xff]
    %v2377 = vld [vmem:[#allocation2 + $0x9a8] sm:$0xff]
    %v2378 = vld [vmem:[#allocation2 + $0x9b0] sm:$0xff]
    %v2379 = vld [vmem:[#allocation2 + $0x9b8] sm:$0xff]
    %v2380 = vld [vmem:[#allocation2 + $0x9c0] sm:$0xff]
    %v2381 = vld [vmem:[#allocation2 + $0x9c8] sm:$0xff]
    %v2382 = vld [vmem:[#allocation2 + $0xa18] sm:$0xff]
    %v2383 = vld [vmem:[#allocation2 + $0xa20] sm:$0xff]
    %v2384 = vld [vmem:[#allocation2 + $0xa28] sm:$0xff]
    %v2385 = vld [vmem:[#allocation2 + $0xa30] sm:$0xff]
    %v2386 = vld [vmem:[#allocation2 + $0xa38] sm:$0xff]
    %v2387 = vld [vmem:[#allocation2 + $0xa40] sm:$0xff]
    %v2388 = vld [vmem:[#allocation2 + $0xa48] sm:$0xff]
    %v2389 = vld [vmem:[#allocation2 + $0xa50] sm:$0xff]
    %v2390 = vld [vmem:[#allocation2 + $0xa58] sm:$0xff]
    %v2391 = vld [vmem:[#allocation2 + $0xa60] sm:$0xff]
    %v2392 = vld [vmem:[#allocation2 + $0xab0] sm:$0xff]
    %v2393 = vld [vmem:[#allocation2 + $0xab8] sm:$0xff]
    %v2394 = vld [vmem:[#allocation2 + $0xac0] sm:$0xff]
    %v2395 = vld [vmem:[#allocation2 + $0xac8] sm:$0xff]
    %v2396 = vld [vmem:[#allocation2 + $0xad0] sm:$0xff]
    %v2397 = vld [vmem:[#allocation2 + $0xad8] sm:$0xff]
    %v2398 = vld [vmem:[#allocation2 + $0xae0] sm:$0xff]
    %v2399 = vld [vmem:[#allocation2 + $0xae8] sm:$0xff]
    %v2400 = vld [vmem:[#allocation2 + $0xaf0] sm:$0xff]
    %v2401 = vld [vmem:[#allocation2 + $0xaf8] sm:$0xff]
    %v2402 = vld [vmem:[#allocation2 + $0xb48] sm:$0xff]
    %v2403 = vld [vmem:[#allocation2 + $0xb50] sm:$0xff]
    %v2404 = vld [vmem:[#allocation2 + $0xb58] sm:$0xff]
    %v2405 = vld [vmem:[#allocation2 + $0xb60] sm:$0xff]
    %v2406 = vld [vmem:[#allocation2 + $0xb68] sm:$0xff]
    %v2407 = vld [vmem:[#allocation2 + $0xb70] sm:$0xff]
    %v2408 = vld [vmem:[#allocation2 + $0xb78] sm:$0xff]
    %v2409 = vld [vmem:[#allocation2 + $0xb80] sm:$0xff]
    %v2410 = vld [vmem:[#allocation2 + $0xb88] sm:$0xff]
    %v2411 = vld [vmem:[#allocation2 + $0xb90] sm:$0xff]
    %v2412 = vld [vmem:[#allocation2 + $0xbe0] sm:$0xff]
    %v2413 = vld [vmem:[#allocation2 + $0xbe8] sm:$0xff]
    %v2414 = vld [vmem:[#allocation2 + $0xbf0] sm:$0xff]
    %v2415 = vld [vmem:[#allocation2 + $0xbf8] sm:$0xff]
    %v2416 = vld [vmem:[#allocation2 + $0xc00] sm:$0xff]
    %v2417 = vld [vmem:[#allocation2 + $0xc08] sm:$0xff]
    %v2418 = vld [vmem:[#allocation2 + $0xc10] sm:$0xff]
    %v2419 = vld [vmem:[#allocation2 + $0xc18] sm:$0xff]
    %v2420 = vld [vmem:[#allocation2 + $0xc20] sm:$0xff]
    %v2421 = vld [vmem:[#allocation2 + $0xc28] sm:$0xff]
    %v2422 = vld [vmem:[#allocation2 + $0xc78] sm:$0xff]
    %v2423 = vld [vmem:[#allocation2 + $0xc80] sm:$0xff]
    %v2424 = vld [vmem:[#allocation2 + $0xc88] sm:$0xff]
    %v2425 = vld [vmem:[#allocation2 + $0xc90] sm:$0xff]
    %v2426 = vld [vmem:[#allocation2 + $0xc98] sm:$0xff]
    %v2427 = vld [vmem:[#allocation2 + $0xca0] sm:$0xff]
    %v2428 = vld [vmem:[#allocation2 + $0xca8] sm:$0xff]
    %v2429 = vld [vmem:[#allocation2 + $0xcb0] sm:$0xff]
    %v2430 = vld [vmem:[#allocation2 + $0xcb8] sm:$0xff]
    %v2431 = vld [vmem:[#allocation2 + $0xcc0] sm:$0xff]
    %v2432 = vld [vmem:[#allocation2 + $0xd10] sm:$0xff]
    %v2433 = vld [vmem:[#allocation2 + $0xd18] sm:$0xff]
    %v2434 = vld [vmem:[#allocation2 + $0xd20] sm:$0xff]
    %v2435 = vld [vmem:[#allocation2 + $0xd28] sm:$0xff]
    %v2436 = vld [vmem:[#allocation2 + $0xd30] sm:$0xff]
    %v2437 = vld [vmem:[#allocation2 + $0xd38] sm:$0xff]
    %v2438 = vld [vmem:[#allocation2 + $0xd40] sm:$0xff]
    %v2439 = vld [vmem:[#allocation2 + $0xd48] sm:$0xff]
    %v2440 = vld [vmem:[#allocation2 + $0xd50] sm:$0xff]
    %v2441 = vld [vmem:[#allocation2 + $0xd58] sm:$0xff]
    %v2442 = vld [vmem:[#allocation2 + $0xda8] sm:$0xff]
    %v2443 = vld [vmem:[#allocation2 + $0xdb0] sm:$0xff]
    %v2444 = vld [vmem:[#allocation2 + $0xdb8] sm:$0xff]
    %v2445 = vld [vmem:[#allocation2 + $0xdc0] sm:$0xff]
    %v2446 = vld [vmem:[#allocation2 + $0xdc8] sm:$0xff]
    %v2447 = vld [vmem:[#allocation2 + $0xdd0] sm:$0xff]
    %v2448 = vld [vmem:[#allocation2 + $0xdd8] sm:$0xff]
    %v2449 = vld [vmem:[#allocation2 + $0xde0] sm:$0xff]
    %v2450 = vld [vmem:[#allocation2 + $0xde8] sm:$0xff]
    %v2451 = vld [vmem:[#allocation2 + $0xdf0] sm:$0xff]
    %v2452 = vld [vmem:[#allocation2 + $0xe40] sm:$0xff]
    %v2453 = vld [vmem:[#allocation2 + $0xe48] sm:$0xff]
    %v2454 = vld [vmem:[#allocation2 + $0xe50] sm:$0xff]
    %v2455 = vld [vmem:[#allocation2 + $0xe58] sm:$0xff]
    %v2456 = vld [vmem:[#allocation2 + $0xe60] sm:$0xff]
    %v2457 = vld [vmem:[#allocation2 + $0xe68] sm:$0xff]
    %v2458 = vld [vmem:[#allocation2 + $0xe70] sm:$0xff]
    %v2459 = vld [vmem:[#allocation2 + $0xe78] sm:$0xff]
    %v2460 = vld [vmem:[#allocation2 + $0xe80] sm:$0xff]
    %v2461 = vld [vmem:[#allocation2 + $0xe88] sm:$0xff]
    %v2462 = vld [vmem:[#allocation2 + $0xed8] sm:$0xff]
    %v2463 = vld [vmem:[#allocation2 + $0xee0] sm:$0xff]
    %v2464 = vld [vmem:[#allocation2 + $0xee8] sm:$0xff]
    %v2465 = vld [vmem:[#allocation2 + $0xef0] sm:$0xff]
    %v2466 = vld [vmem:[#allocation2 + $0xef8] sm:$0xff]
    %v2467 = vld [vmem:[#allocation2 + $0xf00] sm:$0xff]
    %v2468 = vld [vmem:[#allocation2 + $0xf08] sm:$0xff]
    %v2469 = vld [vmem:[#allocation2 + $0xf10] sm:$0xff]
    %v2470 = vld [vmem:[#allocation2 + $0xf18] sm:$0xff]
    %v2471 = vld [vmem:[#allocation2 + $0xf20] sm:$0xff]
    %v2472 = vld [vmem:[#allocation2 + $0xf70] sm:$0xff]
    %v2473 = vld [vmem:[#allocation2 + $0xf78] sm:$0xff]
    %v2474 = vld [vmem:[#allocation2 + $0xf80] sm:$0xff]
    %v2475 = vld [vmem:[#allocation2 + $0xf88] sm:$0xff]
    %v2476 = vld [vmem:[#allocation2 + $0xf90] sm:$0xff]
    %v2477 = vld [vmem:[#allocation2 + $0xf98] sm:$0xff]
    %v2478 = vld [vmem:[#allocation2 + $0xfa0] sm:$0xff]
    %v2479 = vld [vmem:[#allocation2 + $0xfa8] sm:$0xff]
    %v2480 = vld [vmem:[#allocation2 + $0xfb0] sm:$0xff]
    %v2481 = vld [vmem:[#allocation2 + $0xfb8] sm:$0xff]
    %v2482 = vld [vmem:[#allocation2 + $0x1008] sm:$0xff]
    %v2483 = vld [vmem:[#allocation2 + $0x1010] sm:$0xff]
    %v2484 = vld [vmem:[#allocation2 + $0x1018] sm:$0xff]
    %v2485 = vld [vmem:[#allocation2 + $0x1020] sm:$0xff]
    %v2486 = vld [vmem:[#allocation2 + $0x1028] sm:$0xff]
    %v2487 = vld [vmem:[#allocation2 + $0x1030] sm:$0xff]
    %v2488 = vld [vmem:[#allocation2 + $0x1038] sm:$0xff]
    %v2489 = vld [vmem:[#allocation2 + $0x1040] sm:$0xff]
    %v2490 = vld [vmem:[#allocation2 + $0x1048] sm:$0xff]
    %v2491 = vld [vmem:[#allocation2 + $0x1050] sm:$0xff]
    %v2492 = vld [vmem:[#allocation2 + $0x10a0] sm:$0xff]
    %v2493 = vld [vmem:[#allocation2 + $0x10a8] sm:$0xff]
    %v2494 = vld [vmem:[#allocation2 + $0x10b0] sm:$0xff]
    %v2495 = vld [vmem:[#allocation2 + $0x10b8] sm:$0xff]
    %v2496 = vld [vmem:[#allocation2 + $0x10c0] sm:$0xff]
    %v2497 = vld [vmem:[#allocation2 + $0x10c8] sm:$0xff]
    %v2498 = vld [vmem:[#allocation2 + $0x10d0] sm:$0xff]
    %v2499 = vld [vmem:[#allocation2 + $0x10d8] sm:$0xff]
    %v2500 = vld [vmem:[#allocation2 + $0x10e0] sm:$0xff]
    %v2501 = vld [vmem:[#allocation2 + $0x10e8] sm:$0xff]
    %v2502 = vld [vmem:[#allocation2 + $0x1138] sm:$0xff]
    %v2503 = vld [vmem:[#allocation2 + $0x1140] sm:$0xff]
    %v2504 = vld [vmem:[#allocation2 + $0x1148] sm:$0xff]
    %v2505 = vld [vmem:[#allocation2 + $0x1150] sm:$0xff]
    %v2506 = vld [vmem:[#allocation2 + $0x1158] sm:$0xff]
    %v2507 = vld [vmem:[#allocation2 + $0x1160] sm:$0xff]
    %v2508 = vld [vmem:[#allocation2 + $0x1168] sm:$0xff]
    %v2509 = vld [vmem:[#allocation2 + $0x1170] sm:$0xff]
    %v2510 = vld [vmem:[#allocation2 + $0x1178] sm:$0xff]
    %v2511 = vld [vmem:[#allocation2 + $0x1180] sm:$0xff]
    %v2512 = vld [vmem:[#allocation2 + $0x11d0] sm:$0xff]
    %v2513 = vld [vmem:[#allocation2 + $0x11d8] sm:$0xff]
    %v2514 = vld [vmem:[#allocation2 + $0x11e0] sm:$0xff]
    %v2515 = vld [vmem:[#allocation2 + $0x11e8] sm:$0xff]
    %v2516 = vld [vmem:[#allocation2 + $0x11f0] sm:$0xff]
    %v2517 = vld [vmem:[#allocation2 + $0x11f8] sm:$0xff]
    %v2518 = vld [vmem:[#allocation2 + $0x1200] sm:$0xff]
    %v2519 = vld [vmem:[#allocation2 + $0x1208] sm:$0xff]
    %v2520 = vld [vmem:[#allocation2 + $0x1210] sm:$0xff]
    %v2521 = vld [vmem:[#allocation2 + $0x1218] sm:$0xff]
    %v2522 = vld [vmem:[#allocation2 + $0x1268] sm:$0xff]
    %v2523 = vld [vmem:[#allocation2 + $0x1270] sm:$0xff]
    %v2524 = vld [vmem:[#allocation2 + $0x1278] sm:$0xff]
    %v2525 = vld [vmem:[#allocation2 + $0x1280] sm:$0xff]
    %v2526 = vld [vmem:[#allocation2 + $0x1288] sm:$0xff]
    %v2527 = vld [vmem:[#allocation2 + $0x1290] sm:$0xff]
    %v2528 = vld [vmem:[#allocation2 + $0x1298] sm:$0xff]
    %v2529 = vld [vmem:[#allocation2 + $0x12a0] sm:$0xff]
    %v2530 = vld [vmem:[#allocation2 + $0x12a8] sm:$0xff]
    %v2531 = vld [vmem:[#allocation2 + $0x12b0] sm:$0xff]
    %2532 = vmatprep.subr.mxu0 %v2373
    %2533 = vmatpush1.msra.mxu0 %v2372
    %2534 = vmatprep.subr.mxu0 %v2383
    %2535 = vmatpush1.msra.mxu0 %v2382
    %2536 = vmatprep.subr.mxu0 %v2393
    %2537 = vmatpush1.msra.mxu0 %v2392
    %2538 = vmatprep.subr.mxu0 %v2403
    %2539 = vmatpush1.msra.mxu0 %v2402
    %2540 = vmatprep.subr.mxu0 %v2413
    %2541 = vmatpush1.msra.mxu0 %v2412
    %2542 = vmatprep.subr.mxu0 %v2423
    %2543 = vmatpush1.msra.mxu0 %v2422
    %2544 = vmatprep.subr.mxu0 %v2433
    %2545 = vmatpush1.msra.mxu0 %v2432
    %2546 = vmatprep.subr.mxu0 %v2443
    %2547 = vmatpush1.msra.mxu0 %v2442
    %2548 = vmatprep.subr.mxu0 %v2453
    %2549 = vmatpush1.msra.mxu0 %v2452
    %2550 = vmatprep.subr.mxu0 %v2463
    %2551 = vmatpush1.msra.mxu0 %v2462
    %2552 = vmatprep.subr.mxu0 %v2473
    %2553 = vmatpush1.msra.mxu0 %v2472
    %2554 = vmatprep.subr.mxu0 %v2483
    %2555 = vmatpush1.msra.mxu0 %v2482
    %2556 = vmatprep.subr.mxu0 %v2493
    %2557 = vmatpush1.msra.mxu0 %v2492
    %2558 = vmatprep.subr.mxu0 %v2503
    %2559 = vmatpush1.msra.mxu0 %v2502
    %2560 = vmatprep.subr.mxu0 %v2513
    %2561 = vmatpush1.msra.mxu0 %v2512
    %2562 = vmatprep.subr.mxu0 %v2523
    %2563 = vmatpush1.msra.mxu0 %v2522
    %2564 = vmatprep.subr.mxu0 0.0
    %2565 = vmatpush1.msra.mxu0 0.0
    %2566 = vmatprep.subr.mxu0 0.0
    %2567 = vmatpush1.msra.mxu0 0.0
    %2568 = vmatprep.subr.mxu0 0.0
    %2569 = vmatpush1.msra.mxu0 0.0
    %2570 = vmatprep.subr.mxu0 0.0
    %2571 = vmatpush1.msra.mxu0 0.0
    %2572 = vmatprep.subr.mxu0 0.0
    %2573 = vmatpush1.msra.mxu0 0.0
    %2574 = vmatprep.subr.mxu0 0.0
    %2575 = vmatpush1.msra.mxu0 0.0
    %2576 = vmatprep.subr.mxu0 0.0
    %2577 = vmatpush1.msra.mxu0 0.0
    %2578 = vmatprep.subr.mxu0 0.0
    %2579 = vmatpush1.msra.mxu0 0.0
    %2580 = vmatprep.subr.mxu0 0.0
    %2581 = vmatpush1.msra.mxu0 0.0
    %2582 = vmatprep.subr.mxu0 0.0
    %2583 = vmatpush1.msra.mxu0 0.0
    %2584 = vmatprep.subr.mxu0 0.0
    %2585 = vmatpush1.msra.mxu0 0.0
    %2586 = vmatprep.subr.mxu0 0.0
    %2587 = vmatpush1.msra.mxu0 0.0
    %2588 = vmatprep.subr.mxu0 0.0
    %2589 = vmatpush1.msra.mxu0 0.0
    %2590 = vmatprep.subr.mxu0 0.0
    %2591 = vmatpush1.msra.mxu0 0.0
    %2592 = vmatprep.subr.mxu0 0.0
    %2593 = vmatpush1.msra.mxu0 0.0
    %2594 = vmatprep.subr.mxu0 0.0
    %2595 = vmatpush1.msra.mxu0 0.0
    %2596 = vmatprep.mubr.f32.mxu0 0.0
    %2597 = vmatmul.mubr.f32.gmra.mrb[0].mxu0 %v2368
    %v2598 = vpop.f32.mrb[0].mxu0
    %v2599 = vadd.f32 0.0, %v2598
    %v2600 = vpop.f32.mrb[0].mxu0
    %v2601 = vadd.f32 0.0, %v2600
    %2602 = vmatprep.mubr.f32.mxu0 0.0
    %2603 = vmatmul.mubr.f32.gmra.mrb[0].mxu0 %v2369
    %v2604 = vpop.f32.mrb[0].mxu0
    %v2605 = vadd.f32 0.0, %v2604
    %v2606 = vpop.f32.mrb[0].mxu0
    %v2607 = vadd.f32 0.0, %v2606
    %2608 = vmatprep.mubr.f32.mxu0 0.0
    %2609 = vmatmul.mubr.f32.gmra.mrb[0].mxu0 %v2370
    %v2610 = vpop.f32.mrb[0].mxu0
    %v2611 = vadd.f32 0.0, %v2610
    %v2612 = vpop.f32.mrb[0].mxu0
    %v2613 = vadd.f32 0.0, %v2612
    %2614 = vmatprep.mubr.f32.mxu0 0.0
    %2615 = vmatmul.mubr.f32.gmra.mrb[0].mxu0 %v2371
    %v2616 = vpop.f32.mrb[0].mxu0
    %v2617 = vadd.f32 0.0, %v2616
    %v2618 = vpop.f32.mrb[0].mxu0
    %v2619 = vadd.f32 0.0, %v2618
    %2620 = vdwg.mxu0
    %2621 = vmatprep.subr.mxu0 %v2375
    %2622 = vmatpush1.msra.mxu0 %v2374
    %2623 = vmatprep.subr.mxu0 %v2385
    %2624 = vmatpush1.msra.mxu0 %v2384
    %2625 = vmatprep.subr.mxu0 %v2395
    %2626 = vmatpush1.msra.mxu0 %v2394
    %2627 = vmatprep.subr.mxu0 %v2405
    %2628 = vmatpush1.msra.mxu0 %v2404
    %2629 = vmatprep.subr.mxu0 %v2415
    %2630 = vmatpush1.msra.mxu0 %v2414
    %2631 = vmatprep.subr.mxu0 %v2425
    %2632 = vmatpush1.msra.mxu0 %v2424
    %2633 = vmatprep.subr.mxu0 %v2435
    %2634 = vmatpush1.msra.mxu0 %v2434
    %2635 = vmatprep.subr.mxu0 %v2445
    %2636 = vmatpush1.msra.mxu0 %v2444
    %2637 = vmatprep.subr.mxu0 %v2455
    %2638 = vmatpush1.msra.mxu0 %v2454
    %2639 = vmatprep.subr.mxu0 %v2465
    %2640 = vmatpush1.msra.mxu0 %v2464
    %2641 = vmatprep.subr.mxu0 %v2475
    %2642 = vmatpush1.msra.mxu0 %v2474
    %2643 = vmatprep.subr.mxu0 %v2485
    %2644 = vmatpush1.msra.mxu0 %v2484
    %2645 = vmatprep.subr.mxu0 %v2495
    %2646 = vmatpush1.msra.mxu0 %v2494
    %2647 = vmatprep.subr.mxu0 %v2505
    %2648 = vmatpush1.msra.mxu0 %v2504
    %2649 = vmatprep.subr.mxu0 %v2515
    %2650 = vmatpush1.msra.mxu0 %v2514
    %2651 = vmatprep.subr.mxu0 %v2525
    %2652 = vmatpush1.msra.mxu0 %v2524
    %2653 = vmatprep.subr.mxu0 0.0
    %2654 = vmatpush1.msra.mxu0 0.0
    %2655 = vmatprep.subr.mxu0 0.0
    %2656 = vmatpush1.msra.mxu0 0.0
    %2657 = vmatprep.subr.mxu0 0.0
    %2658 = vmatpush1.msra.mxu0 0.0
    %2659 = vmatprep.subr.mxu0 0.0
    %2660 = vmatpush1.msra.mxu0 0.0
    %2661 = vmatprep.subr.mxu0 0.0
    %2662 = vmatpush1.msra.mxu0 0.0
    %2663 = vmatprep.subr.mxu0 0.0
    %2664 = vmatpush1.msra.mxu0 0.0
    %2665 = vmatprep.subr.mxu0 0.0
    %2666 = vmatpush1.msra.mxu0 0.0
    %2667 = vmatprep.subr.mxu0 0.0
    %2668 = vmatpush1.msra.mxu0 0.0
    %2669 = vmatprep.subr.mxu0 0.0
    %2670 = vmatpush1.msra.mxu0 0.0
    %2671 = vmatprep.subr.mxu0 0.0
    %2672 = vmatpush1.msra.mxu0 0.0
    %2673 = vmatprep.subr.mxu0 0.0
    %2674 = vmatpush1.msra.mxu0 0.0
    %2675 = vmatprep.subr.mxu0 0.0
    %2676 = vmatpush1.msra.mxu0 0.0
    %2677 = vmatprep.subr.mxu0 0.0
    %2678 = vmatpush1.msra.mxu0 0.0
    %2679 = vmatprep.subr.mxu0 0.0
    %2680 = vmatpush1.msra.mxu0 0.0
    %2681 = vmatprep.subr.mxu0 0.0
    %2682 = vmatpush1.msra.mxu0 0.0
    %2683 = vmatprep.subr.mxu0 0.0
    %2684 = vmatpush1.msra.mxu0 0.0
    %2685 = vmatprep.mubr.f32.mxu0 0.0
    %2686 = vmatmul.mubr.f32.gmra.mrb[0].mxu0 %v2368
    %v2687 = vpop.f32.mrb[0].mxu0
    %v2688 = vadd.f32 0.0, %v2687
    %v2689 = vpop.f32.mrb[0].mxu0
    %v2690 = vadd.f32 0.0, %v2689
    %2691 = vmatprep.mubr.f32.mxu0 0.0
    %2692 = vmatmul.mubr.f32.gmra.mrb[0].mxu0 %v2369
    %v2693 = vpop.f32.mrb[0].mxu0
    %v2694 = vadd.f32 0.0, %v2693
    %v2695 = vpop.f32.mrb[0].mxu0
    %v2696 = vadd.f32 0.0, %v2695
    %2697 = vmatprep.mubr.f32.mxu0 0.0
    %2698 = vmatmul.mubr.f32.gmra.mrb[0].mxu0 %v2370
    %v2699 = vpop.f32.mrb[0].mxu0
    %v2700 = vadd.f32 0.0, %v2699
    %v2701 = vpop.f32.mrb[0].mxu0
    %v2702 = vadd.f32 0.0, %v2701
    %2703 = vmatprep.mubr.f32.mxu0 0.0
    %2704 = vmatmul.mubr.f32.gmra.mrb[0].mxu0 %v2371
    %v2705 = vpop.f32.mrb[0].mxu0
    %v2706 = vadd.f32 0.0, %v2705
    %v2707 = vpop.f32.mrb[0].mxu0
    %v2708 = vadd.f32 0.0, %v2707
    %2709 = vdwg.mxu0
    %2710 = vmatprep.subr.mxu0 %v2377
    %2711 = vmatpush1.msra.mxu0 %v2376
    %2712 = vmatprep.subr.mxu0 %v2387
    %2713 = vmatpush1.msra.mxu0 %v2386
    %2714 = vmatprep.subr.mxu0 %v2397
    %2715 = vmatpush1.msra.mxu0 %v2396
    %2716 = vmatprep.subr.mxu0 %v2407
    %2717 = vmatpush1.msra.mxu0 %v2406
    %2718 = vmatprep.subr.mxu0 %v2417
    %2719 = vmatpush1.msra.mxu0 %v2416
    %2720 = vmatprep.subr.mxu0 %v2427
    %2721 = vmatpush1.msra.mxu0 %v2426
    %2722 = vmatprep.subr.mxu0 %v2437
    %2723 = vmatpush1.msra.mxu0 %v2436
    %2724 = vmatprep.subr.mxu0 %v2447
    %2725 = vmatpush1.msra.mxu0 %v2446
    %2726 = vmatprep.subr.mxu0 %v2457
    %2727 = vmatpush1.msra.mxu0 %v2456
    %2728 = vmatprep.subr.mxu0 %v2467
    %2729 = vmatpush1.msra.mxu0 %v2466
    %2730 = vmatprep.subr.mxu0 %v2477
    %2731 = vmatpush1.msra.mxu0 %v2476
    %2732 = vmatprep.subr.mxu0 %v2487
    %2733 = vmatpush1.msra.mxu0 %v2486
    %2734 = vmatprep.subr.mxu0 %v2497
    %2735 = vmatpush1.msra.mxu0 %v2496
    %2736 = vmatprep.subr.mxu0 %v2507
    %2737 = vmatpush1.msra.mxu0 %v2506
    %2738 = vmatprep.subr.mxu0 %v2517
    %2739 = vmatpush1.msra.mxu0 %v2516
    %2740 = vmatprep.subr.mxu0 %v2527
    %2741 = vmatpush1.msra.mxu0 %v2526
    %2742 = vmatprep.subr.mxu0 0.0
    %2743 = vmatpush1.msra.mxu0 0.0
    %2744 = vmatprep.subr.mxu0 0.0
    %2745 = vmatpush1.msra.mxu0 0.0
    %2746 = vmatprep.subr.mxu0 0.0
    %2747 = vmatpush1.msra.mxu0 0.0
    %2748 = vmatprep.subr.mxu0 0.0
    %2749 = vmatpush1.msra.mxu0 0.0
    %2750 = vmatprep.subr.mxu0 0.0
    %2751 = vmatpush1.msra.mxu0 0.0
    %2752 = vmatprep.subr.mxu0 0.0
    %2753 = vmatpush1.msra.mxu0 0.0
    %2754 = vmatprep.subr.mxu0 0.0
    %2755 = vmatpush1.msra.mxu0 0.0
    %2756 = vmatprep.subr.mxu0 0.0
    %2757 = vmatpush1.msra.mxu0 0.0
    %2758 = vmatprep.subr.mxu0 0.0
    %2759 = vmatpush1.msra.mxu0 0.0
    %2760 = vmatprep.subr.mxu0 0.0
    %2761 = vmatpush1.msra.mxu0 0.0
    %2762 = vmatprep.subr.mxu0 0.0
    %2763 = vmatpush1.msra.mxu0 0.0
    %2764 = vmatprep.subr.mxu0 0.0
    %2765 = vmatpush1.msra.mxu0 0.0
    %2766 = vmatprep.subr.mxu0 0.0
    %2767 = vmatpush1.msra.mxu0 0.0
    %2768 = vmatprep.subr.mxu0 0.0
    %2769 = vmatpush1.msra.mxu0 0.0
    %2770 = vmatprep.subr.mxu0 0.0
    %2771 = vmatpush1.msra.mxu0 0.0
    %2772 = vmatprep.subr.mxu0 0.0
    %2773 = vmatpush1.msra.mxu0 0.0
    %2774 = vmatprep.mubr.f32.mxu0 0.0
    %2775 = vmatmul.mubr.f32.gmra.mrb[0].mxu0 %v2368
    %v2776 = vpop.f32.mrb[0].mxu0
    %v2777 = vadd.f32 0.0, %v2776
    %v2778 = vpop.f32.mrb[0].mxu0
    %v2779 = vadd.f32 0.0, %v2778
    %2780 = vmatprep.mubr.f32.mxu0 0.0
    %2781 = vmatmul.mubr.f32.gmra.mrb[0].mxu0 %v2369
    %v2782 = vpop.f32.mrb[0].mxu0
    %v2783 = vadd.f32 0.0, %v2782
    %v2784 = vpop.f32.mrb[0].mxu0
    %v2785 = vadd.f32 0.0, %v2784
    %2786 = vmatprep.mubr.f32.mxu0 0.0
    %2787 = vmatmul.mubr.f32.gmra.mrb[0].mxu0 %v2370
    %v2788 = vpop.f32.mrb[0].mxu0
    %v2789 = vadd.f32 0.0, %v2788
    %v2790 = vpop.f32.mrb[0].mxu0
    %v2791 = vadd.f32 0.0, %v2790
    %2792 = vmatprep.mubr.f32.mxu0 0.0
    %2793 = vmatmul.mubr.f32.gmra.mrb[0].mxu0 %v2371
    %v2794 = vpop.f32.mrb[0].mxu0
    %v2795 = vadd.f32 0.0, %v2794
    %v2796 = vpop.f32.mrb[0].mxu0
    %v2797 = vadd.f32 0.0, %v2796
    %2798 = vdwg.mxu0
    %2799 = vmatprep.subr.mxu0 %v2379
    %2800 = vmatpush1.msra.mxu0 %v2378
    %2801 = vmatprep.subr.mxu0 %v2389
    %2802 = vmatpush1.msra.mxu0 %v2388
    %2803 = vmatprep.subr.mxu0 %v2399
    %2804 = vmatpush1.msra.mxu0 %v2398
    %2805 = vmatprep.subr.mxu0 %v2409
    %2806 = vmatpush1.msra.mxu0 %v2408
    %2807 = vmatprep.subr.mxu0 %v2419
    %2808 = vmatpush1.msra.mxu0 %v2418
    %2809 = vmatprep.subr.mxu0 %v2429
    %2810 = vmatpush1.msra.mxu0 %v2428
    %2811 = vmatprep.subr.mxu0 %v2439
    %2812 = vmatpush1.msra.mxu0 %v2438
    %2813 = vmatprep.subr.mxu0 %v2449
    %2814 = vmatpush1.msra.mxu0 %v2448
    %2815 = vmatprep.subr.mxu0 %v2459
    %2816 = vmatpush1.msra.mxu0 %v2458
    %2817 = vmatprep.subr.mxu0 %v2469
    %2818 = vmatpush1.msra.mxu0 %v2468
    %2819 = vmatprep.subr.mxu0 %v2479
    %2820 = vmatpush1.msra.mxu0 %v2478
    %2821 = vmatprep.subr.mxu0 %v2489
    %2822 = vmatpush1.msra.mxu0 %v2488
    %2823 = vmatprep.subr.mxu0 %v2499
    %2824 = vmatpush1.msra.mxu0 %v2498
    %2825 = vmatprep.subr.mxu0 %v2509
    %2826 = vmatpush1.msra.mxu0 %v2508
    %2827 = vmatprep.subr.mxu0 %v2519
    %2828 = vmatpush1.msra.mxu0 %v2518
    %2829 = vmatprep.subr.mxu0 %v2529
    %2830 = vmatpush1.msra.mxu0 %v2528
    %2831 = vmatprep.subr.mxu0 0.0
    %2832 = vmatpush1.msra.mxu0 0.0
    %2833 = vmatprep.subr.mxu0 0.0
    %2834 = vmatpush1.msra.mxu0 0.0
    %2835 = vmatprep.subr.mxu0 0.0
    %2836 = vmatpush1.msra.mxu0 0.0
    %2837 = vmatprep.subr.mxu0 0.0
    %2838 = vmatpush1.msra.mxu0 0.0
    %2839 = vmatprep.subr.mxu0 0.0
    %2840 = vmatpush1.msra.mxu0 0.0
    %2841 = vmatprep.subr.mxu0 0.0
    %2842 = vmatpush1.msra.mxu0 0.0
    %2843 = vmatprep.subr.mxu0 0.0
    %2844 = vmatpush1.msra.mxu0 0.0
    %2845 = vmatprep.subr.mxu0 0.0
    %2846 = vmatpush1.msra.mxu0 0.0
    %2847 = vmatprep.subr.mxu0 0.0
    %2848 = vmatpush1.msra.mxu0 0.0
    %2849 = vmatprep.subr.mxu0 0.0
    %2850 = vmatpush1.msra.mxu0 0.0
    %2851 = vmatprep.subr.mxu0 0.0
    %2852 = vmatpush1.msra.mxu0 0.0
    %2853 = vmatprep.subr.mxu0 0.0
    %2854 = vmatpush1.msra.mxu0 0.0
    %2855 = vmatprep.subr.mxu0 0.0
    %2856 = vmatpush1.msra.mxu0 0.0
    %2857 = vmatprep.subr.mxu0 0.0
    %2858 = vmatpush1.msra.mxu0 0.0
    %2859 = vmatprep.subr.mxu0 0.0
    %2860 = vmatpush1.msra.mxu0 0.0
    %2861 = vmatprep.subr.mxu0 0.0
    %2862 = vmatpush1.msra.mxu0 0.0
    %2863 = vmatprep.mubr.f32.mxu0 0.0
    %2864 = vmatmul.mubr.f32.gmra.mrb[0].mxu0 %v2368
    %v2865 = vpop.f32.mrb[0].mxu0
    %v2866 = vadd.f32 0.0, %v2865
    %v2867 = vpop.f32.mrb[0].mxu0
    %v2868 = vadd.f32 0.0, %v2867
    %2869 = vmatprep.mubr.f32.mxu0 0.0
    %2870 = vmatmul.mubr.f32.gmra.mrb[0].mxu0 %v2369
    %v2871 = vpop.f32.mrb[0].mxu0
    %v2872 = vadd.f32 0.0, %v2871
    %v2873 = vpop.f32.mrb[0].mxu0
    %v2874 = vadd.f32 0.0, %v2873
    %2875 = vmatprep.mubr.f32.mxu0 0.0
    %2876 = vmatmul.mubr.f32.gmra.mrb[0].mxu0 %v2370
    %v2877 = vpop.f32.mrb[0].mxu0
    %v2878 = vadd.f32 0.0, %v2877
    %v2879 = vpop.f32.mrb[0].mxu0
    %v2880 = vadd.f32 0.0, %v2879
    %2881 = vmatprep.mubr.f32.mxu0 0.0
    %2882 = vmatmul.mubr.f32.gmra.mrb[0].mxu0 %v2371
    %v2883 = vpop.f32.mrb[0].mxu0
    %v2884 = vadd.f32 0.0, %v2883
    %v2885 = vpop.f32.mrb[0].mxu0
    %v2886 = vadd.f32 0.0, %v2885
    %2887 = vdwg.mxu0
    %2888 = vmatprep.subr.mxu0 %v2381
    %2889 = vmatpush1.msra.mxu0 %v2380
    %2890 = vmatprep.subr.mxu0 %v2391
    %2891 = vmatpush1.msra.mxu0 %v2390
    %2892 = vmatprep.subr.mxu0 %v2401
    %2893 = vmatpush1.msra.mxu0 %v2400
    %2894 = vmatprep.subr.mxu0 %v2411
    %2895 = vmatpush1.msra.mxu0 %v2410
    %2896 = vmatprep.subr.mxu0 %v2421
    %2897 = vmatpush1.msra.mxu0 %v2420
    %2898 = vmatprep.subr.mxu0 %v2431
    %2899 = vmatpush1.msra.mxu0 %v2430
    %2900 = vmatprep.subr.mxu0 %v2441
    %2901 = vmatpush1.msra.mxu0 %v2440
    %2902 = vmatprep.subr.mxu0 %v2451
    %2903 = vmatpush1.msra.mxu0 %v2450
    %2904 = vmatprep.subr.mxu0 %v2461
    %2905 = vmatpush1.msra.mxu0 %v2460
    %2906 = vmatprep.subr.mxu0 %v2471
    %2907 = vmatpush1.msra.mxu0 %v2470
    %2908 = vmatprep.subr.mxu0 %v2481
    %2909 = vmatpush1.msra.mxu0 %v2480
    %2910 = vmatprep.subr.mxu0 %v2491
    %2911 = vmatpush1.msra.mxu0 %v2490
    %2912 = vmatprep.subr.mxu0 %v2501
    %2913 = vmatpush1.msra.mxu0 %v2500
    %2914 = vmatprep.subr.mxu0 %v2511
    %2915 = vmatpush1.msra.mxu0 %v2510
    %2916 = vmatprep.subr.mxu0 %v2521
    %2917 = vmatpush1.msra.mxu0 %v2520
    %2918 = vmatprep.subr.mxu0 %v2531
    %2919 = vmatpush1.msra.mxu0 %v2530
    %2920 = vmatprep.subr.mxu0 0.0
    %2921 = vmatpush1.msra.mxu0 0.0
    %2922 = vmatprep.subr.mxu0 0.0
    %2923 = vmatpush1.msra.mxu0 0.0
    %2924 = vmatprep.subr.mxu0 0.0
    %2925 = vmatpush1.msra.mxu0 0.0
    %2926 = vmatprep.subr.mxu0 0.0
    %2927 = vmatpush1.msra.mxu0 0.0
    %2928 = vmatprep.subr.mxu0 0.0
    %2929 = vmatpush1.msra.mxu0 0.0
    %2930 = vmatprep.subr.mxu0 0.0
    %2931 = vmatpush1.msra.mxu0 0.0
    %2932 = vmatprep.subr.mxu0 0.0
    %2933 = vmatpush1.msra.mxu0 0.0
    %2934 = vmatprep.subr.mxu0 0.0
    %2935 = vmatpush1.msra.mxu0 0.0
    %2936 = vmatprep.subr.mxu0 0.0
    %2937 = vmatpush1.msra.mxu0 0.0
    %2938 = vmatprep.subr.mxu0 0.0
    %2939 = vmatpush1.msra.mxu0 0.0
    %2940 = vmatprep.subr.mxu0 0.0
    %2941 = vmatpush1.msra.mxu0 0.0
    %2942 = vmatprep.subr.mxu0 0.0
    %2943 = vmatpush1.msra.mxu0 0.0
    %2944 = vmatprep.subr.mxu0 0.0
    %2945 = vmatpush1.msra.mxu0 0.0
    %2946 = vmatprep.subr.mxu0 0.0
    %2947 = vmatpush1.msra.mxu0 0.0
    %2948 = vmatprep.subr.mxu0 0.0
    %2949 = vmatpush1.msra.mxu0 0.0
    %2950 = vmatprep.subr.mxu0 0.0
    %2951 = vmatpush1.msra.mxu0 0.0
    %2952 = vmatprep.mubr.f32.mxu0 0.0
    %2953 = vmatmul.mubr.f32.gmra.mrb[0].mxu0 %v2368
    %v2954 = vpop.f32.mrb[0].mxu0
    %v2955 = vadd.f32 0.0, %v2954
    %v2956 = vpop.f32.mrb[0].mxu0
    %v2957 = vadd.f32 0.0, %v2956
    %2958 = vmatprep.mubr.f32.mxu0 0.0
    %2959 = vmatmul.mubr.f32.gmra.mrb[0].mxu0 %v2369
    %v2960 = vpop.f32.mrb[0].mxu0
    %v2961 = vadd.f32 0.0, %v2960
    %v2962 = vpop.f32.mrb[0].mxu0
    %v2963 = vadd.f32 0.0, %v2962
    %2964 = vmatprep.mubr.f32.mxu0 0.0
    %2965 = vmatmul.mubr.f32.gmra.mrb[0].mxu0 %v2370
    %v2966 = vpop.f32.mrb[0].mxu0
    %v2967 = vadd.f32 0.0, %v2966
    %v2968 = vpop.f32.mrb[0].mxu0
    %v2969 = vadd.f32 0.0, %v2968
    %2970 = vmatprep.mubr.f32.mxu0 0.0
    %2971 = vmatmul.mubr.f32.gmra.mrb[0].mxu0 %v2371
    %v2972 = vpop.f32.mrb[0].mxu0
    %v2973 = vadd.f32 0.0, %v2972
    %v2974 = vpop.f32.mrb[0].mxu0
    %v2975 = vadd.f32 0.0, %v2974
    %2976 = vdwg.mxu0
    %v2977 = vld [vmem:[#allocation7] sm:$0xff]
    %s2978 = scalar_lea.vmem [#allocation7], 8
    %v2979 = vld [vmem:[%s2978] sm:$0xff]
    %v2981 = vsel %vm134, %v2979, 0
    %2983 = vmatprep.subr.mxu0 0.0
    %2984 = vmatpush1.msra.mxu0 %v2601
    %2985 = vmatprep.subr.mxu0 0.0
    %2986 = vmatpush1.msra.mxu0 %v2607
    %2987 = vmatprep.subr.mxu0 0.0
    %2988 = vmatpush1.msra.mxu0 %v2613
    %2989 = vmatprep.subr.mxu0 0.0
    %2990 = vmatpush1.msra.mxu0 %v2619
    %2991 = vmatprep.subr.mxu0 0.0
    %2992 = vmatpush1.msra.mxu0 0.0
    %2993 = vmatprep.subr.mxu0 0.0
    %2994 = vmatpush1.msra.mxu0 0.0
    %2995 = vmatprep.subr.mxu0 0.0
    %2996 = vmatpush1.msra.mxu0 0.0
    %2997 = vmatprep.subr.mxu0 0.0
    %2998 = vmatpush1.msra.mxu0 0.0
    %2999 = vmatprep.subr.mxu0 0.0
    %3000 = vmatpush1.msra.mxu0 0.0
    %3001 = vmatprep.subr.mxu0 0.0
    %3002 = vmatpush1.msra.mxu0 0.0
    %3003 = vmatprep.subr.mxu0 0.0
    %3004 = vmatpush1.msra.mxu0 0.0
    %3005 = vmatprep.subr.mxu0 0.0
    %3006 = vmatpush1.msra.mxu0 0.0
    %3007 = vmatprep.subr.mxu0 0.0
    %3008 = vmatpush1.msra.mxu0 0.0
    %3009 = vmatprep.subr.mxu0 0.0
    %3010 = vmatpush1.msra.mxu0 0.0
    %3011 = vmatprep.subr.mxu0 0.0
    %3012 = vmatpush1.msra.mxu0 0.0
    %3013 = vmatprep.subr.mxu0 0.0
    %3014 = vmatpush1.msra.mxu0 0.0
    %3015 = vmatprep.subr.mxu0 0.0
    %3016 = vmatpush1.msra.mxu0 0.0
    %3017 = vmatprep.subr.mxu0 0.0
    %3018 = vmatpush1.msra.mxu0 0.0
    %3019 = vmatprep.subr.mxu0 0.0
    %3020 = vmatpush1.msra.mxu0 0.0
    %3021 = vmatprep.subr.mxu0 0.0
    %3022 = vmatpush1.msra.mxu0 0.0
    %3023 = vmatprep.subr.mxu0 0.0
    %3024 = vmatpush1.msra.mxu0 0.0
    %3025 = vmatprep.subr.mxu0 0.0
    %3026 = vmatpush1.msra.mxu0 0.0
    %3027 = vmatprep.subr.mxu0 0.0
    %3028 = vmatpush1.msra.mxu0 0.0
    %3029 = vmatprep.subr.mxu0 0.0
    %3030 = vmatpush1.msra.mxu0 0.0
    %3031 = vmatprep.subr.mxu0 0.0
    %3032 = vmatpush1.msra.mxu0 0.0
    %3033 = vmatprep.subr.mxu0 0.0
    %3034 = vmatpush1.msra.mxu0 0.0
    %3035 = vmatprep.subr.mxu0 0.0
    %3036 = vmatpush1.msra.mxu0 0.0
    %3037 = vmatprep.subr.mxu0 0.0
    %3038 = vmatpush1.msra.mxu0 0.0
    %3039 = vmatprep.subr.mxu0 0.0
    %3040 = vmatpush1.msra.mxu0 0.0
    %3041 = vmatprep.subr.mxu0 0.0
    %3042 = vmatpush1.msra.mxu0 0.0
    %3043 = vmatprep.subr.mxu0 0.0
    %3044 = vmatpush1.msra.mxu0 0.0
    %3045 = vmatprep.subr.mxu0 0.0
    %3046 = vmatpush1.msra.mxu0 0.0
    %3047 = vmatprep.mubr.f32.mxu0 0.0
    %3048 = vmatmul.mubr.f32.gmra.mrb[0].mxu0 %v2981
    %v3049 = vpop.f32.mrb[0].mxu0
    %v3050 = vadd.f32 0.0, %v3049
    %v3051 = vpop.f32.mrb[0].mxu0
    %3052 = vdwg.mxu0
    %v3054 = vsel %vm134, %v2977, 0
    %3056 = vmatprep.subr.mxu0 0.0
    %3057 = vmatpush1.msra.mxu0 %v2599
    %3058 = vmatprep.subr.mxu0 0.0
    %3059 = vmatpush1.msra.mxu0 %v2605
    %3060 = vmatprep.subr.mxu0 0.0
    %3061 = vmatpush1.msra.mxu0 %v2611
    %3062 = vmatprep.subr.mxu0 0.0
    %3063 = vmatpush1.msra.mxu0 %v2617
    %3064 = vmatprep.subr.mxu0 0.0
    %3065 = vmatpush1.msra.mxu0 0.0
    %3066 = vmatprep.subr.mxu0 0.0
    %3067 = vmatpush1.msra.mxu0 0.0
    %3068 = vmatprep.subr.mxu0 0.0
    %3069 = vmatpush1.msra.mxu0 0.0
    %3070 = vmatprep.subr.mxu0 0.0
    %3071 = vmatpush1.msra.mxu0 0.0
    %3072 = vmatprep.subr.mxu0 0.0
    %3073 = vmatpush1.msra.mxu0 0.0
    %3074 = vmatprep.subr.mxu0 0.0
    %3075 = vmatpush1.msra.mxu0 0.0
    %3076 = vmatprep.subr.mxu0 0.0
    %3077 = vmatpush1.msra.mxu0 0.0
    %3078 = vmatprep.subr.mxu0 0.0
    %3079 = vmatpush1.msra.mxu0 0.0
    %3080 = vmatprep.subr.mxu0 0.0
    %3081 = vmatpush1.msra.mxu0 0.0
    %3082 = vmatprep.subr.mxu0 0.0
    %3083 = vmatpush1.msra.mxu0 0.0
    %3084 = vmatprep.subr.mxu0 0.0
    %3085 = vmatpush1.msra.mxu0 0.0
    %3086 = vmatprep.subr.mxu0 0.0
    %3087 = vmatpush1.msra.mxu0 0.0
    %3088 = vmatprep.subr.mxu0 0.0
    %3089 = vmatpush1.msra.mxu0 0.0
    %3090 = vmatprep.subr.mxu0 0.0
    %3091 = vmatpush1.msra.mxu0 0.0
    %3092 = vmatprep.subr.mxu0 0.0
    %3093 = vmatpush1.msra.mxu0 0.0
    %3094 = vmatprep.subr.mxu0 0.0
    %3095 = vmatpush1.msra.mxu0 0.0
    %3096 = vmatprep.subr.mxu0 0.0
    %3097 = vmatpush1.msra.mxu0 0.0
    %3098 = vmatprep.subr.mxu0 0.0
    %3099 = vmatpush1.msra.mxu0 0.0
    %3100 = vmatprep.subr.mxu0 0.0
    %3101 = vmatpush1.msra.mxu0 0.0
    %3102 = vmatprep.subr.mxu0 0.0
    %3103 = vmatpush1.msra.mxu0 0.0
    %3104 = vmatprep.subr.mxu0 0.0
    %3105 = vmatpush1.msra.mxu0 0.0
    %3106 = vmatprep.subr.mxu0 0.0
    %3107 = vmatpush1.msra.mxu0 0.0
    %3108 = vmatprep.subr.mxu0 0.0
    %3109 = vmatpush1.msra.mxu0 0.0
    %3110 = vmatprep.subr.mxu0 0.0
    %3111 = vmatpush1.msra.mxu0 0.0
    %3112 = vmatprep.subr.mxu0 0.0
    %3113 = vmatpush1.msra.mxu0 0.0
    %3114 = vmatprep.subr.mxu0 0.0
    %3115 = vmatpush1.msra.mxu0 0.0
    %3116 = vmatprep.subr.mxu0 0.0
    %3117 = vmatpush1.msra.mxu0 0.0
    %3118 = vmatprep.subr.mxu0 0.0
    %3119 = vmatpush1.msra.mxu0 0.0
    %3120 = vmatprep.mubr.f32.mxu0 0.0
    %3121 = vmatmul.mubr.f32.gmra.mrb[0].mxu0 %v3054
    %v3122 = vpop.f32.mrb[0].mxu0
    %v3123 = vadd.f32 %v3050, %v3122
    %v3124 = vpop.f32.mrb[0].mxu0
    %3125 = vdwg.mxu0
    %s3126 = scalar_lea.vmem [#allocation7], 16
    %v3127 = vld [vmem:[%s3126] sm:$0xff]
    %v3129 = vsel %vm134, %v3127, 0
    %3131 = vmatprep.subr.mxu0 0.0
    %3132 = vmatpush1.msra.mxu0 %v2688
    %3133 = vmatprep.subr.mxu0 0.0
    %3134 = vmatpush1.msra.mxu0 %v2694
    %3135 = vmatprep.subr.mxu0 0.0
    %3136 = vmatpush1.msra.mxu0 %v2700
    %3137 = vmatprep.subr.mxu0 0.0
    %3138 = vmatpush1.msra.mxu0 %v2706
    %3139 = vmatprep.subr.mxu0 0.0
    %3140 = vmatpush1.msra.mxu0 0.0
    %3141 = vmatprep.subr.mxu0 0.0
    %3142 = vmatpush1.msra.mxu0 0.0
    %3143 = vmatprep.subr.mxu0 0.0
    %3144 = vmatpush1.msra.mxu0 0.0
    %3145 = vmatprep.subr.mxu0 0.0
    %3146 = vmatpush1.msra.mxu0 0.0
    %3147 = vmatprep.subr.mxu0 0.0
    %3148 = vmatpush1.msra.mxu0 0.0
    %3149 = vmatprep.subr.mxu0 0.0
    %3150 = vmatpush1.msra.mxu0 0.0
    %3151 = vmatprep.subr.mxu0 0.0
    %3152 = vmatpush1.msra.mxu0 0.0
    %3153 = vmatprep.subr.mxu0 0.0
    %3154 = vmatpush1.msra.mxu0 0.0
    %3155 = vmatprep.subr.mxu0 0.0
    %3156 = vmatpush1.msra.mxu0 0.0
    %3157 = vmatprep.subr.mxu0 0.0
    %3158 = vmatpush1.msra.mxu0 0.0
    %3159 = vmatprep.subr.mxu0 0.0
    %3160 = vmatpush1.msra.mxu0 0.0
    %3161 = vmatprep.subr.mxu0 0.0
    %3162 = vmatpush1.msra.mxu0 0.0
    %3163 = vmatprep.subr.mxu0 0.0
    %3164 = vmatpush1.msra.mxu0 0.0
    %3165 = vmatprep.subr.mxu0 0.0
    %3166 = vmatpush1.msra.mxu0 0.0
    %3167 = vmatprep.subr.mxu0 0.0
    %3168 = vmatpush1.msra.mxu0 0.0
    %3169 = vmatprep.subr.mxu0 0.0
    %3170 = vmatpush1.msra.mxu0 0.0
    %3171 = vmatprep.subr.mxu0 0.0
    %3172 = vmatpush1.msra.mxu0 0.0
    %3173 = vmatprep.subr.mxu0 0.0
    %3174 = vmatpush1.msra.mxu0 0.0
    %3175 = vmatprep.subr.mxu0 0.0
    %3176 = vmatpush1.msra.mxu0 0.0
    %3177 = vmatprep.subr.mxu0 0.0
    %3178 = vmatpush1.msra.mxu0 0.0
    %3179 = vmatprep.subr.mxu0 0.0
    %3180 = vmatpush1.msra.mxu0 0.0
    %3181 = vmatprep.subr.mxu0 0.0
    %3182 = vmatpush1.msra.mxu0 0.0
    %3183 = vmatprep.subr.mxu0 0.0
    %3184 = vmatpush1.msra.mxu0 0.0
    %3185 = vmatprep.subr.mxu0 0.0
    %3186 = vmatpush1.msra.mxu0 0.0
    %3187 = vmatprep.subr.mxu0 0.0
    %3188 = vmatpush1.msra.mxu0 0.0
    %3189 = vmatprep.subr.mxu0 0.0
    %3190 = vmatpush1.msra.mxu0 0.0
    %3191 = vmatprep.subr.mxu0 0.0
    %3192 = vmatpush1.msra.mxu0 0.0
    %3193 = vmatprep.subr.mxu0 0.0
    %3194 = vmatpush1.msra.mxu0 0.0
    %3195 = vmatprep.mubr.f32.mxu0 0.0
    %3196 = vmatmul.mubr.f32.gmra.mrb[0].mxu0 %v3129
    %v3197 = vpop.f32.mrb[0].mxu0
    %v3198 = vadd.f32 0.0, %v3197
    %v3199 = vpop.f32.mrb[0].mxu0
    %3200 = vdwg.mxu0
    %v3201 = vadd.f32 %v3123, %v3198
    %s3202 = scalar_lea.vmem [#allocation7], 24
    %v3203 = vld [vmem:[%s3202] sm:$0xff]
    %v3205 = vsel %vm134, %v3203, 0
    %3207 = vmatprep.subr.mxu0 0.0
    %3208 = vmatpush1.msra.mxu0 %v2690
    %3209 = vmatprep.subr.mxu0 0.0
    %3210 = vmatpush1.msra.mxu0 %v2696
    %3211 = vmatprep.subr.mxu0 0.0
    %3212 = vmatpush1.msra.mxu0 %v2702
    %3213 = vmatprep.subr.mxu0 0.0
    %3214 = vmatpush1.msra.mxu0 %v2708
    %3215 = vmatprep.subr.mxu0 0.0
    %3216 = vmatpush1.msra.mxu0 0.0
    %3217 = vmatprep.subr.mxu0 0.0
    %3218 = vmatpush1.msra.mxu0 0.0
    %3219 = vmatprep.subr.mxu0 0.0
    %3220 = vmatpush1.msra.mxu0 0.0
    %3221 = vmatprep.subr.mxu0 0.0
    %3222 = vmatpush1.msra.mxu0 0.0
    %3223 = vmatprep.subr.mxu0 0.0
    %3224 = vmatpush1.msra.mxu0 0.0
    %3225 = vmatprep.subr.mxu0 0.0
    %3226 = vmatpush1.msra.mxu0 0.0
    %3227 = vmatprep.subr.mxu0 0.0
    %3228 = vmatpush1.msra.mxu0 0.0
    %3229 = vmatprep.subr.mxu0 0.0
    %3230 = vmatpush1.msra.mxu0 0.0
    %3231 = vmatprep.subr.mxu0 0.0
    %3232 = vmatpush1.msra.mxu0 0.0
    %3233 = vmatprep.subr.mxu0 0.0
    %3234 = vmatpush1.msra.mxu0 0.0
    %3235 = vmatprep.subr.mxu0 0.0
    %3236 = vmatpush1.msra.mxu0 0.0
    %3237 = vmatprep.subr.mxu0 0.0
    %3238 = vmatpush1.msra.mxu0 0.0
    %3239 = vmatprep.subr.mxu0 0.0
    %3240 = vmatpush1.msra.mxu0 0.0
    %3241 = vmatprep.subr.mxu0 0.0
    %3242 = vmatpush1.msra.mxu0 0.0
    %3243 = vmatprep.subr.mxu0 0.0
    %3244 = vmatpush1.msra.mxu0 0.0
    %3245 = vmatprep.subr.mxu0 0.0
    %3246 = vmatpush1.msra.mxu0 0.0
    %3247 = vmatprep.subr.mxu0 0.0
    %3248 = vmatpush1.msra.mxu0 0.0
    %3249 = vmatprep.subr.mxu0 0.0
    %3250 = vmatpush1.msra.mxu0 0.0
    %3251 = vmatprep.subr.mxu0 0.0
    %3252 = vmatpush1.msra.mxu0 0.0
    %3253 = vmatprep.subr.mxu0 0.0
    %3254 = vmatpush1.msra.mxu0 0.0
    %3255 = vmatprep.subr.mxu0 0.0
    %3256 = vmatpush1.msra.mxu0 0.0
    %3257 = vmatprep.subr.mxu0 0.0
    %3258 = vmatpush1.msra.mxu0 0.0
    %3259 = vmatprep.subr.mxu0 0.0
    %3260 = vmatpush1.msra.mxu0 0.0
    %3261 = vmatprep.subr.mxu0 0.0
    %3262 = vmatpush1.msra.mxu0 0.0
    %3263 = vmatprep.subr.mxu0 0.0
    %3264 = vmatpush1.msra.mxu0 0.0
    %3265 = vmatprep.subr.mxu0 0.0
    %3266 = vmatpush1.msra.mxu0 0.0
    %3267 = vmatprep.subr.mxu0 0.0
    %3268 = vmatpush1.msra.mxu0 0.0
    %3269 = vmatprep.subr.mxu0 0.0
    %3270 = vmatpush1.msra.mxu0 0.0
    %3271 = vmatprep.mubr.f32.mxu0 0.0
    %3272 = vmatmul.mubr.f32.gmra.mrb[0].mxu0 %v3205
    %v3273 = vpop.f32.mrb[0].mxu0
    %v3274 = vadd.f32 0.0, %v3273
    %v3275 = vpop.f32.mrb[0].mxu0
    %3276 = vdwg.mxu0
    %v3277 = vadd.f32 %v3201, %v3274
    %s3278 = scalar_lea.vmem [#allocation7], 32
    %v3279 = vld [vmem:[%s3278] sm:$0xff]
    %v3281 = vsel %vm134, %v3279, 0
    %3283 = vmatprep.subr.mxu0 0.0
    %3284 = vmatpush1.msra.mxu0 %v2777
    %3285 = vmatprep.subr.mxu0 0.0
    %3286 = vmatpush1.msra.mxu0 %v2783
    %3287 = vmatprep.subr.mxu0 0.0
    %3288 = vmatpush1.msra.mxu0 %v2789
    %3289 = vmatprep.subr.mxu0 0.0
    %3290 = vmatpush1.msra.mxu0 %v2795
    %3291 = vmatprep.subr.mxu0 0.0
    %3292 = vmatpush1.msra.mxu0 0.0
    %3293 = vmatprep.subr.mxu0 0.0
    %3294 = vmatpush1.msra.mxu0 0.0
    %3295 = vmatprep.subr.mxu0 0.0
    %3296 = vmatpush1.msra.mxu0 0.0
    %3297 = vmatprep.subr.mxu0 0.0
    %3298 = vmatpush1.msra.mxu0 0.0
    %3299 = vmatprep.subr.mxu0 0.0
    %3300 = vmatpush1.msra.mxu0 0.0
    %3301 = vmatprep.subr.mxu0 0.0
    %3302 = vmatpush1.msra.mxu0 0.0
    %3303 = vmatprep.subr.mxu0 0.0
    %3304 = vmatpush1.msra.mxu0 0.0
    %3305 = vmatprep.subr.mxu0 0.0
    %3306 = vmatpush1.msra.mxu0 0.0
    %3307 = vmatprep.subr.mxu0 0.0
    %3308 = vmatpush1.msra.mxu0 0.0
    %3309 = vmatprep.subr.mxu0 0.0
    %3310 = vmatpush1.msra.mxu0 0.0
    %3311 = vmatprep.subr.mxu0 0.0
    %3312 = vmatpush1.msra.mxu0 0.0
    %3313 = vmatprep.subr.mxu0 0.0
    %3314 = vmatpush1.msra.mxu0 0.0
    %3315 = vmatprep.subr.mxu0 0.0
    %3316 = vmatpush1.msra.mxu0 0.0
    %3317 = vmatprep.subr.mxu0 0.0
    %3318 = vmatpush1.msra.mxu0 0.0
    %3319 = vmatprep.subr.mxu0 0.0
    %3320 = vmatpush1.msra.mxu0 0.0
    %3321 = vmatprep.subr.mxu0 0.0
    %3322 = vmatpush1.msra.mxu0 0.0
    %3323 = vmatprep.subr.mxu0 0.0
    %3324 = vmatpush1.msra.mxu0 0.0
    %3325 = vmatprep.subr.mxu0 0.0
    %3326 = vmatpush1.msra.mxu0 0.0
    %3327 = vmatprep.subr.mxu0 0.0
    %3328 = vmatpush1.msra.mxu0 0.0
    %3329 = vmatprep.subr.mxu0 0.0
    %3330 = vmatpush1.msra.mxu0 0.0
    %3331 = vmatprep.subr.mxu0 0.0
    %3332 = vmatpush1.msra.mxu0 0.0
    %3333 = vmatprep.subr.mxu0 0.0
    %3334 = vmatpush1.msra.mxu0 0.0
    %3335 = vmatprep.subr.mxu0 0.0
    %3336 = vmatpush1.msra.mxu0 0.0
    %3337 = vmatprep.subr.mxu0 0.0
    %3338 = vmatpush1.msra.mxu0 0.0
    %3339 = vmatprep.subr.mxu0 0.0
    %3340 = vmatpush1.msra.mxu0 0.0
    %3341 = vmatprep.subr.mxu0 0.0
    %3342 = vmatpush1.msra.mxu0 0.0
    %3343 = vmatprep.subr.mxu0 0.0
    %3344 = vmatpush1.msra.mxu0 0.0
    %3345 = vmatprep.subr.mxu0 0.0
    %3346 = vmatpush1.msra.mxu0 0.0
    %3347 = vmatprep.mubr.f32.mxu0 0.0
    %3348 = vmatmul.mubr.f32.gmra.mrb[0].mxu0 %v3281
    %v3349 = vpop.f32.mrb[0].mxu0
    %v3350 = vadd.f32 0.0, %v3349
    %v3351 = vpop.f32.mrb[0].mxu0
    %3352 = vdwg.mxu0
    %v3353 = vadd.f32 %v3277, %v3350
    %s3354 = scalar_lea.vmem [#allocation7], 40
    %v3355 = vld [vmem:[%s3354] sm:$0xff]
    %v3357 = vsel %vm134, %v3355, 0
    %3359 = vmatprep.subr.mxu0 0.0
    %3360 = vmatpush1.msra.mxu0 %v2779
    %3361 = vmatprep.subr.mxu0 0.0
    %3362 = vmatpush1.msra.mxu0 %v2785
    %3363 = vmatprep.subr.mxu0 0.0
    %3364 = vmatpush1.msra.mxu0 %v2791
    %3365 = vmatprep.subr.mxu0 0.0
    %3366 = vmatpush1.msra.mxu0 %v2797
    %3367 = vmatprep.subr.mxu0 0.0
    %3368 = vmatpush1.msra.mxu0 0.0
    %3369 = vmatprep.subr.mxu0 0.0
    %3370 = vmatpush1.msra.mxu0 0.0
    %3371 = vmatprep.subr.mxu0 0.0
    %3372 = vmatpush1.msra.mxu0 0.0
    %3373 = vmatprep.subr.mxu0 0.0
    %3374 = vmatpush1.msra.mxu0 0.0
    %3375 = vmatprep.subr.mxu0 0.0
    %3376 = vmatpush1.msra.mxu0 0.0
    %3377 = vmatprep.subr.mxu0 0.0
    %3378 = vmatpush1.msra.mxu0 0.0
    %3379 = vmatprep.subr.mxu0 0.0
    %3380 = vmatpush1.msra.mxu0 0.0
    %3381 = vmatprep.subr.mxu0 0.0
    %3382 = vmatpush1.msra.mxu0 0.0
    %3383 = vmatprep.subr.mxu0 0.0
    %3384 = vmatpush1.msra.mxu0 0.0
    %3385 = vmatprep.subr.mxu0 0.0
    %3386 = vmatpush1.msra.mxu0 0.0
    %3387 = vmatprep.subr.mxu0 0.0
    %3388 = vmatpush1.msra.mxu0 0.0
    %3389 = vmatprep.subr.mxu0 0.0
    %3390 = vmatpush1.msra.mxu0 0.0
    %3391 = vmatprep.subr.mxu0 0.0
    %3392 = vmatpush1.msra.mxu0 0.0
    %3393 = vmatprep.subr.mxu0 0.0
    %3394 = vmatpush1.msra.mxu0 0.0
    %3395 = vmatprep.subr.mxu0 0.0
    %3396 = vmatpush1.msra.mxu0 0.0
    %3397 = vmatprep.subr.mxu0 0.0
    %3398 = vmatpush1.msra.mxu0 0.0
    %3399 = vmatprep.subr.mxu0 0.0
    %3400 = vmatpush1.msra.mxu0 0.0
    %3401 = vmatprep.subr.mxu0 0.0
    %3402 = vmatpush1.msra.mxu0 0.0
    %3403 = vmatprep.subr.mxu0 0.0
    %3404 = vmatpush1.msra.mxu0 0.0
    %3405 = vmatprep.subr.mxu0 0.0
    %3406 = vmatpush1.msra.mxu0 0.0
    %3407 = vmatprep.subr.mxu0 0.0
    %3408 = vmatpush1.msra.mxu0 0.0
    %3409 = vmatprep.subr.mxu0 0.0
    %3410 = vmatpush1.msra.mxu0 0.0
    %3411 = vmatprep.subr.mxu0 0.0
    %3412 = vmatpush1.msra.mxu0 0.0
    %3413 = vmatprep.subr.mxu0 0.0
    %3414 = vmatpush1.msra.mxu0 0.0
    %3415 = vmatprep.subr.mxu0 0.0
    %3416 = vmatpush1.msra.mxu0 0.0
    %3417 = vmatprep.subr.mxu0 0.0
    %3418 = vmatpush1.msra.mxu0 0.0
    %3419 = vmatprep.subr.mxu0 0.0
    %3420 = vmatpush1.msra.mxu0 0.0
    %3421 = vmatprep.subr.mxu0 0.0
    %3422 = vmatpush1.msra.mxu0 0.0
    %3423 = vmatprep.mubr.f32.mxu0 0.0
    %3424 = vmatmul.mubr.f32.gmra.mrb[0].mxu0 %v3357
    %v3425 = vpop.f32.mrb[0].mxu0
    %v3426 = vadd.f32 0.0, %v3425
    %v3427 = vpop.f32.mrb[0].mxu0
    %3428 = vdwg.mxu0
    %v3429 = vadd.f32 %v3353, %v3426
    %s3430 = scalar_lea.vmem [#allocation7], 48
    %v3431 = vld [vmem:[%s3430] sm:$0xff]
    %v3433 = vsel %vm134, %v3431, 0
    %3435 = vmatprep.subr.mxu0 0.0
    %3436 = vmatpush1.msra.mxu0 %v2866
    %3437 = vmatprep.subr.mxu0 0.0
    %3438 = vmatpush1.msra.mxu0 %v2872
    %3439 = vmatprep.subr.mxu0 0.0
    %3440 = vmatpush1.msra.mxu0 %v2878
    %3441 = vmatprep.subr.mxu0 0.0
    %3442 = vmatpush1.msra.mxu0 %v2884
    %3443 = vmatprep.subr.mxu0 0.0
    %3444 = vmatpush1.msra.mxu0 0.0
    %3445 = vmatprep.subr.mxu0 0.0
    %3446 = vmatpush1.msra.mxu0 0.0
    %3447 = vmatprep.subr.mxu0 0.0
    %3448 = vmatpush1.msra.mxu0 0.0
    %3449 = vmatprep.subr.mxu0 0.0
    %3450 = vmatpush1.msra.mxu0 0.0
    %3451 = vmatprep.subr.mxu0 0.0
    %3452 = vmatpush1.msra.mxu0 0.0
    %3453 = vmatprep.subr.mxu0 0.0
    %3454 = vmatpush1.msra.mxu0 0.0
    %3455 = vmatprep.subr.mxu0 0.0
    %3456 = vmatpush1.msra.mxu0 0.0
    %3457 = vmatprep.subr.mxu0 0.0
    %3458 = vmatpush1.msra.mxu0 0.0
    %3459 = vmatprep.subr.mxu0 0.0
    %3460 = vmatpush1.msra.mxu0 0.0
    %3461 = vmatprep.subr.mxu0 0.0
    %3462 = vmatpush1.msra.mxu0 0.0
    %3463 = vmatprep.subr.mxu0 0.0
    %3464 = vmatpush1.msra.mxu0 0.0
    %3465 = vmatprep.subr.mxu0 0.0
    %3466 = vmatpush1.msra.mxu0 0.0
    %3467 = vmatprep.subr.mxu0 0.0
    %3468 = vmatpush1.msra.mxu0 0.0
    %3469 = vmatprep.subr.mxu0 0.0
    %3470 = vmatpush1.msra.mxu0 0.0
    %3471 = vmatprep.subr.mxu0 0.0
    %3472 = vmatpush1.msra.mxu0 0.0
    %3473 = vmatprep.subr.mxu0 0.0
    %3474 = vmatpush1.msra.mxu0 0.0
    %3475 = vmatprep.subr.mxu0 0.0
    %3476 = vmatpush1.msra.mxu0 0.0
    %3477 = vmatprep.subr.mxu0 0.0
    %3478 = vmatpush1.msra.mxu0 0.0
    %3479 = vmatprep.subr.mxu0 0.0
    %3480 = vmatpush1.msra.mxu0 0.0
    %3481 = vmatprep.subr.mxu0 0.0
    %3482 = vmatpush1.msra.mxu0 0.0
    %3483 = vmatprep.subr.mxu0 0.0
    %3484 = vmatpush1.msra.mxu0 0.0
    %3485 = vmatprep.subr.mxu0 0.0
    %3486 = vmatpush1.msra.mxu0 0.0
    %3487 = vmatprep.subr.mxu0 0.0
    %3488 = vmatpush1.msra.mxu0 0.0
    %3489 = vmatprep.subr.mxu0 0.0
    %3490 = vmatpush1.msra.mxu0 0.0
    %3491 = vmatprep.subr.mxu0 0.0
    %3492 = vmatpush1.msra.mxu0 0.0
    %3493 = vmatprep.subr.mxu0 0.0
    %3494 = vmatpush1.msra.mxu0 0.0
    %3495 = vmatprep.subr.mxu0 0.0
    %3496 = vmatpush1.msra.mxu0 0.0
    %3497 = vmatprep.subr.mxu0 0.0
    %3498 = vmatpush1.msra.mxu0 0.0
    %3499 = vmatprep.mubr.f32.mxu0 0.0
    %3500 = vmatmul.mubr.f32.gmra.mrb[0].mxu0 %v3433
    %v3501 = vpop.f32.mrb[0].mxu0
    %v3502 = vadd.f32 0.0, %v3501
    %v3503 = vpop.f32.mrb[0].mxu0
    %3504 = vdwg.mxu0
    %v3505 = vadd.f32 %v3429, %v3502
    %s3506 = scalar_lea.vmem [#allocation7], 56
    %v3507 = vld [vmem:[%s3506] sm:$0xff]
    %v3509 = vsel %vm134, %v3507, 0
    %3511 = vmatprep.subr.mxu0 0.0
    %3512 = vmatpush1.msra.mxu0 %v2868
    %3513 = vmatprep.subr.mxu0 0.0
    %3514 = vmatpush1.msra.mxu0 %v2874
    %3515 = vmatprep.subr.mxu0 0.0
    %3516 = vmatpush1.msra.mxu0 %v2880
    %3517 = vmatprep.subr.mxu0 0.0
    %3518 = vmatpush1.msra.mxu0 %v2886
    %3519 = vmatprep.subr.mxu0 0.0
    %3520 = vmatpush1.msra.mxu0 0.0
    %3521 = vmatprep.subr.mxu0 0.0
    %3522 = vmatpush1.msra.mxu0 0.0
    %3523 = vmatprep.subr.mxu0 0.0
    %3524 = vmatpush1.msra.mxu0 0.0
    %3525 = vmatprep.subr.mxu0 0.0
    %3526 = vmatpush1.msra.mxu0 0.0
    %3527 = vmatprep.subr.mxu0 0.0
    %3528 = vmatpush1.msra.mxu0 0.0
    %3529 = vmatprep.subr.mxu0 0.0
    %3530 = vmatpush1.msra.mxu0 0.0
    %3531 = vmatprep.subr.mxu0 0.0
    %3532 = vmatpush1.msra.mxu0 0.0
    %3533 = vmatprep.subr.mxu0 0.0
    %3534 = vmatpush1.msra.mxu0 0.0
    %3535 = vmatprep.subr.mxu0 0.0
    %3536 = vmatpush1.msra.mxu0 0.0
    %3537 = vmatprep.subr.mxu0 0.0
    %3538 = vmatpush1.msra.mxu0 0.0
    %3539 = vmatprep.subr.mxu0 0.0
    %3540 = vmatpush1.msra.mxu0 0.0
    %3541 = vmatprep.subr.mxu0 0.0
    %3542 = vmatpush1.msra.mxu0 0.0
    %3543 = vmatprep.subr.mxu0 0.0
    %3544 = vmatpush1.msra.mxu0 0.0
    %3545 = vmatprep.subr.mxu0 0.0
    %3546 = vmatpush1.msra.mxu0 0.0
    %3547 = vmatprep.subr.mxu0 0.0
    %3548 = vmatpush1.msra.mxu0 0.0
    %3549 = vmatprep.subr.mxu0 0.0
    %3550 = vmatpush1.msra.mxu0 0.0
    %3551 = vmatprep.subr.mxu0 0.0
    %3552 = vmatpush1.msra.mxu0 0.0
    %3553 = vmatprep.subr.mxu0 0.0
    %3554 = vmatpush1.msra.mxu0 0.0
    %3555 = vmatprep.subr.mxu0 0.0
    %3556 = vmatpush1.msra.mxu0 0.0
    %3557 = vmatprep.subr.mxu0 0.0
    %3558 = vmatpush1.msra.mxu0 0.0
    %3559 = vmatprep.subr.mxu0 0.0
    %3560 = vmatpush1.msra.mxu0 0.0
    %3561 = vmatprep.subr.mxu0 0.0
    %3562 = vmatpush1.msra.mxu0 0.0
    %3563 = vmatprep.subr.mxu0 0.0
    %3564 = vmatpush1.msra.mxu0 0.0
    %3565 = vmatprep.subr.mxu0 0.0
    %3566 = vmatpush1.msra.mxu0 0.0
    %3567 = vmatprep.subr.mxu0 0.0
    %3568 = vmatpush1.msra.mxu0 0.0
    %3569 = vmatprep.subr.mxu0 0.0
    %3570 = vmatpush1.msra.mxu0 0.0
    %3571 = vmatprep.subr.mxu0 0.0
    %3572 = vmatpush1.msra.mxu0 0.0
    %3573 = vmatprep.subr.mxu0 0.0
    %3574 = vmatpush1.msra.mxu0 0.0
    %3575 = vmatprep.mubr.f32.mxu0 0.0
    %3576 = vmatmul.mubr.f32.gmra.mrb[0].mxu0 %v3509
    %v3577 = vpop.f32.mrb[0].mxu0
    %v3578 = vadd.f32 0.0, %v3577
    %v3579 = vpop.f32.mrb[0].mxu0
    %3580 = vdwg.mxu0
    %v3581 = vadd.f32 %v3505, %v3578
    %s3582 = scalar_lea.vmem [#allocation7], 64
    %v3583 = vld [vmem:[%s3582] sm:$0xff]
    %v3585 = vsel %vm134, %v3583, 0
    %3587 = vmatprep.subr.mxu0 0.0
    %3588 = vmatpush1.msra.mxu0 %v2955
    %3589 = vmatprep.subr.mxu0 0.0
    %3590 = vmatpush1.msra.mxu0 %v2961
    %3591 = vmatprep.subr.mxu0 0.0
    %3592 = vmatpush1.msra.mxu0 %v2967
    %3593 = vmatprep.subr.mxu0 0.0
    %3594 = vmatpush1.msra.mxu0 %v2973
    %3595 = vmatprep.subr.mxu0 0.0
    %3596 = vmatpush1.msra.mxu0 0.0
    %3597 = vmatprep.subr.mxu0 0.0
    %3598 = vmatpush1.msra.mxu0 0.0
    %3599 = vmatprep.subr.mxu0 0.0
    %3600 = vmatpush1.msra.mxu0 0.0
    %3601 = vmatprep.subr.mxu0 0.0
    %3602 = vmatpush1.msra.mxu0 0.0
    %3603 = vmatprep.subr.mxu0 0.0
    %3604 = vmatpush1.msra.mxu0 0.0
    %3605 = vmatprep.subr.mxu0 0.0
    %3606 = vmatpush1.msra.mxu0 0.0
    %3607 = vmatprep.subr.mxu0 0.0
    %3608 = vmatpush1.msra.mxu0 0.0
    %3609 = vmatprep.subr.mxu0 0.0
    %3610 = vmatpush1.msra.mxu0 0.0
    %3611 = vmatprep.subr.mxu0 0.0
    %3612 = vmatpush1.msra.mxu0 0.0
    %3613 = vmatprep.subr.mxu0 0.0
    %3614 = vmatpush1.msra.mxu0 0.0
    %3615 = vmatprep.subr.mxu0 0.0
    %3616 = vmatpush1.msra.mxu0 0.0
    %3617 = vmatprep.subr.mxu0 0.0
    %3618 = vmatpush1.msra.mxu0 0.0
    %3619 = vmatprep.subr.mxu0 0.0
    %3620 = vmatpush1.msra.mxu0 0.0
    %3621 = vmatprep.subr.mxu0 0.0
    %3622 = vmatpush1.msra.mxu0 0.0
    %3623 = vmatprep.subr.mxu0 0.0
    %3624 = vmatpush1.msra.mxu0 0.0
    %3625 = vmatprep.subr.mxu0 0.0
    %3626 = vmatpush1.msra.mxu0 0.0
    %3627 = vmatprep.subr.mxu0 0.0
    %3628 = vmatpush1.msra.mxu0 0.0
    %3629 = vmatprep.subr.mxu0 0.0
    %3630 = vmatpush1.msra.mxu0 0.0
    %3631 = vmatprep.subr.mxu0 0.0
    %3632 = vmatpush1.msra.mxu0 0.0
    %3633 = vmatprep.subr.mxu0 0.0
    %3634 = vmatpush1.msra.mxu0 0.0
    %3635 = vmatprep.subr.mxu0 0.0
    %3636 = vmatpush1.msra.mxu0 0.0
    %3637 = vmatprep.subr.mxu0 0.0
    %3638 = vmatpush1.msra.mxu0 0.0
    %3639 = vmatprep.subr.mxu0 0.0
    %3640 = vmatpush1.msra.mxu0 0.0
    %3641 = vmatprep.subr.mxu0 0.0
    %3642 = vmatpush1.msra.mxu0 0.0
    %3643 = vmatprep.subr.mxu0 0.0
    %3644 = vmatpush1.msra.mxu0 0.0
    %3645 = vmatprep.subr.mxu0 0.0
    %3646 = vmatpush1.msra.mxu0 0.0
    %3647 = vmatprep.subr.mxu0 0.0
    %3648 = vmatpush1.msra.mxu0 0.0
    %3649 = vmatprep.subr.mxu0 0.0
    %3650 = vmatpush1.msra.mxu0 0.0
    %3651 = vmatprep.mubr.f32.mxu0 0.0
    %3652 = vmatmul.mubr.f32.gmra.mrb[0].mxu0 %v3585
    %v3653 = vpop.f32.mrb[0].mxu0
    %v3654 = vadd.f32 0.0, %v3653
    %v3655 = vpop.f32.mrb[0].mxu0
    %3656 = vdwg.mxu0
    %v3657 = vadd.f32 %v3581, %v3654
    %v3658 = vmul.f32 %v3657, 0.5
    %v3659 = vmul.f32 %v3657, 0.70710677
    %v3660 = verf.f32.pop %v3659
    %v3661 = vadd.f32 %v3660, 1.0
    %v3662 = vmul.f32 %v3658, %v3661
    %v3663 = vrot.slane %v3662, 4
    %v3664 = vadd.f32 %v3662, %v3663
    %v3665 = vrot.slane %v3664, 2
    %v3666 = vadd.f32 %v3664, %v3665
    %v3667 = vrot.slane %v3666, 1
    %v3668 = vadd.f32 %v3666, %v3667
    %v3669 = vrcp.pop 8.0
    %v3670 = vmul.f32 %v3668, %v3669
    %v3671 = vsub.f32 %v3662, %v3670
    %v3672 = vmul.f32 %v3671, %v3671
    %v3673 = vrot.slane %v3672, 4
    %v3674 = vadd.f32 %v3672, %v3673
    %v3675 = vrot.slane %v3674, 2
    %v3676 = vadd.f32 %v3674, %v3675
    %v3677 = vrot.slane %v3676, 1
    %v3678 = vadd.f32 %v3676, %v3677
    %v3679 = vmul.f32 %v3678, %v3669
    %v3680 = vadd.f32 %v3679, 1e-05
    %v3681 = vrsqrt.pop %v3680
    %v3682 = vmul.f32 %v3671, %v3681
    %v3683 = vld [vmem:[#allocation10 + $0x4] ss:$0 sm:$0xff]
    %v3684 = vmul.f32 %v3682, %v3683
    %v3685 = vld [vmem:[#allocation10 + $0x5] ss:$0 sm:$0xff]
    %v3686 = vadd.f32 %v3684, %v3685
    %v3687 = vld [vmem:[#allocation10 + $0x10] ss:$0 sm:$0xff]
    %v3688 = vadd.f32 %v2957, %v3687
    %v3689 = vadd.f32 %v2963, %v3687
    %v3690 = vadd.f32 %v2969, %v3687
    %v3691 = vadd.f32 %v2975, %v3687
    %3692 = vst [vmem:[%s7] sm:$0xff] %v3688
    %3693 = vst [vmem:[%s7 + $0x8] sm:$0xff] %v3689
    %3694 = vst [vmem:[%s7 + $0x10] sm:$0xff] %v3690
    %3695 = vst [vmem:[%s7 + $0x18] sm:$0xff] %v3691
    %v3696 = vld [vmem:[#allocation2 + $0x1300] sm:$0xff]
    %v3697 = vld [vmem:[#allocation2 + $0x1308] sm:$0xff]
    %v3698 = vld [vmem:[#allocation2 + $0x1310] sm:$0xff]
    %v3699 = vld [vmem:[#allocation2 + $0x1318] sm:$0xff]
    %v3700 = vld [vmem:[#allocation2 + $0x1320] sm:$0xff]
    %v3701 = vld [vmem:[#allocation2 + $0x1328] sm:$0xff]
    %v3702 = vld [vmem:[#allocation2 + $0x1330] sm:$0xff]
    %v3703 = vld [vmem:[#allocation2 + $0x1338] sm:$0xff]
    %v3704 = vld [vmem:[#allocation2 + $0x1340] sm:$0xff]
    %v3705 = vld [vmem:[#allocation2 + $0x1348] sm:$0xff]
    %v3706 = vld [vmem:[#allocation2 + $0x1350] sm:$0xff]
    %v3707 = vld [vmem:[#allocation2 + $0x1358] sm:$0xff]
    %v3708 = vld [vmem:[#allocation2 + $0x1360] sm:$0xff]
    %v3709 = vld [vmem:[#allocation2 + $0x1368] sm:$0xff]
    %v3710 = vld [vmem:[#allocation2 + $0x1370] sm:$0xff]
    %v3711 = vld [vmem:[#allocation2 + $0x1378] sm:$0xff]
    %v3712 = vld [vmem:[#allocation2 + $0x1380] sm:$0xff]
    %v3713 = vld [vmem:[#allocation2 + $0x1388] sm:$0xff]
    %v3714 = vld [vmem:[#allocation2 + $0x1390] sm:$0xff]
    %v3715 = vld [vmem:[#allocation2 + $0x1398] sm:$0xff]
    %v3716 = vld [vmem:[#allocation2 + $0x13a0] sm:$0xff]
    %v3717 = vld [vmem:[#allocation2 + $0x13a8] sm:$0xff]
    %v3718 = vld [vmem:[#allocation2 + $0x13b0] sm:$0xff]
    %v3719 = vld [vmem:[#allocation2 + $0x13b8] sm:$0xff]
    %v3720 = vld [vmem:[#allocation2 + $0x13c0] sm:$0xff]
    %v3721 = vld [vmem:[#allocation2 + $0x13c8] sm:$0xff]
    %v3722 = vld [vmem:[#allocation2 + $0x13d0] sm:$0xff]
    %v3723 = vld [vmem:[#allocation2 + $0x13d8] sm:$0xff]
    %v3724 = vld [vmem:[#allocation2 + $0x13e0] sm:$0xff]
    %v3725 = vld [vmem:[#allocation2 + $0x13e8] sm:$0xff]
    %v3726 = vld [vmem:[#allocation2 + $0x13f0] sm:$0xff]
    %v3727 = vld [vmem:[#allocation2 + $0x13f8] sm:$0xff]
    %v3728 = vld [vmem:[#allocation2 + $0x1400] sm:$0xff]
    %v3729 = vld [vmem:[#allocation2 + $0x1408] sm:$0xff]
    %v3730 = vld [vmem:[#allocation2 + $0x1410] sm:$0xff]
    %v3731 = vld [vmem:[#allocation2 + $0x1418] sm:$0xff]
    %v3732 = vld [vmem:[#allocation2 + $0x1420] sm:$0xff]
    %v3733 = vld [vmem:[#allocation2 + $0x1428] sm:$0xff]
    %v3734 = vld [vmem:[#allocation2 + $0x1430] sm:$0xff]
    %v3735 = vld [vmem:[#allocation2 + $0x1438] sm:$0xff]
    %v3736 = vld [vmem:[#allocation2 + $0x1440] sm:$0xff]
    %v3737 = vld [vmem:[#allocation2 + $0x1448] sm:$0xff]
    %v3738 = vld [vmem:[#allocation2 + $0x1450] sm:$0xff]
    %v3739 = vld [vmem:[#allocation2 + $0x1458] sm:$0xff]
    %v3740 = vld [vmem:[#allocation2 + $0x1460] sm:$0xff]
    %v3741 = vld [vmem:[#allocation2 + $0x1468] sm:$0xff]
    %v3742 = vld [vmem:[#allocation2 + $0x1470] sm:$0xff]
    %v3743 = vld [vmem:[#allocation2 + $0x1478] sm:$0xff]
    %v3744 = vld [vmem:[#allocation2 + $0x1480] sm:$0xff]
    %v3745 = vld [vmem:[#allocation2 + $0x1488] sm:$0xff]
    %v3746 = vld [vmem:[#allocation2 + $0x1490] sm:$0xff]
    %v3747 = vld [vmem:[#allocation2 + $0x1498] sm:$0xff]
    %v3748 = vld [vmem:[#allocation2 + $0x14a0] sm:$0xff]
    %v3749 = vld [vmem:[#allocation2 + $0x14a8] sm:$0xff]
    %v3750 = vld [vmem:[#allocation2 + $0x14b0] sm:$0xff]
    %v3751 = vld [vmem:[#allocation2 + $0x14b8] sm:$0xff]
    %v3752 = vld [vmem:[#allocation2 + $0x14c0] sm:$0xff]
    %v3753 = vld [vmem:[#allocation2 + $0x14c8] sm:$0xff]
    %v3754 = vld [vmem:[#allocation2 + $0x14d0] sm:$0xff]
    %v3755 = vld [vmem:[#allocation2 + $0x14d8] sm:$0xff]
    %v3756 = vld [vmem:[#allocation2 + $0x14e0] sm:$0xff]
    %v3757 = vld [vmem:[#allocation2 + $0x14e8] sm:$0xff]
    %v3758 = vld [vmem:[#allocation2 + $0x14f0] sm:$0xff]
    %v3759 = vld [vmem:[#allocation2 + $0x14f8] sm:$0xff]
    %v3760 = vld [vmem:[#allocation2 + $0x1500] sm:$0xff]
    %v3761 = vld [vmem:[#allocation2 + $0x1508] sm:$0xff]
    %v3762 = vld [vmem:[#allocation2 + $0x1510] sm:$0xff]
    %v3763 = vld [vmem:[#allocation2 + $0x1518] sm:$0xff]
    %v3764 = vld [vmem:[#allocation2 + $0x1520] sm:$0xff]
    %v3765 = vld [vmem:[#allocation2 + $0x1528] sm:$0xff]
    %v3766 = vld [vmem:[#allocation2 + $0x1530] sm:$0xff]
    %v3767 = vld [vmem:[#allocation2 + $0x1538] sm:$0xff]
    %v3768 = vld [vmem:[#allocation2 + $0x1540] sm:$0xff]
    %v3769 = vld [vmem:[#allocation2 + $0x1548] sm:$0xff]
    %v3770 = vld [vmem:[#allocation2 + $0x1550] sm:$0xff]
    %v3771 = vld [vmem:[#allocation2 + $0x1558] sm:$0xff]
    %v3772 = vld [vmem:[#allocation2 + $0x1560] sm:$0xff]
    %v3773 = vld [vmem:[#allocation2 + $0x1568] sm:$0xff]
    %v3774 = vld [vmem:[#allocation2 + $0x1570] sm:$0xff]
    %v3775 = vld [vmem:[#allocation2 + $0x1578] sm:$0xff]
    %v3776 = vld [vmem:[#allocation2 + $0x1580] sm:$0xff]
    %v3777 = vld [vmem:[#allocation2 + $0x1588] sm:$0xff]
    %v3778 = vld [vmem:[#allocation2 + $0x1590] sm:$0xff]
    %v3779 = vld [vmem:[#allocation2 + $0x1598] sm:$0xff]
    %v3780 = vld [vmem:[#allocation2 + $0x15a0] sm:$0xff]
    %v3781 = vld [vmem:[#allocation2 + $0x15a8] sm:$0xff]
    %v3782 = vld [vmem:[#allocation2 + $0x15b0] sm:$0xff]
    %v3783 = vld [vmem:[#allocation2 + $0x15b8] sm:$0xff]
    %v3784 = vld [vmem:[#allocation2 + $0x15c0] sm:$0xff]
    %v3785 = vld [vmem:[#allocation2 + $0x15c8] sm:$0xff]
    %v3786 = vld [vmem:[#allocation2 + $0x15d0] sm:$0xff]
    %v3787 = vld [vmem:[#allocation2 + $0x15d8] sm:$0xff]
    %v3788 = vld [vmem:[#allocation2 + $0x15e0] sm:$0xff]
    %v3789 = vld [vmem:[#allocation2 + $0x15e8] sm:$0xff]
    %v3790 = vld [vmem:[#allocation2 + $0x15f0] sm:$0xff]
    %v3791 = vld [vmem:[#allocation2 + $0x15f8] sm:$0xff]
    %v3792 = vld [vmem:[#allocation2 + $0x1600] sm:$0xff]
    %v3793 = vld [vmem:[#allocation2 + $0x1608] sm:$0xff]
    %v3794 = vld [vmem:[#allocation2 + $0x1610] sm:$0xff]
    %v3795 = vld [vmem:[#allocation2 + $0x1618] sm:$0xff]
    %v3796 = vld [vmem:[#allocation2 + $0x1620] sm:$0xff]
    %v3797 = vld [vmem:[#allocation2 + $0x1628] sm:$0xff]
    %v3798 = vld [vmem:[#allocation2 + $0x1630] sm:$0xff]
    %v3799 = vld [vmem:[#allocation2 + $0x1638] sm:$0xff]
    %v3800 = vld [vmem:[#allocation2 + $0x1640] sm:$0xff]
    %v3801 = vld [vmem:[#allocation2 + $0x1648] sm:$0xff]
    %v3802 = vld [vmem:[#allocation2 + $0x1650] sm:$0xff]
    %v3803 = vld [vmem:[#allocation2 + $0x1658] sm:$0xff]
    %v3804 = vld [vmem:[#allocation2 + $0x1660] sm:$0xff]
    %v3805 = vld [vmem:[#allocation2 + $0x1668] sm:$0xff]
    %v3806 = vld [vmem:[#allocation2 + $0x1670] sm:$0xff]
    %v3807 = vld [vmem:[#allocation2 + $0x1678] sm:$0xff]
    %v3808 = vld [vmem:[#allocation2 + $0x1680] sm:$0xff]
    %v3809 = vld [vmem:[#allocation2 + $0x1688] sm:$0xff]
    %v3810 = vld [vmem:[#allocation2 + $0x1690] sm:$0xff]
    %v3811 = vld [vmem:[#allocation2 + $0x1698] sm:$0xff]
    %v3812 = vld [vmem:[#allocation2 + $0x16a0] sm:$0xff]
    %v3813 = vld [vmem:[#allocation2 + $0x16a8] sm:$0xff]
    %v3814 = vld [vmem:[#allocation2 + $0x16b0] sm:$0xff]
    %v3815 = vld [vmem:[#allocation2 + $0x16b8] sm:$0xff]
    %v3816 = vld [vmem:[#allocation2 + $0x16c0] sm:$0xff]
    %v3817 = vld [vmem:[#allocation2 + $0x16c8] sm:$0xff]
    %v3818 = vld [vmem:[#allocation2 + $0x16d0] sm:$0xff]
    %v3819 = vld [vmem:[#allocation2 + $0x16d8] sm:$0xff]
    %v3820 = vld [vmem:[#allocation2 + $0x16e0] sm:$0xff]
    %v3821 = vld [vmem:[#allocation2 + $0x16e8] sm:$0xff]
    %v3822 = vld [vmem:[#allocation2 + $0x16f0] sm:$0xff]
    %v3823 = vld [vmem:[#allocation2 + $0x16f8] sm:$0xff]
    %v3824 = vld [vmem:[#allocation2 + $0x1700] sm:$0xff]
    %v3825 = vld [vmem:[#allocation2 + $0x1708] sm:$0xff]
    %v3826 = vld [vmem:[#allocation2 + $0x1710] sm:$0xff]
    %v3827 = vld [vmem:[#allocation2 + $0x1718] sm:$0xff]
    %v3828 = vld [vmem:[#allocation2 + $0x1720] sm:$0xff]
    %v3829 = vld [vmem:[#allocation2 + $0x1728] sm:$0xff]
    %v3830 = vld [vmem:[#allocation2 + $0x1730] sm:$0xff]
    %v3831 = vld [vmem:[#allocation2 + $0x1738] sm:$0xff]
    %v3832 = vld [vmem:[#allocation2 + $0x1740] sm:$0xff]
    %v3833 = vld [vmem:[#allocation2 + $0x1748] sm:$0xff]
    %v3834 = vld [vmem:[#allocation2 + $0x1750] sm:$0xff]
    %v3835 = vld [vmem:[#allocation2 + $0x1758] sm:$0xff]
    %v3836 = vld [vmem:[#allocation2 + $0x1760] sm:$0xff]
    %v3837 = vld [vmem:[#allocation2 + $0x1768] sm:$0xff]
    %v3838 = vld [vmem:[#allocation2 + $0x1770] sm:$0xff]
    %v3839 = vld [vmem:[#allocation2 + $0x1778] sm:$0xff]
    %v3840 = vld [vmem:[#allocation2 + $0x1780] sm:$0xff]
    %v3841 = vld [vmem:[#allocation2 + $0x1788] sm:$0xff]
    %v3842 = vld [vmem:[#allocation2 + $0x1790] sm:$0xff]
    %v3843 = vld [vmem:[#allocation2 + $0x1798] sm:$0xff]
    %v3844 = vld [vmem:[#allocation2 + $0x17a0] sm:$0xff]
    %v3845 = vld [vmem:[#allocation2 + $0x17a8] sm:$0xff]
    %v3846 = vld [vmem:[#allocation2 + $0x17b0] sm:$0xff]
    %v3847 = vld [vmem:[#allocation2 + $0x17b8] sm:$0xff]
    %v3848 = vld [vmem:[#allocation2 + $0x17c0] sm:$0xff]
    %v3849 = vld [vmem:[#allocation2 + $0x17c8] sm:$0xff]
    %v3850 = vld [vmem:[#allocation2 + $0x17d0] sm:$0xff]
    %v3851 = vld [vmem:[#allocation2 + $0x17d8] sm:$0xff]
    %v3852 = vld [vmem:[#allocation2 + $0x17e0] sm:$0xff]
    %v3853 = vld [vmem:[#allocation2 + $0x17e8] sm:$0xff]
    %v3854 = vld [vmem:[#allocation2 + $0x17f0] sm:$0xff]
    %v3855 = vld [vmem:[#allocation2 + $0x17f8] sm:$0xff]
    %v3856 = vld [vmem:[#allocation2 + $0x1800] sm:$0xff]
    %v3857 = vld [vmem:[#allocation2 + $0x1808] sm:$0xff]
    %v3858 = vld [vmem:[#allocation2 + $0x1810] sm:$0xff]
    %v3859 = vld [vmem:[#allocation2 + $0x1818] sm:$0xff]
    %v3860 = vld [vmem:[#allocation2 + $0x1820] sm:$0xff]
    %v3861 = vld [vmem:[#allocation2 + $0x1828] sm:$0xff]
    %v3862 = vld [vmem:[#allocation2 + $0x1830] sm:$0xff]
    %v3863 = vld [vmem:[#allocation2 + $0x1838] sm:$0xff]
    %v3864 = vld [vmem:[#allocation2 + $0x1840] sm:$0xff]
    %v3865 = vld [vmem:[#allocation2 + $0x1848] sm:$0xff]
    %v3866 = vld [vmem:[#allocation2 + $0x1850] sm:$0xff]
    %v3867 = vld [vmem:[#allocation2 + $0x1858] sm:$0xff]
    %v3868 = vld [vmem:[#allocation2 + $0x1860] sm:$0xff]
    %v3869 = vld [vmem:[#allocation2 + $0x1868] sm:$0xff]
    %v3870 = vld [vmem:[#allocation2 + $0x1870] sm:$0xff]
    %v3871 = vld [vmem:[#allocation2 + $0x1878] sm:$0xff]
    %v3872 = vld [vmem:[#allocation2 + $0x1880] sm:$0xff]
    %v3873 = vld [vmem:[#allocation2 + $0x1888] sm:$0xff]
    %v3874 = vld [vmem:[#allocation2 + $0x1890] sm:$0xff]
    %v3875 = vld [vmem:[#allocation2 + $0x1898] sm:$0xff]
    %v3876 = vld [vmem:[#allocation2 + $0x18a0] sm:$0xff]
    %v3877 = vld [vmem:[#allocation2 + $0x18a8] sm:$0xff]
    %v3878 = vld [vmem:[#allocation2 + $0x18b0] sm:$0xff]
    %v3879 = vld [vmem:[#allocation2 + $0x18b8] sm:$0xff]
    %v3880 = vld [vmem:[#allocation2 + $0x18c0] sm:$0xff]
    %v3881 = vld [vmem:[#allocation2 + $0x18c8] sm:$0xff]
    %v3882 = vld [vmem:[#allocation2 + $0x18d0] sm:$0xff]
    %v3883 = vld [vmem:[#allocation2 + $0x18d8] sm:$0xff]
    %v3884 = vld [vmem:[#allocation2 + $0x18e0] sm:$0xff]
    %v3885 = vld [vmem:[#allocation2 + $0x18e8] sm:$0xff]
    %v3886 = vld [vmem:[#allocation2 + $0x18f0] sm:$0xff]
    %v3887 = vld [vmem:[#allocation2 + $0x18f8] sm:$0xff]
    %v3888 = vld [vmem:[#allocation2 + $0x1900] sm:$0xff]
    %v3889 = vld [vmem:[#allocation2 + $0x1908] sm:$0xff]
    %v3890 = vld [vmem:[#allocation2 + $0x1910] sm:$0xff]
    %v3891 = vld [vmem:[#allocation2 + $0x1918] sm:$0xff]
    %v3892 = vld [vmem:[#allocation2 + $0x1920] sm:$0xff]
    %v3893 = vld [vmem:[#allocation2 + $0x1928] sm:$0xff]
    %v3894 = vld [vmem:[#allocation2 + $0x1930] sm:$0xff]
    %v3895 = vld [vmem:[#allocation2 + $0x1938] sm:$0xff]
    %v3896 = vld [vmem:[#allocation2 + $0x1940] sm:$0xff]
    %v3897 = vld [vmem:[#allocation2 + $0x1948] sm:$0xff]
    %v3898 = vld [vmem:[#allocation2 + $0x1950] sm:$0xff]
    %v3899 = vld [vmem:[#allocation2 + $0x1958] sm:$0xff]
    %v3900 = vld [vmem:[#allocation2 + $0x1960] sm:$0xff]
    %v3901 = vld [vmem:[#allocation2 + $0x1968] sm:$0xff]
    %v3902 = vld [vmem:[#allocation2 + $0x1970] sm:$0xff]
    %v3903 = vld [vmem:[#allocation2 + $0x1978] sm:$0xff]
    %v3904 = vld [vmem:[#allocation2 + $0x1980] sm:$0xff]
    %v3905 = vld [vmem:[#allocation2 + $0x1988] sm:$0xff]
    %v3906 = vld [vmem:[#allocation2 + $0x1990] sm:$0xff]
    %v3907 = vld [vmem:[#allocation2 + $0x1998] sm:$0xff]
    %v3908 = vld [vmem:[#allocation2 + $0x19a0] sm:$0xff]
    %v3909 = vld [vmem:[#allocation2 + $0x19a8] sm:$0xff]
    %v3910 = vld [vmem:[#allocation2 + $0x19b0] sm:$0xff]
    %v3911 = vld [vmem:[#allocation2 + $0x19b8] sm:$0xff]
    %v3912 = vld [vmem:[#allocation2 + $0x19c0] sm:$0xff]
    %v3913 = vld [vmem:[#allocation2 + $0x19c8] sm:$0xff]
    %v3914 = vld [vmem:[#allocation2 + $0x19d0] sm:$0xff]
    %v3915 = vld [vmem:[#allocation2 + $0x19d8] sm:$0xff]
    %v3916 = vld [vmem:[#allocation2 + $0x19e0] sm:$0xff]
    %v3917 = vld [vmem:[#allocation2 + $0x19e8] sm:$0xff]
    %v3918 = vld [vmem:[#allocation2 + $0x19f0] sm:$0xff]
    %v3919 = vld [vmem:[#allocation2 + $0x19f8] sm:$0xff]
    %v3920 = vld [vmem:[#allocation2 + $0x1a00] sm:$0xff]
    %v3921 = vld [vmem:[#allocation2 + $0x1a08] sm:$0xff]
    %v3922 = vld [vmem:[#allocation2 + $0x1a10] sm:$0xff]
    %v3923 = vld [vmem:[#allocation2 + $0x1a18] sm:$0xff]
    %v3924 = vld [vmem:[#allocation2 + $0x1a20] sm:$0xff]
    %v3925 = vld [vmem:[#allocation2 + $0x1a28] sm:$0xff]
    %v3926 = vld [vmem:[#allocation2 + $0x1a30] sm:$0xff]
    %v3927 = vld [vmem:[#allocation2 + $0x1a38] sm:$0xff]
    %v3928 = vld [vmem:[#allocation2 + $0x1a40] sm:$0xff]
    %v3929 = vld [vmem:[#allocation2 + $0x1a48] sm:$0xff]
    %v3930 = vld [vmem:[#allocation2 + $0x1a50] sm:$0xff]
    %v3931 = vld [vmem:[#allocation2 + $0x1a58] sm:$0xff]
    %v3932 = vld [vmem:[#allocation2 + $0x1a60] sm:$0xff]
    %v3933 = vld [vmem:[#allocation2 + $0x1a68] sm:$0xff]
    %v3934 = vld [vmem:[#allocation2 + $0x1a70] sm:$0xff]
    %v3935 = vld [vmem:[#allocation2 + $0x1a78] sm:$0xff]
    %v3936 = vld [vmem:[#allocation2 + $0x1a80] sm:$0xff]
    %v3937 = vld [vmem:[#allocation2 + $0x1a88] sm:$0xff]
    %v3938 = vld [vmem:[#allocation2 + $0x1a90] sm:$0xff]
    %v3939 = vld [vmem:[#allocation2 + $0x1a98] sm:$0xff]
    %v3940 = vld [vmem:[#allocation2 + $0x1aa0] sm:$0xff]
    %v3941 = vld [vmem:[#allocation2 + $0x1aa8] sm:$0xff]
    %v3942 = vld [vmem:[#allocation2 + $0x1ab0] sm:$0xff]
    %v3943 = vld [vmem:[#allocation2 + $0x1ab8] sm:$0xff]
    %v3944 = vld [vmem:[#allocation2 + $0x1ac0] sm:$0xff]
    %v3945 = vld [vmem:[#allocation2 + $0x1ac8] sm:$0xff]
    %v3946 = vld [vmem:[#allocation2 + $0x1ad0] sm:$0xff]
    %v3947 = vld [vmem:[#allocation2 + $0x1ad8] sm:$0xff]
    %v3948 = vld [vmem:[#allocation2 + $0x1ae0] sm:$0xff]
    %v3949 = vld [vmem:[#allocation2 + $0x1ae8] sm:$0xff]
    %v3950 = vld [vmem:[#allocation2 + $0x1af0] sm:$0xff]
    %v3951 = vld [vmem:[#allocation2 + $0x1af8] sm:$0xff]
    %v3952 = vld [vmem:[#allocation2 + $0x1b00] sm:$0xff]
    %v3953 = vld [vmem:[#allocation2 + $0x1b08] sm:$0xff]
    %v3954 = vld [vmem:[#allocation2 + $0x1b10] sm:$0xff]
    %v3955 = vld [vmem:[#allocation2 + $0x1b18] sm:$0xff]
    %v3956 = vld [vmem:[#allocation2 + $0x1b20] sm:$0xff]
    %v3957 = vld [vmem:[#allocation2 + $0x1b28] sm:$0xff]
    %v3958 = vld [vmem:[#allocation2 + $0x1b30] sm:$0xff]
    %v3959 = vld [vmem:[#allocation2 + $0x1b38] sm:$0xff]
    %v3960 = vld [vmem:[#allocation2 + $0x1b40] sm:$0xff]
    %v3961 = vld [vmem:[#allocation2 + $0x1b48] sm:$0xff]
    %v3962 = vld [vmem:[#allocation2 + $0x1b50] sm:$0xff]
    %v3963 = vld [vmem:[#allocation2 + $0x1b58] sm:$0xff]
    %v3964 = vld [vmem:[#allocation2 + $0x1b60] sm:$0xff]
    %v3965 = vld [vmem:[#allocation2 + $0x1b68] sm:$0xff]
    %v3966 = vld [vmem:[#allocation2 + $0x1b70] sm:$0xff]
    %v3967 = vld [vmem:[#allocation2 + $0x1b78] sm:$0xff]
    %v3968 = vld [vmem:[#allocation2 + $0x1b80] sm:$0xff]
    %v3969 = vld [vmem:[#allocation2 + $0x1b88] sm:$0xff]
    %v3970 = vld [vmem:[#allocation2 + $0x1b90] sm:$0xff]
    %v3971 = vld [vmem:[#allocation2 + $0x1b98] sm:$0xff]
    %v3972 = vld [vmem:[#allocation2 + $0x1ba0] sm:$0xff]
    %v3973 = vld [vmem:[#allocation2 + $0x1ba8] sm:$0xff]
    %v3974 = vld [vmem:[#allocation2 + $0x1bb0] sm:$0xff]
    %v3975 = vld [vmem:[#allocation2 + $0x1bb8] sm:$0xff]
    %v3976 = vld [vmem:[#allocation2 + $0x1bc0] sm:$0xff]
    %v3977 = vld [vmem:[#allocation2 + $0x1bc8] sm:$0xff]
    %v3978 = vld [vmem:[#allocation2 + $0x1bd0] sm:$0xff]
    %v3979 = vld [vmem:[#allocation2 + $0x1bd8] sm:$0xff]
    %v3980 = vld [vmem:[#allocation2 + $0x1be0] sm:$0xff]
    %v3981 = vld [vmem:[#allocation2 + $0x1be8] sm:$0xff]
    %v3982 = vld [vmem:[#allocation2 + $0x1bf0] sm:$0xff]
    %v3983 = vld [vmem:[#allocation2 + $0x1bf8] sm:$0xff]
    %v3984 = vld [vmem:[#allocation2 + $0x1c00] sm:$0xff]
    %v3985 = vld [vmem:[#allocation2 + $0x1c08] sm:$0xff]
    %v3986 = vld [vmem:[#allocation2 + $0x1c10] sm:$0xff]
    %v3987 = vld [vmem:[#allocation2 + $0x1c18] sm:$0xff]
    %v3988 = vld [vmem:[#allocation2 + $0x1c20] sm:$0xff]
    %v3989 = vld [vmem:[#allocation2 + $0x1c28] sm:$0xff]
    %v3990 = vld [vmem:[#allocation2 + $0x1c30] sm:$0xff]
    %v3991 = vld [vmem:[#allocation2 + $0x1c38] sm:$0xff]
    %v3992 = vld [vmem:[#allocation2 + $0x1c40] sm:$0xff]
    %v3993 = vld [vmem:[#allocation2 + $0x1c48] sm:$0xff]
    %v3994 = vld [vmem:[#allocation2 + $0x1c50] sm:$0xff]
    %v3995 = vld [vmem:[#allocation2 + $0x1c58] sm:$0xff]
    %v3996 = vld [vmem:[#allocation2 + $0x1c60] sm:$0xff]
    %v3997 = vld [vmem:[#allocation2 + $0x1c68] sm:$0xff]
    %v3998 = vld [vmem:[#allocation2 + $0x1c70] sm:$0xff]
    %v3999 = vld [vmem:[#allocation2 + $0x1c78] sm:$0xff]
    %4000 = vmatprep.subr.mxu0 %v3697
    %4001 = vmatpush1.msra.mxu0 %v3696
    %4002 = vmatprep.subr.mxu0 %v3716
    %4003 = vmatpush1.msra.mxu0 %v3715
    %4004 = vmatprep.subr.mxu0 %v3735
    %4005 = vmatpush1.msra.mxu0 %v3734
    %4006 = vmatprep.subr.mxu0 %v3754
    %4007 = vmatpush1.msra.mxu0 %v3753
    %4008 = vmatprep.subr.mxu0 %v3773
    %4009 = vmatpush1.msra.mxu0 %v3772
    %4010 = vmatprep.subr.mxu0 %v3792
    %4011 = vmatpush1.msra.mxu0 %v3791
    %4012 = vmatprep.subr.mxu0 %v3811
    %4013 = vmatpush1.msra.mxu0 %v3810
    %4014 = vmatprep.subr.mxu0 %v3830
    %4015 = vmatpush1.msra.mxu0 %v3829
    %4016 = vmatprep.subr.mxu0 %v3849
    %4017 = vmatpush1.msra.mxu0 %v3848
    %4018 = vmatprep.subr.mxu0 %v3868
    %4019 = vmatpush1.msra.mxu0 %v3867
    %4020 = vmatprep.subr.mxu0 %v3887
    %4021 = vmatpush1.msra.mxu0 %v3886
    %4022 = vmatprep.subr.mxu0 %v3906
    %4023 = vmatpush1.msra.mxu0 %v3905
    %4024 = vmatprep.subr.mxu0 %v3925
    %4025 = vmatpush1.msra.mxu0 %v3924
    %4026 = vmatprep.subr.mxu0 %v3944
    %4027 = vmatpush1.msra.mxu0 %v3943
    %4028 = vmatprep.subr.mxu0 %v3963
    %4029 = vmatpush1.msra.mxu0 %v3962
    %4030 = vmatprep.subr.mxu0 %v3982
    %4031 = vmatpush1.msra.mxu0 %v3981
    %4032 = vmatprep.subr.mxu0 0.0
    %4033 = vmatpush1.msra.mxu0 0.0
    %4034 = vmatprep.subr.mxu0 0.0
    %4035 = vmatpush1.msra.mxu0 0.0
    %4036 = vmatprep.subr.mxu0 0.0
    %4037 = vmatpush1.msra.mxu0 0.0
    %4038 = vmatprep.subr.mxu0 0.0
    %4039 = vmatpush1.msra.mxu0 0.0
    %4040 = vmatprep.subr.mxu0 0.0
    %4041 = vmatpush1.msra.mxu0 0.0
    %4042 = vmatprep.subr.mxu0 0.0
    %4043 = vmatpush1.msra.mxu0 0.0
    %4044 = vmatprep.subr.mxu0 0.0
    %4045 = vmatpush1.msra.mxu0 0.0
    %4046 = vmatprep.subr.mxu0 0.0
    %4047 = vmatpush1.msra.mxu0 0.0
    %4048 = vmatprep.subr.mxu0 0.0
    %4049 = vmatpush1.msra.mxu0 0.0
    %4050 = vmatprep.subr.mxu0 0.0
    %4051 = vmatpush1.msra.mxu0 0.0
    %4052 = vmatprep.subr.mxu0 0.0
    %4053 = vmatpush1.msra.mxu0 0.0
    %4054 = vmatprep.subr.mxu0 0.0
    %4055 = vmatpush1.msra.mxu0 0.0
    %4056 = vmatprep.subr.mxu0 0.0
    %4057 = vmatpush1.msra.mxu0 0.0
    %4058 = vmatprep.subr.mxu0 0.0
    %4059 = vmatpush1.msra.mxu0 0.0
    %4060 = vmatprep.subr.mxu0 0.0
    %4061 = vmatpush1.msra.mxu0 0.0
    %4062 = vmatprep.subr.mxu0 0.0
    %4063 = vmatpush1.msra.mxu0 0.0
    %4064 = vmatprep.mubr.f32.mxu0 0.0
    %4065 = vmatmul.mubr.f32.gmra.mrb[0].mxu0 %v3686
    %v4066 = vpop.f32.mrb[0].mxu0
    %v4067 = vadd.f32 0.0, %v4066
    %v4068 = vpop.f32.mrb[0].mxu0
    %v4069 = vadd.f32 0.0, %v4068
    %4070 = vdwg.mxu0
    %4071 = vmatprep.subr.mxu0 %v3699
    %4072 = vmatpush1.msra.mxu0 %v3698
    %4073 = vmatprep.subr.mxu0 %v3718
    %4074 = vmatpush1.msra.mxu0 %v3717
    %4075 = vmatprep.subr.mxu0 %v3737
    %4076 = vmatpush1.msra.mxu0 %v3736
    %4077 = vmatprep.subr.mxu0 %v3756
    %4078 = vmatpush1.msra.mxu0 %v3755
    %4079 = vmatprep.subr.mxu0 %v3775
    %4080 = vmatpush1.msra.mxu0 %v3774
    %4081 = vmatprep.subr.mxu0 %v3794
    %4082 = vmatpush1.msra.mxu0 %v3793
    %4083 = vmatprep.subr.mxu0 %v3813
    %4084 = vmatpush1.msra.mxu0 %v3812
    %4085 = vmatprep.subr.mxu0 %v3832
    %4086 = vmatpush1.msra.mxu0 %v3831
    %4087 = vmatprep.subr.mxu0 %v3851
    %4088 = vmatpush1.msra.mxu0 %v3850
    %4089 = vmatprep.subr.mxu0 %v3870
    %4090 = vmatpush1.msra.mxu0 %v3869
    %4091 = vmatprep.subr.mxu0 %v3889
    %4092 = vmatpush1.msra.mxu0 %v3888
    %4093 = vmatprep.subr.mxu0 %v3908
    %4094 = vmatpush1.msra.mxu0 %v3907
    %4095 = vmatprep.subr.mxu0 %v3927
    %4096 = vmatpush1.msra.mxu0 %v3926
    %4097 = vmatprep.subr.mxu0 %v3946
    %4098 = vmatpush1.msra.mxu0 %v3945
    %4099 = vmatprep.subr.mxu0 %v3965
    %4100 = vmatpush1.msra.mxu0 %v3964
    %4101 = vmatprep.subr.mxu0 %v3984
    %4102 = vmatpush1.msra.mxu0 %v3983
    %4103 = vmatprep.subr.mxu0 0.0
    %4104 = vmatpush1.msra.mxu0 0.0
    %4105 = vmatprep.subr.mxu0 0.0
    %4106 = vmatpush1.msra.mxu0 0.0
    %4107 = vmatprep.subr.mxu0 0.0
    %4108 = vmatpush1.msra.mxu0 0.0
    %4109 = vmatprep.subr.mxu0 0.0
    %4110 = vmatpush1.msra.mxu0 0.0
    %4111 = vmatprep.subr.mxu0 0.0
    %4112 = vmatpush1.msra.mxu0 0.0
    %4113 = vmatprep.subr.mxu0 0.0
    %4114 = vmatpush1.msra.mxu0 0.0
    %4115 = vmatprep.subr.mxu0 0.0
    %4116 = vmatpush1.msra.mxu0 0.0
    %4117 = vmatprep.subr.mxu0 0.0
    %4118 = vmatpush1.msra.mxu0 0.0
    %4119 = vmatprep.subr.mxu0 0.0
    %4120 = vmatpush1.msra.mxu0 0.0
    %4121 = vmatprep.subr.mxu0 0.0
    %4122 = vmatpush1.msra.mxu0 0.0
    %4123 = vmatprep.subr.mxu0 0.0
    %4124 = vmatpush1.msra.mxu0 0.0
    %4125 = vmatprep.subr.mxu0 0.0
    %4126 = vmatpush1.msra.mxu0 0.0
    %4127 = vmatprep.subr.mxu0 0.0
    %4128 = vmatpush1.msra.mxu0 0.0
    %4129 = vmatprep.subr.mxu0 0.0
    %4130 = vmatpush1.msra.mxu0 0.0
    %4131 = vmatprep.subr.mxu0 0.0
    %4132 = vmatpush1.msra.mxu0 0.0
    %4133 = vmatprep.subr.mxu0 0.0
    %4134 = vmatpush1.msra.mxu0 0.0
    %4135 = vmatprep.mubr.f32.mxu0 0.0
    %4136 = vmatmul.mubr.f32.gmra.mrb[0].mxu0 %v3686
    %v4137 = vpop.f32.mrb[0].mxu0
    %v4138 = vadd.f32 0.0, %v4137
    %v4139 = vpop.f32.mrb[0].mxu0
    %v4140 = vadd.f32 0.0, %v4139
    %4141 = vdwg.mxu0
    %4142 = vmatprep.subr.mxu0 %v3701
    %4143 = vmatpush1.msra.mxu0 %v3700
    %4144 = vmatprep.subr.mxu0 %v3720
    %4145 = vmatpush1.msra.mxu0 %v3719
    %4146 = vmatprep.subr.mxu0 %v3739
    %4147 = vmatpush1.msra.mxu0 %v3738
    %4148 = vmatprep.subr.mxu0 %v3758
    %4149 = vmatpush1.msra.mxu0 %v3757
    %4150 = vmatprep.subr.mxu0 %v3777
    %4151 = vmatpush1.msra.mxu0 %v3776
    %4152 = vmatprep.subr.mxu0 %v3796
    %4153 = vmatpush1.msra.mxu0 %v3795
    %4154 = vmatprep.subr.mxu0 %v3815
    %4155 = vmatpush1.msra.mxu0 %v3814
    %4156 = vmatprep.subr.mxu0 %v3834
    %4157 = vmatpush1.msra.mxu0 %v3833
    %4158 = vmatprep.subr.mxu0 %v3853
    %4159 = vmatpush1.msra.mxu0 %v3852
    %4160 = vmatprep.subr.mxu0 %v3872
    %4161 = vmatpush1.msra.mxu0 %v3871
    %4162 = vmatprep.subr.mxu0 %v3891
    %4163 = vmatpush1.msra.mxu0 %v3890
    %4164 = vmatprep.subr.mxu0 %v3910
    %4165 = vmatpush1.msra.mxu0 %v3909
    %4166 = vmatprep.subr.mxu0 %v3929
    %4167 = vmatpush1.msra.mxu0 %v3928
    %4168 = vmatprep.subr.mxu0 %v3948
    %4169 = vmatpush1.msra.mxu0 %v3947
    %4170 = vmatprep.subr.mxu0 %v3967
    %4171 = vmatpush1.msra.mxu0 %v3966
    %4172 = vmatprep.subr.mxu0 %v3986
    %4173 = vmatpush1.msra.mxu0 %v3985
    %4174 = vmatprep.subr.mxu0 0.0
    %4175 = vmatpush1.msra.mxu0 0.0
    %4176 = vmatprep.subr.mxu0 0.0
    %4177 = vmatpush1.msra.mxu0 0.0
    %4178 = vmatprep.subr.mxu0 0.0
    %4179 = vmatpush1.msra.mxu0 0.0
    %4180 = vmatprep.subr.mxu0 0.0
    %4181 = vmatpush1.msra.mxu0 0.0
    %4182 = vmatprep.subr.mxu0 0.0
    %4183 = vmatpush1.msra.mxu0 0.0
    %4184 = vmatprep.subr.mxu0 0.0
    %4185 = vmatpush1.msra.mxu0 0.0
    %4186 = vmatprep.subr.mxu0 0.0
    %4187 = vmatpush1.msra.mxu0 0.0
    %4188 = vmatprep.subr.mxu0 0.0
    %4189 = vmatpush1.msra.mxu0 0.0
    %4190 = vmatprep.subr.mxu0 0.0
    %4191 = vmatpush1.msra.mxu0 0.0
    %4192 = vmatprep.subr.mxu0 0.0
    %4193 = vmatpush1.msra.mxu0 0.0
    %4194 = vmatprep.subr.mxu0 0.0
    %4195 = vmatpush1.msra.mxu0 0.0
    %4196 = vmatprep.subr.mxu0 0.0
    %4197 = vmatpush1.msra.mxu0 0.0
    %4198 = vmatprep.subr.mxu0 0.0
    %4199 = vmatpush1.msra.mxu0 0.0
    %4200 = vmatprep.subr.mxu0 0.0
    %4201 = vmatpush1.msra.mxu0 0.0
    %4202 = vmatprep.subr.mxu0 0.0
    %4203 = vmatpush1.msra.mxu0 0.0
    %4204 = vmatprep.subr.mxu0 0.0
    %4205 = vmatpush1.msra.mxu0 0.0
    %4206 = vmatprep.mubr.f32.mxu0 0.0
    %4207 = vmatmul.mubr.f32.gmra.mrb[0].mxu0 %v3686
    %v4208 = vpop.f32.mrb[0].mxu0
    %v4209 = vadd.f32 0.0, %v4208
    %v4210 = vpop.f32.mrb[0].mxu0
    %v4211 = vadd.f32 0.0, %v4210
    %4212 = vdwg.mxu0
    %4213 = vmatprep.subr.mxu0 %v3703
    %4214 = vmatpush1.msra.mxu0 %v3702
    %4215 = vmatprep.subr.mxu0 %v3722
    %4216 = vmatpush1.msra.mxu0 %v3721
    %4217 = vmatprep.subr.mxu0 %v3741
    %4218 = vmatpush1.msra.mxu0 %v3740
    %4219 = vmatprep.subr.mxu0 %v3760
    %4220 = vmatpush1.msra.mxu0 %v3759
    %4221 = vmatprep.subr.mxu0 %v3779
    %4222 = vmatpush1.msra.mxu0 %v3778
    %4223 = vmatprep.subr.mxu0 %v3798
    %4224 = vmatpush1.msra.mxu0 %v3797
    %4225 = vmatprep.subr.mxu0 %v3817
    %4226 = vmatpush1.msra.mxu0 %v3816
    %4227 = vmatprep.subr.mxu0 %v3836
    %4228 = vmatpush1.msra.mxu0 %v3835
    %4229 = vmatprep.subr.mxu0 %v3855
    %4230 = vmatpush1.msra.mxu0 %v3854
    %4231 = vmatprep.subr.mxu0 %v3874
    %4232 = vmatpush1.msra.mxu0 %v3873
    %4233 = vmatprep.subr.mxu0 %v3893
    %4234 = vmatpush1.msra.mxu0 %v3892
    %4235 = vmatprep.subr.mxu0 %v3912
    %4236 = vmatpush1.msra.mxu0 %v3911
    %4237 = vmatprep.subr.mxu0 %v3931
    %4238 = vmatpush1.msra.mxu0 %v3930
    %4239 = vmatprep.subr.mxu0 %v3950
    %4240 = vmatpush1.msra.mxu0 %v3949
    %4241 = vmatprep.subr.mxu0 %v3969
    %4242 = vmatpush1.msra.mxu0 %v3968
    %4243 = vmatprep.subr.mxu0 %v3988
    %4244 = vmatpush1.msra.mxu0 %v3987
    %4245 = vmatprep.subr.mxu0 0.0
    %4246 = vmatpush1.msra.mxu0 0.0
    %4247 = vmatprep.subr.mxu0 0.0
    %4248 = vmatpush1.msra.mxu0 0.0
    %4249 = vmatprep.subr.mxu0 0.0
    %4250 = vmatpush1.msra.mxu0 0.0
    %4251 = vmatprep.subr.mxu0 0.0
    %4252 = vmatpush1.msra.mxu0 0.0
    %4253 = vmatprep.subr.mxu0 0.0
    %4254 = vmatpush1.msra.mxu0 0.0
    %4255 = vmatprep.subr.mxu0 0.0
    %4256 = vmatpush1.msra.mxu0 0.0
    %4257 = vmatprep.subr.mxu0 0.0
    %4258 = vmatpush1.msra.mxu0 0.0
    %4259 = vmatprep.subr.mxu0 0.0
    %4260 = vmatpush1.msra.mxu0 0.0
    %4261 = vmatprep.subr.mxu0 0.0
    %4262 = vmatpush1.msra.mxu0 0.0
    %4263 = vmatprep.subr.mxu0 0.0
    %4264 = vmatpush1.msra.mxu0 0.0
    %4265 = vmatprep.subr.mxu0 0.0
    %4266 = vmatpush1.msra.mxu0 0.0
    %4267 = vmatprep.subr.mxu0 0.0
    %4268 = vmatpush1.msra.mxu0 0.0
    %4269 = vmatprep.subr.mxu0 0.0
    %4270 = vmatpush1.msra.mxu0 0.0
    %4271 = vmatprep.subr.mxu0 0.0
    %4272 = vmatpush1.msra.mxu0 0.0
    %4273 = vmatprep.subr.mxu0 0.0
    %4274 = vmatpush1.msra.mxu0 0.0
    %4275 = vmatprep.subr.mxu0 0.0
    %4276 = vmatpush1.msra.mxu0 0.0
    %4277 = vmatprep.mubr.f32.mxu0 0.0
    %4278 = vmatmul.mubr.f32.gmra.mrb[0].mxu0 %v3686
    %v4279 = vpop.f32.mrb[0].mxu0
    %v4280 = vadd.f32 0.0, %v4279
    %v4281 = vpop.f32.mrb[0].mxu0
    %v4282 = vadd.f32 0.0, %v4281
    %4283 = vdwg.mxu0
    %4284 = vmatprep.subr.mxu0 %v3705
    %4285 = vmatpush1.msra.mxu0 %v3704
    %4286 = vmatprep.subr.mxu0 %v3724
    %4287 = vmatpush1.msra.mxu0 %v3723
    %4288 = vmatprep.subr.mxu0 %v3743
    %4289 = vmatpush1.msra.mxu0 %v3742
    %4290 = vmatprep.subr.mxu0 %v3762
    %4291 = vmatpush1.msra.mxu0 %v3761
    %4292 = vmatprep.subr.mxu0 %v3781
    %4293 = vmatpush1.msra.mxu0 %v3780
    %4294 = vmatprep.subr.mxu0 %v3800
    %4295 = vmatpush1.msra.mxu0 %v3799
    %4296 = vmatprep.subr.mxu0 %v3819
    %4297 = vmatpush1.msra.mxu0 %v3818
    %4298 = vmatprep.subr.mxu0 %v3838
    %4299 = vmatpush1.msra.mxu0 %v3837
    %4300 = vmatprep.subr.mxu0 %v3857
    %4301 = vmatpush1.msra.mxu0 %v3856
    %4302 = vmatprep.subr.mxu0 %v3876
    %4303 = vmatpush1.msra.mxu0 %v3875
    %4304 = vmatprep.subr.mxu0 %v3895
    %4305 = vmatpush1.msra.mxu0 %v3894
    %4306 = vmatprep.subr.mxu0 %v3914
    %4307 = vmatpush1.msra.mxu0 %v3913
    %4308 = vmatprep.subr.mxu0 %v3933
    %4309 = vmatpush1.msra.mxu0 %v3932
    %4310 = vmatprep.subr.mxu0 %v3952
    %4311 = vmatpush1.msra.mxu0 %v3951
    %4312 = vmatprep.subr.mxu0 %v3971
    %4313 = vmatpush1.msra.mxu0 %v3970
    %4314 = vmatprep.subr.mxu0 %v3990
    %4315 = vmatpush1.msra.mxu0 %v3989
    %4316 = vmatprep.subr.mxu0 0.0
    %4317 = vmatpush1.msra.mxu0 0.0
    %4318 = vmatprep.subr.mxu0 0.0
    %4319 = vmatpush1.msra.mxu0 0.0
    %4320 = vmatprep.subr.mxu0 0.0
    %4321 = vmatpush1.msra.mxu0 0.0
    %4322 = vmatprep.subr.mxu0 0.0
    %4323 = vmatpush1.msra.mxu0 0.0
    %4324 = vmatprep.subr.mxu0 0.0
    %4325 = vmatpush1.msra.mxu0 0.0
    %4326 = vmatprep.subr.mxu0 0.0
    %4327 = vmatpush1.msra.mxu0 0.0
    %4328 = vmatprep.subr.mxu0 0.0
    %4329 = vmatpush1.msra.mxu0 0.0
    %4330 = vmatprep.subr.mxu0 0.0
    %4331 = vmatpush1.msra.mxu0 0.0
    %4332 = vmatprep.subr.mxu0 0.0
    %4333 = vmatpush1.msra.mxu0 0.0
    %4334 = vmatprep.subr.mxu0 0.0
    %4335 = vmatpush1.msra.mxu0 0.0
    %4336 = vmatprep.subr.mxu0 0.0
    %4337 = vmatpush1.msra.mxu0 0.0
    %4338 = vmatprep.subr.mxu0 0.0
    %4339 = vmatpush1.msra.mxu0 0.0
    %4340 = vmatprep.subr.mxu0 0.0
    %4341 = vmatpush1.msra.mxu0 0.0
    %4342 = vmatprep.subr.mxu0 0.0
    %4343 = vmatpush1.msra.mxu0 0.0
    %4344 = vmatprep.subr.mxu0 0.0
    %4345 = vmatpush1.msra.mxu0 0.0
    %4346 = vmatprep.subr.mxu0 0.0
    %4347 = vmatpush1.msra.mxu0 0.0
    %4348 = vmatprep.mubr.f32.mxu0 0.0
    %4349 = vmatmul.mubr.f32.gmra.mrb[0].mxu0 %v3686
    %v4350 = vpop.f32.mrb[0].mxu0
    %v4351 = vadd.f32 0.0, %v4350
    %v4352 = vpop.f32.mrb[0].mxu0
    %v4353 = vadd.f32 0.0, %v4352
    %4354 = vdwg.mxu0
    %4355 = vmatprep.subr.mxu0 %v3707
    %4356 = vmatpush1.msra.mxu0 %v3706
    %4357 = vmatprep.subr.mxu0 %v3726
    %4358 = vmatpush1.msra.mxu0 %v3725
    %4359 = vmatprep.subr.mxu0 %v3745
    %4360 = vmatpush1.msra.mxu0 %v3744
    %4361 = vmatprep.subr.mxu0 %v3764
    %4362 = vmatpush1.msra.mxu0 %v3763
    %4363 = vmatprep.subr.mxu0 %v3783
    %4364 = vmatpush1.msra.mxu0 %v3782
    %4365 = vmatprep.subr.mxu0 %v3802
    %4366 = vmatpush1.msra.mxu0 %v3801
    %4367 = vmatprep.subr.mxu0 %v3821
    %4368 = vmatpush1.msra.mxu0 %v3820
    %4369 = vmatprep.subr.mxu0 %v3840
    %4370 = vmatpush1.msra.mxu0 %v3839
    %4371 = vmatprep.subr.mxu0 %v3859
    %4372 = vmatpush1.msra.mxu0 %v3858
    %4373 = vmatprep.subr.mxu0 %v3878
    %4374 = vmatpush1.msra.mxu0 %v3877
    %4375 = vmatprep.subr.mxu0 %v3897
    %4376 = vmatpush1.msra.mxu0 %v3896
    %4377 = vmatprep.subr.mxu0 %v3916
    %4378 = vmatpush1.msra.mxu0 %v3915
    %4379 = vmatprep.subr.mxu0 %v3935
    %4380 = vmatpush1.msra.mxu0 %v3934
    %4381 = vmatprep.subr.mxu0 %v3954
    %4382 = vmatpush1.msra.mxu0 %v3953
    %4383 = vmatprep.subr.mxu0 %v3973
    %4384 = vmatpush1.msra.mxu0 %v3972
    %4385 = vmatprep.subr.mxu0 %v3992
    %4386 = vmatpush1.msra.mxu0 %v3991
    %4387 = vmatprep.subr.mxu0 0.0
    %4388 = vmatpush1.msra.mxu0 0.0
    %4389 = vmatprep.subr.mxu0 0.0
    %4390 = vmatpush1.msra.mxu0 0.0
    %4391 = vmatprep.subr.mxu0 0.0
    %4392 = vmatpush1.msra.mxu0 0.0
    %4393 = vmatprep.subr.mxu0 0.0
    %4394 = vmatpush1.msra.mxu0 0.0
    %4395 = vmatprep.subr.mxu0 0.0
    %4396 = vmatpush1.msra.mxu0 0.0
    %4397 = vmatprep.subr.mxu0 0.0
    %4398 = vmatpush1.msra.mxu0 0.0
    %4399 = vmatprep.subr.mxu0 0.0
    %4400 = vmatpush1.msra.mxu0 0.0
    %4401 = vmatprep.subr.mxu0 0.0
    %4402 = vmatpush1.msra.mxu0 0.0
    %4403 = vmatprep.subr.mxu0 0.0
    %4404 = vmatpush1.msra.mxu0 0.0
    %4405 = vmatprep.subr.mxu0 0.0
    %4406 = vmatpush1.msra.mxu0 0.0
    %4407 = vmatprep.subr.mxu0 0.0
    %4408 = vmatpush1.msra.mxu0 0.0
    %4409 = vmatprep.subr.mxu0 0.0
    %4410 = vmatpush1.msra.mxu0 0.0
    %4411 = vmatprep.subr.mxu0 0.0
    %4412 = vmatpush1.msra.mxu0 0.0
    %4413 = vmatprep.subr.mxu0 0.0
    %4414 = vmatpush1.msra.mxu0 0.0
    %4415 = vmatprep.subr.mxu0 0.0
    %4416 = vmatpush1.msra.mxu0 0.0
    %4417 = vmatprep.subr.mxu0 0.0
    %4418 = vmatpush1.msra.mxu0 0.0
    %4419 = vmatprep.mubr.f32.mxu0 0.0
    %4420 = vmatmul.mubr.f32.gmra.mrb[0].mxu0 %v3686
    %v4421 = vpop.f32.mrb[0].mxu0
    %v4422 = vadd.f32 0.0, %v4421
    %v4423 = vpop.f32.mrb[0].mxu0
    %v4424 = vadd.f32 0.0, %v4423
    %4425 = vdwg.mxu0
    %4426 = vmatprep.subr.mxu0 %v3709
    %4427 = vmatpush1.msra.mxu0 %v3708
    %4428 = vmatprep.subr.mxu0 %v3728
    %4429 = vmatpush1.msra.mxu0 %v3727
    %4430 = vmatprep.subr.mxu0 %v3747
    %4431 = vmatpush1.msra.mxu0 %v3746
    %4432 = vmatprep.subr.mxu0 %v3766
    %4433 = vmatpush1.msra.mxu0 %v3765
    %4434 = vmatprep.subr.mxu0 %v3785
    %4435 = vmatpush1.msra.mxu0 %v3784
    %4436 = vmatprep.subr.mxu0 %v3804
    %4437 = vmatpush1.msra.mxu0 %v3803
    %4438 = vmatprep.subr.mxu0 %v3823
    %4439 = vmatpush1.msra.mxu0 %v3822
    %4440 = vmatprep.subr.mxu0 %v3842
    %4441 = vmatpush1.msra.mxu0 %v3841
    %4442 = vmatprep.subr.mxu0 %v3861
    %4443 = vmatpush1.msra.mxu0 %v3860
    %4444 = vmatprep.subr.mxu0 %v3880
    %4445 = vmatpush1.msra.mxu0 %v3879
    %4446 = vmatprep.subr.mxu0 %v3899
    %4447 = vmatpush1.msra.mxu0 %v3898
    %4448 = vmatprep.subr.mxu0 %v3918
    %4449 = vmatpush1.msra.mxu0 %v3917
    %4450 = vmatprep.subr.mxu0 %v3937
    %4451 = vmatpush1.msra.mxu0 %v3936
    %4452 = vmatprep.subr.mxu0 %v3956
    %4453 = vmatpush1.msra.mxu0 %v3955
    %4454 = vmatprep.subr.mxu0 %v3975
    %4455 = vmatpush1.msra.mxu0 %v3974
    %4456 = vmatprep.subr.mxu0 %v3994
    %4457 = vmatpush1.msra.mxu0 %v3993
    %4458 = vmatprep.subr.mxu0 0.0
    %4459 = vmatpush1.msra.mxu0 0.0
    %4460 = vmatprep.subr.mxu0 0.0
    %4461 = vmatpush1.msra.mxu0 0.0
    %4462 = vmatprep.subr.mxu0 0.0
    %4463 = vmatpush1.msra.mxu0 0.0
    %4464 = vmatprep.subr.mxu0 0.0
    %4465 = vmatpush1.msra.mxu0 0.0
    %4466 = vmatprep.subr.mxu0 0.0
    %4467 = vmatpush1.msra.mxu0 0.0
    %4468 = vmatprep.subr.mxu0 0.0
    %4469 = vmatpush1.msra.mxu0 0.0
    %4470 = vmatprep.subr.mxu0 0.0
    %4471 = vmatpush1.msra.mxu0 0.0
    %4472 = vmatprep.subr.mxu0 0.0
    %4473 = vmatpush1.msra.mxu0 0.0
    %4474 = vmatprep.subr.mxu0 0.0
    %4475 = vmatpush1.msra.mxu0 0.0
    %4476 = vmatprep.subr.mxu0 0.0
    %4477 = vmatpush1.msra.mxu0 0.0
    %4478 = vmatprep.subr.mxu0 0.0
    %4479 = vmatpush1.msra.mxu0 0.0
    %4480 = vmatprep.subr.mxu0 0.0
    %4481 = vmatpush1.msra.mxu0 0.0
    %4482 = vmatprep.subr.mxu0 0.0
    %4483 = vmatpush1.msra.mxu0 0.0
    %4484 = vmatprep.subr.mxu0 0.0
    %4485 = vmatpush1.msra.mxu0 0.0
    %4486 = vmatprep.subr.mxu0 0.0
    %4487 = vmatpush1.msra.mxu0 0.0
    %4488 = vmatprep.subr.mxu0 0.0
    %4489 = vmatpush1.msra.mxu0 0.0
    %4490 = vmatprep.mubr.f32.mxu0 0.0
    %4491 = vmatmul.mubr.f32.gmra.mrb[0].mxu0 %v3686
    %v4492 = vpop.f32.mrb[0].mxu0
    %v4493 = vadd.f32 0.0, %v4492
    %v4494 = vpop.f32.mrb[0].mxu0
    %v4495 = vadd.f32 0.0, %v4494
    %4496 = vdwg.mxu0
    %4497 = vmatprep.subr.mxu0 %v3711
    %4498 = vmatpush1.msra.mxu0 %v3710
    %4499 = vmatprep.subr.mxu0 %v3730
    %4500 = vmatpush1.msra.mxu0 %v3729
    %4501 = vmatprep.subr.mxu0 %v3749
    %4502 = vmatpush1.msra.mxu0 %v3748
    %4503 = vmatprep.subr.mxu0 %v3768
    %4504 = vmatpush1.msra.mxu0 %v3767
    %4505 = vmatprep.subr.mxu0 %v3787
    %4506 = vmatpush1.msra.mxu0 %v3786
    %4507 = vmatprep.subr.mxu0 %v3806
    %4508 = vmatpush1.msra.mxu0 %v3805
    %4509 = vmatprep.subr.mxu0 %v3825
    %4510 = vmatpush1.msra.mxu0 %v3824
    %4511 = vmatprep.subr.mxu0 %v3844
    %4512 = vmatpush1.msra.mxu0 %v3843
    %4513 = vmatprep.subr.mxu0 %v3863
    %4514 = vmatpush1.msra.mxu0 %v3862
    %4515 = vmatprep.subr.mxu0 %v3882
    %4516 = vmatpush1.msra.mxu0 %v3881
    %4517 = vmatprep.subr.mxu0 %v3901
    %4518 = vmatpush1.msra.mxu0 %v3900
    %4519 = vmatprep.subr.mxu0 %v3920
    %4520 = vmatpush1.msra.mxu0 %v3919
    %4521 = vmatprep.subr.mxu0 %v3939
    %4522 = vmatpush1.msra.mxu0 %v3938
    %4523 = vmatprep.subr.mxu0 %v3958
    %4524 = vmatpush1.msra.mxu0 %v3957
    %4525 = vmatprep.subr.mxu0 %v3977
    %4526 = vmatpush1.msra.mxu0 %v3976
    %4527 = vmatprep.subr.mxu0 %v3996
    %4528 = vmatpush1.msra.mxu0 %v3995
    %4529 = vmatprep.subr.mxu0 0.0
    %4530 = vmatpush1.msra.mxu0 0.0
    %4531 = vmatprep.subr.mxu0 0.0
    %4532 = vmatpush1.msra.mxu0 0.0
    %4533 = vmatprep.subr.mxu0 0.0
    %4534 = vmatpush1.msra.mxu0 0.0
    %4535 = vmatprep.subr.mxu0 0.0
    %4536 = vmatpush1.msra.mxu0 0.0
    %4537 = vmatprep.subr.mxu0 0.0
    %4538 = vmatpush1.msra.mxu0 0.0
    %4539 = vmatprep.subr.mxu0 0.0
    %4540 = vmatpush1.msra.mxu0 0.0
    %4541 = vmatprep.subr.mxu0 0.0
    %4542 = vmatpush1.msra.mxu0 0.0
    %4543 = vmatprep.subr.mxu0 0.0
    %4544 = vmatpush1.msra.mxu0 0.0
    %4545 = vmatprep.subr.mxu0 0.0
    %4546 = vmatpush1.msra.mxu0 0.0
    %4547 = vmatprep.subr.mxu0 0.0
    %4548 = vmatpush1.msra.mxu0 0.0
    %4549 = vmatprep.subr.mxu0 0.0
    %4550 = vmatpush1.msra.mxu0 0.0
    %4551 = vmatprep.subr.mxu0 0.0
    %4552 = vmatpush1.msra.mxu0 0.0
    %4553 = vmatprep.subr.mxu0 0.0
    %4554 = vmatpush1.msra.mxu0 0.0
    %4555 = vmatprep.subr.mxu0 0.0
    %4556 = vmatpush1.msra.mxu0 0.0
    %4557 = vmatprep.subr.mxu0 0.0
    %4558 = vmatpush1.msra.mxu0 0.0
    %4559 = vmatprep.subr.mxu0 0.0
    %4560 = vmatpush1.msra.mxu0 0.0
    %4561 = vmatprep.mubr.f32.mxu0 0.0
    %4562 = vmatmul.mubr.f32.gmra.mrb[0].mxu0 %v3686
    %v4563 = vpop.f32.mrb[0].mxu0
    %v4564 = vadd.f32 0.0, %v4563
    %v4565 = vpop.f32.mrb[0].mxu0
    %v4566 = vadd.f32 0.0, %v4565
    %4567 = vdwg.mxu0
    %4568 = vmatprep.subr.mxu0 %v3713
    %4569 = vmatpush1.msra.mxu0 %v3712
    %4570 = vmatprep.subr.mxu0 %v3732
    %4571 = vmatpush1.msra.mxu0 %v3731
    %4572 = vmatprep.subr.mxu0 %v3751
    %4573 = vmatpush1.msra.mxu0 %v3750
    %4574 = vmatprep.subr.mxu0 %v3770
    %4575 = vmatpush1.msra.mxu0 %v3769
    %4576 = vmatprep.subr.mxu0 %v3789
    %4577 = vmatpush1.msra.mxu0 %v3788
    %4578 = vmatprep.subr.mxu0 %v3808
    %4579 = vmatpush1.msra.mxu0 %v3807
    %4580 = vmatprep.subr.mxu0 %v3827
    %4581 = vmatpush1.msra.mxu0 %v3826
    %4582 = vmatprep.subr.mxu0 %v3846
    %4583 = vmatpush1.msra.mxu0 %v3845
    %4584 = vmatprep.subr.mxu0 %v3865
    %4585 = vmatpush1.msra.mxu0 %v3864
    %4586 = vmatprep.subr.mxu0 %v3884
    %4587 = vmatpush1.msra.mxu0 %v3883
    %4588 = vmatprep.subr.mxu0 %v3903
    %4589 = vmatpush1.msra.mxu0 %v3902
    %4590 = vmatprep.subr.mxu0 %v3922
    %4591 = vmatpush1.msra.mxu0 %v3921
    %4592 = vmatprep.subr.mxu0 %v3941
    %4593 = vmatpush1.msra.mxu0 %v3940
    %4594 = vmatprep.subr.mxu0 %v3960
    %4595 = vmatpush1.msra.mxu0 %v3959
    %4596 = vmatprep.subr.mxu0 %v3979
    %4597 = vmatpush1.msra.mxu0 %v3978
    %4598 = vmatprep.subr.mxu0 %v3998
    %4599 = vmatpush1.msra.mxu0 %v3997
    %4600 = vmatprep.subr.mxu0 0.0
    %4601 = vmatpush1.msra.mxu0 0.0
    %4602 = vmatprep.subr.mxu0 0.0
    %4603 = vmatpush1.msra.mxu0 0.0
    %4604 = vmatprep.subr.mxu0 0.0
    %4605 = vmatpush1.msra.mxu0 0.0
    %4606 = vmatprep.subr.mxu0 0.0
    %4607 = vmatpush1.msra.mxu0 0.0
    %4608 = vmatprep.subr.mxu0 0.0
    %4609 = vmatpush1.msra.mxu0 0.0
    %4610 = vmatprep.subr.mxu0 0.0
    %4611 = vmatpush1.msra.mxu0 0.0
    %4612 = vmatprep.subr.mxu0 0.0
    %4613 = vmatpush1.msra.mxu0 0.0
    %4614 = vmatprep.subr.mxu0 0.0
    %4615 = vmatpush1.msra.mxu0 0.0
    %4616 = vmatprep.subr.mxu0 0.0
    %4617 = vmatpush1.msra.mxu0 0.0
    %4618 = vmatprep.subr.mxu0 0.0
    %4619 = vmatpush1.msra.mxu0 0.0
    %4620 = vmatprep.subr.mxu0 0.0
    %4621 = vmatpush1.msra.mxu0 0.0
    %4622 = vmatprep.subr.mxu0 0.0
    %4623 = vmatpush1.msra.mxu0 0.0
    %4624 = vmatprep.subr.mxu0 0.0
    %4625 = vmatpush1.msra.mxu0 0.0
    %4626 = vmatprep.subr.mxu0 0.0
    %4627 = vmatpush1.msra.mxu0 0.0
    %4628 = vmatprep.subr.mxu0 0.0
    %4629 = vmatpush1.msra.mxu0 0.0
    %4630 = vmatprep.subr.mxu0 0.0
    %4631 = vmatpush1.msra.mxu0 0.0
    %4632 = vmatprep.mubr.f32.mxu0 0.0
    %4633 = vmatmul.mubr.f32.gmra.mrb[0].mxu0 %v3686
    %v4634 = vpop.f32.mrb[0].mxu0
    %v4635 = vadd.f32 0.0, %v4634
    %v4636 = vpop.f32.mrb[0].mxu0
    %v4637 = vadd.f32 0.0, %v4636
    %4638 = vdwg.mxu0
    %4639 = vmatprep.subr.mxu0 0.0
    %4640 = vmatpush1.msra.mxu0 %v3714
    %4641 = vmatprep.subr.mxu0 0.0
    %4642 = vmatpush1.msra.mxu0 %v3733
    %4643 = vmatprep.subr.mxu0 0.0
    %4644 = vmatpush1.msra.mxu0 %v3752
    %4645 = vmatprep.subr.mxu0 0.0
    %4646 = vmatpush1.msra.mxu0 %v3771
    %4647 = vmatprep.subr.mxu0 0.0
    %4648 = vmatpush1.msra.mxu0 %v3790
    %4649 = vmatprep.subr.mxu0 0.0
    %4650 = vmatpush1.msra.mxu0 %v3809
    %4651 = vmatprep.subr.mxu0 0.0
    %4652 = vmatpush1.msra.mxu0 %v3828
    %4653 = vmatprep.subr.mxu0 0.0
    %4654 = vmatpush1.msra.mxu0 %v3847
    %4655 = vmatprep.subr.mxu0 0.0
    %4656 = vmatpush1.msra.mxu0 %v3866
    %4657 = vmatprep.subr.mxu0 0.0
    %4658 = vmatpush1.msra.mxu0 %v3885
    %4659 = vmatprep.subr.mxu0 0.0
    %4660 = vmatpush1.msra.mxu0 %v3904
    %4661 = vmatprep.subr.mxu0 0.0
    %4662 = vmatpush1.msra.mxu0 %v3923
    %4663 = vmatprep.subr.mxu0 0.0
    %4664 = vmatpush1.msra.mxu0 %v3942
    %4665 = vmatprep.subr.mxu0 0.0
    %4666 = vmatpush1.msra.mxu0 %v3961
    %4667 = vmatprep.subr.mxu0 0.0
    %4668 = vmatpush1.msra.mxu0 %v3980
    %4669 = vmatprep.subr.mxu0 0.0
    %4670 = vmatpush1.msra.mxu0 %v3999
    %4671 = vmatprep.subr.mxu0 0.0
    %4672 = vmatpush1.msra.mxu0 0.0
    %4673 = vmatprep.subr.mxu0 0.0
    %4674 = vmatpush1.msra.mxu0 0.0
    %4675 = vmatprep.subr.mxu0 0.0
    %4676 = vmatpush1.msra.mxu0 0.0
    %4677 = vmatprep.subr.mxu0 0.0
    %4678 = vmatpush1.msra.mxu0 0.0
    %4679 = vmatprep.subr.mxu0 0.0
    %4680 = vmatpush1.msra.mxu0 0.0
    %4681 = vmatprep.subr.mxu0 0.0
    %4682 = vmatpush1.msra.mxu0 0.0
    %4683 = vmatprep.subr.mxu0 0.0
    %4684 = vmatpush1.msra.mxu0 0.0
    %4685 = vmatprep.subr.mxu0 0.0
    %4686 = vmatpush1.msra.mxu0 0.0
    %4687 = vmatprep.subr.mxu0 0.0
    %4688 = vmatpush1.msra.mxu0 0.0
    %4689 = vmatprep.subr.mxu0 0.0
    %4690 = vmatpush1.msra.mxu0 0.0
    %4691 = vmatprep.subr.mxu0 0.0
    %4692 = vmatpush1.msra.mxu0 0.0
    %4693 = vmatprep.subr.mxu0 0.0
    %4694 = vmatpush1.msra.mxu0 0.0
    %4695 = vmatprep.subr.mxu0 0.0
    %4696 = vmatpush1.msra.mxu0 0.0
    %4697 = vmatprep.subr.mxu0 0.0
    %4698 = vmatpush1.msra.mxu0 0.0
    %4699 = vmatprep.subr.mxu0 0.0
    %4700 = vmatpush1.msra.mxu0 0.0
    %4701 = vmatprep.subr.mxu0 0.0
    %4702 = vmatpush1.msra.mxu0 0.0
    %4703 = vmatprep.mubr.f32.mxu0 0.0
    %4704 = vmatmul.mubr.f32.gmra.mrb[0].mxu0 %v3686
    %v4705 = vpop.f32.mrb[0].mxu0
    %v4706 = vadd.f32 0.0, %v4705
    %v4707 = vpop.f32.mrb[0].mxu0
    %4708 = vdwg.mxu0
    %v4709 = vld [vmem:[#allocation9] sm:$0x3]
    %s4710 = scalar_lea.vmem [#allocation9], 2
    %v4711 = vld [vmem:[%s4710] sm:$0x3]
    %vm4712 = vcmask 64512
    %v4714 = vsel %vm4712, %v4711, 0
    %4716 = vmatprep.subr.mxu0 %v4140
    %4717 = vmatpush1.msra.mxu0 %v4138
    %4718 = vmatprep.subr.mxu0 0.0
    %4719 = vmatpush1.msra.mxu0 0.0
    %4720 = vmatprep.subr.mxu0 0.0
    %4721 = vmatpush1.msra.mxu0 0.0
    %4722 = vmatprep.subr.mxu0 0.0
    %4723 = vmatpush1.msra.mxu0 0.0
    %4724 = vmatprep.subr.mxu0 0.0
    %4725 = vmatpush1.msra.mxu0 0.0
    %4726 = vmatprep.subr.mxu0 0.0
    %4727 = vmatpush1.msra.mxu0 0.0
    %4728 = vmatprep.subr.mxu0 0.0
    %4729 = vmatpush1.msra.mxu0 0.0
    %4730 = vmatprep.subr.mxu0 0.0
    %4731 = vmatpush1.msra.mxu0 0.0
    %4732 = vmatprep.subr.mxu0 0.0
    %4733 = vmatpush1.msra.mxu0 0.0
    %4734 = vmatprep.subr.mxu0 0.0
    %4735 = vmatpush1.msra.mxu0 0.0
    %4736 = vmatprep.subr.mxu0 0.0
    %4737 = vmatpush1.msra.mxu0 0.0
    %4738 = vmatprep.subr.mxu0 0.0
    %4739 = vmatpush1.msra.mxu0 0.0
    %4740 = vmatprep.subr.mxu0 0.0
    %4741 = vmatpush1.msra.mxu0 0.0
    %4742 = vmatprep.subr.mxu0 0.0
    %4743 = vmatpush1.msra.mxu0 0.0
    %4744 = vmatprep.subr.mxu0 0.0
    %4745 = vmatpush1.msra.mxu0 0.0
    %4746 = vmatprep.subr.mxu0 0.0
    %4747 = vmatpush1.msra.mxu0 0.0
    %4748 = vmatprep.subr.mxu0 0.0
    %4749 = vmatpush1.msra.mxu0 0.0
    %4750 = vmatprep.subr.mxu0 0.0
    %4751 = vmatpush1.msra.mxu0 0.0
    %4752 = vmatprep.subr.mxu0 0.0
    %4753 = vmatpush1.msra.mxu0 0.0
    %4754 = vmatprep.subr.mxu0 0.0
    %4755 = vmatpush1.msra.mxu0 0.0
    %4756 = vmatprep.subr.mxu0 0.0
    %4757 = vmatpush1.msra.mxu0 0.0
    %4758 = vmatprep.subr.mxu0 0.0
    %4759 = vmatpush1.msra.mxu0 0.0
    %4760 = vmatprep.subr.mxu0 0.0
    %4761 = vmatpush1.msra.mxu0 0.0
    %4762 = vmatprep.subr.mxu0 0.0
    %4763 = vmatpush1.msra.mxu0 0.0
    %4764 = vmatprep.subr.mxu0 0.0
    %4765 = vmatpush1.msra.mxu0 0.0
    %4766 = vmatprep.subr.mxu0 0.0
    %4767 = vmatpush1.msra.mxu0 0.0
    %4768 = vmatprep.subr.mxu0 0.0
    %4769 = vmatpush1.msra.mxu0 0.0
    %4770 = vmatprep.subr.mxu0 0.0
    %4771 = vmatpush1.msra.mxu0 0.0
    %4772 = vmatprep.subr.mxu0 0.0
    %4773 = vmatpush1.msra.mxu0 0.0
    %4774 = vmatprep.subr.mxu0 0.0
    %4775 = vmatpush1.msra.mxu0 0.0
    %4776 = vmatprep.subr.mxu0 0.0
    %4777 = vmatpush1.msra.mxu0 0.0
    %4778 = vmatprep.subr.mxu0 0.0
    %4779 = vmatpush1.msra.mxu0 0.0
    %4780 = vmatprep.mubr.f32.mxu0 0.0
    %4781 = vmatmul.mubr.f32.gmra.mrb[0].mxu0 %v4714
    %v4782 = vpop.f32.mrb[0].mxu0
    %v4783 = vadd.f32 0.0, %v4782
    %v4784 = vpop.f32.mrb[0].mxu0
    %v4785 = vadd.f32 0.0, %v4784
    %4786 = vdwg.mxu0
    %v4788 = vsel %vm4712, %v4709, 0
    %4790 = vmatprep.subr.mxu0 %v4069
    %4791 = vmatpush1.msra.mxu0 %v4067
    %4792 = vmatprep.subr.mxu0 0.0
    %4793 = vmatpush1.msra.mxu0 0.0
    %4794 = vmatprep.subr.mxu0 0.0
    %4795 = vmatpush1.msra.mxu0 0.0
    %4796 = vmatprep.subr.mxu0 0.0
    %4797 = vmatpush1.msra.mxu0 0.0
    %4798 = vmatprep.subr.mxu0 0.0
    %4799 = vmatpush1.msra.mxu0 0.0
    %4800 = vmatprep.subr.mxu0 0.0
    %4801 = vmatpush1.msra.mxu0 0.0
    %4802 = vmatprep.subr.mxu0 0.0
    %4803 = vmatpush1.msra.mxu0 0.0
    %4804 = vmatprep.subr.mxu0 0.0
    %4805 = vmatpush1.msra.mxu0 0.0
    %4806 = vmatprep.subr.mxu0 0.0
    %4807 = vmatpush1.msra.mxu0 0.0
    %4808 = vmatprep.subr.mxu0 0.0
    %4809 = vmatpush1.msra.mxu0 0.0
    %4810 = vmatprep.subr.mxu0 0.0
    %4811 = vmatpush1.msra.mxu0 0.0
    %4812 = vmatprep.subr.mxu0 0.0
    %4813 = vmatpush1.msra.mxu0 0.0
    %4814 = vmatprep.subr.mxu0 0.0
    %4815 = vmatpush1.msra.mxu0 0.0
    %4816 = vmatprep.subr.mxu0 0.0
    %4817 = vmatpush1.msra.mxu0 0.0
    %4818 = vmatprep.subr.mxu0 0.0
    %4819 = vmatpush1.msra.mxu0 0.0
    %4820 = vmatprep.subr.mxu0 0.0
    %4821 = vmatpush1.msra.mxu0 0.0
    %4822 = vmatprep.subr.mxu0 0.0
    %4823 = vmatpush1.msra.mxu0 0.0
    %4824 = vmatprep.subr.mxu0 0.0
    %4825 = vmatpush1.msra.mxu0 0.0
    %4826 = vmatprep.subr.mxu0 0.0
    %4827 = vmatpush1.msra.mxu0 0.0
    %4828 = vmatprep.subr.mxu0 0.0
    %4829 = vmatpush1.msra.mxu0 0.0
    %4830 = vmatprep.subr.mxu0 0.0
    %4831 = vmatpush1.msra.mxu0 0.0
    %4832 = vmatprep.subr.mxu0 0.0
    %4833 = vmatpush1.msra.mxu0 0.0
    %4834 = vmatprep.subr.mxu0 0.0
    %4835 = vmatpush1.msra.mxu0 0.0
    %4836 = vmatprep.subr.mxu0 0.0
    %4837 = vmatpush1.msra.mxu0 0.0
    %4838 = vmatprep.subr.mxu0 0.0
    %4839 = vmatpush1.msra.mxu0 0.0
    %4840 = vmatprep.subr.mxu0 0.0
    %4841 = vmatpush1.msra.mxu0 0.0
    %4842 = vmatprep.subr.mxu0 0.0
    %4843 = vmatpush1.msra.mxu0 0.0
    %4844 = vmatprep.subr.mxu0 0.0
    %4845 = vmatpush1.msra.mxu0 0.0
    %4846 = vmatprep.subr.mxu0 0.0
    %4847 = vmatpush1.msra.mxu0 0.0
    %4848 = vmatprep.subr.mxu0 0.0
    %4849 = vmatpush1.msra.mxu0 0.0
    %4850 = vmatprep.subr.mxu0 0.0
    %4851 = vmatpush1.msra.mxu0 0.0
    %4852 = vmatprep.subr.mxu0 0.0
    %4853 = vmatpush1.msra.mxu0 0.0
    %4854 = vmatprep.mubr.f32.mxu0 0.0
    %4855 = vmatmul.mubr.f32.gmra.mrb[0].mxu0 %v4788
    %v4856 = vpop.f32.mrb[0].mxu0
    %v4857 = vadd.f32 %v4783, %v4856
    %v4858 = vpop.f32.mrb[0].mxu0
    %v4859 = vadd.f32 %v4785, %v4858
    %4860 = vdwg.mxu0
    %s4861 = scalar_lea.vmem [#allocation9], 4
    %v4862 = vld [vmem:[%s4861] sm:$0x3]
    %v4864 = vsel %vm4712, %v4862, 0
    %4866 = vmatprep.subr.mxu0 %v4211
    %4867 = vmatpush1.msra.mxu0 %v4209
    %4868 = vmatprep.subr.mxu0 0.0
    %4869 = vmatpush1.msra.mxu0 0.0
    %4870 = vmatprep.subr.mxu0 0.0
    %4871 = vmatpush1.msra.mxu0 0.0
    %4872 = vmatprep.subr.mxu0 0.0
    %4873 = vmatpush1.msra.mxu0 0.0
    %4874 = vmatprep.subr.mxu0 0.0
    %4875 = vmatpush1.msra.mxu0 0.0
    %4876 = vmatprep.subr.mxu0 0.0
    %4877 = vmatpush1.msra.mxu0 0.0
    %4878 = vmatprep.subr.mxu0 0.0
    %4879 = vmatpush1.msra.mxu0 0.0
    %4880 = vmatprep.subr.mxu0 0.0
    %4881 = vmatpush1.msra.mxu0 0.0
    %4882 = vmatprep.subr.mxu0 0.0
    %4883 = vmatpush1.msra.mxu0 0.0
    %4884 = vmatprep.subr.mxu0 0.0
    %4885 = vmatpush1.msra.mxu0 0.0
    %4886 = vmatprep.subr.mxu0 0.0
    %4887 = vmatpush1.msra.mxu0 0.0
    %4888 = vmatprep.subr.mxu0 0.0
    %4889 = vmatpush1.msra.mxu0 0.0
    %4890 = vmatprep.subr.mxu0 0.0
    %4891 = vmatpush1.msra.mxu0 0.0
    %4892 = vmatprep.subr.mxu0 0.0
    %4893 = vmatpush1.msra.mxu0 0.0
    %4894 = vmatprep.subr.mxu0 0.0
    %4895 = vmatpush1.msra.mxu0 0.0
    %4896 = vmatprep.subr.mxu0 0.0
    %4897 = vmatpush1.msra.mxu0 0.0
    %4898 = vmatprep.subr.mxu0 0.0
    %4899 = vmatpush1.msra.mxu0 0.0
    %4900 = vmatprep.subr.mxu0 0.0
    %4901 = vmatpush1.msra.mxu0 0.0
    %4902 = vmatprep.subr.mxu0 0.0
    %4903 = vmatpush1.msra.mxu0 0.0
    %4904 = vmatprep.subr.mxu0 0.0
    %4905 = vmatpush1.msra.mxu0 0.0
    %4906 = vmatprep.subr.mxu0 0.0
    %4907 = vmatpush1.msra.mxu0 0.0
    %4908 = vmatprep.subr.mxu0 0.0
    %4909 = vmatpush1.msra.mxu0 0.0
    %4910 = vmatprep.subr.mxu0 0.0
    %4911 = vmatpush1.msra.mxu0 0.0
    %4912 = vmatprep.subr.mxu0 0.0
    %4913 = vmatpush1.msra.mxu0 0.0
    %4914 = vmatprep.subr.mxu0 0.0
    %4915 = vmatpush1.msra.mxu0 0.0
    %4916 = vmatprep.subr.mxu0 0.0
    %4917 = vmatpush1.msra.mxu0 0.0
    %4918 = vmatprep.subr.mxu0 0.0
    %4919 = vmatpush1.msra.mxu0 0.0
    %4920 = vmatprep.subr.mxu0 0.0
    %4921 = vmatpush1.msra.mxu0 0.0
    %4922 = vmatprep.subr.mxu0 0.0
    %4923 = vmatpush1.msra.mxu0 0.0
    %4924 = vmatprep.subr.mxu0 0.0
    %4925 = vmatpush1.msra.mxu0 0.0
    %4926 = vmatprep.subr.mxu0 0.0
    %4927 = vmatpush1.msra.mxu0 0.0
    %4928 = vmatprep.subr.mxu0 0.0
    %4929 = vmatpush1.msra.mxu0 0.0
    %4930 = vmatprep.mubr.f32.mxu0 0.0
    %4931 = vmatmul.mubr.f32.gmra.mrb[0].mxu0 %v4864
    %v4932 = vpop.f32.mrb[0].mxu0
    %v4933 = vadd.f32 0.0, %v4932
    %v4934 = vpop.f32.mrb[0].mxu0
    %v4935 = vadd.f32 0.0, %v4934
    %4936 = vdwg.mxu0
    %v4937 = vadd.f32 %v4857, %v4933
    %v4938 = vadd.f32 %v4859, %v4935
    %s4939 = scalar_lea.vmem [#allocation9], 6
    %v4940 = vld [vmem:[%s4939] sm:$0x3]
    %v4942 = vsel %vm4712, %v4940, 0
    %4944 = vmatprep.subr.mxu0 %v4282
    %4945 = vmatpush1.msra.mxu0 %v4280
    %4946 = vmatprep.subr.mxu0 0.0
    %4947 = vmatpush1.msra.mxu0 0.0
    %4948 = vmatprep.subr.mxu0 0.0
    %4949 = vmatpush1.msra.mxu0 0.0
    %4950 = vmatprep.subr.mxu0 0.0
    %4951 = vmatpush1.msra.mxu0 0.0
    %4952 = vmatprep.subr.mxu0 0.0
    %4953 = vmatpush1.msra.mxu0 0.0
    %4954 = vmatprep.subr.mxu0 0.0
    %4955 = vmatpush1.msra.mxu0 0.0
    %4956 = vmatprep.subr.mxu0 0.0
    %4957 = vmatpush1.msra.mxu0 0.0
    %4958 = vmatprep.subr.mxu0 0.0
    %4959 = vmatpush1.msra.mxu0 0.0
    %4960 = vmatprep.subr.mxu0 0.0
    %4961 = vmatpush1.msra.mxu0 0.0
    %4962 = vmatprep.subr.mxu0 0.0
    %4963 = vmatpush1.msra.mxu0 0.0
    %4964 = vmatprep.subr.mxu0 0.0
    %4965 = vmatpush1.msra.mxu0 0.0
    %4966 = vmatprep.subr.mxu0 0.0
    %4967 = vmatpush1.msra.mxu0 0.0
    %4968 = vmatprep.subr.mxu0 0.0
    %4969 = vmatpush1.msra.mxu0 0.0
    %4970 = vmatprep.subr.mxu0 0.0
    %4971 = vmatpush1.msra.mxu0 0.0
    %4972 = vmatprep.subr.mxu0 0.0
    %4973 = vmatpush1.msra.mxu0 0.0
    %4974 = vmatprep.subr.mxu0 0.0
    %4975 = vmatpush1.msra.mxu0 0.0
    %4976 = vmatprep.subr.mxu0 0.0
    %4977 = vmatpush1.msra.mxu0 0.0
    %4978 = vmatprep.subr.mxu0 0.0
    %4979 = vmatpush1.msra.mxu0 0.0
    %4980 = vmatprep.subr.mxu0 0.0
    %4981 = vmatpush1.msra.mxu0 0.0
    %4982 = vmatprep.subr.mxu0 0.0
    %4983 = vmatpush1.msra.mxu0 0.0
    %4984 = vmatprep.subr.mxu0 0.0
    %4985 = vmatpush1.msra.mxu0 0.0
    %4986 = vmatprep.subr.mxu0 0.0
    %4987 = vmatpush1.msra.mxu0 0.0
    %4988 = vmatprep.subr.mxu0 0.0
    %4989 = vmatpush1.msra.mxu0 0.0
    %4990 = vmatprep.subr.mxu0 0.0
    %4991 = vmatpush1.msra.mxu0 0.0
    %4992 = vmatprep.subr.mxu0 0.0
    %4993 = vmatpush1.msra.mxu0 0.0
    %4994 = vmatprep.subr.mxu0 0.0
    %4995 = vmatpush1.msra.mxu0 0.0
    %4996 = vmatprep.subr.mxu0 0.0
    %4997 = vmatpush1.msra.mxu0 0.0
    %4998 = vmatprep.subr.mxu0 0.0
    %4999 = vmatpush1.msra.mxu0 0.0
    %5000 = vmatprep.subr.mxu0 0.0
    %5001 = vmatpush1.msra.mxu0 0.0
    %5002 = vmatprep.subr.mxu0 0.0
    %5003 = vmatpush1.msra.mxu0 0.0
    %5004 = vmatprep.subr.mxu0 0.0
    %5005 = vmatpush1.msra.mxu0 0.0
    %5006 = vmatprep.subr.mxu0 0.0
    %5007 = vmatpush1.msra.mxu0 0.0
    %5008 = vmatprep.mubr.f32.mxu0 0.0
    %5009 = vmatmul.mubr.f32.gmra.mrb[0].mxu0 %v4942
    %v5010 = vpop.f32.mrb[0].mxu0
    %v5011 = vadd.f32 0.0, %v5010
    %v5012 = vpop.f32.mrb[0].mxu0
    %v5013 = vadd.f32 0.0, %v5012
    %5014 = vdwg.mxu0
    %v5015 = vadd.f32 %v4937, %v5011
    %v5016 = vadd.f32 %v4938, %v5013
    %s5017 = scalar_lea.vmem [#allocation9], 8
    %v5018 = vld [vmem:[%s5017] sm:$0x3]
    %v5020 = vsel %vm4712, %v5018, 0
    %5022 = vmatprep.subr.mxu0 %v4353
    %5023 = vmatpush1.msra.mxu0 %v4351
    %5024 = vmatprep.subr.mxu0 0.0
    %5025 = vmatpush1.msra.mxu0 0.0
    %5026 = vmatprep.subr.mxu0 0.0
    %5027 = vmatpush1.msra.mxu0 0.0
    %5028 = vmatprep.subr.mxu0 0.0
    %5029 = vmatpush1.msra.mxu0 0.0
    %5030 = vmatprep.subr.mxu0 0.0
    %5031 = vmatpush1.msra.mxu0 0.0
    %5032 = vmatprep.subr.mxu0 0.0
    %5033 = vmatpush1.msra.mxu0 0.0
    %5034 = vmatprep.subr.mxu0 0.0
    %5035 = vmatpush1.msra.mxu0 0.0
    %5036 = vmatprep.subr.mxu0 0.0
    %5037 = vmatpush1.msra.mxu0 0.0
    %5038 = vmatprep.subr.mxu0 0.0
    %5039 = vmatpush1.msra.mxu0 0.0
    %5040 = vmatprep.subr.mxu0 0.0
    %5041 = vmatpush1.msra.mxu0 0.0
    %5042 = vmatprep.subr.mxu0 0.0
    %5043 = vmatpush1.msra.mxu0 0.0
    %5044 = vmatprep.subr.mxu0 0.0
    %5045 = vmatpush1.msra.mxu0 0.0
    %5046 = vmatprep.subr.mxu0 0.0
    %5047 = vmatpush1.msra.mxu0 0.0
    %5048 = vmatprep.subr.mxu0 0.0
    %5049 = vmatpush1.msra.mxu0 0.0
    %5050 = vmatprep.subr.mxu0 0.0
    %5051 = vmatpush1.msra.mxu0 0.0
    %5052 = vmatprep.subr.mxu0 0.0
    %5053 = vmatpush1.msra.mxu0 0.0
    %5054 = vmatprep.subr.mxu0 0.0
    %5055 = vmatpush1.msra.mxu0 0.0
    %5056 = vmatprep.subr.mxu0 0.0
    %5057 = vmatpush1.msra.mxu0 0.0
    %5058 = vmatprep.subr.mxu0 0.0
    %5059 = vmatpush1.msra.mxu0 0.0
    %5060 = vmatprep.subr.mxu0 0.0
    %5061 = vmatpush1.msra.mxu0 0.0
    %5062 = vmatprep.subr.mxu0 0.0
    %5063 = vmatpush1.msra.mxu0 0.0
    %5064 = vmatprep.subr.mxu0 0.0
    %5065 = vmatpush1.msra.mxu0 0.0
    %5066 = vmatprep.subr.mxu0 0.0
    %5067 = vmatpush1.msra.mxu0 0.0
    %5068 = vmatprep.subr.mxu0 0.0
    %5069 = vmatpush1.msra.mxu0 0.0
    %5070 = vmatprep.subr.mxu0 0.0
    %5071 = vmatpush1.msra.mxu0 0.0
    %5072 = vmatprep.subr.mxu0 0.0
    %5073 = vmatpush1.msra.mxu0 0.0
    %5074 = vmatprep.subr.mxu0 0.0
    %5075 = vmatpush1.msra.mxu0 0.0
    %5076 = vmatprep.subr.mxu0 0.0
    %5077 = vmatpush1.msra.mxu0 0.0
    %5078 = vmatprep.subr.mxu0 0.0
    %5079 = vmatpush1.msra.mxu0 0.0
    %5080 = vmatprep.subr.mxu0 0.0
    %5081 = vmatpush1.msra.mxu0 0.0
    %5082 = vmatprep.subr.mxu0 0.0
    %5083 = vmatpush1.msra.mxu0 0.0
    %5084 = vmatprep.subr.mxu0 0.0
    %5085 = vmatpush1.msra.mxu0 0.0
    %5086 = vmatprep.mubr.f32.mxu0 0.0
    %5087 = vmatmul.mubr.f32.gmra.mrb[0].mxu0 %v5020
    %v5088 = vpop.f32.mrb[0].mxu0
    %v5089 = vadd.f32 0.0, %v5088
    %v5090 = vpop.f32.mrb[0].mxu0
    %v5091 = vadd.f32 0.0, %v5090
    %5092 = vdwg.mxu0
    %v5093 = vadd.f32 %v5015, %v5089
    %v5094 = vadd.f32 %v5016, %v5091
    %s5095 = scalar_lea.vmem [#allocation9], 10
    %v5096 = vld [vmem:[%s5095] sm:$0x3]
    %v5098 = vsel %vm4712, %v5096, 0
    %5100 = vmatprep.subr.mxu0 %v4424
    %5101 = vmatpush1.msra.mxu0 %v4422
    %5102 = vmatprep.subr.mxu0 0.0
    %5103 = vmatpush1.msra.mxu0 0.0
    %5104 = vmatprep.subr.mxu0 0.0
    %5105 = vmatpush1.msra.mxu0 0.0
    %5106 = vmatprep.subr.mxu0 0.0
    %5107 = vmatpush1.msra.mxu0 0.0
    %5108 = vmatprep.subr.mxu0 0.0
    %5109 = vmatpush1.msra.mxu0 0.0
    %5110 = vmatprep.subr.mxu0 0.0
    %5111 = vmatpush1.msra.mxu0 0.0
    %5112 = vmatprep.subr.mxu0 0.0
    %5113 = vmatpush1.msra.mxu0 0.0
    %5114 = vmatprep.subr.mxu0 0.0
    %5115 = vmatpush1.msra.mxu0 0.0
    %5116 = vmatprep.subr.mxu0 0.0
    %5117 = vmatpush1.msra.mxu0 0.0
    %5118 = vmatprep.subr.mxu0 0.0
    %5119 = vmatpush1.msra.mxu0 0.0
    %5120 = vmatprep.subr.mxu0 0.0
    %5121 = vmatpush1.msra.mxu0 0.0
    %5122 = vmatprep.subr.mxu0 0.0
    %5123 = vmatpush1.msra.mxu0 0.0
    %5124 = vmatprep.subr.mxu0 0.0
    %5125 = vmatpush1.msra.mxu0 0.0
    %5126 = vmatprep.subr.mxu0 0.0
    %5127 = vmatpush1.msra.mxu0 0.0
    %5128 = vmatprep.subr.mxu0 0.0
    %5129 = vmatpush1.msra.mxu0 0.0
    %5130 = vmatprep.subr.mxu0 0.0
    %5131 = vmatpush1.msra.mxu0 0.0
    %5132 = vmatprep.subr.mxu0 0.0
    %5133 = vmatpush1.msra.mxu0 0.0
    %5134 = vmatprep.subr.mxu0 0.0
    %5135 = vmatpush1.msra.mxu0 0.0
    %5136 = vmatprep.subr.mxu0 0.0
    %5137 = vmatpush1.msra.mxu0 0.0
    %5138 = vmatprep.subr.mxu0 0.0
    %5139 = vmatpush1.msra.mxu0 0.0
    %5140 = vmatprep.subr.mxu0 0.0
    %5141 = vmatpush1.msra.mxu0 0.0
    %5142 = vmatprep.subr.mxu0 0.0
    %5143 = vmatpush1.msra.mxu0 0.0
    %5144 = vmatprep.subr.mxu0 0.0
    %5145 = vmatpush1.msra.mxu0 0.0
    %5146 = vmatprep.subr.mxu0 0.0
    %5147 = vmatpush1.msra.mxu0 0.0
    %5148 = vmatprep.subr.mxu0 0.0
    %5149 = vmatpush1.msra.mxu0 0.0
    %5150 = vmatprep.subr.mxu0 0.0
    %5151 = vmatpush1.msra.mxu0 0.0
    %5152 = vmatprep.subr.mxu0 0.0
    %5153 = vmatpush1.msra.mxu0 0.0
    %5154 = vmatprep.subr.mxu0 0.0
    %5155 = vmatpush1.msra.mxu0 0.0
    %5156 = vmatprep.subr.mxu0 0.0
    %5157 = vmatpush1.msra.mxu0 0.0
    %5158 = vmatprep.subr.mxu0 0.0
    %5159 = vmatpush1.msra.mxu0 0.0
    %5160 = vmatprep.subr.mxu0 0.0
    %5161 = vmatpush1.msra.mxu0 0.0
    %5162 = vmatprep.subr.mxu0 0.0
    %5163 = vmatpush1.msra.mxu0 0.0
    %5164 = vmatprep.mubr.f32.mxu0 0.0
    %5165 = vmatmul.mubr.f32.gmra.mrb[0].mxu0 %v5098
    %v5166 = vpop.f32.mrb[0].mxu0
    %v5167 = vadd.f32 0.0, %v5166
    %v5168 = vpop.f32.mrb[0].mxu0
    %v5169 = vadd.f32 0.0, %v5168
    %5170 = vdwg.mxu0
    %v5171 = vadd.f32 %v5093, %v5167
    %v5172 = vadd.f32 %v5094, %v5169
    %s5173 = scalar_lea.vmem [#allocation9], 12
    %v5174 = vld [vmem:[%s5173] sm:$0x3]
    %v5176 = vsel %vm4712, %v5174, 0
    %5178 = vmatprep.subr.mxu0 %v4495
    %5179 = vmatpush1.msra.mxu0 %v4493
    %5180 = vmatprep.subr.mxu0 0.0
    %5181 = vmatpush1.msra.mxu0 0.0
    %5182 = vmatprep.subr.mxu0 0.0
    %5183 = vmatpush1.msra.mxu0 0.0
    %5184 = vmatprep.subr.mxu0 0.0
    %5185 = vmatpush1.msra.mxu0 0.0
    %5186 = vmatprep.subr.mxu0 0.0
    %5187 = vmatpush1.msra.mxu0 0.0
    %5188 = vmatprep.subr.mxu0 0.0
    %5189 = vmatpush1.msra.mxu0 0.0
    %5190 = vmatprep.subr.mxu0 0.0
    %5191 = vmatpush1.msra.mxu0 0.0
    %5192 = vmatprep.subr.mxu0 0.0
    %5193 = vmatpush1.msra.mxu0 0.0
    %5194 = vmatprep.subr.mxu0 0.0
    %5195 = vmatpush1.msra.mxu0 0.0
    %5196 = vmatprep.subr.mxu0 0.0
    %5197 = vmatpush1.msra.mxu0 0.0
    %5198 = vmatprep.subr.mxu0 0.0
    %5199 = vmatpush1.msra.mxu0 0.0
    %5200 = vmatprep.subr.mxu0 0.0
    %5201 = vmatpush1.msra.mxu0 0.0
    %5202 = vmatprep.subr.mxu0 0.0
    %5203 = vmatpush1.msra.mxu0 0.0
    %5204 = vmatprep.subr.mxu0 0.0
    %5205 = vmatpush1.msra.mxu0 0.0
    %5206 = vmatprep.subr.mxu0 0.0
    %5207 = vmatpush1.msra.mxu0 0.0
    %5208 = vmatprep.subr.mxu0 0.0
    %5209 = vmatpush1.msra.mxu0 0.0
    %5210 = vmatprep.subr.mxu0 0.0
    %5211 = vmatpush1.msra.mxu0 0.0
    %5212 = vmatprep.subr.mxu0 0.0
    %5213 = vmatpush1.msra.mxu0 0.0
    %5214 = vmatprep.subr.mxu0 0.0
    %5215 = vmatpush1.msra.mxu0 0.0
    %5216 = vmatprep.subr.mxu0 0.0
    %5217 = vmatpush1.msra.mxu0 0.0
    %5218 = vmatprep.subr.mxu0 0.0
    %5219 = vmatpush1.msra.mxu0 0.0
    %5220 = vmatprep.subr.mxu0 0.0
    %5221 = vmatpush1.msra.mxu0 0.0
    %5222 = vmatprep.subr.mxu0 0.0
    %5223 = vmatpush1.msra.mxu0 0.0
    %5224 = vmatprep.subr.mxu0 0.0
    %5225 = vmatpush1.msra.mxu0 0.0
    %5226 = vmatprep.subr.mxu0 0.0
    %5227 = vmatpush1.msra.mxu0 0.0
    %5228 = vmatprep.subr.mxu0 0.0
    %5229 = vmatpush1.msra.mxu0 0.0
    %5230 = vmatprep.subr.mxu0 0.0
    %5231 = vmatpush1.msra.mxu0 0.0
    %5232 = vmatprep.subr.mxu0 0.0
    %5233 = vmatpush1.msra.mxu0 0.0
    %5234 = vmatprep.subr.mxu0 0.0
    %5235 = vmatpush1.msra.mxu0 0.0
    %5236 = vmatprep.subr.mxu0 0.0
    %5237 = vmatpush1.msra.mxu0 0.0
    %5238 = vmatprep.subr.mxu0 0.0
    %5239 = vmatpush1.msra.mxu0 0.0
    %5240 = vmatprep.subr.mxu0 0.0
    %5241 = vmatpush1.msra.mxu0 0.0
    %5242 = vmatprep.mubr.f32.mxu0 0.0
    %5243 = vmatmul.mubr.f32.gmra.mrb[0].mxu0 %v5176
    %v5244 = vpop.f32.mrb[0].mxu0
    %v5245 = vadd.f32 0.0, %v5244
    %v5246 = vpop.f32.mrb[0].mxu0
    %v5247 = vadd.f32 0.0, %v5246
    %5248 = vdwg.mxu0
    %v5249 = vadd.f32 %v5171, %v5245
    %v5250 = vadd.f32 %v5172, %v5247
    %s5251 = scalar_lea.vmem [#allocation9], 14
    %v5252 = vld [vmem:[%s5251] sm:$0x3]
    %v5254 = vsel %vm4712, %v5252, 0
    %5256 = vmatprep.subr.mxu0 %v4566
    %5257 = vmatpush1.msra.mxu0 %v4564
    %5258 = vmatprep.subr.mxu0 0.0
    %5259 = vmatpush1.msra.mxu0 0.0
    %5260 = vmatprep.subr.mxu0 0.0
    %5261 = vmatpush1.msra.mxu0 0.0
    %5262 = vmatprep.subr.mxu0 0.0
    %5263 = vmatpush1.msra.mxu0 0.0
    %5264 = vmatprep.subr.mxu0 0.0
    %5265 = vmatpush1.msra.mxu0 0.0
    %5266 = vmatprep.subr.mxu0 0.0
    %5267 = vmatpush1.msra.mxu0 0.0
    %5268 = vmatprep.subr.mxu0 0.0
    %5269 = vmatpush1.msra.mxu0 0.0
    %5270 = vmatprep.subr.mxu0 0.0
    %5271 = vmatpush1.msra.mxu0 0.0
    %5272 = vmatprep.subr.mxu0 0.0
    %5273 = vmatpush1.msra.mxu0 0.0
    %5274 = vmatprep.subr.mxu0 0.0
    %5275 = vmatpush1.msra.mxu0 0.0
    %5276 = vmatprep.subr.mxu0 0.0
    %5277 = vmatpush1.msra.mxu0 0.0
    %5278 = vmatprep.subr.mxu0 0.0
    %5279 = vmatpush1.msra.mxu0 0.0
    %5280 = vmatprep.subr.mxu0 0.0
    %5281 = vmatpush1.msra.mxu0 0.0
    %5282 = vmatprep.subr.mxu0 0.0
    %5283 = vmatpush1.msra.mxu0 0.0
    %5284 = vmatprep.subr.mxu0 0.0
    %5285 = vmatpush1.msra.mxu0 0.0
    %5286 = vmatprep.subr.mxu0 0.0
    %5287 = vmatpush1.msra.mxu0 0.0
    %5288 = vmatprep.subr.mxu0 0.0
    %5289 = vmatpush1.msra.mxu0 0.0
    %5290 = vmatprep.subr.mxu0 0.0
    %5291 = vmatpush1.msra.mxu0 0.0
    %5292 = vmatprep.subr.mxu0 0.0
    %5293 = vmatpush1.msra.mxu0 0.0
    %5294 = vmatprep.subr.mxu0 0.0
    %5295 = vmatpush1.msra.mxu0 0.0
    %5296 = vmatprep.subr.mxu0 0.0
    %5297 = vmatpush1.msra.mxu0 0.0
    %5298 = vmatprep.subr.mxu0 0.0
    %5299 = vmatpush1.msra.mxu0 0.0
    %5300 = vmatprep.subr.mxu0 0.0
    %5301 = vmatpush1.msra.mxu0 0.0
    %5302 = vmatprep.subr.mxu0 0.0
    %5303 = vmatpush1.msra.mxu0 0.0
    %5304 = vmatprep.subr.mxu0 0.0
    %5305 = vmatpush1.msra.mxu0 0.0
    %5306 = vmatprep.subr.mxu0 0.0
    %5307 = vmatpush1.msra.mxu0 0.0
    %5308 = vmatprep.subr.mxu0 0.0
    %5309 = vmatpush1.msra.mxu0 0.0
    %5310 = vmatprep.subr.mxu0 0.0
    %5311 = vmatpush1.msra.mxu0 0.0
    %5312 = vmatprep.subr.mxu0 0.0
    %5313 = vmatpush1.msra.mxu0 0.0
    %5314 = vmatprep.subr.mxu0 0.0
    %5315 = vmatpush1.msra.mxu0 0.0
    %5316 = vmatprep.subr.mxu0 0.0
    %5317 = vmatpush1.msra.mxu0 0.0
    %5318 = vmatprep.subr.mxu0 0.0
    %5319 = vmatpush1.msra.mxu0 0.0
    %5320 = vmatprep.mubr.f32.mxu0 0.0
    %5321 = vmatmul.mubr.f32.gmra.mrb[0].mxu0 %v5254
    %v5322 = vpop.f32.mrb[0].mxu0
    %v5323 = vadd.f32 0.0, %v5322
    %v5324 = vpop.f32.mrb[0].mxu0
    %v5325 = vadd.f32 0.0, %v5324
    %5326 = vdwg.mxu0
    %v5327 = vadd.f32 %v5249, %v5323
    %v5328 = vadd.f32 %v5250, %v5325
    %s5329 = scalar_lea.vmem [#allocation9], 16
    %v5330 = vld [vmem:[%s5329] sm:$0x3]
    %v5332 = vsel %vm4712, %v5330, 0
    %5334 = vmatprep.subr.mxu0 %v4637
    %5335 = vmatpush1.msra.mxu0 %v4635
    %5336 = vmatprep.subr.mxu0 0.0
    %5337 = vmatpush1.msra.mxu0 0.0
    %5338 = vmatprep.subr.mxu0 0.0
    %5339 = vmatpush1.msra.mxu0 0.0
    %5340 = vmatprep.subr.mxu0 0.0
    %5341 = vmatpush1.msra.mxu0 0.0
    %5342 = vmatprep.subr.mxu0 0.0
    %5343 = vmatpush1.msra.mxu0 0.0
    %5344 = vmatprep.subr.mxu0 0.0
    %5345 = vmatpush1.msra.mxu0 0.0
    %5346 = vmatprep.subr.mxu0 0.0
    %5347 = vmatpush1.msra.mxu0 0.0
    %5348 = vmatprep.subr.mxu0 0.0
    %5349 = vmatpush1.msra.mxu0 0.0
    %5350 = vmatprep.subr.mxu0 0.0
    %5351 = vmatpush1.msra.mxu0 0.0
    %5352 = vmatprep.subr.mxu0 0.0
    %5353 = vmatpush1.msra.mxu0 0.0
    %5354 = vmatprep.subr.mxu0 0.0
    %5355 = vmatpush1.msra.mxu0 0.0
    %5356 = vmatprep.subr.mxu0 0.0
    %5357 = vmatpush1.msra.mxu0 0.0
    %5358 = vmatprep.subr.mxu0 0.0
    %5359 = vmatpush1.msra.mxu0 0.0
    %5360 = vmatprep.subr.mxu0 0.0
    %5361 = vmatpush1.msra.mxu0 0.0
    %5362 = vmatprep.subr.mxu0 0.0
    %5363 = vmatpush1.msra.mxu0 0.0
    %5364 = vmatprep.subr.mxu0 0.0
    %5365 = vmatpush1.msra.mxu0 0.0
    %5366 = vmatprep.subr.mxu0 0.0
    %5367 = vmatpush1.msra.mxu0 0.0
    %5368 = vmatprep.subr.mxu0 0.0
    %5369 = vmatpush1.msra.mxu0 0.0
    %5370 = vmatprep.subr.mxu0 0.0
    %5371 = vmatpush1.msra.mxu0 0.0
    %5372 = vmatprep.subr.mxu0 0.0
    %5373 = vmatpush1.msra.mxu0 0.0
    %5374 = vmatprep.subr.mxu0 0.0
    %5375 = vmatpush1.msra.mxu0 0.0
    %5376 = vmatprep.subr.mxu0 0.0
    %5377 = vmatpush1.msra.mxu0 0.0
    %5378 = vmatprep.subr.mxu0 0.0
    %5379 = vmatpush1.msra.mxu0 0.0
    %5380 = vmatprep.subr.mxu0 0.0
    %5381 = vmatpush1.msra.mxu0 0.0
    %5382 = vmatprep.subr.mxu0 0.0
    %5383 = vmatpush1.msra.mxu0 0.0
    %5384 = vmatprep.subr.mxu0 0.0
    %5385 = vmatpush1.msra.mxu0 0.0
    %5386 = vmatprep.subr.mxu0 0.0
    %5387 = vmatpush1.msra.mxu0 0.0
    %5388 = vmatprep.subr.mxu0 0.0
    %5389 = vmatpush1.msra.mxu0 0.0
    %5390 = vmatprep.subr.mxu0 0.0
    %5391 = vmatpush1.msra.mxu0 0.0
    %5392 = vmatprep.subr.mxu0 0.0
    %5393 = vmatpush1.msra.mxu0 0.0
    %5394 = vmatprep.subr.mxu0 0.0
    %5395 = vmatpush1.msra.mxu0 0.0
    %5396 = vmatprep.subr.mxu0 0.0
    %5397 = vmatpush1.msra.mxu0 0.0
    %5398 = vmatprep.mubr.f32.mxu0 0.0
    %5399 = vmatmul.mubr.f32.gmra.mrb[0].mxu0 %v5332
    %v5400 = vpop.f32.mrb[0].mxu0
    %v5401 = vadd.f32 0.0, %v5400
    %v5402 = vpop.f32.mrb[0].mxu0
    %v5403 = vadd.f32 0.0, %v5402
    %5404 = vdwg.mxu0
    %v5405 = vadd.f32 %v5327, %v5401
    %v5406 = vadd.f32 %v5328, %v5403
    %v5407 = vmul.f32 %v5405, 0.5
    %v5408 = vmul.f32 %v5406, 0.5
    %v5409 = vmul.f32 %v5405, 0.70710677
    %v5410 = vmul.f32 %v5406, 0.70710677
    %v5411 = verf.f32.pop %v5409
    %v5412 = verf.f32.pop %v5410
    %v5413 = vadd.f32 %v5411, 1.0
    %v5414 = vadd.f32 %v5412, 1.0
    %v5415 = vmul.f32 %v5407, %v5413
    %v5416 = vmul.f32 %v5408, %v5414
    %vm5417 = vcmask 1041408
    %v5418 = vsel %vm5417, %v5415, 0.0
    %v5419 = vrot.slane %v5418, 4
    %v5420 = vadd.f32 %v5418, %v5419
    %v5421 = vrot.slane %v5420, 2
    %v5422 = vadd.f32 %v5420, %v5421
    %v5423 = vrot.slane %v5422, 1
    %v5424 = vadd.f32 %v5422, %v5423
    %v5425 = vsel %vm5417, %v5416, 0.0
    %v5426 = vrot.slane %v5425, 4
    %v5427 = vadd.f32 %v5425, %v5426
    %v5428 = vrot.slane %v5427, 2
    %v5429 = vadd.f32 %v5427, %v5428
    %v5430 = vrot.slane %v5429, 1
    %v5431 = vadd.f32 %v5429, %v5430
    %v5432 = vrcp.pop 2.0
    %v5433 = vmul.f32 %v5424, %v5432
    %v5434 = vmul.f32 %v5431, %v5432
    %v5435 = vsub.f32 %v5415, %v5433
    %v5436 = vsub.f32 %v5416, %v5434
    %v5437 = vmul.f32 %v5435, %v5435
    %v5438 = vmul.f32 %v5436, %v5436
    %v5439 = vsel %vm5417, %v5437, 0.0
    %v5440 = vrot.slane %v5439, 4
    %v5441 = vadd.f32 %v5439, %v5440
    %v5442 = vrot.slane %v5441, 2
    %v5443 = vadd.f32 %v5441, %v5442
    %v5444 = vrot.slane %v5443, 1
    %v5445 = vadd.f32 %v5443, %v5444
    %v5446 = vsel %vm5417, %v5438, 0.0
    %v5447 = vrot.slane %v5446, 4
    %v5448 = vadd.f32 %v5446, %v5447
    %v5449 = vrot.slane %v5448, 2
    %v5450 = vadd.f32 %v5448, %v5449
    %v5451 = vrot.slane %v5450, 1
    %v5452 = vadd.f32 %v5450, %v5451
    %v5453 = vmul.f32 %v5445, %v5432
    %v5454 = vmul.f32 %v5452, %v5432
    %v5455 = vadd.f32 %v5453, 1e-05
    %v5456 = vadd.f32 %v5454, 1e-05
    %v5457 = vrsqrt.pop %v5455
    %v5458 = vrsqrt.pop %v5456
    %v5459 = vmul.f32 %v5435, %v5457
    %v5460 = vmul.f32 %v5436, %v5458
    %s5461 = scalar_lea.vmem [#allocation10], 6
    %v5462 = vld [vmem:[%s5461] ss:$8 sm:$0x3]
    %v5464 = vlaneseq
    %v5465 = vshrl.u32 %v5464, 7
    %v5466 = vsub.s32 0, %v5465
    %v5467 = vrot.slane %v5462, %v5466
    %v5468 = vlaneseq
    %v5469 = vshrl.u32 %v5468, 7
    %v5470 = vsub.s32 1, %v5469
    %v5471 = vrot.slane %v5462, %v5470
    %v5474 = vmul.f32 %v5459, %v5467
    %v5475 = vmul.f32 %v5460, %v5471
    %s5476 = scalar_lea.vmem [#allocation10], 7
    %v5477 = vld [vmem:[%s5476] ss:$8 sm:$0x3]
    %v5479 = vlaneseq
    %v5480 = vshrl.u32 %v5479, 7
    %v5481 = vsub.s32 0, %v5480
    %v5482 = vrot.slane %v5477, %v5481
    %v5483 = vlaneseq
    %v5484 = vshrl.u32 %v5483, 7
    %v5485 = vsub.s32 1, %v5484
    %v5486 = vrot.slane %v5477, %v5485
    %v5489 = vadd.f32 %v5474, %v5482
    %v5490 = vadd.f32 %v5475, %v5486
    %v5491 = vld [vmem:[#allocation10 + $0x11] ss:$0 sm:$0xff]
    %v5492 = vadd.f32 %v4706, %v5491
    %5493 = vst [vmem:[%s7 + $0x20] sm:$0xff] %v5492
    %v5494 = vld [vmem:[#allocation4 + $0x20] sm:$0xff]
    %v5495 = vld [vmem:[#allocation4 + $0x28] sm:$0xff]
    %v5496 = vld [vmem:[#allocation4 + $0x30] sm:$0xff]
    %v5497 = vld [vmem:[#allocation4 + $0x38] sm:$0xff]
    %v5498 = vld [vmem:[#allocation4 + $0x40] sm:$0xff]
    %v5499 = vld [vmem:[#allocation4 + $0x48] sm:$0xff]
    %v5500 = vld [vmem:[#allocation4 + $0x50] sm:$0xff]
    %v5501 = vld [vmem:[#allocation4 + $0x58] sm:$0xff]
    %v5502 = vld [vmem:[#allocation4 + $0x60] sm:$0xff]
    %v5503 = vld [vmem:[#allocation4 + $0x68] sm:$0xff]
    %v5504 = vld [vmem:[#allocation4 + $0x70] sm:$0xff]
    %v5505 = vld [vmem:[#allocation4 + $0x78] sm:$0xff]
    %v5506 = vld [vmem:[#allocation4 + $0x80] sm:$0xff]
    %v5507 = vld [vmem:[#allocation4 + $0x88] sm:$0xff]
    %v5508 = vld [vmem:[#allocation4 + $0x90] sm:$0xff]
    %v5509 = vld [vmem:[#allocation4 + $0x98] sm:$0xff]
    %v5510 = vld [vmem:[#allocation4 + $0xa0] sm:$0xff]
    %v5511 = vld [vmem:[#allocation4 + $0xa8] sm:$0xff]
    %v5512 = vld [vmem:[#allocation4 + $0xb0] sm:$0xff]
    %v5513 = vld [vmem:[#allocation4 + $0xb8] sm:$0xff]
    %v5514 = vld [vmem:[#allocation4 + $0xc0] sm:$0xff]
    %v5515 = vld [vmem:[#allocation4 + $0xc8] sm:$0xff]
    %v5516 = vld [vmem:[#allocation4 + $0xd0] sm:$0xff]
    %v5517 = vld [vmem:[#allocation4 + $0xd8] sm:$0xff]
    %v5518 = vld [vmem:[#allocation4 + $0xe0] sm:$0xff]
    %v5519 = vld [vmem:[#allocation4 + $0xe8] sm:$0xff]
    %v5520 = vld [vmem:[#allocation4 + $0xf0] sm:$0xff]
    %v5521 = vld [vmem:[#allocation4 + $0xf8] sm:$0xff]
    %v5522 = vld [vmem:[#allocation4 + $0x100] sm:$0xff]
    %v5523 = vld [vmem:[#allocation4 + $0x108] sm:$0xff]
    %v5524 = vld [vmem:[#allocation4 + $0x110] sm:$0xff]
    %v5525 = vld [vmem:[#allocation4 + $0x118] sm:$0xff]
    %v5526 = vld [vmem:[#allocation10 + $0x12] ss:$0 sm:$0xff]
    %5527 = vmatprep.subr.mxu0 0.0
    %5528 = vmatpush1.msra.mxu0 %v5494
    %5529 = vmatprep.subr.mxu0 0.0
    %5530 = vmatpush1.msra.mxu0 %v5495
    %5531 = vmatprep.subr.mxu0 0.0
    %5532 = vmatpush1.msra.mxu0 %v5496
    %5533 = vmatprep.subr.mxu0 0.0
    %5534 = vmatpush1.msra.mxu0 %v5497
    %5535 = vmatprep.subr.mxu0 0.0
    %5536 = vmatpush1.msra.mxu0 %v5498
    %5537 = vmatprep.subr.mxu0 0.0
    %5538 = vmatpush1.msra.mxu0 %v5499
    %5539 = vmatprep.subr.mxu0 0.0
    %5540 = vmatpush1.msra.mxu0 %v5500
    %5541 = vmatprep.subr.mxu0 0.0
    %5542 = vmatpush1.msra.mxu0 %v5501
    %5543 = vmatprep.subr.mxu0 0.0
    %5544 = vmatpush1.msra.mxu0 %v5502
    %5545 = vmatprep.subr.mxu0 0.0
    %5546 = vmatpush1.msra.mxu0 %v5503
    %5547 = vmatprep.subr.mxu0 0.0
    %5548 = vmatpush1.msra.mxu0 %v5504
    %5549 = vmatprep.subr.mxu0 0.0
    %5550 = vmatpush1.msra.mxu0 %v5505
    %5551 = vmatprep.subr.mxu0 0.0
    %5552 = vmatpush1.msra.mxu0 %v5506
    %5553 = vmatprep.subr.mxu0 0.0
    %5554 = vmatpush1.msra.mxu0 %v5507
    %5555 = vmatprep.subr.mxu0 0.0
    %5556 = vmatpush1.msra.mxu0 %v5508
    %5557 = vmatprep.subr.mxu0 0.0
    %5558 = vmatpush1.msra.mxu0 %v5509
    %5559 = vmatprep.subr.mxu0 0.0
    %5560 = vmatpush1.msra.mxu0 %v5510
    %5561 = vmatprep.subr.mxu0 0.0
    %5562 = vmatpush1.msra.mxu0 %v5511
    %5563 = vmatprep.subr.mxu0 0.0
    %5564 = vmatpush1.msra.mxu0 %v5512
    %5565 = vmatprep.subr.mxu0 0.0
    %5566 = vmatpush1.msra.mxu0 %v5513
    %5567 = vmatprep.subr.mxu0 0.0
    %5568 = vmatpush1.msra.mxu0 %v5514
    %5569 = vmatprep.subr.mxu0 0.0
    %5570 = vmatpush1.msra.mxu0 %v5515
    %5571 = vmatprep.subr.mxu0 0.0
    %5572 = vmatpush1.msra.mxu0 %v5516
    %5573 = vmatprep.subr.mxu0 0.0
    %5574 = vmatpush1.msra.mxu0 %v5517
    %5575 = vmatprep.subr.mxu0 0.0
    %5576 = vmatpush1.msra.mxu0 %v5518
    %5577 = vmatprep.subr.mxu0 0.0
    %5578 = vmatpush1.msra.mxu0 %v5519
    %5579 = vmatprep.subr.mxu0 0.0
    %5580 = vmatpush1.msra.mxu0 %v5520
    %5581 = vmatprep.subr.mxu0 0.0
    %5582 = vmatpush1.msra.mxu0 %v5521
    %5583 = vmatprep.subr.mxu0 0.0
    %5584 = vmatpush1.msra.mxu0 %v5522
    %5585 = vmatprep.subr.mxu0 0.0
    %5586 = vmatpush1.msra.mxu0 %v5523
    %5587 = vmatprep.subr.mxu0 0.0
    %5588 = vmatpush1.msra.mxu0 %v5524
    %5589 = vmatprep.subr.mxu0 0.0
    %5590 = vmatpush1.msra.mxu0 %v5525
    %5591 = vmatprep.mubr.f32.mxu0 %v5490
    %5592 = vmatmul.mubr.f32.gmra.mrb[0].mxu0 %v5489
    %v5593 = vpop.f32.mrb[0].mxu0
    %v5594 = vadd.f32 %v5526, %v5593
    %v5595 = vpop.f32.mrb[0].mxu0
    %5596 = vdwg.mxu0
    %5597 = vst [vmem:[%s7 + $0x28] sm:$0x3] %v5594
    // Predicated region
    $region54: #{forward.1} parent=1 // pred_check
      _
    $region55: #{forward.1} parent=1 // pred_check_branch
      %5599 = sbr.rel (0) target = $region57
    $region56: #{forward.1} parent=1 // pred_region
      _
    $region57: #{forward.1} parent=1 // pred_fallthru
      _
    // Predicated region
    $region58: #{forward.1} parent=1 // pred_check
      _
    $region59: #{forward.1} parent=1 // pred_check_branch
      %5601 = sbr.rel (0) target = $region61
    $region60: #{forward.1} parent=1 // pred_region
      _
    $region61: #{forward.1} parent=1 // pred_fallthru
      _
    %5602 = vsyncpa [#allocation3], 1
    %5603 = vsyncpa [#allocation5], 1
    %5604 = vsyncpa [#allocation8], 1
    %5605 = vsyncpa [#allocation11], 1

</llo_original>
